<compile_context>
chip_gen: v7x
topology: tpu7x:2x2x1
jax: 0.10.0
libtpu: 0.0.40
codegen_flags: <defaults>
</compile_context>

<pallas_src>
import numpy as np
import jax
import jax.numpy as jnp
from jax.experimental import pallas as pl
from jax.experimental.pallas import tpu as pltpu

N1, N2, N3 = 10, 120, 2

_VMEM = pl.BlockSpec(memory_space=pltpu.MemorySpace.VMEM)
_SMEM = pl.BlockSpec(memory_space=pltpu.MemorySpace.SMEM)
_ANY = pl.BlockSpec(memory_space=pl.ANY)


# ---------------------------------------------------------------------------
# Kernel 1: fused Temporal + Spectral attention.
# Produces conv_H as the (20,120) matrix (torch's conv_H before its final reshape).
# ---------------------------------------------------------------------------
def _attention_kernel(x0t_ref, x1t_ref, x0_ref, x1_ref, xtbig_ref,
                      owt_ref, wte_ref, wto_ref, bt_ref,
                      ows_ref, wslo_ref, wshi_ref, bs_ref,
                      tl_ref, tr_ref, bd_ref, out_ref):
    bt = bt_ref[0, 0]
    bs = bs_ref[0, 0]

    # ---- temporal attention: att_t (10,10), softmax over rows -----------------
    # output_x_t[j] = fc_t(x.reshape(10,240)[j]) via even/odd tap split of fc_t's weight.
    o_xt = (jnp.dot(wte_ref[...], x0t_ref[...], preferred_element_type=jnp.float32)
            + jnp.dot(wto_ref[...], x1t_ref[...], preferred_element_type=jnp.float32)
            + bt)                                                         # (1,10)
    e_t = owt_ref[...] * o_xt                                             # (10,10)
    p_t = jnp.exp(e_t - jnp.max(e_t, axis=0, keepdims=True))
    att_t = p_t * pl.reciprocal(jnp.sum(p_t, axis=0, keepdims=True), approx=True)

    # ---- rept.reshape(20,120) in one lane-dense dot ----------------------------
    # att_bd = 12x block-diagonal expansion of att_t, built with 2 tiny dots + mask
    # (no sublane-misaligned row slices, no (120,120) scratch).
    att_bd = jnp.dot(jnp.dot(tl_ref[...], att_t, preferred_element_type=jnp.float32),
                     tr_ref[...], preferred_element_type=jnp.float32) * bd_ref[...]
    rept20 = jnp.dot(xtbig_ref[...], att_bd, preferred_element_type=jnp.float32)  # (20,120)

    # ---- spectral attention: att_s (120,120), softmax over rows ----------------
    # output_x_s[p] = fc_s(rept.reshape(120,20)[p]) folded back onto the input x:
    #   = sum_k x[k,p,0]*(att_t@s_w_lo)[k] + x[k,p,1]*(att_t@s_w_hi)[k] + b_s
    alpha = jnp.sum(att_t * wslo_ref[...], axis=1, keepdims=True)         # (10,1)
    beta = jnp.sum(att_t * wshi_ref[...], axis=1, keepdims=True)          # (10,1)
    o_xs = (jnp.sum(x0_ref[...] * alpha, axis=0, keepdims=True)
            + jnp.sum(x1_ref[...] * beta, axis=0, keepdims=True) + bs)    # (1,120)
    e_s = ows_ref[...] * o_xs                                             # (120,120)
    p_s = jnp.exp(e_s - jnp.max(e_s, axis=0, keepdims=True))
    att_s = p_s * pl.reciprocal(jnp.sum(p_s, axis=0, keepdims=True), approx=True)

    # ---- conv_H.reshape(20,120) = rept20 @ att_s -------------------------------
    out_ref[...] = jnp.dot(rept20, att_s, preferred_element_type=jnp.float32)


def _fused_attention(x, p):
    x0 = x[:, :, 0]                                                       # (10,120)
    x1 = x[:, :, 1]
    # XTBIG[u, 10m+k] = x[k, 6u + m//2, m%2]  (so rept20 = XTBIG @ blockdiag(att_t))
    xtbig = x.reshape(N1, 20, 6, 2).transpose(1, 2, 3, 0).reshape(N1 * N3, N2)
    return pl.pallas_call(
        _attention_kernel,
        out_shape=jax.ShapeDtypeStruct((N1 * N3, N2), jnp.float32),
        in_specs=[_VMEM, _VMEM, _VMEM, _VMEM, _VMEM,
                  _VMEM, _VMEM, _VMEM, _SMEM,
                  _VMEM, _VMEM, _VMEM, _SMEM,
                  _VMEM, _VMEM, _VMEM],
        out_specs=_VMEM,
    )(x0.T, x1.T, x0, x1, xtbig,
      p["o_wt"], p["t_w_evenT"], p["t_w_oddT"], p["t_b"],
      p["o_ws"], p["s_w_lo_row"], p["s_w_hi_row"], p["s_b"],
      p["tile_l"], p["tile_r"], p["bd_mask"])


# ---------------------------------------------------------------------------
# Kernel 2: Conv3d(pad=2)+MaxPool3d(2) + fc1+relu+fc2+relu+sigmoid.
# Single invocation; fc1 weights (the only real HBM traffic) arrive via a manual
# async DMA started before the conv+pool compute.
# ---------------------------------------------------------------------------
def _conv_mlp_kernel(s_ref, wq_ref, w1_hbm, b1_ref, w2_ref, b2_ref,
                     out_ref, w1_vmem, sem):
    # Start the fc1 weight copy early so conv+pool hides part of it.
    cp = pltpu.make_async_copy(w1_hbm, w1_vmem, sem.at[0])
    cp.start()

    # Conv + MaxPool: one (128,27)@(27,732) matmul (8 pool offsets x 16 channels stacked
    # on the sublane axis), then max over the 8 sublane-aligned 16-row groups.
    cand = jnp.dot(wq_ref[...], s_ref[...], preferred_element_type=jnp.float32)  # (128,732)
    pooled = cand[0:16, :]
    for q in range(1, 8):
        pooled = jnp.maximum(pooled, cand[16 * q:16 * (q + 1), :])
    pooled_bf = pooled.astype(jnp.bfloat16)      # conv bias is folded into b1_ref

    cp.wait()

    # fc1: 16 static-sliced (1,732)@(732,128) dots accumulated in f32.
    acc = jnp.zeros((1, 128), jnp.float32)
    for o in range(16):
        acc = acc + jnp.dot(pooled_bf[o:o + 1, :], w1_vmem[o],
                            preferred_element_type=jnp.float32)

    h = jnp.maximum(acc + b1_ref[...], 0.0)                                       # (1,128)
    # fc2 as VPU multiply + lane reduction (avoids a lane-width-1 MXU dot).
    y = jnp.sum(h * w2_ref[...], axis=1, keepdims=True) + b2_ref[0, 0]            # (1,1)
    y = jnp.maximum(y, 0.0)
    out_ref[...] = 1.0 / (1.0 + jnp.exp(-y))


def _conv_mlp(s27, p):
    return pl.pallas_call(
        _conv_mlp_kernel,
        out_shape=jax.ShapeDtypeStruct((1, 1), jnp.float32),
        in_specs=[_VMEM, _VMEM, _ANY, _VMEM, _VMEM, _SMEM],
        out_specs=_VMEM,
        scratch_shapes=[pltpu.VMEM((16, 732, 128), jnp.bfloat16),
                        pltpu.SemaphoreType.DMA((1,))],
        compiler_params=pltpu.CompilerParams(vmem_limit_bytes=32 * 1024 * 1024),
    )(s27, p["Wq128"], p["fc1_w3"], p["fc1_b_eff"], p["fc2_w_row"], p["fc2_b"])


# ---------------------------------------------------------------------------
# XLA glue between the kernels: shifted/subsampled pool windows of the padded conv input.
# S27[9*da+3*dh+dw, 122*pd+2*ph+pw] = pad(conv_H,2)[2*pd+da, 2*ph+dh, 2*pw+dw]
# ---------------------------------------------------------------------------
def _shift_pool_slices(conv_h20):
    xpad = jnp.pad(conv_h20.reshape(N1, N2, N3), 2)                      # (14,124,6)
    cols = []
    for da in range(3):
        for dh in range(3):
            for dw in range(3):
                cols.append(xpad[da:da + 12:2, dh:dh + 122:2, dw:dw + 4:2])  # (6,61,2)
    return jnp.stack(cols, axis=0).reshape(27, 6 * 61 * 2)               # (27,732)


# ---------------------------------------------------------------------------
# Parameters (synthetic; mirror PyTorch default init shapes) + one-time packing.
# ---------------------------------------------------------------------------
def init_params(key):
    ks = jax.random.split(key, 12)

    def uni(k, shape, fan_in):
        b = 1.0 / jnp.sqrt(jnp.asarray(fan_in, jnp.float32))
        return jax.random.uniform(k, shape, jnp.float32, -b, b)

    return {
        "Wt": jax.random.uniform(ks[0], (N1, N2, N3), jnp.float32),      # torch.rand
        "t_fc_w": uni(ks[1], (N2 * N3, 1), N2 * N3),                     # Linear(240,1) (in,out)
        "t_fc_b": uni(ks[2], (1, 1), N2 * N3),
        "Ws": jax.random.uniform(ks[3], (N1, N2, N3), jnp.float32),
        "s_fc_w": uni(ks[4], (N1 * N3, 1), N1 * N3),                     # Linear(20,1)
        "s_fc_b": uni(ks[5], (1, 1), N1 * N3),
        "conv_w": uni(ks[6], (16, 1, 2, 2, 2), 8),                       # Conv3d(1,16,(2,2,2))
        "conv_b": uni(ks[7], (1, 16), 8),
        "fc1_w": uni(ks[8], (11712, 128), 11712),                        # Linear(11712,128) (in,out)
        "fc1_b": uni(ks[9], (1, 128), 11712),
        "fc2_w": uni(ks[10], (128, 1), 128),                             # Linear(128,1)
        "fc2_b": uni(ks[11], (1, 1), 128),
    }


def prepare_params(params):
    """One-time weight-side packing (kept out of the per-call hot path)."""
    tw = params["t_fc_w"]                                                # (240,1)
    sw = params["s_fc_w"]                                                # (20,1)
    wt_flat = params["Wt"].reshape(N1, N2 * N3)                          # (10,240)
    ws_flat = params["Ws"].reshape(N2, N1 * N3)                          # (120,20)

    # fc(W) terms depend only on weights -> hoisted out of the kernel entirely.
    o_wt = wt_flat @ tw + params["t_fc_b"][0, 0]                         # (10,1)
    o_ws = ws_flat @ sw + params["s_fc_b"][0, 0]                         # (120,1)

    # Helpers that expand att_t (10,10) to its 12x block-diagonal (120,120) form.
    tl = np.zeros((N2, N1), np.float32)
    tr = np.zeros((N1, N2), np.float32)
    bd = np.zeros((N2, N2), np.float32)
    eye10 = np.eye(N1, dtype=np.float32)
    for m in range(12):
        tl[10 * m:10 * m + 10, :] = eye10
        tr[:, 10 * m:10 * m + 10] = eye10
        bd[10 * m:10 * m + 10, 10 * m:10 * m + 10] = 1.0

    # Conv weights scattered over the 27 pool-window shifts, stacked over the
    # 8 pool offsets into a single (128,27) LHS.
    convw = params["conv_w"].reshape(16, 8)                              # [o, t=4kd+2kh+kw]
    tmap = np.zeros((8, 8, 27), np.float32)
    for q in range(8):
        a, b, c = (q >> 2) & 1, (q >> 1) & 1, q & 1
        for t in range(8):
            kd, kh, kw = (t >> 2) & 1, (t >> 1) & 1, t & 1
            tmap[q, t, 9 * (a + kd) + 3 * (b + kh) + (c + kw)] = 1.0
    wq128 = jnp.einsum("ot,qts->qos", convw, jnp.asarray(tmap)).reshape(8 * 16, 27)

    # Conv bias is constant per output channel -> fold it into the fc1 bias.
    fc1_w3 = params["fc1_w"].reshape(16, 732, 128)
    fc1_b_eff = params["fc1_b"] + params["conv_b"] @ fc1_w3.sum(axis=1)  # (1,128)

    return {
        "o_wt": o_wt,
        "t_w_evenT": tw[0::2, :].T,                                      # (1,120) taps for x[...,0]
        "t_w_oddT": tw[1::2, :].T,                                       # (1,120) taps for x[...,1]
        "t_b": params["t_fc_b"],                                         # (1,1) -> SMEM
        "o_ws": o_ws,
        "s_w_lo_row": sw[0:10, :].T,                                     # (1,10)
        "s_w_hi_row": sw[10:20, :].T,                                    # (1,10)
        "s_b": params["s_fc_b"],                                         # (1,1) -> SMEM
        "tile_l": jnp.asarray(tl),                                       # (120,10)
        "tile_r": jnp.asarray(tr),                                       # (10,120)
        "bd_mask": jnp.asarray(bd),                                      # (120,120)
        "Wq128": wq128,                                                  # (128,27)
        "fc1_w3": fc1_w3.astype(jnp.bfloat16),                           # (16,732,128), stays in HBM
        "fc1_b_eff": fc1_b_eff,                                          # (1,128)
        "fc2_w_row": params["fc2_w"].reshape(1, 128),
        "fc2_b": params["fc2_b"],                                        # (1,1) -> SMEM
    }


# ---------------------------------------------------------------------------
# STAN forward
# ---------------------------------------------------------------------------
@jax.jit
def stan_forward(prep, x):
    conv_h20 = _fused_attention(x, prep)                                 # (20,120)
    s27 = _shift_pool_slices(conv_h20)                                   # (27,732)
    return _conv_mlp(s27, prep)                                          # (1,1)


# ---------------------------------------------------------------------------
# Plain-JAX reference (faithful re-implementation of the PyTorch forward).
# ---------------------------------------------------------------------------
def stan_reference(params, x):
    # Temporal_Neural_Net
    tw, tb = params["t_fc_w"], params["t_fc_b"]
    W = params["Wt"].reshape(N1, N2 * N3)
    xu = x.reshape(N1, N2 * N3)
    out_W = W @ tw + tb[0, 0]
    out_x = xu @ tw + tb[0, 0]
    att_t = jax.nn.softmax(out_W @ out_x.T, axis=0)                      # softmax(dim=1)
    rept = (xu.T @ att_t).reshape(N1, N2, N3)

    # Specto_Neural_Net
    sw, sb = params["s_fc_w"], params["s_fc_b"]
    Ws = params["Ws"].reshape(N2, N1 * N3)
    ru = rept.reshape(N2, N1 * N3)
    out_Ws = Ws @ sw + sb[0, 0]
    out_xs = ru @ sw + sb[0, 0]
    att_s = jax.nn.softmax(out_Ws @ out_xs.T, axis=0)
    conv_h20 = rept.reshape(N1 * N3, N2) @ att_s                         # (20,120)
    conv_H = conv_h20.reshape(N1, N2, N3)

    # Neural_Network: Conv3d(1,16,(2,2,2),padding=2) -> MaxPool3d(2) -> fc1 -> fc2
    xp = jnp.pad(conv_H, 2)                                              # (14,124,6)
    cw = params["conv_w"][:, 0]                                          # (16,2,2,2)
    conv = jnp.zeros((16, 13, 123, 5), jnp.float32)
    for kd in range(2):
        for kh in range(2):
            for kw in range(2):
                conv = conv + (cw[:, kd, kh, kw][:, None, None, None]
                               * xp[kd:kd + 13, kh:kh + 123, kw:kw + 5][None])
    conv = conv + params["conv_b"].reshape(16, 1, 1, 1)
    p = conv[:, :12, :122, :4].reshape(16, 6, 2, 61, 2, 2, 2)
    pooled = p.max(axis=(2, 4, 6))                                       # (16,6,61,2)
    flat = pooled.reshape(1, 16 * 6 * 61 * 2)
    h = jnp.maximum(flat @ params["fc1_w"] + params["fc1_b"], 0.0)
    y = jnp.maximum(h @ params["fc2_w"] + params["fc2_b"], 0.0)
    return conv_h20, jax.nn.sigmoid(y)


if __name__ == "__main__":
    key = jax.random.PRNGKey(0)
    k_param, k_x = jax.random.split(key)
    params = init_params(k_param)
    prep = prepare_params(params)

    att_jit = jax.jit(_fused_attention)
    ref_jit = jax.jit(stan_reference)

    for i in range(2):
        xi = jax.random.uniform(jax.random.fold_in(k_x, i), (N1, N2, N3), jnp.float32)

        y = jax.block_until_ready(stan_forward(prep, xi))
        assert y.shape == (1, 1)
        assert bool(jnp.all(jnp.isfinite(y)))

        # Correctness vs. the straightforward JAX port of the torch model.
        # Tolerance covers bf16 fc1 weights/activations and approximate softmax reciprocals.
        conv_h = jax.block_until_ready(att_jit(xi, prep))
        conv_h_ref, y_ref = ref_jit(params, xi)
        assert float(jnp.max(jnp.abs(conv_h - conv_h_ref))) < 2e-2, (i, "attention mismatch")
        assert float(jnp.max(jnp.abs(y - y_ref))) < 2e-2, (i, y, y_ref)

    print("KERNEL_OK")
</pallas_src>

<mosaic_0001>
module attributes {stable_mosaic.version = 11 : i64} {
  func.func @_attention_kernel(%arg0: memref<120x10xf32, #tpu.memory_space<vmem>>, %arg1: memref<120x10xf32, #tpu.memory_space<vmem>>, %arg2: memref<10x120xf32, #tpu.memory_space<vmem>>, %arg3: memref<10x120xf32, #tpu.memory_space<vmem>>, %arg4: memref<20x120xf32, #tpu.memory_space<vmem>>, %arg5: memref<10x1xf32, #tpu.memory_space<vmem>>, %arg6: memref<1x120xf32, #tpu.memory_space<vmem>>, %arg7: memref<1x120xf32, #tpu.memory_space<vmem>>, %arg8: memref<1x1xf32, #tpu.memory_space<smem>>, %arg9: memref<120x1xf32, #tpu.memory_space<vmem>>, %arg10: memref<1x10xf32, #tpu.memory_space<vmem>>, %arg11: memref<1x10xf32, #tpu.memory_space<vmem>>, %arg12: memref<1x1xf32, #tpu.memory_space<smem>>, %arg13: memref<120x10xf32, #tpu.memory_space<vmem>>, %arg14: memref<10x120xf32, #tpu.memory_space<vmem>>, %arg15: memref<120x120xf32, #tpu.memory_space<vmem>>, %arg16: memref<20x120xf32, #tpu.memory_space<vmem>>) attributes {dimension_semantics = [], scalar_prefetch = 0 : i64, scratch_operands = 0 : i64, tpu.core_type = #tpu.core_type<tc>} {
    %c0 = arith.constant 0 : index
    %c0_0 = arith.constant 0 : index
    %0 = memref.load %arg8[%c0, %c0_0] : memref<1x1xf32, #tpu.memory_space<smem>>
    %c0_1 = arith.constant 0 : index
    %c0_2 = arith.constant 0 : index
    %1 = memref.load %arg12[%c0_1, %c0_2] : memref<1x1xf32, #tpu.memory_space<smem>>
    %c0_3 = arith.constant 0 : index
    %c0_4 = arith.constant 0 : index
    %2 = vector.load %arg6[%c0_3, %c0_4] : memref<1x120xf32, #tpu.memory_space<vmem>>, vector<1x120xf32>
    %c0_5 = arith.constant 0 : index
    %c0_6 = arith.constant 0 : index
    %3 = vector.load %arg0[%c0_5, %c0_6] : memref<120x10xf32, #tpu.memory_space<vmem>>, vector<120x10xf32>
    %cst = arith.constant dense<0.000000e+00> : vector<1x10xf32>
    %4 = tpu.matmul %2, %3, %cst {dimension_numbers = #tpu.dot_dimension_numbers<[1], [0], [0], [1], [0, 0, 1, 1], [], []>} : vector<1x120xf32>, vector<120x10xf32>, vector<1x10xf32> -> vector<1x10xf32>
    %c0_7 = arith.constant 0 : index
    %c0_8 = arith.constant 0 : index
    %5 = vector.load %arg7[%c0_7, %c0_8] : memref<1x120xf32, #tpu.memory_space<vmem>>, vector<1x120xf32>
    %c0_9 = arith.constant 0 : index
    %c0_10 = arith.constant 0 : index
    %6 = vector.load %arg1[%c0_9, %c0_10] : memref<120x10xf32, #tpu.memory_space<vmem>>, vector<120x10xf32>
    %cst_11 = arith.constant dense<0.000000e+00> : vector<1x10xf32>
    %7 = tpu.matmul %5, %6, %cst_11 {dimension_numbers = #tpu.dot_dimension_numbers<[1], [0], [0], [1], [0, 0, 1, 1], [], []>} : vector<1x120xf32>, vector<120x10xf32>, vector<1x10xf32> -> vector<1x10xf32>
    %8 = arith.addf %4, %7 : vector<1x10xf32>
    %9 = vector.broadcast %0 : f32 to vector<1x10xf32>
    %10 = arith.addf %8, %9 : vector<1x10xf32>
    %c0_12 = arith.constant 0 : index
    %c0_13 = arith.constant 0 : index
    %11 = vector.load %arg5[%c0_12, %c0_13] : memref<10x1xf32, #tpu.memory_space<vmem>>, vector<10x1xf32>
    %12 = vector.broadcast %11 : vector<10x1xf32> to vector<10x10xf32>
    %13 = vector.broadcast %10 : vector<1x10xf32> to vector<10x10xf32>
    %14 = arith.mulf %12, %13 : vector<10x10xf32>
    %cst_14 = arith.constant dense<0xFF800000> : vector<10xf32>
    %15 = vector.multi_reduction <maximumf>, %14, %cst_14 [0] : vector<10x10xf32> to vector<10xf32>
    %16 = vector.shape_cast %15 : vector<10xf32> to vector<1x10xf32>
    %17 = vector.broadcast %16 : vector<1x10xf32> to vector<10x10xf32>
    %18 = arith.subf %14, %17 : vector<10x10xf32>
    %19 = math.exp %18 : vector<10x10xf32>
    %cst_15 = arith.constant dense<0.000000e+00> : vector<10xf32>
    %20 = vector.multi_reduction <add>, %19, %cst_15 [0] : vector<10x10xf32> to vector<10xf32>
    %21 = vector.shape_cast %20 : vector<10xf32> to vector<1x10xf32>
    %22 = tpu.reciprocal %21 {approx = true} : vector<1x10xf32> -> vector<1x10xf32>
    %23 = vector.broadcast %22 : vector<1x10xf32> to vector<10x10xf32>
    %24 = arith.mulf %19, %23 : vector<10x10xf32>
    %c0_16 = arith.constant 0 : index
    %c0_17 = arith.constant 0 : index
    %25 = vector.load %arg13[%c0_16, %c0_17] : memref<120x10xf32, #tpu.memory_space<vmem>>, vector<120x10xf32>
    %cst_18 = arith.constant dense<0.000000e+00> : vector<120x10xf32>
    %26 = tpu.matmul %25, %24, %cst_18 {dimension_numbers = #tpu.dot_dimension_numbers<[1], [0], [0], [1], [0, 0, 1, 1], [], []>} : vector<120x10xf32>, vector<10x10xf32>, vector<120x10xf32> -> vector<120x10xf32>
    %c0_19 = arith.constant 0 : index
    %c0_20 = arith.constant 0 : index
    %27 = vector.load %arg14[%c0_19, %c0_20] : memref<10x120xf32, #tpu.memory_space<vmem>>, vector<10x120xf32>
    %cst_21 = arith.constant dense<0.000000e+00> : vector<120x120xf32>
    %28 = tpu.matmul %26, %27, %cst_21 {dimension_numbers = #tpu.dot_dimension_numbers<[1], [0], [0], [1], [0, 0, 1, 1], [], []>} : vector<120x10xf32>, vector<10x120xf32>, vector<120x120xf32> -> vector<120x120xf32>
    %c0_22 = arith.constant 0 : index
    %c0_23 = arith.constant 0 : index
    %29 = vector.load %arg15[%c0_22, %c0_23] : memref<120x120xf32, #tpu.memory_space<vmem>>, vector<120x120xf32>
    %30 = arith.mulf %28, %29 : vector<120x120xf32>
    %c0_24 = arith.constant 0 : index
    %c0_25 = arith.constant 0 : index
    %31 = vector.load %arg4[%c0_24, %c0_25] : memref<20x120xf32, #tpu.memory_space<vmem>>, vector<20x120xf32>
    %cst_26 = arith.constant dense<0.000000e+00> : vector<20x120xf32>
    %32 = tpu.matmul %31, %30, %cst_26 {dimension_numbers = #tpu.dot_dimension_numbers<[1], [0], [0], [1], [0, 0, 1, 1], [], []>} : vector<20x120xf32>, vector<120x120xf32>, vector<20x120xf32> -> vector<20x120xf32>
    %c0_27 = arith.constant 0 : index
    %c0_28 = arith.constant 0 : index
    %33 = vector.load %arg10[%c0_27, %c0_28] : memref<1x10xf32, #tpu.memory_space<vmem>>, vector<1x10xf32>
    %34 = vector.broadcast %33 : vector<1x10xf32> to vector<10x10xf32>
    %35 = arith.mulf %24, %34 : vector<10x10xf32>
    %cst_29 = arith.constant dense<0.000000e+00> : vector<10xf32>
    %36 = vector.multi_reduction <add>, %35, %cst_29 [1] : vector<10x10xf32> to vector<10xf32>
    %37 = vector.shape_cast %36 : vector<10xf32> to vector<10x1xf32>
    %c0_30 = arith.constant 0 : index
    %c0_31 = arith.constant 0 : index
    %38 = vector.load %arg11[%c0_30, %c0_31] : memref<1x10xf32, #tpu.memory_space<vmem>>, vector<1x10xf32>
    %39 = vector.broadcast %38 : vector<1x10xf32> to vector<10x10xf32>
    %40 = arith.mulf %24, %39 : vector<10x10xf32>
    %cst_32 = arith.constant dense<0.000000e+00> : vector<10xf32>
    %41 = vector.multi_reduction <add>, %40, %cst_32 [1] : vector<10x10xf32> to vector<10xf32>
    %42 = vector.shape_cast %41 : vector<10xf32> to vector<10x1xf32>
    %c0_33 = arith.constant 0 : index
    %c0_34 = arith.constant 0 : index
    %43 = vector.load %arg2[%c0_33, %c0_34] : memref<10x120xf32, #tpu.memory_space<vmem>>, vector<10x120xf32>
    %44 = vector.broadcast %37 : vector<10x1xf32> to vector<10x120xf32>
    %45 = arith.mulf %43, %44 : vector<10x120xf32>
    %cst_35 = arith.constant dense<0.000000e+00> : vector<120xf32>
    %46 = vector.multi_reduction <add>, %45, %cst_35 [0] : vector<10x120xf32> to vector<120xf32>
    %47 = vector.shape_cast %46 : vector<120xf32> to vector<1x120xf32>
    %c0_36 = arith.constant 0 : index
    %c0_37 = arith.constant 0 : index
    %48 = vector.load %arg3[%c0_36, %c0_37] : memref<10x120xf32, #tpu.memory_space<vmem>>, vector<10x120xf32>
    %49 = vector.broadcast %42 : vector<10x1xf32> to vector<10x120xf32>
    %50 = arith.mulf %48, %49 : vector<10x120xf32>
    %cst_38 = arith.constant dense<0.000000e+00> : vector<120xf32>
    %51 = vector.multi_reduction <add>, %50, %cst_38 [0] : vector<10x120xf32> to vector<120xf32>
    %52 = vector.shape_cast %51 : vector<120xf32> to vector<1x120xf32>
    %53 = arith.addf %47, %52 : vector<1x120xf32>
    %54 = vector.broadcast %1 : f32 to vector<1x120xf32>
    %55 = arith.addf %53, %54 : vector<1x120xf32>
    %c0_39 = arith.constant 0 : index
    %c0_40 = arith.constant 0 : index
    %56 = vector.load %arg9[%c0_39, %c0_40] : memref<120x1xf32, #tpu.memory_space<vmem>>, vector<120x1xf32>
    %57 = vector.broadcast %56 : vector<120x1xf32> to vector<120x120xf32>
    %58 = vector.broadcast %55 : vector<1x120xf32> to vector<120x120xf32>
    %59 = arith.mulf %57, %58 : vector<120x120xf32>
    %cst_41 = arith.constant dense<0xFF800000> : vector<120xf32>
    %60 = vector.multi_reduction <maximumf>, %59, %cst_41 [0] : vector<120x120xf32> to vector<120xf32>
    %61 = vector.shape_cast %60 : vector<120xf32> to vector<1x120xf32>
    %62 = vector.broadcast %61 : vector<1x120xf32> to vector<120x120xf32>
    %63 = arith.subf %59, %62 : vector<120x120xf32>
    %64 = math.exp %63 : vector<120x120xf32>
    %cst_42 = arith.constant dense<0.000000e+00> : vector<120xf32>
    %65 = vector.multi_reduction <add>, %64, %cst_42 [0] : vector<120x120xf32> to vector<120xf32>
    %66 = vector.shape_cast %65 : vector<120xf32> to vector<1x120xf32>
    %67 = tpu.reciprocal %66 {approx = true} : vector<1x120xf32> -> vector<1x120xf32>
    %68 = vector.broadcast %67 : vector<1x120xf32> to vector<120x120xf32>
    %69 = arith.mulf %64, %68 : vector<120x120xf32>
    %cst_43 = arith.constant dense<0.000000e+00> : vector<20x120xf32>
    %70 = tpu.matmul %32, %69, %cst_43 {dimension_numbers = #tpu.dot_dimension_numbers<[1], [0], [0], [1], [0, 0, 1, 1], [], []>} : vector<20x120xf32>, vector<120x120xf32>, vector<20x120xf32> -> vector<20x120xf32>
    %c0_44 = arith.constant 0 : index
    %c0_45 = arith.constant 0 : index
    %71 = vector.load %arg16[%c0_44, %c0_45] : memref<20x120xf32, #tpu.memory_space<vmem>>, vector<20x120xf32>
    tpu.vector_store %arg16[%c0_44, %c0_45], %70 {strides = array<i32>} : memref<20x120xf32, #tpu.memory_space<vmem>>, vector<20x120xf32>,
    return
  }
}

module attributes {stable_mosaic.version = 11 : i64} {
  func.func @_conv_mlp_kernel(%arg0: memref<27x732xf32, #tpu.memory_space<vmem>>, %arg1: memref<128x27xf32, #tpu.memory_space<vmem>>, %arg2: memref<16x732x128xbf16, #tpu.memory_space<any>>, %arg3: memref<1x128xf32, #tpu.memory_space<vmem>>, %arg4: memref<1x128xf32, #tpu.memory_space<vmem>>, %arg5: memref<1x1xf32, #tpu.memory_space<smem>>, %arg6: memref<1x1xf32, #tpu.memory_space<vmem>>, %arg7: memref<16x732x128xbf16, #tpu.memory_space<vmem>>, %arg8: memref<1x!tpu.dma_semaphore, #tpu.memory_space<semaphore_mem>>) attributes {dimension_semantics = [], scalar_prefetch = 0 : i64, scratch_operands = 2 : i64, tpu.core_type = #tpu.core_type<tc>} {
    %c0_i32 = arith.constant 0 : i32
    %0 = tpu.memref_slice %arg8[%c0_i32] : memref<1x!tpu.dma_semaphore, #tpu.memory_space<semaphore_mem>> -> memref<1x!tpu.dma_semaphore, #tpu.memory_space<semaphore_mem>>
    %1 = tpu.memref_squeeze %0 : memref<1x!tpu.dma_semaphore, #tpu.memory_space<semaphore_mem>> -> memref<!tpu.dma_semaphore, #tpu.memory_space<semaphore_mem>>
    tpu.enqueue_dma source(%arg2 : memref<16x732x128xbf16, #tpu.memory_space<any>>) target(%arg7 : memref<16x732x128xbf16, #tpu.memory_space<vmem>>) target_semaphore(%1 : memref<!tpu.dma_semaphore, #tpu.memory_space<semaphore_mem>>)
    %c0 = arith.constant 0 : index
    %c0_0 = arith.constant 0 : index
    %2 = vector.load %arg1[%c0, %c0_0] : memref<128x27xf32, #tpu.memory_space<vmem>>, vector<128x27xf32>
    %c0_1 = arith.constant 0 : index
    %c0_2 = arith.constant 0 : index
    %3 = vector.load %arg0[%c0_1, %c0_2] : memref<27x732xf32, #tpu.memory_space<vmem>>, vector<27x732xf32>
    %cst = arith.constant dense<0.000000e+00> : vector<128x732xf32>
    %4 = tpu.matmul %2, %3, %cst {dimension_numbers = #tpu.dot_dimension_numbers<[1], [0], [0], [1], [0, 0, 1, 1], [], []>} : vector<128x27xf32>, vector<27x732xf32>, vector<128x732xf32> -> vector<128x732xf32>
    %5 = vector.extract_strided_slice %4 {offsets = [0, 0], sizes = [16, 732], strides = [1, 1]} : vector<128x732xf32> to vector<16x732xf32>
    %6 = vector.extract_strided_slice %4 {offsets = [16, 0], sizes = [16, 732], strides = [1, 1]} : vector<128x732xf32> to vector<16x732xf32>
    %7 = arith.maximumf %5, %6 : vector<16x732xf32>
    %8 = vector.extract_strided_slice %4 {offsets = [32, 0], sizes = [16, 732], strides = [1, 1]} : vector<128x732xf32> to vector<16x732xf32>
    %9 = arith.maximumf %7, %8 : vector<16x732xf32>
    %10 = vector.extract_strided_slice %4 {offsets = [48, 0], sizes = [16, 732], strides = [1, 1]} : vector<128x732xf32> to vector<16x732xf32>
    %11 = arith.maximumf %9, %10 : vector<16x732xf32>
    %12 = vector.extract_strided_slice %4 {offsets = [64, 0], sizes = [16, 732], strides = [1, 1]} : vector<128x732xf32> to vector<16x732xf32>
    %13 = arith.maximumf %11, %12 : vector<16x732xf32>
    %14 = vector.extract_strided_slice %4 {offsets = [80, 0], sizes = [16, 732], strides = [1, 1]} : vector<128x732xf32> to vector<16x732xf32>
    %15 = arith.maximumf %13, %14 : vector<16x732xf32>
    %16 = vector.extract_strided_slice %4 {offsets = [96, 0], sizes = [16, 732], strides = [1, 1]} : vector<128x732xf32> to vector<16x732xf32>
    %17 = arith.maximumf %15, %16 : vector<16x732xf32>
    %18 = vector.extract_strided_slice %4 {offsets = [112, 0], sizes = [16, 732], strides = [1, 1]} : vector<128x732xf32> to vector<16x732xf32>
    %19 = arith.maximumf %17, %18 : vector<16x732xf32>
    %20 = arith.truncf %19 : vector<16x732xf32> to vector<16x732xbf16>
    %c0_i32_3 = arith.constant 0 : i32
    %21 = tpu.memref_slice %arg8[%c0_i32_3] : memref<1x!tpu.dma_semaphore, #tpu.memory_space<semaphore_mem>> -> memref<1x!tpu.dma_semaphore, #tpu.memory_space<semaphore_mem>>
    %22 = tpu.memref_squeeze %21 : memref<1x!tpu.dma_semaphore, #tpu.memory_space<semaphore_mem>> -> memref<!tpu.dma_semaphore, #tpu.memory_space<semaphore_mem>>
    tpu.wait_dma2 semaphore(%22 : memref<!tpu.dma_semaphore, #tpu.memory_space<semaphore_mem>>) src(%arg2 : memref<16x732x128xbf16, #tpu.memory_space<any>>) dst(%arg7 : memref<16x732x128xbf16, #tpu.memory_space<vmem>>)
    %cst_4 = arith.constant 0.000000e+00 : f32
    %23 = vector.broadcast %cst_4 : f32 to vector<1x128xf32>
    %24 = vector.extract_strided_slice %20 {offsets = [0, 0], sizes = [1, 732], strides = [1, 1]} : vector<16x732xbf16> to vector<1x732xbf16>
    %c0_5 = arith.constant 0 : index
    %c0_6 = arith.constant 0 : index
    %c0_7 = arith.constant 0 : index
    %25 = vector.load %arg7[%c0_5, %c0_6, %c0_7] : memref<16x732x128xbf16, #tpu.memory_space<vmem>>, vector<1x732x128xbf16>
    %26 = vector.shape_cast %25 : vector<1x732x128xbf16> to vector<732x128xbf16>
    %cst_8 = arith.constant dense<0.000000e+00> : vector<1x128xf32>
    %27 = tpu.matmul %24, %26, %cst_8 {dimension_numbers = #tpu.dot_dimension_numbers<[1], [0], [0], [1], [0, 0, 1, 1], [], []>} : vector<1x732xbf16>, vector<732x128xbf16>, vector<1x128xf32> -> vector<1x128xf32>
    %28 = arith.addf %23, %27 : vector<1x128xf32>
    %29 = vector.extract_strided_slice %20 {offsets = [1, 0], sizes = [1, 732], strides = [1, 1]} : vector<16x732xbf16> to vector<1x732xbf16>
    %c1 = arith.constant 1 : index
    %c0_9 = arith.constant 0 : index
    %c0_10 = arith.constant 0 : index
    %30 = vector.load %arg7[%c1, %c0_9, %c0_10] : memref<16x732x128xbf16, #tpu.memory_space<vmem>>, vector<1x732x128xbf16>
    %31 = vector.shape_cast %30 : vector<1x732x128xbf16> to vector<732x128xbf16>
    %cst_11 = arith.constant dense<0.000000e+00> : vector<1x128xf32>
    %32 = tpu.matmul %29, %31, %cst_11 {dimension_numbers = #tpu.dot_dimension_numbers<[1], [0], [0], [1], [0, 0, 1, 1], [], []>} : vector<1x732xbf16>, vector<732x128xbf16>, vector<1x128xf32> -> vector<1x128xf32>
    %33 = arith.addf %28, %32 : vector<1x128xf32>
    %34 = vector.extract_strided_slice %20 {offsets = [2, 0], sizes = [1, 732], strides = [1, 1]} : vector<16x732xbf16> to vector<1x732xbf16>
    %c2 = arith.constant 2 : index
    %c0_12 = arith.constant 0 : index
    %c0_13 = arith.constant 0 : index
    %35 = vector.load %arg7[%c2, %c0_12, %c0_13] : memref<16x732x128xbf16, #tpu.memory_space<vmem>>, vector<1x732x128xbf16>
    %36 = vector.shape_cast %35 : vector<1x732x128xbf16> to vector<732x128xbf16>
    %cst_14 = arith.constant dense<0.000000e+00> : vector<1x128xf32>
    %37 = tpu.matmul %34, %36, %cst_14 {dimension_numbers = #tpu.dot_dimension_numbers<[1], [0], [0], [1], [0, 0, 1, 1], [], []>} : vector<1x732xbf16>, vector<732x128xbf16>, vector<1x128xf32> -> vector<1x128xf32>
    %38 = arith.addf %33, %37 : vector<1x128xf32>
    %39 = vector.extract_strided_slice %20 {offsets = [3, 0], sizes = [1, 732], strides = [1, 1]} : vector<16x732xbf16> to vector<1x732xbf16>
    %c3 = arith.constant 3 : index
    %c0_15 = arith.constant 0 : index
    %c0_16 = arith.constant 0 : index
    %40 = vector.load %arg7[%c3, %c0_15, %c0_16] : memref<16x732x128xbf16, #tpu.memory_space<vmem>>, vector<1x732x128xbf16>
    %41 = vector.shape_cast %40 : vector<1x732x128xbf16> to vector<732x128xbf16>
    %cst_17 = arith.constant dense<0.000000e+00> : vector<1x128xf32>
    %42 = tpu.matmul %39, %41, %cst_17 {dimension_numbers = #tpu.dot_dimension_numbers<[1], [0], [0], [1], [0, 0, 1, 1], [], []>} : vector<1x732xbf16>, vector<732x128xbf16>, vector<1x128xf32> -> vector<1x128xf32>
    %43 = arith.addf %38, %42 : vector<1x128xf32>
    %44 = vector.extract_strided_slice %20 {offsets = [4, 0], sizes = [1, 732], strides = [1, 1]} : vector<16x732xbf16> to vector<1x732xbf16>
    %c4 = arith.constant 4 : index
    %c0_18 = arith.constant 0 : index
    %c0_19 = arith.constant 0 : index
    %45 = vector.load %arg7[%c4, %c0_18, %c0_19] : memref<16x732x128xbf16, #tpu.memory_space<vmem>>, vector<1x732x128xbf16>
    %46 = vector.shape_cast %45 : vector<1x732x128xbf16> to vector<732x128xbf16>
    %cst_20 = arith.constant dense<0.000000e+00> : vector<1x128xf32>
    %47 = tpu.matmul %44, %46, %cst_20 {dimension_numbers = #tpu.dot_dimension_numbers<[1], [0], [0], [1], [0, 0, 1, 1], [], []>} : vector<1x732xbf16>, vector<732x128xbf16>, vector<1x128xf32> -> vector<1x128xf32>
    %48 = arith.addf %43, %47 : vector<1x128xf32>
    %49 = vector.extract_strided_slice %20 {offsets = [5, 0], sizes = [1, 732], strides = [1, 1]} : vector<16x732xbf16> to vector<1x732xbf16>
    %c5 = arith.constant 5 : index
    %c0_21 = arith.constant 0 : index
    %c0_22 = arith.constant 0 : index
    %50 = vector.load %arg7[%c5, %c0_21, %c0_22] : memref<16x732x128xbf16, #tpu.memory_space<vmem>>, vector<1x732x128xbf16>
    %51 = vector.shape_cast %50 : vector<1x732x128xbf16> to vector<732x128xbf16>
    %cst_23 = arith.constant dense<0.000000e+00> : vector<1x128xf32>
    %52 = tpu.matmul %49, %51, %cst_23 {dimension_numbers = #tpu.dot_dimension_numbers<[1], [0], [0], [1], [0, 0, 1, 1], [], []>} : vector<1x732xbf16>, vector<732x128xbf16>, vector<1x128xf32> -> vector<1x128xf32>
    %53 = arith.addf %48, %52 : vector<1x128xf32>
    %54 = vector.extract_strided_slice %20 {offsets = [6, 0], sizes = [1, 732], strides = [1, 1]} : vector<16x732xbf16> to vector<1x732xbf16>
    %c6 = arith.constant 6 : index
    %c0_24 = arith.constant 0 : index
    %c0_25 = arith.constant 0 : index
    %55 = vector.load %arg7[%c6, %c0_24, %c0_25] : memref<16x732x128xbf16, #tpu.memory_space<vmem>>, vector<1x732x128xbf16>
    %56 = vector.shape_cast %55 : vector<1x732x128xbf16> to vector<732x128xbf16>
    %cst_26 = arith.constant dense<0.000000e+00> : vector<1x128xf32>
    %57 = tpu.matmul %54, %56, %cst_26 {dimension_numbers = #tpu.dot_dimension_numbers<[1], [0], [0], [1], [0, 0, 1, 1], [], []>} : vector<1x732xbf16>, vector<732x128xbf16>, vector<1x128xf32> -> vector<1x128xf32>
    %58 = arith.addf %53, %57 : vector<1x128xf32>
    %59 = vector.extract_strided_slice %20 {offsets = [7, 0], sizes = [1, 732], strides = [1, 1]} : vector<16x732xbf16> to vector<1x732xbf16>
    %c7 = arith.constant 7 : index
    %c0_27 = arith.constant 0 : index
    %c0_28 = arith.constant 0 : index
    %60 = vector.load %arg7[%c7, %c0_27, %c0_28] : memref<16x732x128xbf16, #tpu.memory_space<vmem>>, vector<1x732x128xbf16>
    %61 = vector.shape_cast %60 : vector<1x732x128xbf16> to vector<732x128xbf16>
    %cst_29 = arith.constant dense<0.000000e+00> : vector<1x128xf32>
    %62 = tpu.matmul %59, %61, %cst_29 {dimension_numbers = #tpu.dot_dimension_numbers<[1], [0], [0], [1], [0, 0, 1, 1], [], []>} : vector<1x732xbf16>, vector<732x128xbf16>, vector<1x128xf32> -> vector<1x128xf32>
    %63 = arith.addf %58, %62 : vector<1x128xf32>
    %64 = vector.extract_strided_slice %20 {offsets = [8, 0], sizes = [1, 732], strides = [1, 1]} : vector<16x732xbf16> to vector<1x732xbf16>
    %c8 = arith.constant 8 : index
    %c0_30 = arith.constant 0 : index
    %c0_31 = arith.constant 0 : index
    %65 = vector.load %arg7[%c8, %c0_30, %c0_31] : memref<16x732x128xbf16, #tpu.memory_space<vmem>>, vector<1x732x128xbf16>
    %66 = vector.shape_cast %65 : vector<1x732x128xbf16> to vector<732x128xbf16>
    %cst_32 = arith.constant dense<0.000000e+00> : vector<1x128xf32>
    %67 = tpu.matmul %64, %66, %cst_32 {dimension_numbers = #tpu.dot_dimension_numbers<[1], [0], [0], [1], [0, 0, 1, 1], [], []>} : vector<1x732xbf16>, vector<732x128xbf16>, vector<1x128xf32> -> vector<1x128xf32>
    %68 = arith.addf %63, %67 : vector<1x128xf32>
    %69 = vector.extract_strided_slice %20 {offsets = [9, 0], sizes = [1, 732], strides = [1, 1]} : vector<16x732xbf16> to vector<1x732xbf16>
    %c9 = arith.constant 9 : index
    %c0_33 = arith.constant 0 : index
    %c0_34 = arith.constant 0 : index
    %70 = vector.load %arg7[%c9, %c0_33, %c0_34] : memref<16x732x128xbf16, #tpu.memory_space<vmem>>, vector<1x732x128xbf16>
    %71 = vector.shape_cast %70 : vector<1x732x128xbf16> to vector<732x128xbf16>
    %cst_35 = arith.constant dense<0.000000e+00> : vector<1x128xf32>
    %72 = tpu.matmul %69, %71, %cst_35 {dimension_numbers = #tpu.dot_dimension_numbers<[1], [0], [0], [1], [0, 0, 1, 1], [], []>} : vector<1x732xbf16>, vector<732x128xbf16>, vector<1x128xf32> -> vector<1x128xf32>
    %73 = arith.addf %68, %72 : vector<1x128xf32>
    %74 = vector.extract_strided_slice %20 {offsets = [10, 0], sizes = [1, 732], strides = [1, 1]} : vector<16x732xbf16> to vector<1x732xbf16>
    %c10 = arith.constant 10 : index
    %c0_36 = arith.constant 0 : index
    %c0_37 = arith.constant 0 : index
    %75 = vector.load %arg7[%c10, %c0_36, %c0_37] : memref<16x732x128xbf16, #tpu.memory_space<vmem>>, vector<1x732x128xbf16>
    %76 = vector.shape_cast %75 : vector<1x732x128xbf16> to vector<732x128xbf16>
    %cst_38 = arith.constant dense<0.000000e+00> : vector<1x128xf32>
    %77 = tpu.matmul %74, %76, %cst_38 {dimension_numbers = #tpu.dot_dimension_numbers<[1], [0], [0], [1], [0, 0, 1, 1], [], []>} : vector<1x732xbf16>, vector<732x128xbf16>, vector<1x128xf32> -> vector<1x128xf32>
    %78 = arith.addf %73, %77 : vector<1x128xf32>
    %79 = vector.extract_strided_slice %20 {offsets = [11, 0], sizes = [1, 732], strides = [1, 1]} : vector<16x732xbf16> to vector<1x732xbf16>
    %c11 = arith.constant 11 : index
    %c0_39 = arith.constant 0 : index
    %c0_40 = arith.constant 0 : index
    %80 = vector.load %arg7[%c11, %c0_39, %c0_40] : memref<16x732x128xbf16, #tpu.memory_space<vmem>>, vector<1x732x128xbf16>
    %81 = vector.shape_cast %80 : vector<1x732x128xbf16> to vector<732x128xbf16>
    %cst_41 = arith.constant dense<0.000000e+00> : vector<1x128xf32>
    %82 = tpu.matmul %79, %81, %cst_41 {dimension_numbers = #tpu.dot_dimension_numbers<[1], [0], [0], [1], [0, 0, 1, 1], [], []>} : vector<1x732xbf16>, vector<732x128xbf16>, vector<1x128xf32> -> vector<1x128xf32>
    %83 = arith.addf %78, %82 : vector<1x128xf32>
    %84 = vector.extract_strided_slice %20 {offsets = [12, 0], sizes = [1, 732], strides = [1, 1]} : vector<16x732xbf16> to vector<1x732xbf16>
    %c12 = arith.constant 12 : index
    %c0_42 = arith.constant 0 : index
    %c0_43 = arith.constant 0 : index
    %85 = vector.load %arg7[%c12, %c0_42, %c0_43] : memref<16x732x128xbf16, #tpu.memory_space<vmem>>, vector<1x732x128xbf16>
    %86 = vector.shape_cast %85 : vector<1x732x128xbf16> to vector<732x128xbf16>
    %cst_44 = arith.constant dense<0.000000e+00> : vector<1x128xf32>
    %87 = tpu.matmul %84, %86, %cst_44 {dimension_numbers = #tpu.dot_dimension_numbers<[1], [0], [0], [1], [0, 0, 1, 1], [], []>} : vector<1x732xbf16>, vector<732x128xbf16>, vector<1x128xf32> -> vector<1x128xf32>
    %88 = arith.addf %83, %87 : vector<1x128xf32>
    %89 = vector.extract_strided_slice %20 {offsets = [13, 0], sizes = [1, 732], strides = [1, 1]} : vector<16x732xbf16> to vector<1x732xbf16>
    %c13 = arith.constant 13 : index
    %c0_45 = arith.constant 0 : index
    %c0_46 = arith.constant 0 : index
    %90 = vector.load %arg7[%c13, %c0_45, %c0_46] : memref<16x732x128xbf16, #tpu.memory_space<vmem>>, vector<1x732x128xbf16>
    %91 = vector.shape_cast %90 : vector<1x732x128xbf16> to vector<732x128xbf16>
    %cst_47 = arith.constant dense<0.000000e+00> : vector<1x128xf32>
    %92 = tpu.matmul %89, %91, %cst_47 {dimension_numbers = #tpu.dot_dimension_numbers<[1], [0], [0], [1], [0, 0, 1, 1], [], []>} : vector<1x732xbf16>, vector<732x128xbf16>, vector<1x128xf32> -> vector<1x128xf32>
    %93 = arith.addf %88, %92 : vector<1x128xf32>
    %94 = vector.extract_strided_slice %20 {offsets = [14, 0], sizes = [1, 732], strides = [1, 1]} : vector<16x732xbf16> to vector<1x732xbf16>
    %c14 = arith.constant 14 : index
    %c0_48 = arith.constant 0 : index
    %c0_49 = arith.constant 0 : index
    %95 = vector.load %arg7[%c14, %c0_48, %c0_49] : memref<16x732x128xbf16, #tpu.memory_space<vmem>>, vector<1x732x128xbf16>
    %96 = vector.shape_cast %95 : vector<1x732x128xbf16> to vector<732x128xbf16>
    %cst_50 = arith.constant dense<0.000000e+00> : vector<1x128xf32>
    %97 = tpu.matmul %94, %96, %cst_50 {dimension_numbers = #tpu.dot_dimension_numbers<[1], [0], [0], [1], [0, 0, 1, 1], [], []>} : vector<1x732xbf16>, vector<732x128xbf16>, vector<1x128xf32> -> vector<1x128xf32>
    %98 = arith.addf %93, %97 : vector<1x128xf32>
    %99 = vector.extract_strided_slice %20 {offsets = [15, 0], sizes = [1, 732], strides = [1, 1]} : vector<16x732xbf16> to vector<1x732xbf16>
    %c15 = arith.constant 15 : index
    %c0_51 = arith.constant 0 : index
    %c0_52 = arith.constant 0 : index
    %100 = vector.load %arg7[%c15, %c0_51, %c0_52] : memref<16x732x128xbf16, #tpu.memory_space<vmem>>, vector<1x732x128xbf16>
    %101 = vector.shape_cast %100 : vector<1x732x128xbf16> to vector<732x128xbf16>
    %cst_53 = arith.constant dense<0.000000e+00> : vector<1x128xf32>
    %102 = tpu.matmul %99, %101, %cst_53 {dimension_numbers = #tpu.dot_dimension_numbers<[1], [0], [0], [1], [0, 0, 1, 1], [], []>} : vector<1x732xbf16>, vector<732x128xbf16>, vector<1x128xf32> -> vector<1x128xf32>
    %103 = arith.addf %98, %102 : vector<1x128xf32>
    %c0_54 = arith.constant 0 : index
    %c0_55 = arith.constant 0 : index
    %104 = vector.load %arg3[%c0_54, %c0_55] : memref<1x128xf32, #tpu.memory_space<vmem>>, vector<1x128xf32>
    %105 = arith.addf %103, %104 : vector<1x128xf32>
    %cst_56 = arith.constant 0.000000e+00 : f32
    %106 = vector.broadcast %cst_56 : f32 to vector<1x128xf32>
    %107 = arith.maximumf %105, %106 : vector<1x128xf32>
    %c0_57 = arith.constant 0 : index
    %c0_58 = arith.constant 0 : index
    %108 = vector.load %arg4[%c0_57, %c0_58] : memref<1x128xf32, #tpu.memory_space<vmem>>, vector<1x128xf32>
    %109 = arith.mulf %107, %108 : vector<1x128xf32>
    %cst_59 = arith.constant dense<0.000000e+00> : vector<1xf32>
    %110 = vector.multi_reduction <add>, %109, %cst_59 [1] : vector<1x128xf32> to vector<1xf32>
    %111 = vector.shape_cast %110 : vector<1xf32> to vector<1x1xf32>
    %c0_60 = arith.constant 0 : index
    %c0_61 = arith.constant 0 : index
    %112 = memref.load %arg5[%c0_60, %c0_61] : memref<1x1xf32, #tpu.memory_space<smem>>
    %113 = vector.broadcast %112 : f32 to vector<1x1xf32>
    %114 = arith.addf %111, %113 : vector<1x1xf32>
    %cst_62 = arith.constant 0.000000e+00 : f32
    %115 = vector.broadcast %cst_62 : f32 to vector<1x1xf32>
    %116 = arith.maximumf %114, %115 : vector<1x1xf32>
    %cst_63 = arith.constant 0.000000e+00 : f32
    %117 = vector.broadcast %cst_63 : f32 to vector<1x1xf32>
    %118 = arith.subf %117, %116 : vector<1x1xf32>
    %119 = math.exp %118 : vector<1x1xf32>
    %cst_64 = arith.constant 1.000000e+00 : f32
    %120 = vector.broadcast %cst_64 : f32 to vector<1x1xf32>
    %121 = arith.addf %120, %119 : vector<1x1xf32>
    %cst_65 = arith.constant 1.000000e+00 : f32
    %122 = vector.broadcast %cst_65 : f32 to vector<1x1xf32>
    %123 = arith.divf %122, %121 : vector<1x1xf32>
    %c0_66 = arith.constant 0 : index
    %c0_67 = arith.constant 0 : index
    %124 = vector.load %arg6[%c0_66, %c0_67] : memref<1x1xf32, #tpu.memory_space<vmem>>, vector<1x1xf32>
    tpu.vector_store %arg6[%c0_66, %c0_67], %123 {strides = array<i32>} : memref<1x1xf32, #tpu.memory_space<vmem>>, vector<1x1xf32>,
    return
  }
}

</mosaic_0001>

<llo_original>
// kernel: stan_forward.2
$region0: #{stan_forward.2}
  #allocation0 [shape = 'u32[]', space=smem, size = 0x4, offset = 0x4, fixed_abs, tag = 'smem constant byte address 0x4 - core index']
  #allocation1 [shape = 'u32[144,128]{1,0:T(1,128)}', space=vmem, size = 0x12000, scoped, tag = 'internal scratch']
  #allocation2 [shape = 'f32[1,1]{1,0:T(1,128)S(6)}', space=smem, size = 0x200, scoped, tag = 'scoped memory for stan_forward.2']
  #allocation3 [shape = 'f32[1,1]{1,0:T(1,128)S(6)}', space=smem, size = 0x200, scoped, tag = 'scoped memory for stan_forward.2']
  %s0 = inlined_call_operand.vmem [shape: f32[120,10], index: 0, kind: input, shape index: {}]
  %s1 = inlined_call_operand.vmem [shape: f32[120,10], index: 1, kind: input, shape index: {}]
  %s2 = inlined_call_operand.vmem [shape: f32[10,120], index: 2, kind: input, shape index: {}]
  %s3 = inlined_call_operand.vmem [shape: f32[10,120], index: 3, kind: input, shape index: {}]
  %s4 = inlined_call_operand.vmem [shape: f32[20,120], index: 4, kind: input, shape index: {}]
  %s5 = inlined_call_operand.vmem [shape: f32[10,1], index: 5, kind: input, shape index: {}]
  %s6 = inlined_call_operand.hbm [shape: f32[1,120], index: 6, kind: input, shape index: {}]
  %s7 = inlined_call_operand.hbm [shape: f32[1,120], index: 7, kind: input, shape index: {}]
  %s8 = inlined_call_operand.<no memory space> [shape: f32[1,1], index: 8, kind: input, shape index: {}]
  %s9 = inlined_call_operand.vmem [shape: f32[120,1], index: 9, kind: input, shape index: {}]
  %s10 = inlined_call_operand.hbm [shape: f32[1,10], index: 10, kind: input, shape index: {}]
  %s11 = inlined_call_operand.hbm [shape: f32[1,10], index: 11, kind: input, shape index: {}]
  %s12 = inlined_call_operand.<no memory space> [shape: f32[1,1], index: 12, kind: input, shape index: {}]
  %s13 = inlined_call_operand.vmem [shape: f32[120,10], index: 13, kind: input, shape index: {}]
  %s14 = inlined_call_operand.hbm [shape: f32[10,120], index: 14, kind: input, shape index: {}]
  %s15 = inlined_call_operand.hbm [shape: f32[120,120], index: 15, kind: input, shape index: {}]
  %s16 = inlined_call_operand.vmem [shape: f32[20,120], index: 16, kind: output, shape index: {}]
  %s17 = sld [smem:[#allocation0]]
  $region98: #{stan_forward.2} parent=0
    _
  %s19 = ssub.s32 1, %s17
  %s20 = scalar_select 0, %s19, %s17
  %21 = sst [smem:[#allocation2]] %s8
  %22 = sst [smem:[#allocation3]] %s12
  $region1: #{stan_forward.2} parent=0
    #allocation4 [shape = 'u8[512]{0}', space=vmem, size = 0x400, scoped, tag = 'input window, operand 6, single buffered']
    #allocation5 [shape = 's32[1]{0}', space=sflag, size = 0x4, scoped, tag = 'scoped memory for stan_forward.2']
    #allocation6 [shape = 'u8[512]{0}', space=vmem, size = 0x400, scoped, tag = 'input window, operand 7, single buffered']
    #allocation7 [shape = 's32[1]{0}', space=sflag, size = 0x4, scoped, tag = 'scoped memory for stan_forward.2']
    #allocation8 [shape = 'u8[512]{0}', space=vmem, size = 0x400, scoped, tag = 'input window, operand 10, single buffered']
    #allocation9 [shape = 'u8[512]{0}', space=vmem, size = 0x400, scoped, tag = 'input window, operand 11, single buffered']
    #allocation10 [shape = 's32[1]{0}', space=sflag, size = 0x4, scoped, tag = 'scoped memory for stan_forward.2']
    #allocation11 [shape = 'u8[8192]{0}', space=vmem, size = 0x2000, scoped, tag = 'input window, operand 14, single buffered']
    #allocation12 [shape = 'u8[61440]{0}', space=vmem, size = 0xf000, scoped, tag = 'input window, operand 15, single buffered']
    #allocation13 [shape = 's32[1]{0}', space=sflag, size = 0x4, scoped, tag = 'scoped memory for stan_forward.2']
    %23 = vsyncpa [#allocation5], 0
    %24 = vsyncpa [#allocation7], 0
    %25 = vsyncpa [#allocation10], 0
    %26 = vsyncpa [#allocation13], 0
    // Predicated region
    $region2: #{stan_forward.2} parent=1 // pred_check
      _
    $region3: #{stan_forward.2} parent=1 // pred_check_branch
      %28 = sbr.rel (0) target = $region5
    $region4: #{stan_forward.2} parent=1 // pred_region
      _
    $region5: #{stan_forward.2} parent=1 // pred_fallthru
      _
    // Predicated region
    $region6: #{stan_forward.2} parent=1 // pred_check
      _
    $region7: #{stan_forward.2} parent=1 // pred_check_branch
      %30 = sbr.rel (0) target = $region9
    $region8: #{stan_forward.2} parent=1 // pred_region
      _
    $region9: #{stan_forward.2} parent=1 // pred_fallthru
      _
    // Predicated region
    $region10: #{stan_forward.2} parent=1 // pred_check
      _
    $region11: #{stan_forward.2} parent=1 // pred_check_branch
      %32 = sbr.rel (0) target = $region13
    $region12: #{stan_forward.2} parent=1 // pred_region
      _
    $region13: #{stan_forward.2} parent=1 // pred_fallthru
      _
    // Predicated region
    $region14: #{stan_forward.2} parent=1 // pred_check
      _
    $region15: #{stan_forward.2} parent=1 // pred_check_branch
      %34 = sbr.rel (0) target = $region17
    $region16: #{stan_forward.2} parent=1 // pred_region
      _
    $region17: #{stan_forward.2} parent=1 // pred_fallthru
      _
    // Predicated region
    $region18: #{stan_forward.2} parent=1 // pred_check
      _
    $region19: #{stan_forward.2} parent=1 // pred_check_branch
      %36 = sbr.rel (0) target = $region21
    $region20: #{stan_forward.2} parent=1 // pred_region
      _
    $region21: #{stan_forward.2} parent=1 // pred_fallthru
      _
    // Predicated region
    $region22: #{stan_forward.2} parent=1 // pred_check
      _
    $region23: #{stan_forward.2} parent=1 // pred_check_branch
      %38 = sbr.rel (0) target = $region25
    $region24: #{stan_forward.2} parent=1 // pred_region
      _
    $region25: #{stan_forward.2} parent=1 // pred_fallthru
      _
    // Predicated region
    $region26: #{stan_forward.2} parent=1 // pred_check
      _
    $region27: #{stan_forward.2} parent=1 // pred_check_branch
      %40 = sbr.rel (0) target = $region29
    $region28: #{stan_forward.2} parent=1 // pred_region
      %s42 = ssub.s32 16, 16
      %43 = vsyncadd [#allocation5], %s42
      %s45 = sshll.u32 [#allocation4], 4
      %s46 = int_to_ptr.vmem [resolvable:$true] %s45
      %48 = dma.hbm_to_vmem [thread:$0]  %s6, 16, %s46, [#allocation5]
    $region29: #{stan_forward.2} parent=1 // pred_fallthru
      _
    // Predicated region
    $region30: #{stan_forward.2} parent=1 // pred_check
      _
    $region31: #{stan_forward.2} parent=1 // pred_check_branch
      %50 = sbr.rel (0) target = $region33
    $region32: #{stan_forward.2} parent=1 // pred_region
      %s52 = ssub.s32 16, 16
      %53 = vsyncadd [#allocation7], %s52
      %s55 = sshll.u32 [#allocation6], 4
      %s56 = int_to_ptr.vmem [resolvable:$true] %s55
      %58 = dma.hbm_to_vmem [thread:$0]  %s7, 16, %s56, [#allocation7]
    $region33: #{stan_forward.2} parent=1 // pred_fallthru
      _
    // Predicated region
    $region34: #{stan_forward.2} parent=1 // pred_check
      _
    $region35: #{stan_forward.2} parent=1 // pred_check_branch
      %60 = sbr.rel (0) target = $region37
    $region36: #{stan_forward.2} parent=1 // pred_region
      _
    $region37: #{stan_forward.2} parent=1 // pred_fallthru
      _
    // Predicated region
    $region38: #{stan_forward.2} parent=1 // pred_check
      _
    $region39: #{stan_forward.2} parent=1 // pred_check_branch
      %62 = sbr.rel (0) target = $region41
    $region40: #{stan_forward.2} parent=1 // pred_region
      _
    $region41: #{stan_forward.2} parent=1 // pred_fallthru
      _
    // Predicated region
    $region42: #{stan_forward.2} parent=1 // pred_check
      _
    $region43: #{stan_forward.2} parent=1 // pred_check_branch
      %64 = sbr.rel (0) target = $region45
    $region44: #{stan_forward.2} parent=1 // pred_region
      %s66 = ssub.s32 16, 16
      %67 = vsyncadd [#allocation7], %s66
      %s69 = sshll.u32 [#allocation8], 4
      %s70 = int_to_ptr.vmem [resolvable:$true] %s69
      %72 = dma.hbm_to_vmem [thread:$0]  %s10, 16, %s70, [#allocation7]
    $region45: #{stan_forward.2} parent=1 // pred_fallthru
      _
    // Predicated region
    $region46: #{stan_forward.2} parent=1 // pred_check
      _
    $region47: #{stan_forward.2} parent=1 // pred_check_branch
      %74 = sbr.rel (0) target = $region49
    $region48: #{stan_forward.2} parent=1 // pred_region
      %s76 = ssub.s32 16, 16
      %77 = vsyncadd [#allocation10], %s76
      %s79 = sshll.u32 [#allocation9], 4
      %s80 = int_to_ptr.vmem [resolvable:$true] %s79
      %82 = dma.hbm_to_vmem [thread:$0]  %s11, 16, %s80, [#allocation10]
    $region49: #{stan_forward.2} parent=1 // pred_fallthru
      _
    // Predicated region
    $region50: #{stan_forward.2} parent=1 // pred_check
      _
    $region51: #{stan_forward.2} parent=1 // pred_check_branch
      %84 = sbr.rel (0) target = $region53
    $region52: #{stan_forward.2} parent=1 // pred_region
      _
    $region53: #{stan_forward.2} parent=1 // pred_fallthru
      _
    // Predicated region
    $region54: #{stan_forward.2} parent=1 // pred_check
      _
    $region55: #{stan_forward.2} parent=1 // pred_check_branch
      %86 = sbr.rel (0) target = $region57
    $region56: #{stan_forward.2} parent=1 // pred_region
      _
    $region57: #{stan_forward.2} parent=1 // pred_fallthru
      _
    // Predicated region
    $region58: #{stan_forward.2} parent=1 // pred_check
      _
    $region59: #{stan_forward.2} parent=1 // pred_check_branch
      %88 = sbr.rel (0) target = $region61
    $region60: #{stan_forward.2} parent=1 // pred_region
      %s90 = ssub.s32 256, 256
      %91 = vsyncadd [#allocation10], %s90
      %s92 = sshll.u32 [#allocation11], 4
      %s93 = int_to_ptr.vmem [resolvable:$true] %s92
      %98 = dma.hbm_to_vmem [thread:$0]  %s14, 256, %s93, [#allocation10], 128, 128, 8
    $region61: #{stan_forward.2} parent=1 // pred_fallthru
      _
    // Predicated region
    $region62: #{stan_forward.2} parent=1 // pred_check
      _
    $region63: #{stan_forward.2} parent=1 // pred_check_branch
      %100 = sbr.rel (0) target = $region65
    $region64: #{stan_forward.2} parent=1 // pred_region
      %s102 = ssub.s32 1920, 1920
      %103 = vsyncadd [#allocation13], %s102
      %s104 = sshll.u32 [#allocation12], 4
      %s105 = int_to_ptr.vmem [resolvable:$true] %s104
      %110 = dma.hbm_to_vmem [thread:$0]  %s15, 1920, %s105, [#allocation13], 128, 128, 8
    $region65: #{stan_forward.2} parent=1 // pred_fallthru
      _
    // Predicated region
    $region66: #{stan_forward.2} parent=1 // pred_check
      _
    $region67: #{stan_forward.2} parent=1 // pred_check_branch
      %112 = sbr.rel (0) target = $region69
    $region68: #{stan_forward.2} parent=1 // pred_region
      %113 = dma.done [#allocation5], 16
    $region69: #{stan_forward.2} parent=1 // pred_fallthru
      _
    // Predicated region
    $region70: #{stan_forward.2} parent=1 // pred_check
      _
    $region71: #{stan_forward.2} parent=1 // pred_check_branch
      %115 = sbr.rel (0) target = $region73
    $region72: #{stan_forward.2} parent=1 // pred_region
      %116 = dma.done [#allocation7], 16
    $region73: #{stan_forward.2} parent=1 // pred_fallthru
      _
    // Predicated region
    $region74: #{stan_forward.2} parent=1 // pred_check
      _
    $region75: #{stan_forward.2} parent=1 // pred_check_branch
      %118 = sbr.rel (0) target = $region77
    $region76: #{stan_forward.2} parent=1 // pred_region
      %119 = dma.done [#allocation7], 16
    $region77: #{stan_forward.2} parent=1 // pred_fallthru
      _
    // Predicated region
    $region78: #{stan_forward.2} parent=1 // pred_check
      _
    $region79: #{stan_forward.2} parent=1 // pred_check_branch
      %121 = sbr.rel (0) target = $region81
    $region80: #{stan_forward.2} parent=1 // pred_region
      %122 = dma.done [#allocation10], 16
    $region81: #{stan_forward.2} parent=1 // pred_fallthru
      _
    // Predicated region
    $region82: #{stan_forward.2} parent=1 // pred_check
      _
    $region83: #{stan_forward.2} parent=1 // pred_check_branch
      %124 = sbr.rel (0) target = $region85
    $region84: #{stan_forward.2} parent=1 // pred_region
      %125 = dma.done [#allocation10], 256
    $region85: #{stan_forward.2} parent=1 // pred_fallthru
      _
    // Predicated region
    $region86: #{stan_forward.2} parent=1 // pred_check
      _
    $region87: #{stan_forward.2} parent=1 // pred_check_branch
      %127 = sbr.rel (0) target = $region89
    $region88: #{stan_forward.2} parent=1 // pred_region
      %128 = dma.done [#allocation13], 1920
    $region89: #{stan_forward.2} parent=1 // pred_fallthru
      _
    %s129 = sld [smem:[#allocation2]]
    %s130 = sld [smem:[#allocation3]]
    %v131 = vld [vmem:[#allocation4] sm:$0x1]
    %v132 = vld [vmem:[%s0] sm:$0xff]
    %v133 = vld [vmem:[%s0 + $0x8] sm:$0xff]
    %v134 = vld [vmem:[%s0 + $0x10] sm:$0xff]
    %v135 = vld [vmem:[%s0 + $0x18] sm:$0xff]
    %v136 = vld [vmem:[%s0 + $0x20] sm:$0xff]
    %v137 = vld [vmem:[%s0 + $0x28] sm:$0xff]
    %v138 = vld [vmem:[%s0 + $0x30] sm:$0xff]
    %v139 = vld [vmem:[%s0 + $0x38] sm:$0xff]
    %v140 = vld [vmem:[%s0 + $0x40] sm:$0xff]
    %v141 = vld [vmem:[%s0 + $0x48] sm:$0xff]
    %v142 = vld [vmem:[%s0 + $0x50] sm:$0xff]
    %v143 = vld [vmem:[%s0 + $0x58] sm:$0xff]
    %v144 = vld [vmem:[%s0 + $0x60] sm:$0xff]
    %v145 = vld [vmem:[%s0 + $0x68] sm:$0xff]
    %v146 = vld [vmem:[%s0 + $0x70] sm:$0xff]
    %v147 = vld [vmem:[#allocation6] sm:$0x1]
    %v148 = vld [vmem:[%s1] sm:$0xff]
    %v149 = vld [vmem:[%s1 + $0x8] sm:$0xff]
    %v150 = vld [vmem:[%s1 + $0x10] sm:$0xff]
    %v151 = vld [vmem:[%s1 + $0x18] sm:$0xff]
    %v152 = vld [vmem:[%s1 + $0x20] sm:$0xff]
    %v153 = vld [vmem:[%s1 + $0x28] sm:$0xff]
    %v154 = vld [vmem:[%s1 + $0x30] sm:$0xff]
    %v155 = vld [vmem:[%s1 + $0x38] sm:$0xff]
    %v156 = vld [vmem:[%s1 + $0x40] sm:$0xff]
    %v157 = vld [vmem:[%s1 + $0x48] sm:$0xff]
    %v158 = vld [vmem:[%s1 + $0x50] sm:$0xff]
    %v159 = vld [vmem:[%s1 + $0x58] sm:$0xff]
    %v160 = vld [vmem:[%s1 + $0x60] sm:$0xff]
    %v161 = vld [vmem:[%s1 + $0x68] sm:$0xff]
    %v162 = vld [vmem:[%s1 + $0x70] sm:$0xff]
    %vm163 = vcmask 982016
    %v165 = vsel %vm163, %v147, 0
    %167 = vmatprep.subr.mxu0 0.0
    %168 = vmatpush1.msra.mxu0 %v148
    %169 = vmatprep.subr.mxu0 0.0
    %170 = vmatpush1.msra.mxu0 %v149
    %171 = vmatprep.subr.mxu0 0.0
    %172 = vmatpush1.msra.mxu0 %v150
    %173 = vmatprep.subr.mxu0 0.0
    %174 = vmatpush1.msra.mxu0 %v151
    %175 = vmatprep.subr.mxu0 0.0
    %176 = vmatpush1.msra.mxu0 %v152
    %177 = vmatprep.subr.mxu0 0.0
    %178 = vmatpush1.msra.mxu0 %v153
    %179 = vmatprep.subr.mxu0 0.0
    %180 = vmatpush1.msra.mxu0 %v154
    %181 = vmatprep.subr.mxu0 0.0
    %182 = vmatpush1.msra.mxu0 %v155
    %183 = vmatprep.subr.mxu0 0.0
    %184 = vmatpush1.msra.mxu0 %v156
    %185 = vmatprep.subr.mxu0 0.0
    %186 = vmatpush1.msra.mxu0 %v157
    %187 = vmatprep.subr.mxu0 0.0
    %188 = vmatpush1.msra.mxu0 %v158
    %189 = vmatprep.subr.mxu0 0.0
    %190 = vmatpush1.msra.mxu0 %v159
    %191 = vmatprep.subr.mxu0 0.0
    %192 = vmatpush1.msra.mxu0 %v160
    %193 = vmatprep.subr.mxu0 0.0
    %194 = vmatpush1.msra.mxu0 %v161
    %195 = vmatprep.subr.mxu0 0.0
    %196 = vmatpush1.msra.mxu0 %v162
    %197 = vmatprep.subr.mxu0 0.0
    %198 = vmatpush1.msra.mxu0 0.0
    %199 = vmatprep.subr.mxu0 0.0
    %200 = vmatpush1.msra.mxu0 0.0
    %201 = vmatprep.subr.mxu0 0.0
    %202 = vmatpush1.msra.mxu0 0.0
    %203 = vmatprep.subr.mxu0 0.0
    %204 = vmatpush1.msra.mxu0 0.0
    %205 = vmatprep.subr.mxu0 0.0
    %206 = vmatpush1.msra.mxu0 0.0
    %207 = vmatprep.subr.mxu0 0.0
    %208 = vmatpush1.msra.mxu0 0.0
    %209 = vmatprep.subr.mxu0 0.0
    %210 = vmatpush1.msra.mxu0 0.0
    %211 = vmatprep.subr.mxu0 0.0
    %212 = vmatpush1.msra.mxu0 0.0
    %213 = vmatprep.subr.mxu0 0.0
    %214 = vmatpush1.msra.mxu0 0.0
    %215 = vmatprep.subr.mxu0 0.0
    %216 = vmatpush1.msra.mxu0 0.0
    %217 = vmatprep.subr.mxu0 0.0
    %218 = vmatpush1.msra.mxu0 0.0
    %219 = vmatprep.subr.mxu0 0.0
    %220 = vmatpush1.msra.mxu0 0.0
    %221 = vmatprep.subr.mxu0 0.0
    %222 = vmatpush1.msra.mxu0 0.0
    %223 = vmatprep.subr.mxu0 0.0
    %224 = vmatpush1.msra.mxu0 0.0
    %225 = vmatprep.subr.mxu0 0.0
    %226 = vmatpush1.msra.mxu0 0.0
    %227 = vmatprep.subr.mxu0 0.0
    %228 = vmatpush1.msra.mxu0 0.0
    %229 = vmatprep.subr.mxu0 0.0
    %230 = vmatpush1.msra.mxu0 0.0
    %231 = vmatprep.mubr.f32.mxu0 0.0
    %232 = vmatmul.mubr.f32.gmra.mrb[0].mxu0 %v165
    %v233 = vpop.f32.mrb[0].mxu0
    %v234 = vadd.f32 0.0, %v233
    %v235 = vpop.f32.mrb[0].mxu0
    %236 = vdwg.mxu0
    %v238 = vsel %vm163, %v131, 0
    %240 = vmatprep.subr.mxu0 0.0
    %241 = vmatpush1.msra.mxu0 %v132
    %242 = vmatprep.subr.mxu0 0.0
    %243 = vmatpush1.msra.mxu0 %v133
    %244 = vmatprep.subr.mxu0 0.0
    %245 = vmatpush1.msra.mxu0 %v134
    %246 = vmatprep.subr.mxu0 0.0
    %247 = vmatpush1.msra.mxu0 %v135
    %248 = vmatprep.subr.mxu0 0.0
    %249 = vmatpush1.msra.mxu0 %v136
    %250 = vmatprep.subr.mxu0 0.0
    %251 = vmatpush1.msra.mxu0 %v137
    %252 = vmatprep.subr.mxu0 0.0
    %253 = vmatpush1.msra.mxu0 %v138
    %254 = vmatprep.subr.mxu0 0.0
    %255 = vmatpush1.msra.mxu0 %v139
    %256 = vmatprep.subr.mxu0 0.0
    %257 = vmatpush1.msra.mxu0 %v140
    %258 = vmatprep.subr.mxu0 0.0
    %259 = vmatpush1.msra.mxu0 %v141
    %260 = vmatprep.subr.mxu0 0.0
    %261 = vmatpush1.msra.mxu0 %v142
    %262 = vmatprep.subr.mxu0 0.0
    %263 = vmatpush1.msra.mxu0 %v143
    %264 = vmatprep.subr.mxu0 0.0
    %265 = vmatpush1.msra.mxu0 %v144
    %266 = vmatprep.subr.mxu0 0.0
    %267 = vmatpush1.msra.mxu0 %v145
    %268 = vmatprep.subr.mxu0 0.0
    %269 = vmatpush1.msra.mxu0 %v146
    %270 = vmatprep.subr.mxu0 0.0
    %271 = vmatpush1.msra.mxu0 0.0
    %272 = vmatprep.subr.mxu0 0.0
    %273 = vmatpush1.msra.mxu0 0.0
    %274 = vmatprep.subr.mxu0 0.0
    %275 = vmatpush1.msra.mxu0 0.0
    %276 = vmatprep.subr.mxu0 0.0
    %277 = vmatpush1.msra.mxu0 0.0
    %278 = vmatprep.subr.mxu0 0.0
    %279 = vmatpush1.msra.mxu0 0.0
    %280 = vmatprep.subr.mxu0 0.0
    %281 = vmatpush1.msra.mxu0 0.0
    %282 = vmatprep.subr.mxu0 0.0
    %283 = vmatpush1.msra.mxu0 0.0
    %284 = vmatprep.subr.mxu0 0.0
    %285 = vmatpush1.msra.mxu0 0.0
    %286 = vmatprep.subr.mxu0 0.0
    %287 = vmatpush1.msra.mxu0 0.0
    %288 = vmatprep.subr.mxu0 0.0
    %289 = vmatpush1.msra.mxu0 0.0
    %290 = vmatprep.subr.mxu0 0.0
    %291 = vmatpush1.msra.mxu0 0.0
    %292 = vmatprep.subr.mxu0 0.0
    %293 = vmatpush1.msra.mxu0 0.0
    %294 = vmatprep.subr.mxu0 0.0
    %295 = vmatpush1.msra.mxu0 0.0
    %296 = vmatprep.subr.mxu0 0.0
    %297 = vmatpush1.msra.mxu0 0.0
    %298 = vmatprep.subr.mxu0 0.0
    %299 = vmatpush1.msra.mxu0 0.0
    %300 = vmatprep.subr.mxu0 0.0
    %301 = vmatpush1.msra.mxu0 0.0
    %302 = vmatprep.subr.mxu0 0.0
    %303 = vmatpush1.msra.mxu0 0.0
    %304 = vmatprep.mubr.f32.mxu0 0.0
    %305 = vmatmul.mubr.f32.gmra.mrb[0].mxu0 %v238
    %v306 = vpop.f32.mrb[0].mxu0
    %v307 = vadd.f32 %v234, %v306
    %v308 = vpop.f32.mrb[0].mxu0
    %309 = vdwg.mxu0
    %v310 = vstv %s129
    %v311 = vadd.f32 %v307, %v310
    %v312 = vld [vmem:[%s5] sm:$0xff]
    %v313 = vld [vmem:[%s5 + $0x8] sm:$0x3]
    %315 = vset.pattern.permute.xlu0 0
    %316 = vperm.xlu0 %315, %v312
    %v317 = vpop.permute.xlu0 %316
    %320 = vset.pattern.permute.xlu0 0
    %321 = vperm.xlu0 %320, %v313
    %v322 = vpop.permute.xlu0 %321
    %v324 = vlaneseq
    %v325 = vshrl.u32 %v324, 7
    %v326 = vsub.s32 0, %v325
    %v327 = vrot.slane %v311, %v326
    %v328 = vmul.f32 %v317, %v327
    %v329 = vmul.f32 %v322, %v327
    %vm330 = vcmask 80896
    %v331 = vsel %vm330, %v328, -inf
    %vm332 = vcmask 74752
    %v333 = vsel %vm332, %v329, -inf
    %v334 = vmax.f32 %v331, %v333
    %v335 = vrot.slane %v334, 4
    %v336 = vmax.f32 %v334, %v335
    %v337 = vrot.slane %v336, 2
    %v338 = vmax.f32 %v336, %v337
    %v339 = vrot.slane %v338, 1
    %v340 = vmax.f32 %v338, %v339
    %v341 = vsub.f32 %v328, %v340
    %v342 = vsub.f32 %v329, %v340
    %v343 = vmul.f32 %v341, 1.442695
    %v344 = vpow.pop %v343
    %v345 = vmul.f32 %v342, 1.442695
    %v346 = vpow.pop %v345
    %v347 = vsel %vm330, %v344, 0.0
    %v348 = vsel %vm332, %v346, 0.0
    %v349 = vadd.f32 %v347, %v348
    %v350 = vrot.slane %v349, 4
    %v351 = vadd.f32 %v349, %v350
    %v352 = vrot.slane %v351, 2
    %v353 = vadd.f32 %v351, %v352
    %v354 = vrot.slane %v353, 1
    %v355 = vadd.f32 %v353, %v354
    %v356 = vrcp.pop %v355
    %v357 = vmul.f32 %v344, %v356
    %v358 = vmul.f32 %v346, %v356
    %v359 = vld [vmem:[%s13] sm:$0xff]
    %v360 = vld [vmem:[%s13 + $0x8] sm:$0xff]
    %v361 = vld [vmem:[%s13 + $0x10] sm:$0xff]
    %v362 = vld [vmem:[%s13 + $0x18] sm:$0xff]
    %v363 = vld [vmem:[%s13 + $0x20] sm:$0xff]
    %v364 = vld [vmem:[%s13 + $0x28] sm:$0xff]
    %v365 = vld [vmem:[%s13 + $0x30] sm:$0xff]
    %v366 = vld [vmem:[%s13 + $0x38] sm:$0xff]
    %v367 = vld [vmem:[%s13 + $0x40] sm:$0xff]
    %v368 = vld [vmem:[%s13 + $0x48] sm:$0xff]
    %v369 = vld [vmem:[%s13 + $0x50] sm:$0xff]
    %v370 = vld [vmem:[%s13 + $0x58] sm:$0xff]
    %v371 = vld [vmem:[%s13 + $0x60] sm:$0xff]
    %v372 = vld [vmem:[%s13 + $0x68] sm:$0xff]
    %v373 = vld [vmem:[%s13 + $0x70] sm:$0xff]
    %v375 = vsel %vm330, %v359, 0
    %v378 = vsel %vm330, %v360, 0
    %v381 = vsel %vm330, %v361, 0
    %v384 = vsel %vm330, %v362, 0
    %v387 = vsel %vm330, %v363, 0
    %v390 = vsel %vm330, %v364, 0
    %v393 = vsel %vm330, %v365, 0
    %v396 = vsel %vm330, %v366, 0
    %v399 = vsel %vm330, %v367, 0
    %v402 = vsel %vm330, %v368, 0
    %v405 = vsel %vm330, %v369, 0
    %v408 = vsel %vm330, %v370, 0
    %v411 = vsel %vm330, %v371, 0
    %v414 = vsel %vm330, %v372, 0
    %v417 = vsel %vm330, %v373, 0
    %vm419 = vcmask 1041408
    %v421 = vsel %vm419, %v358, 0
    %423 = vmatprep.subr.mxu0 0.0
    %424 = vmatpush1.msra.mxu0 %v357
    %425 = vmatprep.subr.mxu0 0.0
    %426 = vmatpush1.msra.mxu0 %v421
    %427 = vmatprep.subr.mxu0 0.0
    %428 = vmatpush1.msra.mxu0 0.0
    %429 = vmatprep.subr.mxu0 0.0
    %430 = vmatpush1.msra.mxu0 0.0
    %431 = vmatprep.subr.mxu0 0.0
    %432 = vmatpush1.msra.mxu0 0.0
    %433 = vmatprep.subr.mxu0 0.0
    %434 = vmatpush1.msra.mxu0 0.0
    %435 = vmatprep.subr.mxu0 0.0
    %436 = vmatpush1.msra.mxu0 0.0
    %437 = vmatprep.subr.mxu0 0.0
    %438 = vmatpush1.msra.mxu0 0.0
    %439 = vmatprep.subr.mxu0 0.0
    %440 = vmatpush1.msra.mxu0 0.0
    %441 = vmatprep.subr.mxu0 0.0
    %442 = vmatpush1.msra.mxu0 0.0
    %443 = vmatprep.subr.mxu0 0.0
    %444 = vmatpush1.msra.mxu0 0.0
    %445 = vmatprep.subr.mxu0 0.0
    %446 = vmatpush1.msra.mxu0 0.0
    %447 = vmatprep.subr.mxu0 0.0
    %448 = vmatpush1.msra.mxu0 0.0
    %449 = vmatprep.subr.mxu0 0.0
    %450 = vmatpush1.msra.mxu0 0.0
    %451 = vmatprep.subr.mxu0 0.0
    %452 = vmatpush1.msra.mxu0 0.0
    %453 = vmatprep.subr.mxu0 0.0
    %454 = vmatpush1.msra.mxu0 0.0
    %455 = vmatprep.subr.mxu0 0.0
    %456 = vmatpush1.msra.mxu0 0.0
    %457 = vmatprep.subr.mxu0 0.0
    %458 = vmatpush1.msra.mxu0 0.0
    %459 = vmatprep.subr.mxu0 0.0
    %460 = vmatpush1.msra.mxu0 0.0
    %461 = vmatprep.subr.mxu0 0.0
    %462 = vmatpush1.msra.mxu0 0.0
    %463 = vmatprep.subr.mxu0 0.0
    %464 = vmatpush1.msra.mxu0 0.0
    %465 = vmatprep.subr.mxu0 0.0
    %466 = vmatpush1.msra.mxu0 0.0
    %467 = vmatprep.subr.mxu0 0.0
    %468 = vmatpush1.msra.mxu0 0.0
    %469 = vmatprep.subr.mxu0 0.0
    %470 = vmatpush1.msra.mxu0 0.0
    %471 = vmatprep.subr.mxu0 0.0
    %472 = vmatpush1.msra.mxu0 0.0
    %473 = vmatprep.subr.mxu0 0.0
    %474 = vmatpush1.msra.mxu0 0.0
    %475 = vmatprep.subr.mxu0 0.0
    %476 = vmatpush1.msra.mxu0 0.0
    %477 = vmatprep.subr.mxu0 0.0
    %478 = vmatpush1.msra.mxu0 0.0
    %479 = vmatprep.subr.mxu0 0.0
    %480 = vmatpush1.msra.mxu0 0.0
    %481 = vmatprep.subr.mxu0 0.0
    %482 = vmatpush1.msra.mxu0 0.0
    %483 = vmatprep.subr.mxu0 0.0
    %484 = vmatpush1.msra.mxu0 0.0
    %485 = vmatprep.subr.mxu0 0.0
    %486 = vmatpush1.msra.mxu0 0.0
    %487 = vmatprep.mubr.f32.mxu0 0.0
    %488 = vmatmul.mubr.f32.gmra.mrb[0].mxu0 %v375
    %v489 = vpop.f32.mrb[0].mxu0
    %v490 = vadd.f32 0.0, %v489
    %v491 = vpop.f32.mrb[0].mxu0
    %492 = vmatprep.mubr.f32.mxu0 0.0
    %493 = vmatmul.mubr.f32.gmra.mrb[0].mxu0 %v378
    %v494 = vpop.f32.mrb[0].mxu0
    %v495 = vadd.f32 0.0, %v494
    %v496 = vpop.f32.mrb[0].mxu0
    %497 = vmatprep.mubr.f32.mxu0 0.0
    %498 = vmatmul.mubr.f32.gmra.mrb[0].mxu0 %v381
    %v499 = vpop.f32.mrb[0].mxu0
    %v500 = vadd.f32 0.0, %v499
    %v501 = vpop.f32.mrb[0].mxu0
    %502 = vmatprep.mubr.f32.mxu0 0.0
    %503 = vmatmul.mubr.f32.gmra.mrb[0].mxu0 %v384
    %v504 = vpop.f32.mrb[0].mxu0
    %v505 = vadd.f32 0.0, %v504
    %v506 = vpop.f32.mrb[0].mxu0
    %507 = vmatprep.mubr.f32.mxu0 0.0
    %508 = vmatmul.mubr.f32.gmra.mrb[0].mxu0 %v387
    %v509 = vpop.f32.mrb[0].mxu0
    %v510 = vadd.f32 0.0, %v509
    %v511 = vpop.f32.mrb[0].mxu0
    %512 = vmatprep.mubr.f32.mxu0 0.0
    %513 = vmatmul.mubr.f32.gmra.mrb[0].mxu0 %v390
    %v514 = vpop.f32.mrb[0].mxu0
    %v515 = vadd.f32 0.0, %v514
    %v516 = vpop.f32.mrb[0].mxu0
    %517 = vmatprep.mubr.f32.mxu0 0.0
    %518 = vmatmul.mubr.f32.gmra.mrb[0].mxu0 %v393
    %v519 = vpop.f32.mrb[0].mxu0
    %v520 = vadd.f32 0.0, %v519
    %v521 = vpop.f32.mrb[0].mxu0
    %522 = vmatprep.mubr.f32.mxu0 0.0
    %523 = vmatmul.mubr.f32.gmra.mrb[0].mxu0 %v396
    %v524 = vpop.f32.mrb[0].mxu0
    %v525 = vadd.f32 0.0, %v524
    %v526 = vpop.f32.mrb[0].mxu0
    %527 = vmatprep.mubr.f32.mxu0 0.0
    %528 = vmatmul.mubr.f32.gmra.mrb[0].mxu0 %v399
    %v529 = vpop.f32.mrb[0].mxu0
    %v530 = vadd.f32 0.0, %v529
    %v531 = vpop.f32.mrb[0].mxu0
    %532 = vmatprep.mubr.f32.mxu0 0.0
    %533 = vmatmul.mubr.f32.gmra.mrb[0].mxu0 %v402
    %v534 = vpop.f32.mrb[0].mxu0
    %v535 = vadd.f32 0.0, %v534
    %v536 = vpop.f32.mrb[0].mxu0
    %537 = vmatprep.mubr.f32.mxu0 0.0
    %538 = vmatmul.mubr.f32.gmra.mrb[0].mxu0 %v405
    %v539 = vpop.f32.mrb[0].mxu0
    %v540 = vadd.f32 0.0, %v539
    %v541 = vpop.f32.mrb[0].mxu0
    %542 = vmatprep.mubr.f32.mxu0 0.0
    %543 = vmatmul.mubr.f32.gmra.mrb[0].mxu0 %v408
    %v544 = vpop.f32.mrb[0].mxu0
    %v545 = vadd.f32 0.0, %v544
    %v546 = vpop.f32.mrb[0].mxu0
    %547 = vmatprep.mubr.f32.mxu0 0.0
    %548 = vmatmul.mubr.f32.gmra.mrb[0].mxu0 %v411
    %v549 = vpop.f32.mrb[0].mxu0
    %v550 = vadd.f32 0.0, %v549
    %v551 = vpop.f32.mrb[0].mxu0
    %552 = vmatprep.mubr.f32.mxu0 0.0
    %553 = vmatmul.mubr.f32.gmra.mrb[0].mxu0 %v414
    %v554 = vpop.f32.mrb[0].mxu0
    %v555 = vadd.f32 0.0, %v554
    %v556 = vpop.f32.mrb[0].mxu0
    %557 = vmatprep.mubr.f32.mxu0 0.0
    %558 = vmatmul.mubr.f32.gmra.mrb[0].mxu0 %v417
    %v559 = vpop.f32.mrb[0].mxu0
    %v560 = vadd.f32 0.0, %v559
    %v561 = vpop.f32.mrb[0].mxu0
    %562 = vdwg.mxu0
    %v563 = vld [vmem:[#allocation11] sm:$0xff]
    %v564 = vld [vmem:[#allocation11 + $0x8] sm:$0x3]
    %v566 = vsel %vm330, %v490, 0
    %v569 = vsel %vm330, %v495, 0
    %v572 = vsel %vm330, %v500, 0
    %v575 = vsel %vm330, %v505, 0
    %v578 = vsel %vm330, %v510, 0
    %v581 = vsel %vm330, %v515, 0
    %v584 = vsel %vm330, %v520, 0
    %v587 = vsel %vm330, %v525, 0
    %v590 = vsel %vm330, %v530, 0
    %v593 = vsel %vm330, %v535, 0
    %v596 = vsel %vm330, %v540, 0
    %v599 = vsel %vm330, %v545, 0
    %v602 = vsel %vm330, %v550, 0
    %v605 = vsel %vm330, %v555, 0
    %v608 = vsel %vm330, %v560, 0
    %v611 = vsel %vm419, %v564, 0
    %613 = vmatprep.subr.mxu0 0.0
    %614 = vmatpush1.msra.mxu0 %v563
    %615 = vmatprep.subr.mxu0 0.0
    %616 = vmatpush1.msra.mxu0 %v611
    %617 = vmatprep.subr.mxu0 0.0
    %618 = vmatpush1.msra.mxu0 0.0
    %619 = vmatprep.subr.mxu0 0.0
    %620 = vmatpush1.msra.mxu0 0.0
    %621 = vmatprep.subr.mxu0 0.0
    %622 = vmatpush1.msra.mxu0 0.0
    %623 = vmatprep.subr.mxu0 0.0
    %624 = vmatpush1.msra.mxu0 0.0
    %625 = vmatprep.subr.mxu0 0.0
    %626 = vmatpush1.msra.mxu0 0.0
    %627 = vmatprep.subr.mxu0 0.0
    %628 = vmatpush1.msra.mxu0 0.0
    %629 = vmatprep.subr.mxu0 0.0
    %630 = vmatpush1.msra.mxu0 0.0
    %631 = vmatprep.subr.mxu0 0.0
    %632 = vmatpush1.msra.mxu0 0.0
    %633 = vmatprep.subr.mxu0 0.0
    %634 = vmatpush1.msra.mxu0 0.0
    %635 = vmatprep.subr.mxu0 0.0
    %636 = vmatpush1.msra.mxu0 0.0
    %637 = vmatprep.subr.mxu0 0.0
    %638 = vmatpush1.msra.mxu0 0.0
    %639 = vmatprep.subr.mxu0 0.0
    %640 = vmatpush1.msra.mxu0 0.0
    %641 = vmatprep.subr.mxu0 0.0
    %642 = vmatpush1.msra.mxu0 0.0
    %643 = vmatprep.subr.mxu0 0.0
    %644 = vmatpush1.msra.mxu0 0.0
    %645 = vmatprep.subr.mxu0 0.0
    %646 = vmatpush1.msra.mxu0 0.0
    %647 = vmatprep.subr.mxu0 0.0
    %648 = vmatpush1.msra.mxu0 0.0
    %649 = vmatprep.subr.mxu0 0.0
    %650 = vmatpush1.msra.mxu0 0.0
    %651 = vmatprep.subr.mxu0 0.0
    %652 = vmatpush1.msra.mxu0 0.0
    %653 = vmatprep.subr.mxu0 0.0
    %654 = vmatpush1.msra.mxu0 0.0
    %655 = vmatprep.subr.mxu0 0.0
    %656 = vmatpush1.msra.mxu0 0.0
    %657 = vmatprep.subr.mxu0 0.0
    %658 = vmatpush1.msra.mxu0 0.0
    %659 = vmatprep.subr.mxu0 0.0
    %660 = vmatpush1.msra.mxu0 0.0
    %661 = vmatprep.subr.mxu0 0.0
    %662 = vmatpush1.msra.mxu0 0.0
    %663 = vmatprep.subr.mxu0 0.0
    %664 = vmatpush1.msra.mxu0 0.0
    %665 = vmatprep.subr.mxu0 0.0
    %666 = vmatpush1.msra.mxu0 0.0
    %667 = vmatprep.subr.mxu0 0.0
    %668 = vmatpush1.msra.mxu0 0.0
    %669 = vmatprep.subr.mxu0 0.0
    %670 = vmatpush1.msra.mxu0 0.0
    %671 = vmatprep.subr.mxu0 0.0
    %672 = vmatpush1.msra.mxu0 0.0
    %673 = vmatprep.subr.mxu0 0.0
    %674 = vmatpush1.msra.mxu0 0.0
    %675 = vmatprep.subr.mxu0 0.0
    %676 = vmatpush1.msra.mxu0 0.0
    %677 = vmatprep.mubr.f32.mxu0 0.0
    %678 = vmatmul.mubr.f32.gmra.mrb[0].mxu0 %v566
    %v679 = vpop.f32.mrb[0].mxu0
    %v680 = vadd.f32 0.0, %v679
    %v681 = vpop.f32.mrb[0].mxu0
    %682 = vmatprep.mubr.f32.mxu0 0.0
    %683 = vmatmul.mubr.f32.gmra.mrb[0].mxu0 %v569
    %v684 = vpop.f32.mrb[0].mxu0
    %v685 = vadd.f32 0.0, %v684
    %v686 = vpop.f32.mrb[0].mxu0
    %687 = vmatprep.mubr.f32.mxu0 0.0
    %688 = vmatmul.mubr.f32.gmra.mrb[0].mxu0 %v572
    %v689 = vpop.f32.mrb[0].mxu0
    %v690 = vadd.f32 0.0, %v689
    %v691 = vpop.f32.mrb[0].mxu0
    %692 = vmatprep.mubr.f32.mxu0 0.0
    %693 = vmatmul.mubr.f32.gmra.mrb[0].mxu0 %v575
    %v694 = vpop.f32.mrb[0].mxu0
    %v695 = vadd.f32 0.0, %v694
    %v696 = vpop.f32.mrb[0].mxu0
    %697 = vmatprep.mubr.f32.mxu0 0.0
    %698 = vmatmul.mubr.f32.gmra.mrb[0].mxu0 %v578
    %v699 = vpop.f32.mrb[0].mxu0
    %v700 = vadd.f32 0.0, %v699
    %v701 = vpop.f32.mrb[0].mxu0
    %702 = vmatprep.mubr.f32.mxu0 0.0
    %703 = vmatmul.mubr.f32.gmra.mrb[0].mxu0 %v581
    %v704 = vpop.f32.mrb[0].mxu0
    %v705 = vadd.f32 0.0, %v704
    %v706 = vpop.f32.mrb[0].mxu0
    %707 = vmatprep.mubr.f32.mxu0 0.0
    %708 = vmatmul.mubr.f32.gmra.mrb[0].mxu0 %v584
    %v709 = vpop.f32.mrb[0].mxu0
    %v710 = vadd.f32 0.0, %v709
    %v711 = vpop.f32.mrb[0].mxu0
    %712 = vmatprep.mubr.f32.mxu0 0.0
    %713 = vmatmul.mubr.f32.gmra.mrb[0].mxu0 %v587
    %v714 = vpop.f32.mrb[0].mxu0
    %v715 = vadd.f32 0.0, %v714
    %v716 = vpop.f32.mrb[0].mxu0
    %717 = vmatprep.mubr.f32.mxu0 0.0
    %718 = vmatmul.mubr.f32.gmra.mrb[0].mxu0 %v590
    %v719 = vpop.f32.mrb[0].mxu0
    %v720 = vadd.f32 0.0, %v719
    %v721 = vpop.f32.mrb[0].mxu0
    %722 = vmatprep.mubr.f32.mxu0 0.0
    %723 = vmatmul.mubr.f32.gmra.mrb[0].mxu0 %v593
    %v724 = vpop.f32.mrb[0].mxu0
    %v725 = vadd.f32 0.0, %v724
    %v726 = vpop.f32.mrb[0].mxu0
    %727 = vmatprep.mubr.f32.mxu0 0.0
    %728 = vmatmul.mubr.f32.gmra.mrb[0].mxu0 %v596
    %v729 = vpop.f32.mrb[0].mxu0
    %v730 = vadd.f32 0.0, %v729
    %v731 = vpop.f32.mrb[0].mxu0
    %732 = vmatprep.mubr.f32.mxu0 0.0
    %733 = vmatmul.mubr.f32.gmra.mrb[0].mxu0 %v599
    %v734 = vpop.f32.mrb[0].mxu0
    %v735 = vadd.f32 0.0, %v734
    %v736 = vpop.f32.mrb[0].mxu0
    %737 = vmatprep.mubr.f32.mxu0 0.0
    %738 = vmatmul.mubr.f32.gmra.mrb[0].mxu0 %v602
    %v739 = vpop.f32.mrb[0].mxu0
    %v740 = vadd.f32 0.0, %v739
    %v741 = vpop.f32.mrb[0].mxu0
    %742 = vmatprep.mubr.f32.mxu0 0.0
    %743 = vmatmul.mubr.f32.gmra.mrb[0].mxu0 %v605
    %v744 = vpop.f32.mrb[0].mxu0
    %v745 = vadd.f32 0.0, %v744
    %v746 = vpop.f32.mrb[0].mxu0
    %747 = vmatprep.mubr.f32.mxu0 0.0
    %748 = vmatmul.mubr.f32.gmra.mrb[0].mxu0 %v608
    %v749 = vpop.f32.mrb[0].mxu0
    %v750 = vadd.f32 0.0, %v749
    %v751 = vpop.f32.mrb[0].mxu0
    %752 = vdwg.mxu0
    %v753 = vld [vmem:[#allocation12] sm:$0xff]
    %v754 = vld [vmem:[#allocation12 + $0x8] sm:$0xff]
    %v755 = vld [vmem:[#allocation12 + $0x10] sm:$0xff]
    %v756 = vld [vmem:[#allocation12 + $0x18] sm:$0xff]
    %v757 = vld [vmem:[#allocation12 + $0x20] sm:$0xff]
    %v758 = vld [vmem:[#allocation12 + $0x28] sm:$0xff]
    %v759 = vld [vmem:[#allocation12 + $0x30] sm:$0xff]
    %v760 = vld [vmem:[#allocation12 + $0x38] sm:$0xff]
    %v761 = vld [vmem:[#allocation12 + $0x40] sm:$0xff]
    %v762 = vld [vmem:[#allocation12 + $0x48] sm:$0xff]
    %v763 = vld [vmem:[#allocation12 + $0x50] sm:$0xff]
    %v764 = vld [vmem:[#allocation12 + $0x58] sm:$0xff]
    %v765 = vld [vmem:[#allocation12 + $0x60] sm:$0xff]
    %v766 = vld [vmem:[#allocation12 + $0x68] sm:$0xff]
    %v767 = vld [vmem:[#allocation12 + $0x70] sm:$0xff]
    %v768 = vmul.f32 %v680, %v753
    %v769 = vmul.f32 %v685, %v754
    %v770 = vmul.f32 %v690, %v755
    %v771 = vmul.f32 %v695, %v756
    %v772 = vmul.f32 %v700, %v757
    %v773 = vmul.f32 %v705, %v758
    %v774 = vmul.f32 %v710, %v759
    %v775 = vmul.f32 %v715, %v760
    %v776 = vmul.f32 %v720, %v761
    %v777 = vmul.f32 %v725, %v762
    %v778 = vmul.f32 %v730, %v763
    %v779 = vmul.f32 %v735, %v764
    %v780 = vmul.f32 %v740, %v765
    %v781 = vmul.f32 %v745, %v766
    %v782 = vmul.f32 %v750, %v767
    %v783 = vld [vmem:[%s4] sm:$0xff]
    %v784 = vld [vmem:[%s4 + $0x8] sm:$0xff]
    %v785 = vld [vmem:[%s4 + $0x10] sm:$0xf]
    %v787 = vsel %vm163, %v783, 0
    %v790 = vsel %vm163, %v784, 0
    %v793 = vsel %vm163, %v785, 0
    %795 = vmatprep.subr.mxu0 0.0
    %796 = vmatpush1.msra.mxu0 %v768
    %797 = vmatprep.subr.mxu0 0.0
    %798 = vmatpush1.msra.mxu0 %v769
    %799 = vmatprep.subr.mxu0 0.0
    %800 = vmatpush1.msra.mxu0 %v770
    %801 = vmatprep.subr.mxu0 0.0
    %802 = vmatpush1.msra.mxu0 %v771
    %803 = vmatprep.subr.mxu0 0.0
    %804 = vmatpush1.msra.mxu0 %v772
    %805 = vmatprep.subr.mxu0 0.0
    %806 = vmatpush1.msra.mxu0 %v773
    %807 = vmatprep.subr.mxu0 0.0
    %808 = vmatpush1.msra.mxu0 %v774
    %809 = vmatprep.subr.mxu0 0.0
    %810 = vmatpush1.msra.mxu0 %v775
    %811 = vmatprep.subr.mxu0 0.0
    %812 = vmatpush1.msra.mxu0 %v776
    %813 = vmatprep.subr.mxu0 0.0
    %814 = vmatpush1.msra.mxu0 %v777
    %815 = vmatprep.subr.mxu0 0.0
    %816 = vmatpush1.msra.mxu0 %v778
    %817 = vmatprep.subr.mxu0 0.0
    %818 = vmatpush1.msra.mxu0 %v779
    %819 = vmatprep.subr.mxu0 0.0
    %820 = vmatpush1.msra.mxu0 %v780
    %821 = vmatprep.subr.mxu0 0.0
    %822 = vmatpush1.msra.mxu0 %v781
    %823 = vmatprep.subr.mxu0 0.0
    %824 = vmatpush1.msra.mxu0 %v782
    %825 = vmatprep.subr.mxu0 0.0
    %826 = vmatpush1.msra.mxu0 0.0
    %827 = vmatprep.subr.mxu0 0.0
    %828 = vmatpush1.msra.mxu0 0.0
    %829 = vmatprep.subr.mxu0 0.0
    %830 = vmatpush1.msra.mxu0 0.0
    %831 = vmatprep.subr.mxu0 0.0
    %832 = vmatpush1.msra.mxu0 0.0
    %833 = vmatprep.subr.mxu0 0.0
    %834 = vmatpush1.msra.mxu0 0.0
    %835 = vmatprep.subr.mxu0 0.0
    %836 = vmatpush1.msra.mxu0 0.0
    %837 = vmatprep.subr.mxu0 0.0
    %838 = vmatpush1.msra.mxu0 0.0
    %839 = vmatprep.subr.mxu0 0.0
    %840 = vmatpush1.msra.mxu0 0.0
    %841 = vmatprep.subr.mxu0 0.0
    %842 = vmatpush1.msra.mxu0 0.0
    %843 = vmatprep.subr.mxu0 0.0
    %844 = vmatpush1.msra.mxu0 0.0
    %845 = vmatprep.subr.mxu0 0.0
    %846 = vmatpush1.msra.mxu0 0.0
    %847 = vmatprep.subr.mxu0 0.0
    %848 = vmatpush1.msra.mxu0 0.0
    %849 = vmatprep.subr.mxu0 0.0
    %850 = vmatpush1.msra.mxu0 0.0
    %851 = vmatprep.subr.mxu0 0.0
    %852 = vmatpush1.msra.mxu0 0.0
    %853 = vmatprep.subr.mxu0 0.0
    %854 = vmatpush1.msra.mxu0 0.0
    %855 = vmatprep.subr.mxu0 0.0
    %856 = vmatpush1.msra.mxu0 0.0
    %857 = vmatprep.subr.mxu0 0.0
    %858 = vmatpush1.msra.mxu0 0.0
    %859 = vmatprep.mubr.f32.mxu0 0.0
    %860 = vmatmul.mubr.f32.gmra.mrb[0].mxu0 %v787
    %v861 = vpop.f32.mrb[0].mxu0
    %v862 = vadd.f32 0.0, %v861
    %v863 = vpop.f32.mrb[0].mxu0
    %864 = vmatprep.mubr.f32.mxu0 0.0
    %865 = vmatmul.mubr.f32.gmra.mrb[0].mxu0 %v790
    %v866 = vpop.f32.mrb[0].mxu0
    %v867 = vadd.f32 0.0, %v866
    %v868 = vpop.f32.mrb[0].mxu0
    %869 = vmatprep.mubr.f32.mxu0 0.0
    %870 = vmatmul.mubr.f32.gmra.mrb[0].mxu0 %v793
    %v871 = vpop.f32.mrb[0].mxu0
    %v872 = vadd.f32 0.0, %v871
    %v873 = vpop.f32.mrb[0].mxu0
    %874 = vdwg.mxu0
    %v875 = vld [vmem:[#allocation8] sm:$0x1]
    %v877 = vlaneseq
    %v878 = vshrl.u32 %v877, 7
    %v879 = vsub.s32 0, %v878
    %v880 = vrot.slane %v875, %v879
    %v882 = vmul.f32 %v357, %v880
    %v883 = vmul.f32 %v358, %v880
    %v884 = vsel %vm330, %v882, 0.0
    %885 = vadd.xlane.f32.xlu0 %v884
    %v886 = vpop.xlane.xlu0 %885
    %v887 = vsel %vm332, %v883, 0.0
    %888 = vadd.xlane.f32.xlu0 %v887
    %v889 = vpop.xlane.xlu0 %888
    %v890 = vld [vmem:[#allocation9] sm:$0x1]
    %v892 = vlaneseq
    %v893 = vshrl.u32 %v892, 7
    %v894 = vsub.s32 0, %v893
    %v895 = vrot.slane %v890, %v894
    %v897 = vmul.f32 %v357, %v895
    %v898 = vmul.f32 %v358, %v895
    %v899 = vsel %vm330, %v897, 0.0
    %900 = vadd.xlane.f32.xlu0 %v899
    %v901 = vpop.xlane.xlu0 %900
    %v902 = vsel %vm332, %v898, 0.0
    %903 = vadd.xlane.f32.xlu0 %v902
    %v904 = vpop.xlane.xlu0 %903
    %v905 = vld [vmem:[%s2] sm:$0xff]
    %v906 = vld [vmem:[%s2 + $0x8] sm:$0x3]
    %v907 = vmul.f32 %v905, %v886
    %v908 = vmul.f32 %v906, %v889
    %v909 = vsel %vm163, %v907, 0.0
    %vm910 = vcmask 975872
    %v911 = vsel %vm910, %v908, 0.0
    %v912 = vadd.f32 %v909, %v911
    %v913 = vrot.slane %v912, 4
    %v914 = vadd.f32 %v912, %v913
    %v915 = vrot.slane %v914, 2
    %v916 = vadd.f32 %v914, %v915
    %v917 = vrot.slane %v916, 1
    %v918 = vadd.f32 %v916, %v917
    %v919 = vld [vmem:[%s3] sm:$0xff]
    %v920 = vld [vmem:[%s3 + $0x8] sm:$0x3]
    %v921 = vmul.f32 %v919, %v901
    %v922 = vmul.f32 %v920, %v904
    %v923 = vsel %vm163, %v921, 0.0
    %v924 = vsel %vm910, %v922, 0.0
    %v925 = vadd.f32 %v923, %v924
    %v926 = vrot.slane %v925, 4
    %v927 = vadd.f32 %v925, %v926
    %v928 = vrot.slane %v927, 2
    %v929 = vadd.f32 %v927, %v928
    %v930 = vrot.slane %v929, 1
    %v931 = vadd.f32 %v929, %v930
    %v932 = vadd.f32 %v918, %v931
    %v933 = vstv %s130
    %v934 = vadd.f32 %v932, %v933
    %v935 = vld [vmem:[%s9] sm:$0xff]
    %v936 = vld [vmem:[%s9 + $0x8] sm:$0xff]
    %v937 = vld [vmem:[%s9 + $0x10] sm:$0xff]
    %v938 = vld [vmem:[%s9 + $0x18] sm:$0xff]
    %v939 = vld [vmem:[%s9 + $0x20] sm:$0xff]
    %v940 = vld [vmem:[%s9 + $0x28] sm:$0xff]
    %v941 = vld [vmem:[%s9 + $0x30] sm:$0xff]
    %v942 = vld [vmem:[%s9 + $0x38] sm:$0xff]
    %v943 = vld [vmem:[%s9 + $0x40] sm:$0xff]
    %v944 = vld [vmem:[%s9 + $0x48] sm:$0xff]
    %v945 = vld [vmem:[%s9 + $0x50] sm:$0xff]
    %v946 = vld [vmem:[%s9 + $0x58] sm:$0xff]
    %v947 = vld [vmem:[%s9 + $0x60] sm:$0xff]
    %v948 = vld [vmem:[%s9 + $0x68] sm:$0xff]
    %v949 = vld [vmem:[%s9 + $0x70] sm:$0xff]
    %951 = vset.pattern.permute.xlu0 0
    %952 = vperm.xlu0 %951, %v935
    %v953 = vpop.permute.xlu0 %952
    %956 = vset.pattern.permute.xlu0 0
    %957 = vperm.xlu0 %956, %v936
    %v958 = vpop.permute.xlu0 %957
    %961 = vset.pattern.permute.xlu0 0
    %962 = vperm.xlu0 %961, %v937
    %v963 = vpop.permute.xlu0 %962
    %966 = vset.pattern.permute.xlu0 0
    %967 = vperm.xlu0 %966, %v938
    %v968 = vpop.permute.xlu0 %967
    %971 = vset.pattern.permute.xlu0 0
    %972 = vperm.xlu0 %971, %v939
    %v973 = vpop.permute.xlu0 %972
    %976 = vset.pattern.permute.xlu0 0
    %977 = vperm.xlu0 %976, %v940
    %v978 = vpop.permute.xlu0 %977
    %981 = vset.pattern.permute.xlu0 0
    %982 = vperm.xlu0 %981, %v941
    %v983 = vpop.permute.xlu0 %982
    %986 = vset.pattern.permute.xlu0 0
    %987 = vperm.xlu0 %986, %v942
    %v988 = vpop.permute.xlu0 %987
    %991 = vset.pattern.permute.xlu0 0
    %992 = vperm.xlu0 %991, %v943
    %v993 = vpop.permute.xlu0 %992
    %996 = vset.pattern.permute.xlu0 0
    %997 = vperm.xlu0 %996, %v944
    %v998 = vpop.permute.xlu0 %997
    %1001 = vset.pattern.permute.xlu0 0
    %1002 = vperm.xlu0 %1001, %v945
    %v1003 = vpop.permute.xlu0 %1002
    %1006 = vset.pattern.permute.xlu0 0
    %1007 = vperm.xlu0 %1006, %v946
    %v1008 = vpop.permute.xlu0 %1007
    %1011 = vset.pattern.permute.xlu0 0
    %1012 = vperm.xlu0 %1011, %v947
    %v1013 = vpop.permute.xlu0 %1012
    %1016 = vset.pattern.permute.xlu0 0
    %1017 = vperm.xlu0 %1016, %v948
    %v1018 = vpop.permute.xlu0 %1017
    %1021 = vset.pattern.permute.xlu0 0
    %1022 = vperm.xlu0 %1021, %v949
    %v1023 = vpop.permute.xlu0 %1022
    %v1025 = vmul.f32 %v953, %v934
    %v1026 = vmul.f32 %v958, %v934
    %v1027 = vmul.f32 %v963, %v934
    %v1028 = vmul.f32 %v968, %v934
    %v1029 = vmul.f32 %v973, %v934
    %v1030 = vmul.f32 %v978, %v934
    %v1031 = vmul.f32 %v983, %v934
    %v1032 = vmul.f32 %v988, %v934
    %v1033 = vmul.f32 %v993, %v934
    %v1034 = vmul.f32 %v998, %v934
    %v1035 = vmul.f32 %v1003, %v934
    %v1036 = vmul.f32 %v1008, %v934
    %v1037 = vmul.f32 %v1013, %v934
    %v1038 = vmul.f32 %v1018, %v934
    %v1039 = vmul.f32 %v1023, %v934
    %v1040 = vsel %vm163, %v1025, -inf
    %v1041 = vsel %vm163, %v1026, -inf
    %v1042 = vsel %vm163, %v1027, -inf
    %v1043 = vsel %vm163, %v1028, -inf
    %v1044 = vsel %vm163, %v1029, -inf
    %v1045 = vmax.f32 %v1040, %v1044
    %v1046 = vsel %vm163, %v1030, -inf
    %v1047 = vmax.f32 %v1041, %v1046
    %v1048 = vsel %vm163, %v1031, -inf
    %v1049 = vmax.f32 %v1042, %v1048
    %v1050 = vsel %vm163, %v1032, -inf
    %v1051 = vmax.f32 %v1043, %v1050
    %v1052 = vsel %vm163, %v1033, -inf
    %v1053 = vmax.f32 %v1045, %v1052
    %v1054 = vsel %vm163, %v1034, -inf
    %v1055 = vmax.f32 %v1047, %v1054
    %v1056 = vsel %vm163, %v1035, -inf
    %v1057 = vmax.f32 %v1049, %v1056
    %v1058 = vsel %vm163, %v1036, -inf
    %v1059 = vmax.f32 %v1051, %v1058
    %v1060 = vsel %vm163, %v1037, -inf
    %v1061 = vmax.f32 %v1053, %v1060
    %v1062 = vsel %vm163, %v1038, -inf
    %v1063 = vmax.f32 %v1055, %v1062
    %v1064 = vsel %vm163, %v1039, -inf
    %v1065 = vmax.f32 %v1057, %v1064
    %v1066 = vmax.f32 %v1061, %v1063
    %v1067 = vmax.f32 %v1065, %v1059
    %v1068 = vmax.f32 %v1066, %v1067
    %v1069 = vrot.slane %v1068, 4
    %v1070 = vmax.f32 %v1068, %v1069
    %v1071 = vrot.slane %v1070, 2
    %v1072 = vmax.f32 %v1070, %v1071
    %v1073 = vrot.slane %v1072, 1
    %v1074 = vmax.f32 %v1072, %v1073
    %v1075 = vsub.f32 %v1025, %v1074
    %v1076 = vsub.f32 %v1026, %v1074
    %v1077 = vsub.f32 %v1027, %v1074
    %v1078 = vsub.f32 %v1028, %v1074
    %v1079 = vsub.f32 %v1029, %v1074
    %v1080 = vsub.f32 %v1030, %v1074
    %v1081 = vsub.f32 %v1031, %v1074
    %v1082 = vsub.f32 %v1032, %v1074
    %v1083 = vsub.f32 %v1033, %v1074
    %v1084 = vsub.f32 %v1034, %v1074
    %v1085 = vsub.f32 %v1035, %v1074
    %v1086 = vsub.f32 %v1036, %v1074
    %v1087 = vsub.f32 %v1037, %v1074
    %v1088 = vsub.f32 %v1038, %v1074
    %v1089 = vsub.f32 %v1039, %v1074
    %v1090 = vmul.f32 %v1075, 1.442695
    %v1091 = vpow.pop %v1090
    %v1092 = vmul.f32 %v1076, 1.442695
    %v1093 = vpow.pop %v1092
    %v1094 = vmul.f32 %v1077, 1.442695
    %v1095 = vpow.pop %v1094
    %v1096 = vmul.f32 %v1078, 1.442695
    %v1097 = vpow.pop %v1096
    %v1098 = vmul.f32 %v1079, 1.442695
    %v1099 = vpow.pop %v1098
    %v1100 = vmul.f32 %v1080, 1.442695
    %v1101 = vpow.pop %v1100
    %v1102 = vmul.f32 %v1081, 1.442695
    %v1103 = vpow.pop %v1102
    %v1104 = vmul.f32 %v1082, 1.442695
    %v1105 = vpow.pop %v1104
    %v1106 = vmul.f32 %v1083, 1.442695
    %v1107 = vpow.pop %v1106
    %v1108 = vmul.f32 %v1084, 1.442695
    %v1109 = vpow.pop %v1108
    %v1110 = vmul.f32 %v1085, 1.442695
    %v1111 = vpow.pop %v1110
    %v1112 = vmul.f32 %v1086, 1.442695
    %v1113 = vpow.pop %v1112
    %v1114 = vmul.f32 %v1087, 1.442695
    %v1115 = vpow.pop %v1114
    %v1116 = vmul.f32 %v1088, 1.442695
    %v1117 = vpow.pop %v1116
    %v1118 = vmul.f32 %v1089, 1.442695
    %v1119 = vpow.pop %v1118
    %v1120 = vsel %vm163, %v1091, 0.0
    %v1121 = vsel %vm163, %v1093, 0.0
    %v1122 = vadd.f32 %v1120, %v1121
    %v1123 = vsel %vm163, %v1095, 0.0
    %v1124 = vadd.f32 %v1122, %v1123
    %v1125 = vsel %vm163, %v1097, 0.0
    %v1126 = vadd.f32 %v1124, %v1125
    %v1127 = vsel %vm163, %v1099, 0.0
    %v1128 = vadd.f32 %v1126, %v1127
    %v1129 = vsel %vm163, %v1101, 0.0
    %v1130 = vadd.f32 %v1128, %v1129
    %v1131 = vsel %vm163, %v1103, 0.0
    %v1132 = vadd.f32 %v1130, %v1131
    %v1133 = vsel %vm163, %v1105, 0.0
    %v1134 = vadd.f32 %v1132, %v1133
    %v1135 = vsel %vm163, %v1107, 0.0
    %v1136 = vadd.f32 %v1134, %v1135
    %v1137 = vsel %vm163, %v1109, 0.0
    %v1138 = vadd.f32 %v1136, %v1137
    %v1139 = vsel %vm163, %v1111, 0.0
    %v1140 = vadd.f32 %v1138, %v1139
    %v1141 = vsel %vm163, %v1113, 0.0
    %v1142 = vadd.f32 %v1140, %v1141
    %v1143 = vsel %vm163, %v1115, 0.0
    %v1144 = vadd.f32 %v1142, %v1143
    %v1145 = vsel %vm163, %v1117, 0.0
    %v1146 = vadd.f32 %v1144, %v1145
    %v1147 = vsel %vm163, %v1119, 0.0
    %v1148 = vadd.f32 %v1146, %v1147
    %v1149 = vrot.slane %v1148, 4
    %v1150 = vadd.f32 %v1148, %v1149
    %v1151 = vrot.slane %v1150, 2
    %v1152 = vadd.f32 %v1150, %v1151
    %v1153 = vrot.slane %v1152, 1
    %v1154 = vadd.f32 %v1152, %v1153
    %v1155 = vrcp.pop %v1154
    %v1156 = vmul.f32 %v1091, %v1155
    %v1157 = vmul.f32 %v1093, %v1155
    %v1158 = vmul.f32 %v1095, %v1155
    %v1159 = vmul.f32 %v1097, %v1155
    %v1160 = vmul.f32 %v1099, %v1155
    %v1161 = vmul.f32 %v1101, %v1155
    %v1162 = vmul.f32 %v1103, %v1155
    %v1163 = vmul.f32 %v1105, %v1155
    %v1164 = vmul.f32 %v1107, %v1155
    %v1165 = vmul.f32 %v1109, %v1155
    %v1166 = vmul.f32 %v1111, %v1155
    %v1167 = vmul.f32 %v1113, %v1155
    %v1168 = vmul.f32 %v1115, %v1155
    %v1169 = vmul.f32 %v1117, %v1155
    %v1170 = vmul.f32 %v1119, %v1155
    %v1172 = vsel %vm163, %v862, 0
    %v1175 = vsel %vm163, %v867, 0
    %v1178 = vsel %vm163, %v872, 0
    %1180 = vmatprep.subr.mxu0 0.0
    %1181 = vmatpush1.msra.mxu0 %v1156
    %1182 = vmatprep.subr.mxu0 0.0
    %1183 = vmatpush1.msra.mxu0 %v1157
    %1184 = vmatprep.subr.mxu0 0.0
    %1185 = vmatpush1.msra.mxu0 %v1158
    %1186 = vmatprep.subr.mxu0 0.0
    %1187 = vmatpush1.msra.mxu0 %v1159
    %1188 = vmatprep.subr.mxu0 0.0
    %1189 = vmatpush1.msra.mxu0 %v1160
    %1190 = vmatprep.subr.mxu0 0.0
    %1191 = vmatpush1.msra.mxu0 %v1161
    %1192 = vmatprep.subr.mxu0 0.0
    %1193 = vmatpush1.msra.mxu0 %v1162
    %1194 = vmatprep.subr.mxu0 0.0
    %1195 = vmatpush1.msra.mxu0 %v1163
    %1196 = vmatprep.subr.mxu0 0.0
    %1197 = vmatpush1.msra.mxu0 %v1164
    %1198 = vmatprep.subr.mxu0 0.0
    %1199 = vmatpush1.msra.mxu0 %v1165
    %1200 = vmatprep.subr.mxu0 0.0
    %1201 = vmatpush1.msra.mxu0 %v1166
    %1202 = vmatprep.subr.mxu0 0.0
    %1203 = vmatpush1.msra.mxu0 %v1167
    %1204 = vmatprep.subr.mxu0 0.0
    %1205 = vmatpush1.msra.mxu0 %v1168
    %1206 = vmatprep.subr.mxu0 0.0
    %1207 = vmatpush1.msra.mxu0 %v1169
    %1208 = vmatprep.subr.mxu0 0.0
    %1209 = vmatpush1.msra.mxu0 %v1170
    %1210 = vmatprep.subr.mxu0 0.0
    %1211 = vmatpush1.msra.mxu0 0.0
    %1212 = vmatprep.subr.mxu0 0.0
    %1213 = vmatpush1.msra.mxu0 0.0
    %1214 = vmatprep.subr.mxu0 0.0
    %1215 = vmatpush1.msra.mxu0 0.0
    %1216 = vmatprep.subr.mxu0 0.0
    %1217 = vmatpush1.msra.mxu0 0.0
    %1218 = vmatprep.subr.mxu0 0.0
    %1219 = vmatpush1.msra.mxu0 0.0
    %1220 = vmatprep.subr.mxu0 0.0
    %1221 = vmatpush1.msra.mxu0 0.0
    %1222 = vmatprep.subr.mxu0 0.0
    %1223 = vmatpush1.msra.mxu0 0.0
    %1224 = vmatprep.subr.mxu0 0.0
    %1225 = vmatpush1.msra.mxu0 0.0
    %1226 = vmatprep.subr.mxu0 0.0
    %1227 = vmatpush1.msra.mxu0 0.0
    %1228 = vmatprep.subr.mxu0 0.0
    %1229 = vmatpush1.msra.mxu0 0.0
    %1230 = vmatprep.subr.mxu0 0.0
    %1231 = vmatpush1.msra.mxu0 0.0
    %1232 = vmatprep.subr.mxu0 0.0
    %1233 = vmatpush1.msra.mxu0 0.0
    %1234 = vmatprep.subr.mxu0 0.0
    %1235 = vmatpush1.msra.mxu0 0.0
    %1236 = vmatprep.subr.mxu0 0.0
    %1237 = vmatpush1.msra.mxu0 0.0
    %1238 = vmatprep.subr.mxu0 0.0
    %1239 = vmatpush1.msra.mxu0 0.0
    %1240 = vmatprep.subr.mxu0 0.0
    %1241 = vmatpush1.msra.mxu0 0.0
    %1242 = vmatprep.subr.mxu0 0.0
    %1243 = vmatpush1.msra.mxu0 0.0
    %1244 = vmatprep.mubr.f32.mxu0 0.0
    %1245 = vmatmul.mubr.f32.gmra.mrb[0].mxu0 %v1172
    %v1246 = vpop.f32.mrb[0].mxu0
    %v1247 = vadd.f32 0.0, %v1246
    %v1248 = vpop.f32.mrb[0].mxu0
    %1249 = vmatprep.mubr.f32.mxu0 0.0
    %1250 = vmatmul.mubr.f32.gmra.mrb[0].mxu0 %v1175
    %v1251 = vpop.f32.mrb[0].mxu0
    %v1252 = vadd.f32 0.0, %v1251
    %v1253 = vpop.f32.mrb[0].mxu0
    %1254 = vmatprep.mubr.f32.mxu0 0.0
    %1255 = vmatmul.mubr.f32.gmra.mrb[0].mxu0 %v1178
    %v1256 = vpop.f32.mrb[0].mxu0
    %v1257 = vadd.f32 0.0, %v1256
    %v1258 = vpop.f32.mrb[0].mxu0
    %1259 = vdwg.mxu0
    %1260 = vst.msk [vmem:[%s16] sm:$0xff] %vm163, %v1247
    %1261 = vst.msk [vmem:[%s16 + $0x8] sm:$0xff] %vm163, %v1252
    %vm1262 = vcmask 977920
    %1263 = vst.msk [vmem:[%s16 + $0x10] sm:$0xf] %vm1262, %v1257
    // Predicated region
    $region90: #{stan_forward.2} parent=1 // pred_check
      _
    $region91: #{stan_forward.2} parent=1 // pred_check_branch
      %1265 = sbr.rel (0) target = $region93
    $region92: #{stan_forward.2} parent=1 // pred_region
      _
    $region93: #{stan_forward.2} parent=1 // pred_fallthru
      _
    // Predicated region
    $region94: #{stan_forward.2} parent=1 // pred_check
      _
    $region95: #{stan_forward.2} parent=1 // pred_check_branch
      %1267 = sbr.rel (0) target = $region97
    $region96: #{stan_forward.2} parent=1 // pred_region
      _
    $region97: #{stan_forward.2} parent=1 // pred_fallthru
      _
    %1268 = vsyncpa [#allocation5], 1
    %1269 = vsyncpa [#allocation7], 1
    %1270 = vsyncpa [#allocation10], 1
    %1271 = vsyncpa [#allocation13], 1

// kernel: stan_forward.3
$region0: #{stan_forward.3}
  #allocation0 [shape = 'u32[]', space=smem, size = 0x4, offset = 0x4, fixed_abs, tag = 'smem constant byte address 0x4 - core index']
  #allocation1 [shape = 'u32[144,128]{1,0:T(1,128)}', space=vmem, size = 0x12000, scoped, tag = 'internal scratch']
  #allocation2 [shape = 'bf16[16,732,128]{2,1,0:T(8,128)(2,1)}', space=vmem, size = 0x2e0000, scoped, tag = 'scratch operand']
  #allocation3 [shape = 's32[1]{0}', space=sflag, size = 0x4, scoped, tag = 'scratch operand']
  #allocation4 [shape = 'f32[1,1]{1,0:T(1,128)S(6)}', space=smem, size = 0x200, scoped, tag = 'scoped memory for stan_forward.3']
  #allocation7 [shape = 's32[]', space=sflag, size = 0x4, offset = 0, fixed_abs, tag = 'sflag constant byte address 0x0 - dummy sync flag']
  %s0 = inlined_call_operand.vmem [shape: f32[27,732], index: 0, kind: input, shape index: {}]
  %s1 = inlined_call_operand.vmem [shape: f32[128,27], index: 1, kind: input, shape index: {}]
  %s2 = inlined_call_operand.vmem [shape: bf16[16,732,128], index: 2, kind: input, shape index: {}]
  %s3 = inlined_call_operand.vmem [shape: f32[1,128], index: 3, kind: input, shape index: {}]
  %s4 = inlined_call_operand.vmem [shape: f32[1,128], index: 4, kind: input, shape index: {}]
  %s5 = inlined_call_operand.<no memory space> [shape: f32[1,1], index: 5, kind: input, shape index: {}]
  %s6 = inlined_call_operand.hbm [shape: f32[1,1], index: 6, kind: output, shape index: {}]
  %s7 = sld [smem:[#allocation0]]
  $region64: #{stan_forward.3} parent=0
    _
  %s9 = ssub.s32 1, %s7
  %s10 = scalar_select 0, %s9, %s7
  %11 = sst [smem:[#allocation4]] %s5
  $region1: #{stan_forward.3} parent=0
    #allocation5 [shape = 'u8[512]{0}', space=vmem, size = 0x400, scoped, tag = 'output window, operand 0, single buffered']
    #allocation6 [shape = 's32[1]{0}', space=sflag, size = 0x4, scoped, tag = 'scoped memory for stan_forward.3']
    %12 = vsyncpa [#allocation6], 0
    // Predicated region
    $region2: #{stan_forward.3} parent=1 // pred_check
      _
    $region3: #{stan_forward.3} parent=1 // pred_check_branch
      %14 = sbr.rel (0) target = $region5
    $region4: #{stan_forward.3} parent=1 // pred_region
      _
    $region5: #{stan_forward.3} parent=1 // pred_fallthru
      _
    // Predicated region
    $region6: #{stan_forward.3} parent=1 // pred_check
      _
    $region7: #{stan_forward.3} parent=1 // pred_check_branch
      %16 = sbr.rel (0) target = $region9
    $region8: #{stan_forward.3} parent=1 // pred_region
      _
    $region9: #{stan_forward.3} parent=1 // pred_fallthru
      _
    // Predicated region
    $region10: #{stan_forward.3} parent=1 // pred_check
      _
    $region11: #{stan_forward.3} parent=1 // pred_check_branch
      %18 = sbr.rel (0) target = $region13
    $region12: #{stan_forward.3} parent=1 // pred_region
      _
    $region13: #{stan_forward.3} parent=1 // pred_fallthru
      _
    // Predicated region
    $region14: #{stan_forward.3} parent=1 // pred_check
      _
    $region15: #{stan_forward.3} parent=1 // pred_check_branch
      %20 = sbr.rel (0) target = $region17
    $region16: #{stan_forward.3} parent=1 // pred_region
      _
    $region17: #{stan_forward.3} parent=1 // pred_fallthru
      _
    // Predicated region
    $region18: #{stan_forward.3} parent=1 // pred_check
      _
    $region19: #{stan_forward.3} parent=1 // pred_check_branch
      %22 = sbr.rel (0) target = $region21
    $region20: #{stan_forward.3} parent=1 // pred_region
      _
    $region21: #{stan_forward.3} parent=1 // pred_fallthru
      _
    %p25 = scmp.lt.u32.totalorder 5888, 8
    %p26 = pneg %p25
    // Predicated region
    $region22: #{stan_forward.3} parent=1 // pred_check
      _
    $region23: #{stan_forward.3} parent=1 // pred_check_branch
      %28 = sbr.rel (%p25) target = $region25
    $region24: #{stan_forward.3} parent=1 // pred_region
      %s43 = sand.u32 5888, 7
      %p44 = scmp.eq.s32.totalorder %s43, 0
      // Predicated region
      $region37: #{stan_forward.3} parent=24 // pred_check
        %p45 = pneg %p44
      $region38: #{stan_forward.3} parent=24 // pred_check_branch
        %47 = sbr.rel (%p45) target = $region40
      $region39: #{stan_forward.3} parent=24 // pred_region
        loop: start=0, step=1, limit=1
        $region41: #{stan_forward.3} parent=39 // loop_pre_header
          _
        $region42: #{stan_forward.3} parent=39 // loop_header
          %s49 = sphi 0, %s53
          %p50 = scmp.ge.s32.totalorder %s49, 1
          %s54 = sphi %s2, %s2
          %s55 = sphi [#allocation2], [#allocation2]
        $region43: #{stan_forward.3} parent=39 // loop_header_branch
          %52 = sbr.rel (%p50) target = $region47
        $region44: #{stan_forward.3} parent=39 // loop_body
          %v56 = vld [vmem:[%s54] sm:$0xff]
          %57 = vst [vmem:[%s55] sm:$0xff] %v56
          %v58 = vld [vmem:[%s54 + $0x8] sm:$0xff]
          %59 = vst [vmem:[%s55 + $0x8] sm:$0xff] %v58
          %v60 = vld [vmem:[%s54 + $0x10] sm:$0xff]
          %61 = vst [vmem:[%s55 + $0x10] sm:$0xff] %v60
          %v62 = vld [vmem:[%s54 + $0x18] sm:$0xff]
          %63 = vst [vmem:[%s55 + $0x18] sm:$0xff] %v62
          %v64 = vld [vmem:[%s54 + $0x20] sm:$0xff]
          %65 = vst [vmem:[%s55 + $0x20] sm:$0xff] %v64
          %v66 = vld [vmem:[%s54 + $0x28] sm:$0xff]
          %67 = vst [vmem:[%s55 + $0x28] sm:$0xff] %v66
          %v68 = vld [vmem:[%s54 + $0x30] sm:$0xff]
          %69 = vst [vmem:[%s55 + $0x30] sm:$0xff] %v68
          %v70 = vld [vmem:[%s54 + $0x38] sm:$0xff]
          %71 = vst [vmem:[%s55 + $0x38] sm:$0xff] %v70
          %v72 = vld [vmem:[%s54 + $0x40] sm:$0xff]
          %73 = vst [vmem:[%s55 + $0x40] sm:$0xff] %v72
          %v74 = vld [vmem:[%s54 + $0x48] sm:$0xff]
          %75 = vst [vmem:[%s55 + $0x48] sm:$0xff] %v74
          %v76 = vld [vmem:[%s54 + $0x50] sm:$0xff]
          %77 = vst [vmem:[%s55 + $0x50] sm:$0xff] %v76
          %v78 = vld [vmem:[%s54 + $0x58] sm:$0xff]
          %79 = vst [vmem:[%s55 + $0x58] sm:$0xff] %v78
          %v80 = vld [vmem:[%s54 + $0x60] sm:$0xff]
          %81 = vst [vmem:[%s55 + $0x60] sm:$0xff] %v80
          %v82 = vld [vmem:[%s54 + $0x68] sm:$0xff]
          %83 = vst [vmem:[%s55 + $0x68] sm:$0xff] %v82
          %v84 = vld [vmem:[%s54 + $0x70] sm:$0xff]
          %85 = vst [vmem:[%s55 + $0x70] sm:$0xff] %v84
          %v86 = vld [vmem:[%s54 + $0x78] sm:$0xff]
          %87 = vst [vmem:[%s55 + $0x78] sm:$0xff] %v86
          %v88 = vld [vmem:[%s54 + $0x80] sm:$0xff]
          %89 = vst [vmem:[%s55 + $0x80] sm:$0xff] %v88
          %v90 = vld [vmem:[%s54 + $0x88] sm:$0xff]
          %91 = vst [vmem:[%s55 + $0x88] sm:$0xff] %v90
          %v92 = vld [vmem:[%s54 + $0x90] sm:$0xff]
          %93 = vst [vmem:[%s55 + $0x90] sm:$0xff] %v92
          %v94 = vld [vmem:[%s54 + $0x98] sm:$0xff]
          %95 = vst [vmem:[%s55 + $0x98] sm:$0xff] %v94
          %v96 = vld [vmem:[%s54 + $0xa0] sm:$0xff]
          %97 = vst [vmem:[%s55 + $0xa0] sm:$0xff] %v96
          %v98 = vld [vmem:[%s54 + $0xa8] sm:$0xff]
          %99 = vst [vmem:[%s55 + $0xa8] sm:$0xff] %v98
          %v100 = vld [vmem:[%s54 + $0xb0] sm:$0xff]
          %101 = vst [vmem:[%s55 + $0xb0] sm:$0xff] %v100
          %v102 = vld [vmem:[%s54 + $0xb8] sm:$0xff]
          %103 = vst [vmem:[%s55 + $0xb8] sm:$0xff] %v102
          %v104 = vld [vmem:[%s54 + $0xc0] sm:$0xff]
          %105 = vst [vmem:[%s55 + $0xc0] sm:$0xff] %v104
          %v106 = vld [vmem:[%s54 + $0xc8] sm:$0xff]
          %107 = vst [vmem:[%s55 + $0xc8] sm:$0xff] %v106
          %v108 = vld [vmem:[%s54 + $0xd0] sm:$0xff]
          %109 = vst [vmem:[%s55 + $0xd0] sm:$0xff] %v108
          %v110 = vld [vmem:[%s54 + $0xd8] sm:$0xff]
          %111 = vst [vmem:[%s55 + $0xd8] sm:$0xff] %v110
          %v112 = vld [vmem:[%s54 + $0xe0] sm:$0xff]
          %113 = vst [vmem:[%s55 + $0xe0] sm:$0xff] %v112
          %v114 = vld [vmem:[%s54 + $0xe8] sm:$0xff]
          %115 = vst [vmem:[%s55 + $0xe8] sm:$0xff] %v114
          %v116 = vld [vmem:[%s54 + $0xf0] sm:$0xff]
          %117 = vst [vmem:[%s55 + $0xf0] sm:$0xff] %v116
          %v118 = vld [vmem:[%s54 + $0xf8] sm:$0xff]
          %119 = vst [vmem:[%s55 + $0xf8] sm:$0xff] %v118
          %v120 = vld [vmem:[%s54 + $0x100] sm:$0xff]
          %121 = vst [vmem:[%s55 + $0x100] sm:$0xff] %v120
          %v122 = vld [vmem:[%s54 + $0x108] sm:$0xff]
          %123 = vst [vmem:[%s55 + $0x108] sm:$0xff] %v122
          %v124 = vld [vmem:[%s54 + $0x110] sm:$0xff]
          %125 = vst [vmem:[%s55 + $0x110] sm:$0xff] %v124
          %v126 = vld [vmem:[%s54 + $0x118] sm:$0xff]
          %127 = vst [vmem:[%s55 + $0x118] sm:$0xff] %v126
          %v128 = vld [vmem:[%s54 + $0x120] sm:$0xff]
          %129 = vst [vmem:[%s55 + $0x120] sm:$0xff] %v128
          %v130 = vld [vmem:[%s54 + $0x128] sm:$0xff]
          %131 = vst [vmem:[%s55 + $0x128] sm:$0xff] %v130
          %v132 = vld [vmem:[%s54 + $0x130] sm:$0xff]
          %133 = vst [vmem:[%s55 + $0x130] sm:$0xff] %v132
          %v134 = vld [vmem:[%s54 + $0x138] sm:$0xff]
          %135 = vst [vmem:[%s55 + $0x138] sm:$0xff] %v134
          %v136 = vld [vmem:[%s54 + $0x140] sm:$0xff]
          %137 = vst [vmem:[%s55 + $0x140] sm:$0xff] %v136
          %v138 = vld [vmem:[%s54 + $0x148] sm:$0xff]
          %139 = vst [vmem:[%s55 + $0x148] sm:$0xff] %v138
          %v140 = vld [vmem:[%s54 + $0x150] sm:$0xff]
          %141 = vst [vmem:[%s55 + $0x150] sm:$0xff] %v140
          %v142 = vld [vmem:[%s54 + $0x158] sm:$0xff]
          %143 = vst [vmem:[%s55 + $0x158] sm:$0xff] %v142
          %v144 = vld [vmem:[%s54 + $0x160] sm:$0xff]
          %145 = vst [vmem:[%s55 + $0x160] sm:$0xff] %v144
          %v146 = vld [vmem:[%s54 + $0x168] sm:$0xff]
          %147 = vst [vmem:[%s55 + $0x168] sm:$0xff] %v146
          %v148 = vld [vmem:[%s54 + $0x170] sm:$0xff]
          %149 = vst [vmem:[%s55 + $0x170] sm:$0xff] %v148
          %v150 = vld [vmem:[%s54 + $0x178] sm:$0xff]
          %151 = vst [vmem:[%s55 + $0x178] sm:$0xff] %v150
          %v152 = vld [vmem:[%s54 + $0x180] sm:$0xff]
          %153 = vst [vmem:[%s55 + $0x180] sm:$0xff] %v152
          %v154 = vld [vmem:[%s54 + $0x188] sm:$0xff]
          %155 = vst [vmem:[%s55 + $0x188] sm:$0xff] %v154
          %v156 = vld [vmem:[%s54 + $0x190] sm:$0xff]
          %157 = vst [vmem:[%s55 + $0x190] sm:$0xff] %v156
          %v158 = vld [vmem:[%s54 + $0x198] sm:$0xff]
          %159 = vst [vmem:[%s55 + $0x198] sm:$0xff] %v158
          %v160 = vld [vmem:[%s54 + $0x1a0] sm:$0xff]
          %161 = vst [vmem:[%s55 + $0x1a0] sm:$0xff] %v160
          %v162 = vld [vmem:[%s54 + $0x1a8] sm:$0xff]
          %163 = vst [vmem:[%s55 + $0x1a8] sm:$0xff] %v162
          %v164 = vld [vmem:[%s54 + $0x1b0] sm:$0xff]
          %165 = vst [vmem:[%s55 + $0x1b0] sm:$0xff] %v164
          %v166 = vld [vmem:[%s54 + $0x1b8] sm:$0xff]
          %167 = vst [vmem:[%s55 + $0x1b8] sm:$0xff] %v166
          %v168 = vld [vmem:[%s54 + $0x1c0] sm:$0xff]
          %169 = vst [vmem:[%s55 + $0x1c0] sm:$0xff] %v168
          %v170 = vld [vmem:[%s54 + $0x1c8] sm:$0xff]
          %171 = vst [vmem:[%s55 + $0x1c8] sm:$0xff] %v170
          %v172 = vld [vmem:[%s54 + $0x1d0] sm:$0xff]
          %173 = vst [vmem:[%s55 + $0x1d0] sm:$0xff] %v172
          %v174 = vld [vmem:[%s54 + $0x1d8] sm:$0xff]
          %175 = vst [vmem:[%s55 + $0x1d8] sm:$0xff] %v174
          %v176 = vld [vmem:[%s54 + $0x1e0] sm:$0xff]
          %177 = vst [vmem:[%s55 + $0x1e0] sm:$0xff] %v176
          %v178 = vld [vmem:[%s54 + $0x1e8] sm:$0xff]
          %179 = vst [vmem:[%s55 + $0x1e8] sm:$0xff] %v178
          %v180 = vld [vmem:[%s54 + $0x1f0] sm:$0xff]
          %181 = vst [vmem:[%s55 + $0x1f0] sm:$0xff] %v180
          %v182 = vld [vmem:[%s54 + $0x1f8] sm:$0xff]
          %183 = vst [vmem:[%s55 + $0x1f8] sm:$0xff] %v182
          %v184 = vld [vmem:[%s54 + $0x200] sm:$0xff]
          %185 = vst [vmem:[%s55 + $0x200] sm:$0xff] %v184
          %v186 = vld [vmem:[%s54 + $0x208] sm:$0xff]
          %187 = vst [vmem:[%s55 + $0x208] sm:$0xff] %v186
          %v188 = vld [vmem:[%s54 + $0x210] sm:$0xff]
          %189 = vst [vmem:[%s55 + $0x210] sm:$0xff] %v188
          %v190 = vld [vmem:[%s54 + $0x218] sm:$0xff]
          %191 = vst [vmem:[%s55 + $0x218] sm:$0xff] %v190
          %v192 = vld [vmem:[%s54 + $0x220] sm:$0xff]
          %193 = vst [vmem:[%s55 + $0x220] sm:$0xff] %v192
          %v194 = vld [vmem:[%s54 + $0x228] sm:$0xff]
          %195 = vst [vmem:[%s55 + $0x228] sm:$0xff] %v194
          %v196 = vld [vmem:[%s54 + $0x230] sm:$0xff]
          %197 = vst [vmem:[%s55 + $0x230] sm:$0xff] %v196
          %v198 = vld [vmem:[%s54 + $0x238] sm:$0xff]
          %199 = vst [vmem:[%s55 + $0x238] sm:$0xff] %v198
          %v200 = vld [vmem:[%s54 + $0x240] sm:$0xff]
          %201 = vst [vmem:[%s55 + $0x240] sm:$0xff] %v200
          %v202 = vld [vmem:[%s54 + $0x248] sm:$0xff]
          %203 = vst [vmem:[%s55 + $0x248] sm:$0xff] %v202
          %v204 = vld [vmem:[%s54 + $0x250] sm:$0xff]
          %205 = vst [vmem:[%s55 + $0x250] sm:$0xff] %v204
          %v206 = vld [vmem:[%s54 + $0x258] sm:$0xff]
          %207 = vst [vmem:[%s55 + $0x258] sm:$0xff] %v206
          %v208 = vld [vmem:[%s54 + $0x260] sm:$0xff]
          %209 = vst [vmem:[%s55 + $0x260] sm:$0xff] %v208
          %v210 = vld [vmem:[%s54 + $0x268] sm:$0xff]
          %211 = vst [vmem:[%s55 + $0x268] sm:$0xff] %v210
          %v212 = vld [vmem:[%s54 + $0x270] sm:$0xff]
          %213 = vst [vmem:[%s55 + $0x270] sm:$0xff] %v212
          %v214 = vld [vmem:[%s54 + $0x278] sm:$0xff]
          %215 = vst [vmem:[%s55 + $0x278] sm:$0xff] %v214
          %v216 = vld [vmem:[%s54 + $0x280] sm:$0xff]
          %217 = vst [vmem:[%s55 + $0x280] sm:$0xff] %v216
          %v218 = vld [vmem:[%s54 + $0x288] sm:$0xff]
          %219 = vst [vmem:[%s55 + $0x288] sm:$0xff] %v218
          %v220 = vld [vmem:[%s54 + $0x290] sm:$0xff]
          %221 = vst [vmem:[%s55 + $0x290] sm:$0xff] %v220
          %v222 = vld [vmem:[%s54 + $0x298] sm:$0xff]
          %223 = vst [vmem:[%s55 + $0x298] sm:$0xff] %v222
          %v224 = vld [vmem:[%s54 + $0x2a0] sm:$0xff]
          %225 = vst [vmem:[%s55 + $0x2a0] sm:$0xff] %v224
          %v226 = vld [vmem:[%s54 + $0x2a8] sm:$0xff]
          %227 = vst [vmem:[%s55 + $0x2a8] sm:$0xff] %v226
          %v228 = vld [vmem:[%s54 + $0x2b0] sm:$0xff]
          %229 = vst [vmem:[%s55 + $0x2b0] sm:$0xff] %v228
          %v230 = vld [vmem:[%s54 + $0x2b8] sm:$0xff]
          %231 = vst [vmem:[%s55 + $0x2b8] sm:$0xff] %v230
          %v232 = vld [vmem:[%s54 + $0x2c0] sm:$0xff]
          %233 = vst [vmem:[%s55 + $0x2c0] sm:$0xff] %v232
          %v234 = vld [vmem:[%s54 + $0x2c8] sm:$0xff]
          %235 = vst [vmem:[%s55 + $0x2c8] sm:$0xff] %v234
          %v236 = vld [vmem:[%s54 + $0x2d0] sm:$0xff]
          %237 = vst [vmem:[%s55 + $0x2d0] sm:$0xff] %v236
          %v238 = vld [vmem:[%s54 + $0x2d8] sm:$0xff]
          %239 = vst [vmem:[%s55 + $0x2d8] sm:$0xff] %v238
          %v240 = vld [vmem:[%s54 + $0x2e0] sm:$0xff]
          %241 = vst [vmem:[%s55 + $0x2e0] sm:$0xff] %v240
          %v242 = vld [vmem:[%s54 + $0x2e8] sm:$0xff]
          %243 = vst [vmem:[%s55 + $0x2e8] sm:$0xff] %v242
          %v244 = vld [vmem:[%s54 + $0x2f0] sm:$0xff]
          %245 = vst [vmem:[%s55 + $0x2f0] sm:$0xff] %v244
          %v246 = vld [vmem:[%s54 + $0x2f8] sm:$0xff]
          %247 = vst [vmem:[%s55 + $0x2f8] sm:$0xff] %v246
          %v248 = vld [vmem:[%s54 + $0x300] sm:$0xff]
          %249 = vst [vmem:[%s55 + $0x300] sm:$0xff] %v248
          %v250 = vld [vmem:[%s54 + $0x308] sm:$0xff]
          %251 = vst [vmem:[%s55 + $0x308] sm:$0xff] %v250
          %v252 = vld [vmem:[%s54 + $0x310] sm:$0xff]
          %253 = vst [vmem:[%s55 + $0x310] sm:$0xff] %v252
          %v254 = vld [vmem:[%s54 + $0x318] sm:$0xff]
          %255 = vst [vmem:[%s55 + $0x318] sm:$0xff] %v254
          %v256 = vld [vmem:[%s54 + $0x320] sm:$0xff]
          %257 = vst [vmem:[%s55 + $0x320] sm:$0xff] %v256
          %v258 = vld [vmem:[%s54 + $0x328] sm:$0xff]
          %259 = vst [vmem:[%s55 + $0x328] sm:$0xff] %v258
          %v260 = vld [vmem:[%s54 + $0x330] sm:$0xff]
          %261 = vst [vmem:[%s55 + $0x330] sm:$0xff] %v260
          %v262 = vld [vmem:[%s54 + $0x338] sm:$0xff]
          %263 = vst [vmem:[%s55 + $0x338] sm:$0xff] %v262
          %v264 = vld [vmem:[%s54 + $0x340] sm:$0xff]
          %265 = vst [vmem:[%s55 + $0x340] sm:$0xff] %v264
          %v266 = vld [vmem:[%s54 + $0x348] sm:$0xff]
          %267 = vst [vmem:[%s55 + $0x348] sm:$0xff] %v266
          %v268 = vld [vmem:[%s54 + $0x350] sm:$0xff]
          %269 = vst [vmem:[%s55 + $0x350] sm:$0xff] %v268
          %v270 = vld [vmem:[%s54 + $0x358] sm:$0xff]
          %271 = vst [vmem:[%s55 + $0x358] sm:$0xff] %v270
          %v272 = vld [vmem:[%s54 + $0x360] sm:$0xff]
          %273 = vst [vmem:[%s55 + $0x360] sm:$0xff] %v272
          %v274 = vld [vmem:[%s54 + $0x368] sm:$0xff]
          %275 = vst [vmem:[%s55 + $0x368] sm:$0xff] %v274
          %v276 = vld [vmem:[%s54 + $0x370] sm:$0xff]
          %277 = vst [vmem:[%s55 + $0x370] sm:$0xff] %v276
          %v278 = vld [vmem:[%s54 + $0x378] sm:$0xff]
          %279 = vst [vmem:[%s55 + $0x378] sm:$0xff] %v278
          %v280 = vld [vmem:[%s54 + $0x380] sm:$0xff]
          %281 = vst [vmem:[%s55 + $0x380] sm:$0xff] %v280
          %v282 = vld [vmem:[%s54 + $0x388] sm:$0xff]
          %283 = vst [vmem:[%s55 + $0x388] sm:$0xff] %v282
          %v284 = vld [vmem:[%s54 + $0x390] sm:$0xff]
          %285 = vst [vmem:[%s55 + $0x390] sm:$0xff] %v284
          %v286 = vld [vmem:[%s54 + $0x398] sm:$0xff]
          %287 = vst [vmem:[%s55 + $0x398] sm:$0xff] %v286
          %v288 = vld [vmem:[%s54 + $0x3a0] sm:$0xff]
          %289 = vst [vmem:[%s55 + $0x3a0] sm:$0xff] %v288
          %v290 = vld [vmem:[%s54 + $0x3a8] sm:$0xff]
          %291 = vst [vmem:[%s55 + $0x3a8] sm:$0xff] %v290
          %v292 = vld [vmem:[%s54 + $0x3b0] sm:$0xff]
          %293 = vst [vmem:[%s55 + $0x3b0] sm:$0xff] %v292
          %v294 = vld [vmem:[%s54 + $0x3b8] sm:$0xff]
          %295 = vst [vmem:[%s55 + $0x3b8] sm:$0xff] %v294
          %v296 = vld [vmem:[%s54 + $0x3c0] sm:$0xff]
          %297 = vst [vmem:[%s55 + $0x3c0] sm:$0xff] %v296
          %v298 = vld [vmem:[%s54 + $0x3c8] sm:$0xff]
          %299 = vst [vmem:[%s55 + $0x3c8] sm:$0xff] %v298
          %v300 = vld [vmem:[%s54 + $0x3d0] sm:$0xff]
          %301 = vst [vmem:[%s55 + $0x3d0] sm:$0xff] %v300
          %v302 = vld [vmem:[%s54 + $0x3d8] sm:$0xff]
          %303 = vst [vmem:[%s55 + $0x3d8] sm:$0xff] %v302
          %v304 = vld [vmem:[%s54 + $0x3e0] sm:$0xff]
          %305 = vst [vmem:[%s55 + $0x3e0] sm:$0xff] %v304
          %v306 = vld [vmem:[%s54 + $0x3e8] sm:$0xff]
          %307 = vst [vmem:[%s55 + $0x3e8] sm:$0xff] %v306
          %v308 = vld [vmem:[%s54 + $0x3f0] sm:$0xff]
          %309 = vst [vmem:[%s55 + $0x3f0] sm:$0xff] %v308
          %v310 = vld [vmem:[%s54 + $0x3f8] sm:$0xff]
          %311 = vst [vmem:[%s55 + $0x3f8] sm:$0xff] %v310
          %v312 = vld [vmem:[%s54 + $0x400] sm:$0xff]
          %313 = vst [vmem:[%s55 + $0x400] sm:$0xff] %v312
          %v314 = vld [vmem:[%s54 + $0x408] sm:$0xff]
          %315 = vst [vmem:[%s55 + $0x408] sm:$0xff] %v314
          %v316 = vld [vmem:[%s54 + $0x410] sm:$0xff]
          %317 = vst [vmem:[%s55 + $0x410] sm:$0xff] %v316
          %v318 = vld [vmem:[%s54 + $0x418] sm:$0xff]
          %319 = vst [vmem:[%s55 + $0x418] sm:$0xff] %v318
          %v320 = vld [vmem:[%s54 + $0x420] sm:$0xff]
          %321 = vst [vmem:[%s55 + $0x420] sm:$0xff] %v320
          %v322 = vld [vmem:[%s54 + $0x428] sm:$0xff]
          %323 = vst [vmem:[%s55 + $0x428] sm:$0xff] %v322
          %v324 = vld [vmem:[%s54 + $0x430] sm:$0xff]
          %325 = vst [vmem:[%s55 + $0x430] sm:$0xff] %v324
          %v326 = vld [vmem:[%s54 + $0x438] sm:$0xff]
          %327 = vst [vmem:[%s55 + $0x438] sm:$0xff] %v326
          %v328 = vld [vmem:[%s54 + $0x440] sm:$0xff]
          %329 = vst [vmem:[%s55 + $0x440] sm:$0xff] %v328
          %v330 = vld [vmem:[%s54 + $0x448] sm:$0xff]
          %331 = vst [vmem:[%s55 + $0x448] sm:$0xff] %v330
          %v332 = vld [vmem:[%s54 + $0x450] sm:$0xff]
          %333 = vst [vmem:[%s55 + $0x450] sm:$0xff] %v332
          %v334 = vld [vmem:[%s54 + $0x458] sm:$0xff]
          %335 = vst [vmem:[%s55 + $0x458] sm:$0xff] %v334
          %v336 = vld [vmem:[%s54 + $0x460] sm:$0xff]
          %337 = vst [vmem:[%s55 + $0x460] sm:$0xff] %v336
          %v338 = vld [vmem:[%s54 + $0x468] sm:$0xff]
          %339 = vst [vmem:[%s55 + $0x468] sm:$0xff] %v338
          %v340 = vld [vmem:[%s54 + $0x470] sm:$0xff]
          %341 = vst [vmem:[%s55 + $0x470] sm:$0xff] %v340
          %v342 = vld [vmem:[%s54 + $0x478] sm:$0xff]
          %343 = vst [vmem:[%s55 + $0x478] sm:$0xff] %v342
          %v344 = vld [vmem:[%s54 + $0x480] sm:$0xff]
          %345 = vst [vmem:[%s55 + $0x480] sm:$0xff] %v344
          %v346 = vld [vmem:[%s54 + $0x488] sm:$0xff]
          %347 = vst [vmem:[%s55 + $0x488] sm:$0xff] %v346
          %v348 = vld [vmem:[%s54 + $0x490] sm:$0xff]
          %349 = vst [vmem:[%s55 + $0x490] sm:$0xff] %v348
          %v350 = vld [vmem:[%s54 + $0x498] sm:$0xff]
          %351 = vst [vmem:[%s55 + $0x498] sm:$0xff] %v350
          %v352 = vld [vmem:[%s54 + $0x4a0] sm:$0xff]
          %353 = vst [vmem:[%s55 + $0x4a0] sm:$0xff] %v352
          %v354 = vld [vmem:[%s54 + $0x4a8] sm:$0xff]
          %355 = vst [vmem:[%s55 + $0x4a8] sm:$0xff] %v354
          %v356 = vld [vmem:[%s54 + $0x4b0] sm:$0xff]
          %357 = vst [vmem:[%s55 + $0x4b0] sm:$0xff] %v356
          %v358 = vld [vmem:[%s54 + $0x4b8] sm:$0xff]
          %359 = vst [vmem:[%s55 + $0x4b8] sm:$0xff] %v358
          %v360 = vld [vmem:[%s54 + $0x4c0] sm:$0xff]
          %361 = vst [vmem:[%s55 + $0x4c0] sm:$0xff] %v360
          %v362 = vld [vmem:[%s54 + $0x4c8] sm:$0xff]
          %363 = vst [vmem:[%s55 + $0x4c8] sm:$0xff] %v362
          %v364 = vld [vmem:[%s54 + $0x4d0] sm:$0xff]
          %365 = vst [vmem:[%s55 + $0x4d0] sm:$0xff] %v364
          %v366 = vld [vmem:[%s54 + $0x4d8] sm:$0xff]
          %367 = vst [vmem:[%s55 + $0x4d8] sm:$0xff] %v366
          %v368 = vld [vmem:[%s54 + $0x4e0] sm:$0xff]
          %369 = vst [vmem:[%s55 + $0x4e0] sm:$0xff] %v368
          %v370 = vld [vmem:[%s54 + $0x4e8] sm:$0xff]
          %371 = vst [vmem:[%s55 + $0x4e8] sm:$0xff] %v370
          %v372 = vld [vmem:[%s54 + $0x4f0] sm:$0xff]
          %373 = vst [vmem:[%s55 + $0x4f0] sm:$0xff] %v372
          %v374 = vld [vmem:[%s54 + $0x4f8] sm:$0xff]
          %375 = vst [vmem:[%s55 + $0x4f8] sm:$0xff] %v374
          %v376 = vld [vmem:[%s54 + $0x500] sm:$0xff]
          %377 = vst [vmem:[%s55 + $0x500] sm:$0xff] %v376
          %v378 = vld [vmem:[%s54 + $0x508] sm:$0xff]
          %379 = vst [vmem:[%s55 + $0x508] sm:$0xff] %v378
          %v380 = vld [vmem:[%s54 + $0x510] sm:$0xff]
          %381 = vst [vmem:[%s55 + $0x510] sm:$0xff] %v380
          %v382 = vld [vmem:[%s54 + $0x518] sm:$0xff]
          %383 = vst [vmem:[%s55 + $0x518] sm:$0xff] %v382
          %v384 = vld [vmem:[%s54 + $0x520] sm:$0xff]
          %385 = vst [vmem:[%s55 + $0x520] sm:$0xff] %v384
          %v386 = vld [vmem:[%s54 + $0x528] sm:$0xff]
          %387 = vst [vmem:[%s55 + $0x528] sm:$0xff] %v386
          %v388 = vld [vmem:[%s54 + $0x530] sm:$0xff]
          %389 = vst [vmem:[%s55 + $0x530] sm:$0xff] %v388
          %v390 = vld [vmem:[%s54 + $0x538] sm:$0xff]
          %391 = vst [vmem:[%s55 + $0x538] sm:$0xff] %v390
          %v392 = vld [vmem:[%s54 + $0x540] sm:$0xff]
          %393 = vst [vmem:[%s55 + $0x540] sm:$0xff] %v392
          %v394 = vld [vmem:[%s54 + $0x548] sm:$0xff]
          %395 = vst [vmem:[%s55 + $0x548] sm:$0xff] %v394
          %v396 = vld [vmem:[%s54 + $0x550] sm:$0xff]
          %397 = vst [vmem:[%s55 + $0x550] sm:$0xff] %v396
          %v398 = vld [vmem:[%s54 + $0x558] sm:$0xff]
          %399 = vst [vmem:[%s55 + $0x558] sm:$0xff] %v398
          %v400 = vld [vmem:[%s54 + $0x560] sm:$0xff]
          %401 = vst [vmem:[%s55 + $0x560] sm:$0xff] %v400
          %v402 = vld [vmem:[%s54 + $0x568] sm:$0xff]
          %403 = vst [vmem:[%s55 + $0x568] sm:$0xff] %v402
          %v404 = vld [vmem:[%s54 + $0x570] sm:$0xff]
          %405 = vst [vmem:[%s55 + $0x570] sm:$0xff] %v404
          %v406 = vld [vmem:[%s54 + $0x578] sm:$0xff]
          %407 = vst [vmem:[%s55 + $0x578] sm:$0xff] %v406
          %v408 = vld [vmem:[%s54 + $0x580] sm:$0xff]
          %409 = vst [vmem:[%s55 + $0x580] sm:$0xff] %v408
          %v410 = vld [vmem:[%s54 + $0x588] sm:$0xff]
          %411 = vst [vmem:[%s55 + $0x588] sm:$0xff] %v410
          %v412 = vld [vmem:[%s54 + $0x590] sm:$0xff]
          %413 = vst [vmem:[%s55 + $0x590] sm:$0xff] %v412
          %v414 = vld [vmem:[%s54 + $0x598] sm:$0xff]
          %415 = vst [vmem:[%s55 + $0x598] sm:$0xff] %v414
          %v416 = vld [vmem:[%s54 + $0x5a0] sm:$0xff]
          %417 = vst [vmem:[%s55 + $0x5a0] sm:$0xff] %v416
          %v418 = vld [vmem:[%s54 + $0x5a8] sm:$0xff]
          %419 = vst [vmem:[%s55 + $0x5a8] sm:$0xff] %v418
          %v420 = vld [vmem:[%s54 + $0x5b0] sm:$0xff]
          %421 = vst [vmem:[%s55 + $0x5b0] sm:$0xff] %v420
          %v422 = vld [vmem:[%s54 + $0x5b8] sm:$0xff]
          %423 = vst [vmem:[%s55 + $0x5b8] sm:$0xff] %v422
          %v424 = vld [vmem:[%s54 + $0x5c0] sm:$0xff]
          %425 = vst [vmem:[%s55 + $0x5c0] sm:$0xff] %v424
          %v426 = vld [vmem:[%s54 + $0x5c8] sm:$0xff]
          %427 = vst [vmem:[%s55 + $0x5c8] sm:$0xff] %v426
          %v428 = vld [vmem:[%s54 + $0x5d0] sm:$0xff]
          %429 = vst [vmem:[%s55 + $0x5d0] sm:$0xff] %v428
          %v430 = vld [vmem:[%s54 + $0x5d8] sm:$0xff]
          %431 = vst [vmem:[%s55 + $0x5d8] sm:$0xff] %v430
          %v432 = vld [vmem:[%s54 + $0x5e0] sm:$0xff]
          %433 = vst [vmem:[%s55 + $0x5e0] sm:$0xff] %v432
          %v434 = vld [vmem:[%s54 + $0x5e8] sm:$0xff]
          %435 = vst [vmem:[%s55 + $0x5e8] sm:$0xff] %v434
          %v436 = vld [vmem:[%s54 + $0x5f0] sm:$0xff]
          %437 = vst [vmem:[%s55 + $0x5f0] sm:$0xff] %v436
          %v438 = vld [vmem:[%s54 + $0x5f8] sm:$0xff]
          %439 = vst [vmem:[%s55 + $0x5f8] sm:$0xff] %v438
          %v440 = vld [vmem:[%s54 + $0x600] sm:$0xff]
          %441 = vst [vmem:[%s55 + $0x600] sm:$0xff] %v440
          %v442 = vld [vmem:[%s54 + $0x608] sm:$0xff]
          %443 = vst [vmem:[%s55 + $0x608] sm:$0xff] %v442
          %v444 = vld [vmem:[%s54 + $0x610] sm:$0xff]
          %445 = vst [vmem:[%s55 + $0x610] sm:$0xff] %v444
          %v446 = vld [vmem:[%s54 + $0x618] sm:$0xff]
          %447 = vst [vmem:[%s55 + $0x618] sm:$0xff] %v446
          %v448 = vld [vmem:[%s54 + $0x620] sm:$0xff]
          %449 = vst [vmem:[%s55 + $0x620] sm:$0xff] %v448
          %v450 = vld [vmem:[%s54 + $0x628] sm:$0xff]
          %451 = vst [vmem:[%s55 + $0x628] sm:$0xff] %v450
          %v452 = vld [vmem:[%s54 + $0x630] sm:$0xff]
          %453 = vst [vmem:[%s55 + $0x630] sm:$0xff] %v452
          %v454 = vld [vmem:[%s54 + $0x638] sm:$0xff]
          %455 = vst [vmem:[%s55 + $0x638] sm:$0xff] %v454
          %v456 = vld [vmem:[%s54 + $0x640] sm:$0xff]
          %457 = vst [vmem:[%s55 + $0x640] sm:$0xff] %v456
          %v458 = vld [vmem:[%s54 + $0x648] sm:$0xff]
          %459 = vst [vmem:[%s55 + $0x648] sm:$0xff] %v458
          %v460 = vld [vmem:[%s54 + $0x650] sm:$0xff]
          %461 = vst [vmem:[%s55 + $0x650] sm:$0xff] %v460
          %v462 = vld [vmem:[%s54 + $0x658] sm:$0xff]
          %463 = vst [vmem:[%s55 + $0x658] sm:$0xff] %v462
          %v464 = vld [vmem:[%s54 + $0x660] sm:$0xff]
          %465 = vst [vmem:[%s55 + $0x660] sm:$0xff] %v464
          %v466 = vld [vmem:[%s54 + $0x668] sm:$0xff]
          %467 = vst [vmem:[%s55 + $0x668] sm:$0xff] %v466
          %v468 = vld [vmem:[%s54 + $0x670] sm:$0xff]
          %469 = vst [vmem:[%s55 + $0x670] sm:$0xff] %v468
          %v470 = vld [vmem:[%s54 + $0x678] sm:$0xff]
          %471 = vst [vmem:[%s55 + $0x678] sm:$0xff] %v470
          %v472 = vld [vmem:[%s54 + $0x680] sm:$0xff]
          %473 = vst [vmem:[%s55 + $0x680] sm:$0xff] %v472
          %v474 = vld [vmem:[%s54 + $0x688] sm:$0xff]
          %475 = vst [vmem:[%s55 + $0x688] sm:$0xff] %v474
          %v476 = vld [vmem:[%s54 + $0x690] sm:$0xff]
          %477 = vst [vmem:[%s55 + $0x690] sm:$0xff] %v476
          %v478 = vld [vmem:[%s54 + $0x698] sm:$0xff]
          %479 = vst [vmem:[%s55 + $0x698] sm:$0xff] %v478
          %v480 = vld [vmem:[%s54 + $0x6a0] sm:$0xff]
          %481 = vst [vmem:[%s55 + $0x6a0] sm:$0xff] %v480
          %v482 = vld [vmem:[%s54 + $0x6a8] sm:$0xff]
          %483 = vst [vmem:[%s55 + $0x6a8] sm:$0xff] %v482
          %v484 = vld [vmem:[%s54 + $0x6b0] sm:$0xff]
          %485 = vst [vmem:[%s55 + $0x6b0] sm:$0xff] %v484
          %v486 = vld [vmem:[%s54 + $0x6b8] sm:$0xff]
          %487 = vst [vmem:[%s55 + $0x6b8] sm:$0xff] %v486
          %v488 = vld [vmem:[%s54 + $0x6c0] sm:$0xff]
          %489 = vst [vmem:[%s55 + $0x6c0] sm:$0xff] %v488
          %v490 = vld [vmem:[%s54 + $0x6c8] sm:$0xff]
          %491 = vst [vmem:[%s55 + $0x6c8] sm:$0xff] %v490
          %v492 = vld [vmem:[%s54 + $0x6d0] sm:$0xff]
          %493 = vst [vmem:[%s55 + $0x6d0] sm:$0xff] %v492
          %v494 = vld [vmem:[%s54 + $0x6d8] sm:$0xff]
          %495 = vst [vmem:[%s55 + $0x6d8] sm:$0xff] %v494
          %v496 = vld [vmem:[%s54 + $0x6e0] sm:$0xff]
          %497 = vst [vmem:[%s55 + $0x6e0] sm:$0xff] %v496
          %v498 = vld [vmem:[%s54 + $0x6e8] sm:$0xff]
          %499 = vst [vmem:[%s55 + $0x6e8] sm:$0xff] %v498
          %v500 = vld [vmem:[%s54 + $0x6f0] sm:$0xff]
          %501 = vst [vmem:[%s55 + $0x6f0] sm:$0xff] %v500
          %v502 = vld [vmem:[%s54 + $0x6f8] sm:$0xff]
          %503 = vst [vmem:[%s55 + $0x6f8] sm:$0xff] %v502
          %v504 = vld [vmem:[%s54 + $0x700] sm:$0xff]
          %505 = vst [vmem:[%s55 + $0x700] sm:$0xff] %v504
          %v506 = vld [vmem:[%s54 + $0x708] sm:$0xff]
          %507 = vst [vmem:[%s55 + $0x708] sm:$0xff] %v506
          %v508 = vld [vmem:[%s54 + $0x710] sm:$0xff]
          %509 = vst [vmem:[%s55 + $0x710] sm:$0xff] %v508
          %v510 = vld [vmem:[%s54 + $0x718] sm:$0xff]
          %511 = vst [vmem:[%s55 + $0x718] sm:$0xff] %v510
          %v512 = vld [vmem:[%s54 + $0x720] sm:$0xff]
          %513 = vst [vmem:[%s55 + $0x720] sm:$0xff] %v512
          %v514 = vld [vmem:[%s54 + $0x728] sm:$0xff]
          %515 = vst [vmem:[%s55 + $0x728] sm:$0xff] %v514
          %v516 = vld [vmem:[%s54 + $0x730] sm:$0xff]
          %517 = vst [vmem:[%s55 + $0x730] sm:$0xff] %v516
          %v518 = vld [vmem:[%s54 + $0x738] sm:$0xff]
          %519 = vst [vmem:[%s55 + $0x738] sm:$0xff] %v518
          %v520 = vld [vmem:[%s54 + $0x740] sm:$0xff]
          %521 = vst [vmem:[%s55 + $0x740] sm:$0xff] %v520
          %v522 = vld [vmem:[%s54 + $0x748] sm:$0xff]
          %523 = vst [vmem:[%s55 + $0x748] sm:$0xff] %v522
          %v524 = vld [vmem:[%s54 + $0x750] sm:$0xff]
          %525 = vst [vmem:[%s55 + $0x750] sm:$0xff] %v524
          %v526 = vld [vmem:[%s54 + $0x758] sm:$0xff]
          %527 = vst [vmem:[%s55 + $0x758] sm:$0xff] %v526
          %v528 = vld [vmem:[%s54 + $0x760] sm:$0xff]
          %529 = vst [vmem:[%s55 + $0x760] sm:$0xff] %v528
          %v530 = vld [vmem:[%s54 + $0x768] sm:$0xff]
          %531 = vst [vmem:[%s55 + $0x768] sm:$0xff] %v530
          %v532 = vld [vmem:[%s54 + $0x770] sm:$0xff]
          %533 = vst [vmem:[%s55 + $0x770] sm:$0xff] %v532
          %v534 = vld [vmem:[%s54 + $0x778] sm:$0xff]
          %535 = vst [vmem:[%s55 + $0x778] sm:$0xff] %v534
          %v536 = vld [vmem:[%s54 + $0x780] sm:$0xff]
          %537 = vst [vmem:[%s55 + $0x780] sm:$0xff] %v536
          %v538 = vld [vmem:[%s54 + $0x788] sm:$0xff]
          %539 = vst [vmem:[%s55 + $0x788] sm:$0xff] %v538
          %v540 = vld [vmem:[%s54 + $0x790] sm:$0xff]
          %541 = vst [vmem:[%s55 + $0x790] sm:$0xff] %v540
          %v542 = vld [vmem:[%s54 + $0x798] sm:$0xff]
          %543 = vst [vmem:[%s55 + $0x798] sm:$0xff] %v542
          %v544 = vld [vmem:[%s54 + $0x7a0] sm:$0xff]
          %545 = vst [vmem:[%s55 + $0x7a0] sm:$0xff] %v544
          %v546 = vld [vmem:[%s54 + $0x7a8] sm:$0xff]
          %547 = vst [vmem:[%s55 + $0x7a8] sm:$0xff] %v546
          %v548 = vld [vmem:[%s54 + $0x7b0] sm:$0xff]
          %549 = vst [vmem:[%s55 + $0x7b0] sm:$0xff] %v548
          %v550 = vld [vmem:[%s54 + $0x7b8] sm:$0xff]
          %551 = vst [vmem:[%s55 + $0x7b8] sm:$0xff] %v550
          %v552 = vld [vmem:[%s54 + $0x7c0] sm:$0xff]
          %553 = vst [vmem:[%s55 + $0x7c0] sm:$0xff] %v552
          %v554 = vld [vmem:[%s54 + $0x7c8] sm:$0xff]
          %555 = vst [vmem:[%s55 + $0x7c8] sm:$0xff] %v554
          %v556 = vld [vmem:[%s54 + $0x7d0] sm:$0xff]
          %557 = vst [vmem:[%s55 + $0x7d0] sm:$0xff] %v556
          %v558 = vld [vmem:[%s54 + $0x7d8] sm:$0xff]
          %559 = vst [vmem:[%s55 + $0x7d8] sm:$0xff] %v558
          %v560 = vld [vmem:[%s54 + $0x7e0] sm:$0xff]
          %561 = vst [vmem:[%s55 + $0x7e0] sm:$0xff] %v560
          %v562 = vld [vmem:[%s54 + $0x7e8] sm:$0xff]
          %563 = vst [vmem:[%s55 + $0x7e8] sm:$0xff] %v562
          %v564 = vld [vmem:[%s54 + $0x7f0] sm:$0xff]
          %565 = vst [vmem:[%s55 + $0x7f0] sm:$0xff] %v564
          %v566 = vld [vmem:[%s54 + $0x7f8] sm:$0xff]
          %567 = vst [vmem:[%s55 + $0x7f8] sm:$0xff] %v566
          %v568 = vld [vmem:[%s54 + $0x800] sm:$0xff]
          %569 = vst [vmem:[%s55 + $0x800] sm:$0xff] %v568
          %v570 = vld [vmem:[%s54 + $0x808] sm:$0xff]
          %571 = vst [vmem:[%s55 + $0x808] sm:$0xff] %v570
          %v572 = vld [vmem:[%s54 + $0x810] sm:$0xff]
          %573 = vst [vmem:[%s55 + $0x810] sm:$0xff] %v572
          %v574 = vld [vmem:[%s54 + $0x818] sm:$0xff]
          %575 = vst [vmem:[%s55 + $0x818] sm:$0xff] %v574
          %v576 = vld [vmem:[%s54 + $0x820] sm:$0xff]
          %577 = vst [vmem:[%s55 + $0x820] sm:$0xff] %v576
          %v578 = vld [vmem:[%s54 + $0x828] sm:$0xff]
          %579 = vst [vmem:[%s55 + $0x828] sm:$0xff] %v578
          %v580 = vld [vmem:[%s54 + $0x830] sm:$0xff]
          %581 = vst [vmem:[%s55 + $0x830] sm:$0xff] %v580
          %v582 = vld [vmem:[%s54 + $0x838] sm:$0xff]
          %583 = vst [vmem:[%s55 + $0x838] sm:$0xff] %v582
          %v584 = vld [vmem:[%s54 + $0x840] sm:$0xff]
          %585 = vst [vmem:[%s55 + $0x840] sm:$0xff] %v584
          %v586 = vld [vmem:[%s54 + $0x848] sm:$0xff]
          %587 = vst [vmem:[%s55 + $0x848] sm:$0xff] %v586
          %v588 = vld [vmem:[%s54 + $0x850] sm:$0xff]
          %589 = vst [vmem:[%s55 + $0x850] sm:$0xff] %v588
          %v590 = vld [vmem:[%s54 + $0x858] sm:$0xff]
          %591 = vst [vmem:[%s55 + $0x858] sm:$0xff] %v590
          %v592 = vld [vmem:[%s54 + $0x860] sm:$0xff]
          %593 = vst [vmem:[%s55 + $0x860] sm:$0xff] %v592
          %v594 = vld [vmem:[%s54 + $0x868] sm:$0xff]
          %595 = vst [vmem:[%s55 + $0x868] sm:$0xff] %v594
          %v596 = vld [vmem:[%s54 + $0x870] sm:$0xff]
          %597 = vst [vmem:[%s55 + $0x870] sm:$0xff] %v596
          %v598 = vld [vmem:[%s54 + $0x878] sm:$0xff]
          %599 = vst [vmem:[%s55 + $0x878] sm:$0xff] %v598
          %v600 = vld [vmem:[%s54 + $0x880] sm:$0xff]
          %601 = vst [vmem:[%s55 + $0x880] sm:$0xff] %v600
          %v602 = vld [vmem:[%s54 + $0x888] sm:$0xff]
          %603 = vst [vmem:[%s55 + $0x888] sm:$0xff] %v602
          %v604 = vld [vmem:[%s54 + $0x890] sm:$0xff]
          %605 = vst [vmem:[%s55 + $0x890] sm:$0xff] %v604
          %v606 = vld [vmem:[%s54 + $0x898] sm:$0xff]
          %607 = vst [vmem:[%s55 + $0x898] sm:$0xff] %v606
          %v608 = vld [vmem:[%s54 + $0x8a0] sm:$0xff]
          %609 = vst [vmem:[%s55 + $0x8a0] sm:$0xff] %v608
          %v610 = vld [vmem:[%s54 + $0x8a8] sm:$0xff]
          %611 = vst [vmem:[%s55 + $0x8a8] sm:$0xff] %v610
          %v612 = vld [vmem:[%s54 + $0x8b0] sm:$0xff]
          %613 = vst [vmem:[%s55 + $0x8b0] sm:$0xff] %v612
          %v614 = vld [vmem:[%s54 + $0x8b8] sm:$0xff]
          %615 = vst [vmem:[%s55 + $0x8b8] sm:$0xff] %v614
          %v616 = vld [vmem:[%s54 + $0x8c0] sm:$0xff]
          %617 = vst [vmem:[%s55 + $0x8c0] sm:$0xff] %v616
          %v618 = vld [vmem:[%s54 + $0x8c8] sm:$0xff]
          %619 = vst [vmem:[%s55 + $0x8c8] sm:$0xff] %v618
          %v620 = vld [vmem:[%s54 + $0x8d0] sm:$0xff]
          %621 = vst [vmem:[%s55 + $0x8d0] sm:$0xff] %v620
          %v622 = vld [vmem:[%s54 + $0x8d8] sm:$0xff]
          %623 = vst [vmem:[%s55 + $0x8d8] sm:$0xff] %v622
          %v624 = vld [vmem:[%s54 + $0x8e0] sm:$0xff]
          %625 = vst [vmem:[%s55 + $0x8e0] sm:$0xff] %v624
          %v626 = vld [vmem:[%s54 + $0x8e8] sm:$0xff]
          %627 = vst [vmem:[%s55 + $0x8e8] sm:$0xff] %v626
          %v628 = vld [vmem:[%s54 + $0x8f0] sm:$0xff]
          %629 = vst [vmem:[%s55 + $0x8f0] sm:$0xff] %v628
          %v630 = vld [vmem:[%s54 + $0x8f8] sm:$0xff]
          %631 = vst [vmem:[%s55 + $0x8f8] sm:$0xff] %v630
          %v632 = vld [vmem:[%s54 + $0x900] sm:$0xff]
          %633 = vst [vmem:[%s55 + $0x900] sm:$0xff] %v632
          %v634 = vld [vmem:[%s54 + $0x908] sm:$0xff]
          %635 = vst [vmem:[%s55 + $0x908] sm:$0xff] %v634
          %v636 = vld [vmem:[%s54 + $0x910] sm:$0xff]
          %637 = vst [vmem:[%s55 + $0x910] sm:$0xff] %v636
          %v638 = vld [vmem:[%s54 + $0x918] sm:$0xff]
          %639 = vst [vmem:[%s55 + $0x918] sm:$0xff] %v638
          %v640 = vld [vmem:[%s54 + $0x920] sm:$0xff]
          %641 = vst [vmem:[%s55 + $0x920] sm:$0xff] %v640
          %v642 = vld [vmem:[%s54 + $0x928] sm:$0xff]
          %643 = vst [vmem:[%s55 + $0x928] sm:$0xff] %v642
          %v644 = vld [vmem:[%s54 + $0x930] sm:$0xff]
          %645 = vst [vmem:[%s55 + $0x930] sm:$0xff] %v644
          %v646 = vld [vmem:[%s54 + $0x938] sm:$0xff]
          %647 = vst [vmem:[%s55 + $0x938] sm:$0xff] %v646
          %v648 = vld [vmem:[%s54 + $0x940] sm:$0xff]
          %649 = vst [vmem:[%s55 + $0x940] sm:$0xff] %v648
          %v650 = vld [vmem:[%s54 + $0x948] sm:$0xff]
          %651 = vst [vmem:[%s55 + $0x948] sm:$0xff] %v650
          %v652 = vld [vmem:[%s54 + $0x950] sm:$0xff]
          %653 = vst [vmem:[%s55 + $0x950] sm:$0xff] %v652
          %v654 = vld [vmem:[%s54 + $0x958] sm:$0xff]
          %655 = vst [vmem:[%s55 + $0x958] sm:$0xff] %v654
          %v656 = vld [vmem:[%s54 + $0x960] sm:$0xff]
          %657 = vst [vmem:[%s55 + $0x960] sm:$0xff] %v656
          %v658 = vld [vmem:[%s54 + $0x968] sm:$0xff]
          %659 = vst [vmem:[%s55 + $0x968] sm:$0xff] %v658
          %v660 = vld [vmem:[%s54 + $0x970] sm:$0xff]
          %661 = vst [vmem:[%s55 + $0x970] sm:$0xff] %v660
          %v662 = vld [vmem:[%s54 + $0x978] sm:$0xff]
          %663 = vst [vmem:[%s55 + $0x978] sm:$0xff] %v662
          %v664 = vld [vmem:[%s54 + $0x980] sm:$0xff]
          %665 = vst [vmem:[%s55 + $0x980] sm:$0xff] %v664
          %v666 = vld [vmem:[%s54 + $0x988] sm:$0xff]
          %667 = vst [vmem:[%s55 + $0x988] sm:$0xff] %v666
          %v668 = vld [vmem:[%s54 + $0x990] sm:$0xff]
          %669 = vst [vmem:[%s55 + $0x990] sm:$0xff] %v668
          %v670 = vld [vmem:[%s54 + $0x998] sm:$0xff]
          %671 = vst [vmem:[%s55 + $0x998] sm:$0xff] %v670
          %v672 = vld [vmem:[%s54 + $0x9a0] sm:$0xff]
          %673 = vst [vmem:[%s55 + $0x9a0] sm:$0xff] %v672
          %v674 = vld [vmem:[%s54 + $0x9a8] sm:$0xff]
          %675 = vst [vmem:[%s55 + $0x9a8] sm:$0xff] %v674
          %v676 = vld [vmem:[%s54 + $0x9b0] sm:$0xff]
          %677 = vst [vmem:[%s55 + $0x9b0] sm:$0xff] %v676
          %v678 = vld [vmem:[%s54 + $0x9b8] sm:$0xff]
          %679 = vst [vmem:[%s55 + $0x9b8] sm:$0xff] %v678
          %v680 = vld [vmem:[%s54 + $0x9c0] sm:$0xff]
          %681 = vst [vmem:[%s55 + $0x9c0] sm:$0xff] %v680
          %v682 = vld [vmem:[%s54 + $0x9c8] sm:$0xff]
          %683 = vst [vmem:[%s55 + $0x9c8] sm:$0xff] %v682
          %v684 = vld [vmem:[%s54 + $0x9d0] sm:$0xff]
          %685 = vst [vmem:[%s55 + $0x9d0] sm:$0xff] %v684
          %v686 = vld [vmem:[%s54 + $0x9d8] sm:$0xff]
          %687 = vst [vmem:[%s55 + $0x9d8] sm:$0xff] %v686
          %v688 = vld [vmem:[%s54 + $0x9e0] sm:$0xff]
          %689 = vst [vmem:[%s55 + $0x9e0] sm:$0xff] %v688
          %v690 = vld [vmem:[%s54 + $0x9e8] sm:$0xff]
          %691 = vst [vmem:[%s55 + $0x9e8] sm:$0xff] %v690
          %v692 = vld [vmem:[%s54 + $0x9f0] sm:$0xff]
          %693 = vst [vmem:[%s55 + $0x9f0] sm:$0xff] %v692
          %v694 = vld [vmem:[%s54 + $0x9f8] sm:$0xff]
          %695 = vst [vmem:[%s55 + $0x9f8] sm:$0xff] %v694
          %v696 = vld [vmem:[%s54 + $0xa00] sm:$0xff]
          %697 = vst [vmem:[%s55 + $0xa00] sm:$0xff] %v696
          %v698 = vld [vmem:[%s54 + $0xa08] sm:$0xff]
          %699 = vst [vmem:[%s55 + $0xa08] sm:$0xff] %v698
          %v700 = vld [vmem:[%s54 + $0xa10] sm:$0xff]
          %701 = vst [vmem:[%s55 + $0xa10] sm:$0xff] %v700
          %v702 = vld [vmem:[%s54 + $0xa18] sm:$0xff]
          %703 = vst [vmem:[%s55 + $0xa18] sm:$0xff] %v702
          %v704 = vld [vmem:[%s54 + $0xa20] sm:$0xff]
          %705 = vst [vmem:[%s55 + $0xa20] sm:$0xff] %v704
          %v706 = vld [vmem:[%s54 + $0xa28] sm:$0xff]
          %707 = vst [vmem:[%s55 + $0xa28] sm:$0xff] %v706
          %v708 = vld [vmem:[%s54 + $0xa30] sm:$0xff]
          %709 = vst [vmem:[%s55 + $0xa30] sm:$0xff] %v708
          %v710 = vld [vmem:[%s54 + $0xa38] sm:$0xff]
          %711 = vst [vmem:[%s55 + $0xa38] sm:$0xff] %v710
          %v712 = vld [vmem:[%s54 + $0xa40] sm:$0xff]
          %713 = vst [vmem:[%s55 + $0xa40] sm:$0xff] %v712
          %v714 = vld [vmem:[%s54 + $0xa48] sm:$0xff]
          %715 = vst [vmem:[%s55 + $0xa48] sm:$0xff] %v714
          %v716 = vld [vmem:[%s54 + $0xa50] sm:$0xff]
          %717 = vst [vmem:[%s55 + $0xa50] sm:$0xff] %v716
          %v718 = vld [vmem:[%s54 + $0xa58] sm:$0xff]
          %719 = vst [vmem:[%s55 + $0xa58] sm:$0xff] %v718
          %v720 = vld [vmem:[%s54 + $0xa60] sm:$0xff]
          %721 = vst [vmem:[%s55 + $0xa60] sm:$0xff] %v720
          %v722 = vld [vmem:[%s54 + $0xa68] sm:$0xff]
          %723 = vst [vmem:[%s55 + $0xa68] sm:$0xff] %v722
          %v724 = vld [vmem:[%s54 + $0xa70] sm:$0xff]
          %725 = vst [vmem:[%s55 + $0xa70] sm:$0xff] %v724
          %v726 = vld [vmem:[%s54 + $0xa78] sm:$0xff]
          %727 = vst [vmem:[%s55 + $0xa78] sm:$0xff] %v726
          %v728 = vld [vmem:[%s54 + $0xa80] sm:$0xff]
          %729 = vst [vmem:[%s55 + $0xa80] sm:$0xff] %v728
          %v730 = vld [vmem:[%s54 + $0xa88] sm:$0xff]
          %731 = vst [vmem:[%s55 + $0xa88] sm:$0xff] %v730
          %v732 = vld [vmem:[%s54 + $0xa90] sm:$0xff]
          %733 = vst [vmem:[%s55 + $0xa90] sm:$0xff] %v732
          %v734 = vld [vmem:[%s54 + $0xa98] sm:$0xff]
          %735 = vst [vmem:[%s55 + $0xa98] sm:$0xff] %v734
          %v736 = vld [vmem:[%s54 + $0xaa0] sm:$0xff]
          %737 = vst [vmem:[%s55 + $0xaa0] sm:$0xff] %v736
          %v738 = vld [vmem:[%s54 + $0xaa8] sm:$0xff]
          %739 = vst [vmem:[%s55 + $0xaa8] sm:$0xff] %v738
          %v740 = vld [vmem:[%s54 + $0xab0] sm:$0xff]
          %741 = vst [vmem:[%s55 + $0xab0] sm:$0xff] %v740
          %v742 = vld [vmem:[%s54 + $0xab8] sm:$0xff]
          %743 = vst [vmem:[%s55 + $0xab8] sm:$0xff] %v742
          %v744 = vld [vmem:[%s54 + $0xac0] sm:$0xff]
          %745 = vst [vmem:[%s55 + $0xac0] sm:$0xff] %v744
          %v746 = vld [vmem:[%s54 + $0xac8] sm:$0xff]
          %747 = vst [vmem:[%s55 + $0xac8] sm:$0xff] %v746
          %v748 = vld [vmem:[%s54 + $0xad0] sm:$0xff]
          %749 = vst [vmem:[%s55 + $0xad0] sm:$0xff] %v748
          %v750 = vld [vmem:[%s54 + $0xad8] sm:$0xff]
          %751 = vst [vmem:[%s55 + $0xad8] sm:$0xff] %v750
          %v752 = vld [vmem:[%s54 + $0xae0] sm:$0xff]
          %753 = vst [vmem:[%s55 + $0xae0] sm:$0xff] %v752
          %v754 = vld [vmem:[%s54 + $0xae8] sm:$0xff]
          %755 = vst [vmem:[%s55 + $0xae8] sm:$0xff] %v754
          %v756 = vld [vmem:[%s54 + $0xaf0] sm:$0xff]
          %757 = vst [vmem:[%s55 + $0xaf0] sm:$0xff] %v756
          %v758 = vld [vmem:[%s54 + $0xaf8] sm:$0xff]
          %759 = vst [vmem:[%s55 + $0xaf8] sm:$0xff] %v758
          %v760 = vld [vmem:[%s54 + $0xb00] sm:$0xff]
          %761 = vst [vmem:[%s55 + $0xb00] sm:$0xff] %v760
          %v762 = vld [vmem:[%s54 + $0xb08] sm:$0xff]
          %763 = vst [vmem:[%s55 + $0xb08] sm:$0xff] %v762
          %v764 = vld [vmem:[%s54 + $0xb10] sm:$0xff]
          %765 = vst [vmem:[%s55 + $0xb10] sm:$0xff] %v764
          %v766 = vld [vmem:[%s54 + $0xb18] sm:$0xff]
          %767 = vst [vmem:[%s55 + $0xb18] sm:$0xff] %v766
          %v768 = vld [vmem:[%s54 + $0xb20] sm:$0xff]
          %769 = vst [vmem:[%s55 + $0xb20] sm:$0xff] %v768
          %v770 = vld [vmem:[%s54 + $0xb28] sm:$0xff]
          %771 = vst [vmem:[%s55 + $0xb28] sm:$0xff] %v770
          %v772 = vld [vmem:[%s54 + $0xb30] sm:$0xff]
          %773 = vst [vmem:[%s55 + $0xb30] sm:$0xff] %v772
          %v774 = vld [vmem:[%s54 + $0xb38] sm:$0xff]
          %775 = vst [vmem:[%s55 + $0xb38] sm:$0xff] %v774
          %v776 = vld [vmem:[%s54 + $0xb40] sm:$0xff]
          %777 = vst [vmem:[%s55 + $0xb40] sm:$0xff] %v776
          %v778 = vld [vmem:[%s54 + $0xb48] sm:$0xff]
          %779 = vst [vmem:[%s55 + $0xb48] sm:$0xff] %v778
          %v780 = vld [vmem:[%s54 + $0xb50] sm:$0xff]
          %781 = vst [vmem:[%s55 + $0xb50] sm:$0xff] %v780
          %v782 = vld [vmem:[%s54 + $0xb58] sm:$0xff]
          %783 = vst [vmem:[%s55 + $0xb58] sm:$0xff] %v782
          %v784 = vld [vmem:[%s54 + $0xb60] sm:$0xff]
          %785 = vst [vmem:[%s55 + $0xb60] sm:$0xff] %v784
          %v786 = vld [vmem:[%s54 + $0xb68] sm:$0xff]
          %787 = vst [vmem:[%s55 + $0xb68] sm:$0xff] %v786
          %v788 = vld [vmem:[%s54 + $0xb70] sm:$0xff]
          %789 = vst [vmem:[%s55 + $0xb70] sm:$0xff] %v788
          %v790 = vld [vmem:[%s54 + $0xb78] sm:$0xff]
          %791 = vst [vmem:[%s55 + $0xb78] sm:$0xff] %v790
          %v792 = vld [vmem:[%s54 + $0xb80] sm:$0xff]
          %793 = vst [vmem:[%s55 + $0xb80] sm:$0xff] %v792
          %v794 = vld [vmem:[%s54 + $0xb88] sm:$0xff]
          %795 = vst [vmem:[%s55 + $0xb88] sm:$0xff] %v794
          %v796 = vld [vmem:[%s54 + $0xb90] sm:$0xff]
          %797 = vst [vmem:[%s55 + $0xb90] sm:$0xff] %v796
          %v798 = vld [vmem:[%s54 + $0xb98] sm:$0xff]
          %799 = vst [vmem:[%s55 + $0xb98] sm:$0xff] %v798
          %v800 = vld [vmem:[%s54 + $0xba0] sm:$0xff]
          %801 = vst [vmem:[%s55 + $0xba0] sm:$0xff] %v800
          %v802 = vld [vmem:[%s54 + $0xba8] sm:$0xff]
          %803 = vst [vmem:[%s55 + $0xba8] sm:$0xff] %v802
          %v804 = vld [vmem:[%s54 + $0xbb0] sm:$0xff]
          %805 = vst [vmem:[%s55 + $0xbb0] sm:$0xff] %v804
          %v806 = vld [vmem:[%s54 + $0xbb8] sm:$0xff]
          %807 = vst [vmem:[%s55 + $0xbb8] sm:$0xff] %v806
          %v808 = vld [vmem:[%s54 + $0xbc0] sm:$0xff]
          %809 = vst [vmem:[%s55 + $0xbc0] sm:$0xff] %v808
          %v810 = vld [vmem:[%s54 + $0xbc8] sm:$0xff]
          %811 = vst [vmem:[%s55 + $0xbc8] sm:$0xff] %v810
          %v812 = vld [vmem:[%s54 + $0xbd0] sm:$0xff]
          %813 = vst [vmem:[%s55 + $0xbd0] sm:$0xff] %v812
          %v814 = vld [vmem:[%s54 + $0xbd8] sm:$0xff]
          %815 = vst [vmem:[%s55 + $0xbd8] sm:$0xff] %v814
          %v816 = vld [vmem:[%s54 + $0xbe0] sm:$0xff]
          %817 = vst [vmem:[%s55 + $0xbe0] sm:$0xff] %v816
          %v818 = vld [vmem:[%s54 + $0xbe8] sm:$0xff]
          %819 = vst [vmem:[%s55 + $0xbe8] sm:$0xff] %v818
          %v820 = vld [vmem:[%s54 + $0xbf0] sm:$0xff]
          %821 = vst [vmem:[%s55 + $0xbf0] sm:$0xff] %v820
          %v822 = vld [vmem:[%s54 + $0xbf8] sm:$0xff]
          %823 = vst [vmem:[%s55 + $0xbf8] sm:$0xff] %v822
          %v824 = vld [vmem:[%s54 + $0xc00] sm:$0xff]
          %825 = vst [vmem:[%s55 + $0xc00] sm:$0xff] %v824
          %v826 = vld [vmem:[%s54 + $0xc08] sm:$0xff]
          %827 = vst [vmem:[%s55 + $0xc08] sm:$0xff] %v826
          %v828 = vld [vmem:[%s54 + $0xc10] sm:$0xff]
          %829 = vst [vmem:[%s55 + $0xc10] sm:$0xff] %v828
          %v830 = vld [vmem:[%s54 + $0xc18] sm:$0xff]
          %831 = vst [vmem:[%s55 + $0xc18] sm:$0xff] %v830
          %v832 = vld [vmem:[%s54 + $0xc20] sm:$0xff]
          %833 = vst [vmem:[%s55 + $0xc20] sm:$0xff] %v832
          %v834 = vld [vmem:[%s54 + $0xc28] sm:$0xff]
          %835 = vst [vmem:[%s55 + $0xc28] sm:$0xff] %v834
          %v836 = vld [vmem:[%s54 + $0xc30] sm:$0xff]
          %837 = vst [vmem:[%s55 + $0xc30] sm:$0xff] %v836
          %v838 = vld [vmem:[%s54 + $0xc38] sm:$0xff]
          %839 = vst [vmem:[%s55 + $0xc38] sm:$0xff] %v838
          %v840 = vld [vmem:[%s54 + $0xc40] sm:$0xff]
          %841 = vst [vmem:[%s55 + $0xc40] sm:$0xff] %v840
          %v842 = vld [vmem:[%s54 + $0xc48] sm:$0xff]
          %843 = vst [vmem:[%s55 + $0xc48] sm:$0xff] %v842
          %v844 = vld [vmem:[%s54 + $0xc50] sm:$0xff]
          %845 = vst [vmem:[%s55 + $0xc50] sm:$0xff] %v844
          %v846 = vld [vmem:[%s54 + $0xc58] sm:$0xff]
          %847 = vst [vmem:[%s55 + $0xc58] sm:$0xff] %v846
          %v848 = vld [vmem:[%s54 + $0xc60] sm:$0xff]
          %849 = vst [vmem:[%s55 + $0xc60] sm:$0xff] %v848
          %v850 = vld [vmem:[%s54 + $0xc68] sm:$0xff]
          %851 = vst [vmem:[%s55 + $0xc68] sm:$0xff] %v850
          %v852 = vld [vmem:[%s54 + $0xc70] sm:$0xff]
          %853 = vst [vmem:[%s55 + $0xc70] sm:$0xff] %v852
          %v854 = vld [vmem:[%s54 + $0xc78] sm:$0xff]
          %855 = vst [vmem:[%s55 + $0xc78] sm:$0xff] %v854
          %v856 = vld [vmem:[%s54 + $0xc80] sm:$0xff]
          %857 = vst [vmem:[%s55 + $0xc80] sm:$0xff] %v856
          %v858 = vld [vmem:[%s54 + $0xc88] sm:$0xff]
          %859 = vst [vmem:[%s55 + $0xc88] sm:$0xff] %v858
          %v860 = vld [vmem:[%s54 + $0xc90] sm:$0xff]
          %861 = vst [vmem:[%s55 + $0xc90] sm:$0xff] %v860
          %v862 = vld [vmem:[%s54 + $0xc98] sm:$0xff]
          %863 = vst [vmem:[%s55 + $0xc98] sm:$0xff] %v862
          %v864 = vld [vmem:[%s54 + $0xca0] sm:$0xff]
          %865 = vst [vmem:[%s55 + $0xca0] sm:$0xff] %v864
          %v866 = vld [vmem:[%s54 + $0xca8] sm:$0xff]
          %867 = vst [vmem:[%s55 + $0xca8] sm:$0xff] %v866
          %v868 = vld [vmem:[%s54 + $0xcb0] sm:$0xff]
          %869 = vst [vmem:[%s55 + $0xcb0] sm:$0xff] %v868
          %v870 = vld [vmem:[%s54 + $0xcb8] sm:$0xff]
          %871 = vst [vmem:[%s55 + $0xcb8] sm:$0xff] %v870
          %v872 = vld [vmem:[%s54 + $0xcc0] sm:$0xff]
          %873 = vst [vmem:[%s55 + $0xcc0] sm:$0xff] %v872
          %v874 = vld [vmem:[%s54 + $0xcc8] sm:$0xff]
          %875 = vst [vmem:[%s55 + $0xcc8] sm:$0xff] %v874
          %v876 = vld [vmem:[%s54 + $0xcd0] sm:$0xff]
          %877 = vst [vmem:[%s55 + $0xcd0] sm:$0xff] %v876
          %v878 = vld [vmem:[%s54 + $0xcd8] sm:$0xff]
          %879 = vst [vmem:[%s55 + $0xcd8] sm:$0xff] %v878
          %v880 = vld [vmem:[%s54 + $0xce0] sm:$0xff]
          %881 = vst [vmem:[%s55 + $0xce0] sm:$0xff] %v880
          %v882 = vld [vmem:[%s54 + $0xce8] sm:$0xff]
          %883 = vst [vmem:[%s55 + $0xce8] sm:$0xff] %v882
          %v884 = vld [vmem:[%s54 + $0xcf0] sm:$0xff]
          %885 = vst [vmem:[%s55 + $0xcf0] sm:$0xff] %v884
          %v886 = vld [vmem:[%s54 + $0xcf8] sm:$0xff]
          %887 = vst [vmem:[%s55 + $0xcf8] sm:$0xff] %v886
          %v888 = vld [vmem:[%s54 + $0xd00] sm:$0xff]
          %889 = vst [vmem:[%s55 + $0xd00] sm:$0xff] %v888
          %v890 = vld [vmem:[%s54 + $0xd08] sm:$0xff]
          %891 = vst [vmem:[%s55 + $0xd08] sm:$0xff] %v890
          %v892 = vld [vmem:[%s54 + $0xd10] sm:$0xff]
          %893 = vst [vmem:[%s55 + $0xd10] sm:$0xff] %v892
          %v894 = vld [vmem:[%s54 + $0xd18] sm:$0xff]
          %895 = vst [vmem:[%s55 + $0xd18] sm:$0xff] %v894
          %v896 = vld [vmem:[%s54 + $0xd20] sm:$0xff]
          %897 = vst [vmem:[%s55 + $0xd20] sm:$0xff] %v896
          %v898 = vld [vmem:[%s54 + $0xd28] sm:$0xff]
          %899 = vst [vmem:[%s55 + $0xd28] sm:$0xff] %v898
          %v900 = vld [vmem:[%s54 + $0xd30] sm:$0xff]
          %901 = vst [vmem:[%s55 + $0xd30] sm:$0xff] %v900
          %v902 = vld [vmem:[%s54 + $0xd38] sm:$0xff]
          %903 = vst [vmem:[%s55 + $0xd38] sm:$0xff] %v902
          %v904 = vld [vmem:[%s54 + $0xd40] sm:$0xff]
          %905 = vst [vmem:[%s55 + $0xd40] sm:$0xff] %v904
          %v906 = vld [vmem:[%s54 + $0xd48] sm:$0xff]
          %907 = vst [vmem:[%s55 + $0xd48] sm:$0xff] %v906
          %v908 = vld [vmem:[%s54 + $0xd50] sm:$0xff]
          %909 = vst [vmem:[%s55 + $0xd50] sm:$0xff] %v908
          %v910 = vld [vmem:[%s54 + $0xd58] sm:$0xff]
          %911 = vst [vmem:[%s55 + $0xd58] sm:$0xff] %v910
          %v912 = vld [vmem:[%s54 + $0xd60] sm:$0xff]
          %913 = vst [vmem:[%s55 + $0xd60] sm:$0xff] %v912
          %v914 = vld [vmem:[%s54 + $0xd68] sm:$0xff]
          %915 = vst [vmem:[%s55 + $0xd68] sm:$0xff] %v914
          %v916 = vld [vmem:[%s54 + $0xd70] sm:$0xff]
          %917 = vst [vmem:[%s55 + $0xd70] sm:$0xff] %v916
          %v918 = vld [vmem:[%s54 + $0xd78] sm:$0xff]
          %919 = vst [vmem:[%s55 + $0xd78] sm:$0xff] %v918
          %v920 = vld [vmem:[%s54 + $0xd80] sm:$0xff]
          %921 = vst [vmem:[%s55 + $0xd80] sm:$0xff] %v920
          %v922 = vld [vmem:[%s54 + $0xd88] sm:$0xff]
          %923 = vst [vmem:[%s55 + $0xd88] sm:$0xff] %v922
          %v924 = vld [vmem:[%s54 + $0xd90] sm:$0xff]
          %925 = vst [vmem:[%s55 + $0xd90] sm:$0xff] %v924
          %v926 = vld [vmem:[%s54 + $0xd98] sm:$0xff]
          %927 = vst [vmem:[%s55 + $0xd98] sm:$0xff] %v926
          %v928 = vld [vmem:[%s54 + $0xda0] sm:$0xff]
          %929 = vst [vmem:[%s55 + $0xda0] sm:$0xff] %v928
          %v930 = vld [vmem:[%s54 + $0xda8] sm:$0xff]
          %931 = vst [vmem:[%s55 + $0xda8] sm:$0xff] %v930
          %v932 = vld [vmem:[%s54 + $0xdb0] sm:$0xff]
          %933 = vst [vmem:[%s55 + $0xdb0] sm:$0xff] %v932
          %v934 = vld [vmem:[%s54 + $0xdb8] sm:$0xff]
          %935 = vst [vmem:[%s55 + $0xdb8] sm:$0xff] %v934
          %v936 = vld [vmem:[%s54 + $0xdc0] sm:$0xff]
          %937 = vst [vmem:[%s55 + $0xdc0] sm:$0xff] %v936
          %v938 = vld [vmem:[%s54 + $0xdc8] sm:$0xff]
          %939 = vst [vmem:[%s55 + $0xdc8] sm:$0xff] %v938
          %v940 = vld [vmem:[%s54 + $0xdd0] sm:$0xff]
          %941 = vst [vmem:[%s55 + $0xdd0] sm:$0xff] %v940
          %v942 = vld [vmem:[%s54 + $0xdd8] sm:$0xff]
          %943 = vst [vmem:[%s55 + $0xdd8] sm:$0xff] %v942
          %v944 = vld [vmem:[%s54 + $0xde0] sm:$0xff]
          %945 = vst [vmem:[%s55 + $0xde0] sm:$0xff] %v944
          %v946 = vld [vmem:[%s54 + $0xde8] sm:$0xff]
          %947 = vst [vmem:[%s55 + $0xde8] sm:$0xff] %v946
          %v948 = vld [vmem:[%s54 + $0xdf0] sm:$0xff]
          %949 = vst [vmem:[%s55 + $0xdf0] sm:$0xff] %v948
          %v950 = vld [vmem:[%s54 + $0xdf8] sm:$0xff]
          %951 = vst [vmem:[%s55 + $0xdf8] sm:$0xff] %v950
          %v952 = vld [vmem:[%s54 + $0xe00] sm:$0xff]
          %953 = vst [vmem:[%s55 + $0xe00] sm:$0xff] %v952
          %v954 = vld [vmem:[%s54 + $0xe08] sm:$0xff]
          %955 = vst [vmem:[%s55 + $0xe08] sm:$0xff] %v954
          %v956 = vld [vmem:[%s54 + $0xe10] sm:$0xff]
          %957 = vst [vmem:[%s55 + $0xe10] sm:$0xff] %v956
          %v958 = vld [vmem:[%s54 + $0xe18] sm:$0xff]
          %959 = vst [vmem:[%s55 + $0xe18] sm:$0xff] %v958
          %v960 = vld [vmem:[%s54 + $0xe20] sm:$0xff]
          %961 = vst [vmem:[%s55 + $0xe20] sm:$0xff] %v960
          %v962 = vld [vmem:[%s54 + $0xe28] sm:$0xff]
          %963 = vst [vmem:[%s55 + $0xe28] sm:$0xff] %v962
          %v964 = vld [vmem:[%s54 + $0xe30] sm:$0xff]
          %965 = vst [vmem:[%s55 + $0xe30] sm:$0xff] %v964
          %v966 = vld [vmem:[%s54 + $0xe38] sm:$0xff]
          %967 = vst [vmem:[%s55 + $0xe38] sm:$0xff] %v966
          %v968 = vld [vmem:[%s54 + $0xe40] sm:$0xff]
          %969 = vst [vmem:[%s55 + $0xe40] sm:$0xff] %v968
          %v970 = vld [vmem:[%s54 + $0xe48] sm:$0xff]
          %971 = vst [vmem:[%s55 + $0xe48] sm:$0xff] %v970
          %v972 = vld [vmem:[%s54 + $0xe50] sm:$0xff]
          %973 = vst [vmem:[%s55 + $0xe50] sm:$0xff] %v972
          %v974 = vld [vmem:[%s54 + $0xe58] sm:$0xff]
          %975 = vst [vmem:[%s55 + $0xe58] sm:$0xff] %v974
          %v976 = vld [vmem:[%s54 + $0xe60] sm:$0xff]
          %977 = vst [vmem:[%s55 + $0xe60] sm:$0xff] %v976
          %v978 = vld [vmem:[%s54 + $0xe68] sm:$0xff]
          %979 = vst [vmem:[%s55 + $0xe68] sm:$0xff] %v978
          %v980 = vld [vmem:[%s54 + $0xe70] sm:$0xff]
          %981 = vst [vmem:[%s55 + $0xe70] sm:$0xff] %v980
          %v982 = vld [vmem:[%s54 + $0xe78] sm:$0xff]
          %983 = vst [vmem:[%s55 + $0xe78] sm:$0xff] %v982
          %v984 = vld [vmem:[%s54 + $0xe80] sm:$0xff]
          %985 = vst [vmem:[%s55 + $0xe80] sm:$0xff] %v984
          %v986 = vld [vmem:[%s54 + $0xe88] sm:$0xff]
          %987 = vst [vmem:[%s55 + $0xe88] sm:$0xff] %v986
          %v988 = vld [vmem:[%s54 + $0xe90] sm:$0xff]
          %989 = vst [vmem:[%s55 + $0xe90] sm:$0xff] %v988
          %v990 = vld [vmem:[%s54 + $0xe98] sm:$0xff]
          %991 = vst [vmem:[%s55 + $0xe98] sm:$0xff] %v990
          %v992 = vld [vmem:[%s54 + $0xea0] sm:$0xff]
          %993 = vst [vmem:[%s55 + $0xea0] sm:$0xff] %v992
          %v994 = vld [vmem:[%s54 + $0xea8] sm:$0xff]
          %995 = vst [vmem:[%s55 + $0xea8] sm:$0xff] %v994
          %v996 = vld [vmem:[%s54 + $0xeb0] sm:$0xff]
          %997 = vst [vmem:[%s55 + $0xeb0] sm:$0xff] %v996
          %v998 = vld [vmem:[%s54 + $0xeb8] sm:$0xff]
          %999 = vst [vmem:[%s55 + $0xeb8] sm:$0xff] %v998
          %v1000 = vld [vmem:[%s54 + $0xec0] sm:$0xff]
          %1001 = vst [vmem:[%s55 + $0xec0] sm:$0xff] %v1000
          %v1002 = vld [vmem:[%s54 + $0xec8] sm:$0xff]
          %1003 = vst [vmem:[%s55 + $0xec8] sm:$0xff] %v1002
          %v1004 = vld [vmem:[%s54 + $0xed0] sm:$0xff]
          %1005 = vst [vmem:[%s55 + $0xed0] sm:$0xff] %v1004
          %v1006 = vld [vmem:[%s54 + $0xed8] sm:$0xff]
          %1007 = vst [vmem:[%s55 + $0xed8] sm:$0xff] %v1006
          %v1008 = vld [vmem:[%s54 + $0xee0] sm:$0xff]
          %1009 = vst [vmem:[%s55 + $0xee0] sm:$0xff] %v1008
          %v1010 = vld [vmem:[%s54 + $0xee8] sm:$0xff]
          %1011 = vst [vmem:[%s55 + $0xee8] sm:$0xff] %v1010
          %v1012 = vld [vmem:[%s54 + $0xef0] sm:$0xff]
          %1013 = vst [vmem:[%s55 + $0xef0] sm:$0xff] %v1012
          %v1014 = vld [vmem:[%s54 + $0xef8] sm:$0xff]
          %1015 = vst [vmem:[%s55 + $0xef8] sm:$0xff] %v1014
          %v1016 = vld [vmem:[%s54 + $0xf00] sm:$0xff]
          %1017 = vst [vmem:[%s55 + $0xf00] sm:$0xff] %v1016
          %v1018 = vld [vmem:[%s54 + $0xf08] sm:$0xff]
          %1019 = vst [vmem:[%s55 + $0xf08] sm:$0xff] %v1018
          %v1020 = vld [vmem:[%s54 + $0xf10] sm:$0xff]
          %1021 = vst [vmem:[%s55 + $0xf10] sm:$0xff] %v1020
          %v1022 = vld [vmem:[%s54 + $0xf18] sm:$0xff]
          %1023 = vst [vmem:[%s55 + $0xf18] sm:$0xff] %v1022
          %v1024 = vld [vmem:[%s54 + $0xf20] sm:$0xff]
          %1025 = vst [vmem:[%s55 + $0xf20] sm:$0xff] %v1024
          %v1026 = vld [vmem:[%s54 + $0xf28] sm:$0xff]
          %1027 = vst [vmem:[%s55 + $0xf28] sm:$0xff] %v1026
          %v1028 = vld [vmem:[%s54 + $0xf30] sm:$0xff]
          %1029 = vst [vmem:[%s55 + $0xf30] sm:$0xff] %v1028
          %v1030 = vld [vmem:[%s54 + $0xf38] sm:$0xff]
          %1031 = vst [vmem:[%s55 + $0xf38] sm:$0xff] %v1030
          %v1032 = vld [vmem:[%s54 + $0xf40] sm:$0xff]
          %1033 = vst [vmem:[%s55 + $0xf40] sm:$0xff] %v1032
          %v1034 = vld [vmem:[%s54 + $0xf48] sm:$0xff]
          %1035 = vst [vmem:[%s55 + $0xf48] sm:$0xff] %v1034
          %v1036 = vld [vmem:[%s54 + $0xf50] sm:$0xff]
          %1037 = vst [vmem:[%s55 + $0xf50] sm:$0xff] %v1036
          %v1038 = vld [vmem:[%s54 + $0xf58] sm:$0xff]
          %1039 = vst [vmem:[%s55 + $0xf58] sm:$0xff] %v1038
          %v1040 = vld [vmem:[%s54 + $0xf60] sm:$0xff]
          %1041 = vst [vmem:[%s55 + $0xf60] sm:$0xff] %v1040
          %v1042 = vld [vmem:[%s54 + $0xf68] sm:$0xff]
          %1043 = vst [vmem:[%s55 + $0xf68] sm:$0xff] %v1042
          %v1044 = vld [vmem:[%s54 + $0xf70] sm:$0xff]
          %1045 = vst [vmem:[%s55 + $0xf70] sm:$0xff] %v1044
          %v1046 = vld [vmem:[%s54 + $0xf78] sm:$0xff]
          %1047 = vst [vmem:[%s55 + $0xf78] sm:$0xff] %v1046
          %v1048 = vld [vmem:[%s54 + $0xf80] sm:$0xff]
          %1049 = vst [vmem:[%s55 + $0xf80] sm:$0xff] %v1048
          %v1050 = vld [vmem:[%s54 + $0xf88] sm:$0xff]
          %1051 = vst [vmem:[%s55 + $0xf88] sm:$0xff] %v1050
          %v1052 = vld [vmem:[%s54 + $0xf90] sm:$0xff]
          %1053 = vst [vmem:[%s55 + $0xf90] sm:$0xff] %v1052
          %v1054 = vld [vmem:[%s54 + $0xf98] sm:$0xff]
          %1055 = vst [vmem:[%s55 + $0xf98] sm:$0xff] %v1054
          %v1056 = vld [vmem:[%s54 + $0xfa0] sm:$0xff]
          %1057 = vst [vmem:[%s55 + $0xfa0] sm:$0xff] %v1056
          %v1058 = vld [vmem:[%s54 + $0xfa8] sm:$0xff]
          %1059 = vst [vmem:[%s55 + $0xfa8] sm:$0xff] %v1058
          %v1060 = vld [vmem:[%s54 + $0xfb0] sm:$0xff]
          %1061 = vst [vmem:[%s55 + $0xfb0] sm:$0xff] %v1060
          %v1062 = vld [vmem:[%s54 + $0xfb8] sm:$0xff]
          %1063 = vst [vmem:[%s55 + $0xfb8] sm:$0xff] %v1062
          %v1064 = vld [vmem:[%s54 + $0xfc0] sm:$0xff]
          %1065 = vst [vmem:[%s55 + $0xfc0] sm:$0xff] %v1064
          %v1066 = vld [vmem:[%s54 + $0xfc8] sm:$0xff]
          %1067 = vst [vmem:[%s55 + $0xfc8] sm:$0xff] %v1066
          %v1068 = vld [vmem:[%s54 + $0xfd0] sm:$0xff]
          %1069 = vst [vmem:[%s55 + $0xfd0] sm:$0xff] %v1068
          %v1070 = vld [vmem:[%s54 + $0xfd8] sm:$0xff]
          %1071 = vst [vmem:[%s55 + $0xfd8] sm:$0xff] %v1070
          %v1072 = vld [vmem:[%s54 + $0xfe0] sm:$0xff]
          %1073 = vst [vmem:[%s55 + $0xfe0] sm:$0xff] %v1072
          %v1074 = vld [vmem:[%s54 + $0xfe8] sm:$0xff]
          %1075 = vst [vmem:[%s55 + $0xfe8] sm:$0xff] %v1074
          %v1076 = vld [vmem:[%s54 + $0xff0] sm:$0xff]
          %1077 = vst [vmem:[%s55 + $0xff0] sm:$0xff] %v1076
          %v1078 = vld [vmem:[%s54 + $0xff8] sm:$0xff]
          %1079 = vst [vmem:[%s55 + $0xff8] sm:$0xff] %v1078
          %v1080 = vld [vmem:[%s54 + $0x1000] sm:$0xff]
          %1081 = vst [vmem:[%s55 + $0x1000] sm:$0xff] %v1080
          %v1082 = vld [vmem:[%s54 + $0x1008] sm:$0xff]
          %1083 = vst [vmem:[%s55 + $0x1008] sm:$0xff] %v1082
          %v1084 = vld [vmem:[%s54 + $0x1010] sm:$0xff]
          %1085 = vst [vmem:[%s55 + $0x1010] sm:$0xff] %v1084
          %v1086 = vld [vmem:[%s54 + $0x1018] sm:$0xff]
          %1087 = vst [vmem:[%s55 + $0x1018] sm:$0xff] %v1086
          %v1088 = vld [vmem:[%s54 + $0x1020] sm:$0xff]
          %1089 = vst [vmem:[%s55 + $0x1020] sm:$0xff] %v1088
          %v1090 = vld [vmem:[%s54 + $0x1028] sm:$0xff]
          %1091 = vst [vmem:[%s55 + $0x1028] sm:$0xff] %v1090
          %v1092 = vld [vmem:[%s54 + $0x1030] sm:$0xff]
          %1093 = vst [vmem:[%s55 + $0x1030] sm:$0xff] %v1092
          %v1094 = vld [vmem:[%s54 + $0x1038] sm:$0xff]
          %1095 = vst [vmem:[%s55 + $0x1038] sm:$0xff] %v1094
          %v1096 = vld [vmem:[%s54 + $0x1040] sm:$0xff]
          %1097 = vst [vmem:[%s55 + $0x1040] sm:$0xff] %v1096
          %v1098 = vld [vmem:[%s54 + $0x1048] sm:$0xff]
          %1099 = vst [vmem:[%s55 + $0x1048] sm:$0xff] %v1098
          %v1100 = vld [vmem:[%s54 + $0x1050] sm:$0xff]
          %1101 = vst [vmem:[%s55 + $0x1050] sm:$0xff] %v1100
          %v1102 = vld [vmem:[%s54 + $0x1058] sm:$0xff]
          %1103 = vst [vmem:[%s55 + $0x1058] sm:$0xff] %v1102
          %v1104 = vld [vmem:[%s54 + $0x1060] sm:$0xff]
          %1105 = vst [vmem:[%s55 + $0x1060] sm:$0xff] %v1104
          %v1106 = vld [vmem:[%s54 + $0x1068] sm:$0xff]
          %1107 = vst [vmem:[%s55 + $0x1068] sm:$0xff] %v1106
          %v1108 = vld [vmem:[%s54 + $0x1070] sm:$0xff]
          %1109 = vst [vmem:[%s55 + $0x1070] sm:$0xff] %v1108
          %v1110 = vld [vmem:[%s54 + $0x1078] sm:$0xff]
          %1111 = vst [vmem:[%s55 + $0x1078] sm:$0xff] %v1110
          %v1112 = vld [vmem:[%s54 + $0x1080] sm:$0xff]
          %1113 = vst [vmem:[%s55 + $0x1080] sm:$0xff] %v1112
          %v1114 = vld [vmem:[%s54 + $0x1088] sm:$0xff]
          %1115 = vst [vmem:[%s55 + $0x1088] sm:$0xff] %v1114
          %v1116 = vld [vmem:[%s54 + $0x1090] sm:$0xff]
          %1117 = vst [vmem:[%s55 + $0x1090] sm:$0xff] %v1116
          %v1118 = vld [vmem:[%s54 + $0x1098] sm:$0xff]
          %1119 = vst [vmem:[%s55 + $0x1098] sm:$0xff] %v1118
          %v1120 = vld [vmem:[%s54 + $0x10a0] sm:$0xff]
          %1121 = vst [vmem:[%s55 + $0x10a0] sm:$0xff] %v1120
          %v1122 = vld [vmem:[%s54 + $0x10a8] sm:$0xff]
          %1123 = vst [vmem:[%s55 + $0x10a8] sm:$0xff] %v1122
          %v1124 = vld [vmem:[%s54 + $0x10b0] sm:$0xff]
          %1125 = vst [vmem:[%s55 + $0x10b0] sm:$0xff] %v1124
          %v1126 = vld [vmem:[%s54 + $0x10b8] sm:$0xff]
          %1127 = vst [vmem:[%s55 + $0x10b8] sm:$0xff] %v1126
          %v1128 = vld [vmem:[%s54 + $0x10c0] sm:$0xff]
          %1129 = vst [vmem:[%s55 + $0x10c0] sm:$0xff] %v1128
          %v1130 = vld [vmem:[%s54 + $0x10c8] sm:$0xff]
          %1131 = vst [vmem:[%s55 + $0x10c8] sm:$0xff] %v1130
          %v1132 = vld [vmem:[%s54 + $0x10d0] sm:$0xff]
          %1133 = vst [vmem:[%s55 + $0x10d0] sm:$0xff] %v1132
          %v1134 = vld [vmem:[%s54 + $0x10d8] sm:$0xff]
          %1135 = vst [vmem:[%s55 + $0x10d8] sm:$0xff] %v1134
          %v1136 = vld [vmem:[%s54 + $0x10e0] sm:$0xff]
          %1137 = vst [vmem:[%s55 + $0x10e0] sm:$0xff] %v1136
          %v1138 = vld [vmem:[%s54 + $0x10e8] sm:$0xff]
          %1139 = vst [vmem:[%s55 + $0x10e8] sm:$0xff] %v1138
          %v1140 = vld [vmem:[%s54 + $0x10f0] sm:$0xff]
          %1141 = vst [vmem:[%s55 + $0x10f0] sm:$0xff] %v1140
          %v1142 = vld [vmem:[%s54 + $0x10f8] sm:$0xff]
          %1143 = vst [vmem:[%s55 + $0x10f8] sm:$0xff] %v1142
          %v1144 = vld [vmem:[%s54 + $0x1100] sm:$0xff]
          %1145 = vst [vmem:[%s55 + $0x1100] sm:$0xff] %v1144
          %v1146 = vld [vmem:[%s54 + $0x1108] sm:$0xff]
          %1147 = vst [vmem:[%s55 + $0x1108] sm:$0xff] %v1146
          %v1148 = vld [vmem:[%s54 + $0x1110] sm:$0xff]
          %1149 = vst [vmem:[%s55 + $0x1110] sm:$0xff] %v1148
          %v1150 = vld [vmem:[%s54 + $0x1118] sm:$0xff]
          %1151 = vst [vmem:[%s55 + $0x1118] sm:$0xff] %v1150
          %v1152 = vld [vmem:[%s54 + $0x1120] sm:$0xff]
          %1153 = vst [vmem:[%s55 + $0x1120] sm:$0xff] %v1152
          %v1154 = vld [vmem:[%s54 + $0x1128] sm:$0xff]
          %1155 = vst [vmem:[%s55 + $0x1128] sm:$0xff] %v1154
          %v1156 = vld [vmem:[%s54 + $0x1130] sm:$0xff]
          %1157 = vst [vmem:[%s55 + $0x1130] sm:$0xff] %v1156
          %v1158 = vld [vmem:[%s54 + $0x1138] sm:$0xff]
          %1159 = vst [vmem:[%s55 + $0x1138] sm:$0xff] %v1158
          %v1160 = vld [vmem:[%s54 + $0x1140] sm:$0xff]
          %1161 = vst [vmem:[%s55 + $0x1140] sm:$0xff] %v1160
          %v1162 = vld [vmem:[%s54 + $0x1148] sm:$0xff]
          %1163 = vst [vmem:[%s55 + $0x1148] sm:$0xff] %v1162
          %v1164 = vld [vmem:[%s54 + $0x1150] sm:$0xff]
          %1165 = vst [vmem:[%s55 + $0x1150] sm:$0xff] %v1164
          %v1166 = vld [vmem:[%s54 + $0x1158] sm:$0xff]
          %1167 = vst [vmem:[%s55 + $0x1158] sm:$0xff] %v1166
          %v1168 = vld [vmem:[%s54 + $0x1160] sm:$0xff]
          %1169 = vst [vmem:[%s55 + $0x1160] sm:$0xff] %v1168
          %v1170 = vld [vmem:[%s54 + $0x1168] sm:$0xff]
          %1171 = vst [vmem:[%s55 + $0x1168] sm:$0xff] %v1170
          %v1172 = vld [vmem:[%s54 + $0x1170] sm:$0xff]
          %1173 = vst [vmem:[%s55 + $0x1170] sm:$0xff] %v1172
          %v1174 = vld [vmem:[%s54 + $0x1178] sm:$0xff]
          %1175 = vst [vmem:[%s55 + $0x1178] sm:$0xff] %v1174
          %v1176 = vld [vmem:[%s54 + $0x1180] sm:$0xff]
          %1177 = vst [vmem:[%s55 + $0x1180] sm:$0xff] %v1176
          %v1178 = vld [vmem:[%s54 + $0x1188] sm:$0xff]
          %1179 = vst [vmem:[%s55 + $0x1188] sm:$0xff] %v1178
          %v1180 = vld [vmem:[%s54 + $0x1190] sm:$0xff]
          %1181 = vst [vmem:[%s55 + $0x1190] sm:$0xff] %v1180
          %v1182 = vld [vmem:[%s54 + $0x1198] sm:$0xff]
          %1183 = vst [vmem:[%s55 + $0x1198] sm:$0xff] %v1182
          %v1184 = vld [vmem:[%s54 + $0x11a0] sm:$0xff]
          %1185 = vst [vmem:[%s55 + $0x11a0] sm:$0xff] %v1184
          %v1186 = vld [vmem:[%s54 + $0x11a8] sm:$0xff]
          %1187 = vst [vmem:[%s55 + $0x11a8] sm:$0xff] %v1186
          %v1188 = vld [vmem:[%s54 + $0x11b0] sm:$0xff]
          %1189 = vst [vmem:[%s55 + $0x11b0] sm:$0xff] %v1188
          %v1190 = vld [vmem:[%s54 + $0x11b8] sm:$0xff]
          %1191 = vst [vmem:[%s55 + $0x11b8] sm:$0xff] %v1190
          %v1192 = vld [vmem:[%s54 + $0x11c0] sm:$0xff]
          %1193 = vst [vmem:[%s55 + $0x11c0] sm:$0xff] %v1192
          %v1194 = vld [vmem:[%s54 + $0x11c8] sm:$0xff]
          %1195 = vst [vmem:[%s55 + $0x11c8] sm:$0xff] %v1194
          %v1196 = vld [vmem:[%s54 + $0x11d0] sm:$0xff]
          %1197 = vst [vmem:[%s55 + $0x11d0] sm:$0xff] %v1196
          %v1198 = vld [vmem:[%s54 + $0x11d8] sm:$0xff]
          %1199 = vst [vmem:[%s55 + $0x11d8] sm:$0xff] %v1198
          %v1200 = vld [vmem:[%s54 + $0x11e0] sm:$0xff]
          %1201 = vst [vmem:[%s55 + $0x11e0] sm:$0xff] %v1200
          %v1202 = vld [vmem:[%s54 + $0x11e8] sm:$0xff]
          %1203 = vst [vmem:[%s55 + $0x11e8] sm:$0xff] %v1202
          %v1204 = vld [vmem:[%s54 + $0x11f0] sm:$0xff]
          %1205 = vst [vmem:[%s55 + $0x11f0] sm:$0xff] %v1204
          %v1206 = vld [vmem:[%s54 + $0x11f8] sm:$0xff]
          %1207 = vst [vmem:[%s55 + $0x11f8] sm:$0xff] %v1206
          %v1208 = vld [vmem:[%s54 + $0x1200] sm:$0xff]
          %1209 = vst [vmem:[%s55 + $0x1200] sm:$0xff] %v1208
          %v1210 = vld [vmem:[%s54 + $0x1208] sm:$0xff]
          %1211 = vst [vmem:[%s55 + $0x1208] sm:$0xff] %v1210
          %v1212 = vld [vmem:[%s54 + $0x1210] sm:$0xff]
          %1213 = vst [vmem:[%s55 + $0x1210] sm:$0xff] %v1212
          %v1214 = vld [vmem:[%s54 + $0x1218] sm:$0xff]
          %1215 = vst [vmem:[%s55 + $0x1218] sm:$0xff] %v1214
          %v1216 = vld [vmem:[%s54 + $0x1220] sm:$0xff]
          %1217 = vst [vmem:[%s55 + $0x1220] sm:$0xff] %v1216
          %v1218 = vld [vmem:[%s54 + $0x1228] sm:$0xff]
          %1219 = vst [vmem:[%s55 + $0x1228] sm:$0xff] %v1218
          %v1220 = vld [vmem:[%s54 + $0x1230] sm:$0xff]
          %1221 = vst [vmem:[%s55 + $0x1230] sm:$0xff] %v1220
          %v1222 = vld [vmem:[%s54 + $0x1238] sm:$0xff]
          %1223 = vst [vmem:[%s55 + $0x1238] sm:$0xff] %v1222
          %v1224 = vld [vmem:[%s54 + $0x1240] sm:$0xff]
          %1225 = vst [vmem:[%s55 + $0x1240] sm:$0xff] %v1224
          %v1226 = vld [vmem:[%s54 + $0x1248] sm:$0xff]
          %1227 = vst [vmem:[%s55 + $0x1248] sm:$0xff] %v1226
          %v1228 = vld [vmem:[%s54 + $0x1250] sm:$0xff]
          %1229 = vst [vmem:[%s55 + $0x1250] sm:$0xff] %v1228
          %v1230 = vld [vmem:[%s54 + $0x1258] sm:$0xff]
          %1231 = vst [vmem:[%s55 + $0x1258] sm:$0xff] %v1230
          %v1232 = vld [vmem:[%s54 + $0x1260] sm:$0xff]
          %1233 = vst [vmem:[%s55 + $0x1260] sm:$0xff] %v1232
          %v1234 = vld [vmem:[%s54 + $0x1268] sm:$0xff]
          %1235 = vst [vmem:[%s55 + $0x1268] sm:$0xff] %v1234
          %v1236 = vld [vmem:[%s54 + $0x1270] sm:$0xff]
          %1237 = vst [vmem:[%s55 + $0x1270] sm:$0xff] %v1236
          %v1238 = vld [vmem:[%s54 + $0x1278] sm:$0xff]
          %1239 = vst [vmem:[%s55 + $0x1278] sm:$0xff] %v1238
          %v1240 = vld [vmem:[%s54 + $0x1280] sm:$0xff]
          %1241 = vst [vmem:[%s55 + $0x1280] sm:$0xff] %v1240
          %v1242 = vld [vmem:[%s54 + $0x1288] sm:$0xff]
          %1243 = vst [vmem:[%s55 + $0x1288] sm:$0xff] %v1242
          %v1244 = vld [vmem:[%s54 + $0x1290] sm:$0xff]
          %1245 = vst [vmem:[%s55 + $0x1290] sm:$0xff] %v1244
          %v1246 = vld [vmem:[%s54 + $0x1298] sm:$0xff]
          %1247 = vst [vmem:[%s55 + $0x1298] sm:$0xff] %v1246
          %v1248 = vld [vmem:[%s54 + $0x12a0] sm:$0xff]
          %1249 = vst [vmem:[%s55 + $0x12a0] sm:$0xff] %v1248
          %v1250 = vld [vmem:[%s54 + $0x12a8] sm:$0xff]
          %1251 = vst [vmem:[%s55 + $0x12a8] sm:$0xff] %v1250
          %v1252 = vld [vmem:[%s54 + $0x12b0] sm:$0xff]
          %1253 = vst [vmem:[%s55 + $0x12b0] sm:$0xff] %v1252
          %v1254 = vld [vmem:[%s54 + $0x12b8] sm:$0xff]
          %1255 = vst [vmem:[%s55 + $0x12b8] sm:$0xff] %v1254
          %v1256 = vld [vmem:[%s54 + $0x12c0] sm:$0xff]
          %1257 = vst [vmem:[%s55 + $0x12c0] sm:$0xff] %v1256
          %v1258 = vld [vmem:[%s54 + $0x12c8] sm:$0xff]
          %1259 = vst [vmem:[%s55 + $0x12c8] sm:$0xff] %v1258
          %v1260 = vld [vmem:[%s54 + $0x12d0] sm:$0xff]
          %1261 = vst [vmem:[%s55 + $0x12d0] sm:$0xff] %v1260
          %v1262 = vld [vmem:[%s54 + $0x12d8] sm:$0xff]
          %1263 = vst [vmem:[%s55 + $0x12d8] sm:$0xff] %v1262
          %v1264 = vld [vmem:[%s54 + $0x12e0] sm:$0xff]
          %1265 = vst [vmem:[%s55 + $0x12e0] sm:$0xff] %v1264
          %v1266 = vld [vmem:[%s54 + $0x12e8] sm:$0xff]
          %1267 = vst [vmem:[%s55 + $0x12e8] sm:$0xff] %v1266
          %v1268 = vld [vmem:[%s54 + $0x12f0] sm:$0xff]
          %1269 = vst [vmem:[%s55 + $0x12f0] sm:$0xff] %v1268
          %v1270 = vld [vmem:[%s54 + $0x12f8] sm:$0xff]
          %1271 = vst [vmem:[%s55 + $0x12f8] sm:$0xff] %v1270
          %v1272 = vld [vmem:[%s54 + $0x1300] sm:$0xff]
          %1273 = vst [vmem:[%s55 + $0x1300] sm:$0xff] %v1272
          %v1274 = vld [vmem:[%s54 + $0x1308] sm:$0xff]
          %1275 = vst [vmem:[%s55 + $0x1308] sm:$0xff] %v1274
          %v1276 = vld [vmem:[%s54 + $0x1310] sm:$0xff]
          %1277 = vst [vmem:[%s55 + $0x1310] sm:$0xff] %v1276
          %v1278 = vld [vmem:[%s54 + $0x1318] sm:$0xff]
          %1279 = vst [vmem:[%s55 + $0x1318] sm:$0xff] %v1278
          %v1280 = vld [vmem:[%s54 + $0x1320] sm:$0xff]
          %1281 = vst [vmem:[%s55 + $0x1320] sm:$0xff] %v1280
          %v1282 = vld [vmem:[%s54 + $0x1328] sm:$0xff]
          %1283 = vst [vmem:[%s55 + $0x1328] sm:$0xff] %v1282
          %v1284 = vld [vmem:[%s54 + $0x1330] sm:$0xff]
          %1285 = vst [vmem:[%s55 + $0x1330] sm:$0xff] %v1284
          %v1286 = vld [vmem:[%s54 + $0x1338] sm:$0xff]
          %1287 = vst [vmem:[%s55 + $0x1338] sm:$0xff] %v1286
          %v1288 = vld [vmem:[%s54 + $0x1340] sm:$0xff]
          %1289 = vst [vmem:[%s55 + $0x1340] sm:$0xff] %v1288
          %v1290 = vld [vmem:[%s54 + $0x1348] sm:$0xff]
          %1291 = vst [vmem:[%s55 + $0x1348] sm:$0xff] %v1290
          %v1292 = vld [vmem:[%s54 + $0x1350] sm:$0xff]
          %1293 = vst [vmem:[%s55 + $0x1350] sm:$0xff] %v1292
          %v1294 = vld [vmem:[%s54 + $0x1358] sm:$0xff]
          %1295 = vst [vmem:[%s55 + $0x1358] sm:$0xff] %v1294
          %v1296 = vld [vmem:[%s54 + $0x1360] sm:$0xff]
          %1297 = vst [vmem:[%s55 + $0x1360] sm:$0xff] %v1296
          %v1298 = vld [vmem:[%s54 + $0x1368] sm:$0xff]
          %1299 = vst [vmem:[%s55 + $0x1368] sm:$0xff] %v1298
          %v1300 = vld [vmem:[%s54 + $0x1370] sm:$0xff]
          %1301 = vst [vmem:[%s55 + $0x1370] sm:$0xff] %v1300
          %v1302 = vld [vmem:[%s54 + $0x1378] sm:$0xff]
          %1303 = vst [vmem:[%s55 + $0x1378] sm:$0xff] %v1302
          %v1304 = vld [vmem:[%s54 + $0x1380] sm:$0xff]
          %1305 = vst [vmem:[%s55 + $0x1380] sm:$0xff] %v1304
          %v1306 = vld [vmem:[%s54 + $0x1388] sm:$0xff]
          %1307 = vst [vmem:[%s55 + $0x1388] sm:$0xff] %v1306
          %v1308 = vld [vmem:[%s54 + $0x1390] sm:$0xff]
          %1309 = vst [vmem:[%s55 + $0x1390] sm:$0xff] %v1308
          %v1310 = vld [vmem:[%s54 + $0x1398] sm:$0xff]
          %1311 = vst [vmem:[%s55 + $0x1398] sm:$0xff] %v1310
          %v1312 = vld [vmem:[%s54 + $0x13a0] sm:$0xff]
          %1313 = vst [vmem:[%s55 + $0x13a0] sm:$0xff] %v1312
          %v1314 = vld [vmem:[%s54 + $0x13a8] sm:$0xff]
          %1315 = vst [vmem:[%s55 + $0x13a8] sm:$0xff] %v1314
          %v1316 = vld [vmem:[%s54 + $0x13b0] sm:$0xff]
          %1317 = vst [vmem:[%s55 + $0x13b0] sm:$0xff] %v1316
          %v1318 = vld [vmem:[%s54 + $0x13b8] sm:$0xff]
          %1319 = vst [vmem:[%s55 + $0x13b8] sm:$0xff] %v1318
          %v1320 = vld [vmem:[%s54 + $0x13c0] sm:$0xff]
          %1321 = vst [vmem:[%s55 + $0x13c0] sm:$0xff] %v1320
          %v1322 = vld [vmem:[%s54 + $0x13c8] sm:$0xff]
          %1323 = vst [vmem:[%s55 + $0x13c8] sm:$0xff] %v1322
          %v1324 = vld [vmem:[%s54 + $0x13d0] sm:$0xff]
          %1325 = vst [vmem:[%s55 + $0x13d0] sm:$0xff] %v1324
          %v1326 = vld [vmem:[%s54 + $0x13d8] sm:$0xff]
          %1327 = vst [vmem:[%s55 + $0x13d8] sm:$0xff] %v1326
          %v1328 = vld [vmem:[%s54 + $0x13e0] sm:$0xff]
          %1329 = vst [vmem:[%s55 + $0x13e0] sm:$0xff] %v1328
          %v1330 = vld [vmem:[%s54 + $0x13e8] sm:$0xff]
          %1331 = vst [vmem:[%s55 + $0x13e8] sm:$0xff] %v1330
          %v1332 = vld [vmem:[%s54 + $0x13f0] sm:$0xff]
          %1333 = vst [vmem:[%s55 + $0x13f0] sm:$0xff] %v1332
          %v1334 = vld [vmem:[%s54 + $0x13f8] sm:$0xff]
          %1335 = vst [vmem:[%s55 + $0x13f8] sm:$0xff] %v1334
          %v1336 = vld [vmem:[%s54 + $0x1400] sm:$0xff]
          %1337 = vst [vmem:[%s55 + $0x1400] sm:$0xff] %v1336
          %v1338 = vld [vmem:[%s54 + $0x1408] sm:$0xff]
          %1339 = vst [vmem:[%s55 + $0x1408] sm:$0xff] %v1338
          %v1340 = vld [vmem:[%s54 + $0x1410] sm:$0xff]
          %1341 = vst [vmem:[%s55 + $0x1410] sm:$0xff] %v1340
          %v1342 = vld [vmem:[%s54 + $0x1418] sm:$0xff]
          %1343 = vst [vmem:[%s55 + $0x1418] sm:$0xff] %v1342
          %v1344 = vld [vmem:[%s54 + $0x1420] sm:$0xff]
          %1345 = vst [vmem:[%s55 + $0x1420] sm:$0xff] %v1344
          %v1346 = vld [vmem:[%s54 + $0x1428] sm:$0xff]
          %1347 = vst [vmem:[%s55 + $0x1428] sm:$0xff] %v1346
          %v1348 = vld [vmem:[%s54 + $0x1430] sm:$0xff]
          %1349 = vst [vmem:[%s55 + $0x1430] sm:$0xff] %v1348
          %v1350 = vld [vmem:[%s54 + $0x1438] sm:$0xff]
          %1351 = vst [vmem:[%s55 + $0x1438] sm:$0xff] %v1350
          %v1352 = vld [vmem:[%s54 + $0x1440] sm:$0xff]
          %1353 = vst [vmem:[%s55 + $0x1440] sm:$0xff] %v1352
          %v1354 = vld [vmem:[%s54 + $0x1448] sm:$0xff]
          %1355 = vst [vmem:[%s55 + $0x1448] sm:$0xff] %v1354
          %v1356 = vld [vmem:[%s54 + $0x1450] sm:$0xff]
          %1357 = vst [vmem:[%s55 + $0x1450] sm:$0xff] %v1356
          %v1358 = vld [vmem:[%s54 + $0x1458] sm:$0xff]
          %1359 = vst [vmem:[%s55 + $0x1458] sm:$0xff] %v1358
          %v1360 = vld [vmem:[%s54 + $0x1460] sm:$0xff]
          %1361 = vst [vmem:[%s55 + $0x1460] sm:$0xff] %v1360
          %v1362 = vld [vmem:[%s54 + $0x1468] sm:$0xff]
          %1363 = vst [vmem:[%s55 + $0x1468] sm:$0xff] %v1362
          %v1364 = vld [vmem:[%s54 + $0x1470] sm:$0xff]
          %1365 = vst [vmem:[%s55 + $0x1470] sm:$0xff] %v1364
          %v1366 = vld [vmem:[%s54 + $0x1478] sm:$0xff]
          %1367 = vst [vmem:[%s55 + $0x1478] sm:$0xff] %v1366
          %v1368 = vld [vmem:[%s54 + $0x1480] sm:$0xff]
          %1369 = vst [vmem:[%s55 + $0x1480] sm:$0xff] %v1368
          %v1370 = vld [vmem:[%s54 + $0x1488] sm:$0xff]
          %1371 = vst [vmem:[%s55 + $0x1488] sm:$0xff] %v1370
          %v1372 = vld [vmem:[%s54 + $0x1490] sm:$0xff]
          %1373 = vst [vmem:[%s55 + $0x1490] sm:$0xff] %v1372
          %v1374 = vld [vmem:[%s54 + $0x1498] sm:$0xff]
          %1375 = vst [vmem:[%s55 + $0x1498] sm:$0xff] %v1374
          %v1376 = vld [vmem:[%s54 + $0x14a0] sm:$0xff]
          %1377 = vst [vmem:[%s55 + $0x14a0] sm:$0xff] %v1376
          %v1378 = vld [vmem:[%s54 + $0x14a8] sm:$0xff]
          %1379 = vst [vmem:[%s55 + $0x14a8] sm:$0xff] %v1378
          %v1380 = vld [vmem:[%s54 + $0x14b0] sm:$0xff]
          %1381 = vst [vmem:[%s55 + $0x14b0] sm:$0xff] %v1380
          %v1382 = vld [vmem:[%s54 + $0x14b8] sm:$0xff]
          %1383 = vst [vmem:[%s55 + $0x14b8] sm:$0xff] %v1382
          %v1384 = vld [vmem:[%s54 + $0x14c0] sm:$0xff]
          %1385 = vst [vmem:[%s55 + $0x14c0] sm:$0xff] %v1384
          %v1386 = vld [vmem:[%s54 + $0x14c8] sm:$0xff]
          %1387 = vst [vmem:[%s55 + $0x14c8] sm:$0xff] %v1386
          %v1388 = vld [vmem:[%s54 + $0x14d0] sm:$0xff]
          %1389 = vst [vmem:[%s55 + $0x14d0] sm:$0xff] %v1388
          %v1390 = vld [vmem:[%s54 + $0x14d8] sm:$0xff]
          %1391 = vst [vmem:[%s55 + $0x14d8] sm:$0xff] %v1390
          %v1392 = vld [vmem:[%s54 + $0x14e0] sm:$0xff]
          %1393 = vst [vmem:[%s55 + $0x14e0] sm:$0xff] %v1392
          %v1394 = vld [vmem:[%s54 + $0x14e8] sm:$0xff]
          %1395 = vst [vmem:[%s55 + $0x14e8] sm:$0xff] %v1394
          %v1396 = vld [vmem:[%s54 + $0x14f0] sm:$0xff]
          %1397 = vst [vmem:[%s55 + $0x14f0] sm:$0xff] %v1396
          %v1398 = vld [vmem:[%s54 + $0x14f8] sm:$0xff]
          %1399 = vst [vmem:[%s55 + $0x14f8] sm:$0xff] %v1398
          %v1400 = vld [vmem:[%s54 + $0x1500] sm:$0xff]
          %1401 = vst [vmem:[%s55 + $0x1500] sm:$0xff] %v1400
          %v1402 = vld [vmem:[%s54 + $0x1508] sm:$0xff]
          %1403 = vst [vmem:[%s55 + $0x1508] sm:$0xff] %v1402
          %v1404 = vld [vmem:[%s54 + $0x1510] sm:$0xff]
          %1405 = vst [vmem:[%s55 + $0x1510] sm:$0xff] %v1404
          %v1406 = vld [vmem:[%s54 + $0x1518] sm:$0xff]
          %1407 = vst [vmem:[%s55 + $0x1518] sm:$0xff] %v1406
          %v1408 = vld [vmem:[%s54 + $0x1520] sm:$0xff]
          %1409 = vst [vmem:[%s55 + $0x1520] sm:$0xff] %v1408
          %v1410 = vld [vmem:[%s54 + $0x1528] sm:$0xff]
          %1411 = vst [vmem:[%s55 + $0x1528] sm:$0xff] %v1410
          %v1412 = vld [vmem:[%s54 + $0x1530] sm:$0xff]
          %1413 = vst [vmem:[%s55 + $0x1530] sm:$0xff] %v1412
          %v1414 = vld [vmem:[%s54 + $0x1538] sm:$0xff]
          %1415 = vst [vmem:[%s55 + $0x1538] sm:$0xff] %v1414
          %v1416 = vld [vmem:[%s54 + $0x1540] sm:$0xff]
          %1417 = vst [vmem:[%s55 + $0x1540] sm:$0xff] %v1416
          %v1418 = vld [vmem:[%s54 + $0x1548] sm:$0xff]
          %1419 = vst [vmem:[%s55 + $0x1548] sm:$0xff] %v1418
          %v1420 = vld [vmem:[%s54 + $0x1550] sm:$0xff]
          %1421 = vst [vmem:[%s55 + $0x1550] sm:$0xff] %v1420
          %v1422 = vld [vmem:[%s54 + $0x1558] sm:$0xff]
          %1423 = vst [vmem:[%s55 + $0x1558] sm:$0xff] %v1422
          %v1424 = vld [vmem:[%s54 + $0x1560] sm:$0xff]
          %1425 = vst [vmem:[%s55 + $0x1560] sm:$0xff] %v1424
          %v1426 = vld [vmem:[%s54 + $0x1568] sm:$0xff]
          %1427 = vst [vmem:[%s55 + $0x1568] sm:$0xff] %v1426
          %v1428 = vld [vmem:[%s54 + $0x1570] sm:$0xff]
          %1429 = vst [vmem:[%s55 + $0x1570] sm:$0xff] %v1428
          %v1430 = vld [vmem:[%s54 + $0x1578] sm:$0xff]
          %1431 = vst [vmem:[%s55 + $0x1578] sm:$0xff] %v1430
          %v1432 = vld [vmem:[%s54 + $0x1580] sm:$0xff]
          %1433 = vst [vmem:[%s55 + $0x1580] sm:$0xff] %v1432
          %v1434 = vld [vmem:[%s54 + $0x1588] sm:$0xff]
          %1435 = vst [vmem:[%s55 + $0x1588] sm:$0xff] %v1434
          %v1436 = vld [vmem:[%s54 + $0x1590] sm:$0xff]
          %1437 = vst [vmem:[%s55 + $0x1590] sm:$0xff] %v1436
          %v1438 = vld [vmem:[%s54 + $0x1598] sm:$0xff]
          %1439 = vst [vmem:[%s55 + $0x1598] sm:$0xff] %v1438
          %v1440 = vld [vmem:[%s54 + $0x15a0] sm:$0xff]
          %1441 = vst [vmem:[%s55 + $0x15a0] sm:$0xff] %v1440
          %v1442 = vld [vmem:[%s54 + $0x15a8] sm:$0xff]
          %1443 = vst [vmem:[%s55 + $0x15a8] sm:$0xff] %v1442
          %v1444 = vld [vmem:[%s54 + $0x15b0] sm:$0xff]
          %1445 = vst [vmem:[%s55 + $0x15b0] sm:$0xff] %v1444
          %v1446 = vld [vmem:[%s54 + $0x15b8] sm:$0xff]
          %1447 = vst [vmem:[%s55 + $0x15b8] sm:$0xff] %v1446
          %v1448 = vld [vmem:[%s54 + $0x15c0] sm:$0xff]
          %1449 = vst [vmem:[%s55 + $0x15c0] sm:$0xff] %v1448
          %v1450 = vld [vmem:[%s54 + $0x15c8] sm:$0xff]
          %1451 = vst [vmem:[%s55 + $0x15c8] sm:$0xff] %v1450
          %v1452 = vld [vmem:[%s54 + $0x15d0] sm:$0xff]
          %1453 = vst [vmem:[%s55 + $0x15d0] sm:$0xff] %v1452
          %v1454 = vld [vmem:[%s54 + $0x15d8] sm:$0xff]
          %1455 = vst [vmem:[%s55 + $0x15d8] sm:$0xff] %v1454
          %v1456 = vld [vmem:[%s54 + $0x15e0] sm:$0xff]
          %1457 = vst [vmem:[%s55 + $0x15e0] sm:$0xff] %v1456
          %v1458 = vld [vmem:[%s54 + $0x15e8] sm:$0xff]
          %1459 = vst [vmem:[%s55 + $0x15e8] sm:$0xff] %v1458
          %v1460 = vld [vmem:[%s54 + $0x15f0] sm:$0xff]
          %1461 = vst [vmem:[%s55 + $0x15f0] sm:$0xff] %v1460
          %v1462 = vld [vmem:[%s54 + $0x15f8] sm:$0xff]
          %1463 = vst [vmem:[%s55 + $0x15f8] sm:$0xff] %v1462
          %v1464 = vld [vmem:[%s54 + $0x1600] sm:$0xff]
          %1465 = vst [vmem:[%s55 + $0x1600] sm:$0xff] %v1464
          %v1466 = vld [vmem:[%s54 + $0x1608] sm:$0xff]
          %1467 = vst [vmem:[%s55 + $0x1608] sm:$0xff] %v1466
          %v1468 = vld [vmem:[%s54 + $0x1610] sm:$0xff]
          %1469 = vst [vmem:[%s55 + $0x1610] sm:$0xff] %v1468
          %v1470 = vld [vmem:[%s54 + $0x1618] sm:$0xff]
          %1471 = vst [vmem:[%s55 + $0x1618] sm:$0xff] %v1470
          %v1472 = vld [vmem:[%s54 + $0x1620] sm:$0xff]
          %1473 = vst [vmem:[%s55 + $0x1620] sm:$0xff] %v1472
          %v1474 = vld [vmem:[%s54 + $0x1628] sm:$0xff]
          %1475 = vst [vmem:[%s55 + $0x1628] sm:$0xff] %v1474
          %v1476 = vld [vmem:[%s54 + $0x1630] sm:$0xff]
          %1477 = vst [vmem:[%s55 + $0x1630] sm:$0xff] %v1476
          %v1478 = vld [vmem:[%s54 + $0x1638] sm:$0xff]
          %1479 = vst [vmem:[%s55 + $0x1638] sm:$0xff] %v1478
          %v1480 = vld [vmem:[%s54 + $0x1640] sm:$0xff]
          %1481 = vst [vmem:[%s55 + $0x1640] sm:$0xff] %v1480
          %v1482 = vld [vmem:[%s54 + $0x1648] sm:$0xff]
          %1483 = vst [vmem:[%s55 + $0x1648] sm:$0xff] %v1482
          %v1484 = vld [vmem:[%s54 + $0x1650] sm:$0xff]
          %1485 = vst [vmem:[%s55 + $0x1650] sm:$0xff] %v1484
          %v1486 = vld [vmem:[%s54 + $0x1658] sm:$0xff]
          %1487 = vst [vmem:[%s55 + $0x1658] sm:$0xff] %v1486
          %v1488 = vld [vmem:[%s54 + $0x1660] sm:$0xff]
          %1489 = vst [vmem:[%s55 + $0x1660] sm:$0xff] %v1488
          %v1490 = vld [vmem:[%s54 + $0x1668] sm:$0xff]
          %1491 = vst [vmem:[%s55 + $0x1668] sm:$0xff] %v1490
          %v1492 = vld [vmem:[%s54 + $0x1670] sm:$0xff]
          %1493 = vst [vmem:[%s55 + $0x1670] sm:$0xff] %v1492
          %v1494 = vld [vmem:[%s54 + $0x1678] sm:$0xff]
          %1495 = vst [vmem:[%s55 + $0x1678] sm:$0xff] %v1494
          %v1496 = vld [vmem:[%s54 + $0x1680] sm:$0xff]
          %1497 = vst [vmem:[%s55 + $0x1680] sm:$0xff] %v1496
          %v1498 = vld [vmem:[%s54 + $0x1688] sm:$0xff]
          %1499 = vst [vmem:[%s55 + $0x1688] sm:$0xff] %v1498
          %v1500 = vld [vmem:[%s54 + $0x1690] sm:$0xff]
          %1501 = vst [vmem:[%s55 + $0x1690] sm:$0xff] %v1500
          %v1502 = vld [vmem:[%s54 + $0x1698] sm:$0xff]
          %1503 = vst [vmem:[%s55 + $0x1698] sm:$0xff] %v1502
          %v1504 = vld [vmem:[%s54 + $0x16a0] sm:$0xff]
          %1505 = vst [vmem:[%s55 + $0x16a0] sm:$0xff] %v1504
          %v1506 = vld [vmem:[%s54 + $0x16a8] sm:$0xff]
          %1507 = vst [vmem:[%s55 + $0x16a8] sm:$0xff] %v1506
          %v1508 = vld [vmem:[%s54 + $0x16b0] sm:$0xff]
          %1509 = vst [vmem:[%s55 + $0x16b0] sm:$0xff] %v1508
          %v1510 = vld [vmem:[%s54 + $0x16b8] sm:$0xff]
          %1511 = vst [vmem:[%s55 + $0x16b8] sm:$0xff] %v1510
          %v1512 = vld [vmem:[%s54 + $0x16c0] sm:$0xff]
          %1513 = vst [vmem:[%s55 + $0x16c0] sm:$0xff] %v1512
          %v1514 = vld [vmem:[%s54 + $0x16c8] sm:$0xff]
          %1515 = vst [vmem:[%s55 + $0x16c8] sm:$0xff] %v1514
          %v1516 = vld [vmem:[%s54 + $0x16d0] sm:$0xff]
          %1517 = vst [vmem:[%s55 + $0x16d0] sm:$0xff] %v1516
          %v1518 = vld [vmem:[%s54 + $0x16d8] sm:$0xff]
          %1519 = vst [vmem:[%s55 + $0x16d8] sm:$0xff] %v1518
          %v1520 = vld [vmem:[%s54 + $0x16e0] sm:$0xff]
          %1521 = vst [vmem:[%s55 + $0x16e0] sm:$0xff] %v1520
          %v1522 = vld [vmem:[%s54 + $0x16e8] sm:$0xff]
          %1523 = vst [vmem:[%s55 + $0x16e8] sm:$0xff] %v1522
          %v1524 = vld [vmem:[%s54 + $0x16f0] sm:$0xff]
          %1525 = vst [vmem:[%s55 + $0x16f0] sm:$0xff] %v1524
          %v1526 = vld [vmem:[%s54 + $0x16f8] sm:$0xff]
          %1527 = vst [vmem:[%s55 + $0x16f8] sm:$0xff] %v1526
        $region45: #{stan_forward.3} parent=39 // loop_footer
          %s53 = sadd.s32 1, %s49
        $region46: #{stan_forward.3} parent=39 // loop_footer_branch
          %48 = sbr.rel target = $region42
        $region47: #{stan_forward.3} parent=39 // loop_exit
          _
      $region40: #{stan_forward.3} parent=24 // pred_fallthru
        _
      %p1528 = pneg %p44
      // Predicated region
      $region48: #{stan_forward.3} parent=24 // pred_check
        _
      $region49: #{stan_forward.3} parent=24 // pred_check_branch
        %1530 = sbr.rel (%p44) target = $region51
      $region50: #{stan_forward.3} parent=24 // pred_region
        %s1531 = sand.u32 5888, 7
      $region51: #{stan_forward.3} parent=24 // pred_fallthru
        _
    $region25: #{stan_forward.3} parent=1 // pred_fallthru
      _
    // Predicated region
    $region26: #{stan_forward.3} parent=1 // pred_check
      %p29 = pneg %p25
    $region27: #{stan_forward.3} parent=1 // pred_check_branch
      %31 = sbr.rel (%p29) target = $region29
    $region28: #{stan_forward.3} parent=1 // pred_region
      %s32 = sshllo.u32 0, 5888
      loop: start=0, step=1, limit=1
      $region30: #{stan_forward.3} parent=28 // loop_pre_header
        _
      $region31: #{stan_forward.3} parent=28 // loop_header
        %s34 = sphi 0, %s38
        %p35 = scmp.ge.s32.totalorder %s34, 1
        %s39 = sphi %s2, %s2
        %s40 = sphi [#allocation2], [#allocation2]
      $region32: #{stan_forward.3} parent=28 // loop_header_branch
        %37 = sbr.rel (%p35) target = $region36
      $region33: #{stan_forward.3} parent=28 // loop_body
        %v41 = vld [vmem:[%s39] sm:%s32]
        %42 = vst [vmem:[%s40] sm:%s32] %v41
      $region34: #{stan_forward.3} parent=28 // loop_footer
        %s38 = sadd.s32 1, %s34
      $region35: #{stan_forward.3} parent=28 // loop_footer_branch
        %33 = sbr.rel target = $region31
      $region36: #{stan_forward.3} parent=28 // loop_exit
        _
    $region29: #{stan_forward.3} parent=1 // pred_fallthru
      _
    // Predicated region
    $region52: #{stan_forward.3} parent=1 // pred_check
      _
    $region53: #{stan_forward.3} parent=1 // pred_check_branch
      %1534 = sbr.rel (0) target = $region55
    $region54: #{stan_forward.3} parent=1 // pred_region
      %1535 = vsyncadd [#allocation3], 94208
    $region55: #{stan_forward.3} parent=1 // pred_fallthru
      _
    %v1536 = vld [vmem:[%s1] sm:$0xff]
    %v1537 = vld [vmem:[%s1 + $0x8] sm:$0xff]
    %v1538 = vld [vmem:[%s1 + $0x10] sm:$0xff]
    %v1539 = vld [vmem:[%s1 + $0x18] sm:$0xff]
    %v1540 = vld [vmem:[%s1 + $0x20] sm:$0xff]
    %v1541 = vld [vmem:[%s1 + $0x28] sm:$0xff]
    %v1542 = vld [vmem:[%s1 + $0x30] sm:$0xff]
    %v1543 = vld [vmem:[%s1 + $0x38] sm:$0xff]
    %v1544 = vld [vmem:[%s1 + $0x40] sm:$0xff]
    %v1545 = vld [vmem:[%s1 + $0x48] sm:$0xff]
    %v1546 = vld [vmem:[%s1 + $0x50] sm:$0xff]
    %v1547 = vld [vmem:[%s1 + $0x58] sm:$0xff]
    %v1548 = vld [vmem:[%s1 + $0x60] sm:$0xff]
    %v1549 = vld [vmem:[%s1 + $0x68] sm:$0xff]
    %v1550 = vld [vmem:[%s1 + $0x70] sm:$0xff]
    %v1551 = vld [vmem:[%s1 + $0x78] sm:$0xff]
    %v1552 = vld [vmem:[%s0] sm:$0xff]
    %v1553 = vld [vmem:[%s0 + $0x8] sm:$0xff]
    %v1554 = vld [vmem:[%s0 + $0x10] sm:$0xff]
    %v1555 = vld [vmem:[%s0 + $0x18] sm:$0xff]
    %v1556 = vld [vmem:[%s0 + $0x20] sm:$0xff]
    %v1557 = vld [vmem:[%s0 + $0x28] sm:$0xff]
    %v1558 = vld [vmem:[%s0 + $0x30] sm:$0xff]
    %v1559 = vld [vmem:[%s0 + $0x38] sm:$0xff]
    %v1560 = vld [vmem:[%s0 + $0x40] sm:$0xff]
    %v1561 = vld [vmem:[%s0 + $0x48] sm:$0xff]
    %v1562 = vld [vmem:[%s0 + $0x50] sm:$0xff]
    %v1563 = vld [vmem:[%s0 + $0x58] sm:$0xff]
    %v1564 = vld [vmem:[%s0 + $0x60] sm:$0xff]
    %v1565 = vld [vmem:[%s0 + $0x68] sm:$0xff]
    %v1566 = vld [vmem:[%s0 + $0x70] sm:$0xff]
    %v1567 = vld [vmem:[%s0 + $0x78] sm:$0xff]
    %v1568 = vld [vmem:[%s0 + $0x80] sm:$0xff]
    %v1569 = vld [vmem:[%s0 + $0x88] sm:$0xff]
    %v1570 = vld [vmem:[%s0 + $0x90] sm:$0x7]
    %v1571 = vld [vmem:[%s0 + $0x98] sm:$0x7]
    %v1572 = vld [vmem:[%s0 + $0xa0] sm:$0x7]
    %v1573 = vld [vmem:[%s0 + $0xa8] sm:$0x7]
    %v1574 = vld [vmem:[%s0 + $0xb0] sm:$0x7]
    %v1575 = vld [vmem:[%s0 + $0xb8] sm:$0x7]
    %vm1576 = vcmask 220160
    %v1578 = vsel %vm1576, %v1536, 0
    %v1581 = vsel %vm1576, %v1537, 0
    %v1584 = vsel %vm1576, %v1538, 0
    %v1587 = vsel %vm1576, %v1539, 0
    %v1590 = vsel %vm1576, %v1540, 0
    %v1593 = vsel %vm1576, %v1541, 0
    %v1596 = vsel %vm1576, %v1542, 0
    %v1599 = vsel %vm1576, %v1543, 0
    %v1602 = vsel %vm1576, %v1544, 0
    %v1605 = vsel %vm1576, %v1545, 0
    %v1608 = vsel %vm1576, %v1546, 0
    %v1611 = vsel %vm1576, %v1547, 0
    %v1614 = vsel %vm1576, %v1548, 0
    %v1617 = vsel %vm1576, %v1549, 0
    %v1620 = vsel %vm1576, %v1550, 0
    %v1623 = vsel %vm1576, %v1551, 0
    %vm1625 = vcmask 1042432
    %v1627 = vsel %vm1625, %v1570, 0
    %v1630 = vsel %vm1625, %v1571, 0
    %v1633 = vsel %vm1625, %v1572, 0
    %v1636 = vsel %vm1625, %v1573, 0
    %v1639 = vsel %vm1625, %v1574, 0
    %v1642 = vsel %vm1625, %v1575, 0
    %1644 = vmatprep.subr.mxu0 %v1553
    %1645 = vmatpush1.msra.mxu0 %v1552
    %1646 = vmatprep.subr.mxu0 %v1559
    %1647 = vmatpush1.msra.mxu0 %v1558
    %1648 = vmatprep.subr.mxu0 %v1565
    %1649 = vmatpush1.msra.mxu0 %v1564
    %1650 = vmatprep.subr.mxu0 %v1630
    %1651 = vmatpush1.msra.mxu0 %v1627
    %1652 = vmatprep.subr.mxu0 0.0
    %1653 = vmatpush1.msra.mxu0 0.0
    %1654 = vmatprep.subr.mxu0 0.0
    %1655 = vmatpush1.msra.mxu0 0.0
    %1656 = vmatprep.subr.mxu0 0.0
    %1657 = vmatpush1.msra.mxu0 0.0
    %1658 = vmatprep.subr.mxu0 0.0
    %1659 = vmatpush1.msra.mxu0 0.0
    %1660 = vmatprep.subr.mxu0 0.0
    %1661 = vmatpush1.msra.mxu0 0.0
    %1662 = vmatprep.subr.mxu0 0.0
    %1663 = vmatpush1.msra.mxu0 0.0
    %1664 = vmatprep.subr.mxu0 0.0
    %1665 = vmatpush1.msra.mxu0 0.0
    %1666 = vmatprep.subr.mxu0 0.0
    %1667 = vmatpush1.msra.mxu0 0.0
    %1668 = vmatprep.subr.mxu0 0.0
    %1669 = vmatpush1.msra.mxu0 0.0
    %1670 = vmatprep.subr.mxu0 0.0
    %1671 = vmatpush1.msra.mxu0 0.0
    %1672 = vmatprep.subr.mxu0 0.0
    %1673 = vmatpush1.msra.mxu0 0.0
    %1674 = vmatprep.subr.mxu0 0.0
    %1675 = vmatpush1.msra.mxu0 0.0
    %1676 = vmatprep.subr.mxu0 0.0
    %1677 = vmatpush1.msra.mxu0 0.0
    %1678 = vmatprep.subr.mxu0 0.0
    %1679 = vmatpush1.msra.mxu0 0.0
    %1680 = vmatprep.subr.mxu0 0.0
    %1681 = vmatpush1.msra.mxu0 0.0
    %1682 = vmatprep.subr.mxu0 0.0
    %1683 = vmatpush1.msra.mxu0 0.0
    %1684 = vmatprep.subr.mxu0 0.0
    %1685 = vmatpush1.msra.mxu0 0.0
    %1686 = vmatprep.subr.mxu0 0.0
    %1687 = vmatpush1.msra.mxu0 0.0
    %1688 = vmatprep.subr.mxu0 0.0
    %1689 = vmatpush1.msra.mxu0 0.0
    %1690 = vmatprep.subr.mxu0 0.0
    %1691 = vmatpush1.msra.mxu0 0.0
    %1692 = vmatprep.subr.mxu0 0.0
    %1693 = vmatpush1.msra.mxu0 0.0
    %1694 = vmatprep.subr.mxu0 0.0
    %1695 = vmatpush1.msra.mxu0 0.0
    %1696 = vmatprep.subr.mxu0 0.0
    %1697 = vmatpush1.msra.mxu0 0.0
    %1698 = vmatprep.subr.mxu0 0.0
    %1699 = vmatpush1.msra.mxu0 0.0
    %1700 = vmatprep.subr.mxu0 0.0
    %1701 = vmatpush1.msra.mxu0 0.0
    %1702 = vmatprep.subr.mxu0 0.0
    %1703 = vmatpush1.msra.mxu0 0.0
    %1704 = vmatprep.subr.mxu0 0.0
    %1705 = vmatpush1.msra.mxu0 0.0
    %1706 = vmatprep.subr.mxu0 0.0
    %1707 = vmatpush1.msra.mxu0 0.0
    %1708 = vmatprep.mubr.f32.mxu0 0.0
    %1709 = vmatmul.mubr.f32.gmra.mrb[0].mxu0 %v1578
    %v1710 = vpop.f32.mrb[0].mxu0
    %v1711 = vadd.f32 0.0, %v1710
    %v1712 = vpop.f32.mrb[0].mxu0
    %v1713 = vadd.f32 0.0, %v1712
    %1714 = vmatprep.mubr.f32.mxu0 0.0
    %1715 = vmatmul.mubr.f32.gmra.mrb[0].mxu0 %v1581
    %v1716 = vpop.f32.mrb[0].mxu0
    %v1717 = vadd.f32 0.0, %v1716
    %v1718 = vpop.f32.mrb[0].mxu0
    %v1719 = vadd.f32 0.0, %v1718
    %1720 = vmatprep.mubr.f32.mxu0 0.0
    %1721 = vmatmul.mubr.f32.gmra.mrb[0].mxu0 %v1584
    %v1722 = vpop.f32.mrb[0].mxu0
    %v1723 = vadd.f32 0.0, %v1722
    %v1724 = vpop.f32.mrb[0].mxu0
    %v1725 = vadd.f32 0.0, %v1724
    %1726 = vmatprep.mubr.f32.mxu0 0.0
    %1727 = vmatmul.mubr.f32.gmra.mrb[0].mxu0 %v1587
    %v1728 = vpop.f32.mrb[0].mxu0
    %v1729 = vadd.f32 0.0, %v1728
    %v1730 = vpop.f32.mrb[0].mxu0
    %v1731 = vadd.f32 0.0, %v1730
    %1732 = vmatprep.mubr.f32.mxu0 0.0
    %1733 = vmatmul.mubr.f32.gmra.mrb[0].mxu0 %v1590
    %v1734 = vpop.f32.mrb[0].mxu0
    %v1735 = vadd.f32 0.0, %v1734
    %v1736 = vpop.f32.mrb[0].mxu0
    %v1737 = vadd.f32 0.0, %v1736
    %1738 = vmatprep.mubr.f32.mxu0 0.0
    %1739 = vmatmul.mubr.f32.gmra.mrb[0].mxu0 %v1593
    %v1740 = vpop.f32.mrb[0].mxu0
    %v1741 = vadd.f32 0.0, %v1740
    %v1742 = vpop.f32.mrb[0].mxu0
    %v1743 = vadd.f32 0.0, %v1742
    %1744 = vmatprep.mubr.f32.mxu0 0.0
    %1745 = vmatmul.mubr.f32.gmra.mrb[0].mxu0 %v1596
    %v1746 = vpop.f32.mrb[0].mxu0
    %v1747 = vadd.f32 0.0, %v1746
    %v1748 = vpop.f32.mrb[0].mxu0
    %v1749 = vadd.f32 0.0, %v1748
    %1750 = vmatprep.mubr.f32.mxu0 0.0
    %1751 = vmatmul.mubr.f32.gmra.mrb[0].mxu0 %v1599
    %v1752 = vpop.f32.mrb[0].mxu0
    %v1753 = vadd.f32 0.0, %v1752
    %v1754 = vpop.f32.mrb[0].mxu0
    %v1755 = vadd.f32 0.0, %v1754
    %1756 = vmatprep.mubr.f32.mxu0 0.0
    %1757 = vmatmul.mubr.f32.gmra.mrb[0].mxu0 %v1602
    %v1758 = vpop.f32.mrb[0].mxu0
    %v1759 = vadd.f32 0.0, %v1758
    %v1760 = vpop.f32.mrb[0].mxu0
    %v1761 = vadd.f32 0.0, %v1760
    %1762 = vmatprep.mubr.f32.mxu0 0.0
    %1763 = vmatmul.mubr.f32.gmra.mrb[0].mxu0 %v1605
    %v1764 = vpop.f32.mrb[0].mxu0
    %v1765 = vadd.f32 0.0, %v1764
    %v1766 = vpop.f32.mrb[0].mxu0
    %v1767 = vadd.f32 0.0, %v1766
    %1768 = vmatprep.mubr.f32.mxu0 0.0
    %1769 = vmatmul.mubr.f32.gmra.mrb[0].mxu0 %v1608
    %v1770 = vpop.f32.mrb[0].mxu0
    %v1771 = vadd.f32 0.0, %v1770
    %v1772 = vpop.f32.mrb[0].mxu0
    %v1773 = vadd.f32 0.0, %v1772
    %1774 = vmatprep.mubr.f32.mxu0 0.0
    %1775 = vmatmul.mubr.f32.gmra.mrb[0].mxu0 %v1611
    %v1776 = vpop.f32.mrb[0].mxu0
    %v1777 = vadd.f32 0.0, %v1776
    %v1778 = vpop.f32.mrb[0].mxu0
    %v1779 = vadd.f32 0.0, %v1778
    %1780 = vmatprep.mubr.f32.mxu0 0.0
    %1781 = vmatmul.mubr.f32.gmra.mrb[0].mxu0 %v1614
    %v1782 = vpop.f32.mrb[0].mxu0
    %v1783 = vadd.f32 0.0, %v1782
    %v1784 = vpop.f32.mrb[0].mxu0
    %v1785 = vadd.f32 0.0, %v1784
    %1786 = vmatprep.mubr.f32.mxu0 0.0
    %1787 = vmatmul.mubr.f32.gmra.mrb[0].mxu0 %v1617
    %v1788 = vpop.f32.mrb[0].mxu0
    %v1789 = vadd.f32 0.0, %v1788
    %v1790 = vpop.f32.mrb[0].mxu0
    %v1791 = vadd.f32 0.0, %v1790
    %1792 = vmatprep.mubr.f32.mxu0 0.0
    %1793 = vmatmul.mubr.f32.gmra.mrb[0].mxu0 %v1620
    %v1794 = vpop.f32.mrb[0].mxu0
    %v1795 = vadd.f32 0.0, %v1794
    %v1796 = vpop.f32.mrb[0].mxu0
    %v1797 = vadd.f32 0.0, %v1796
    %1798 = vmatprep.mubr.f32.mxu0 0.0
    %1799 = vmatmul.mubr.f32.gmra.mrb[0].mxu0 %v1623
    %v1800 = vpop.f32.mrb[0].mxu0
    %v1801 = vadd.f32 0.0, %v1800
    %v1802 = vpop.f32.mrb[0].mxu0
    %v1803 = vadd.f32 0.0, %v1802
    %1804 = vdwg.mxu0
    %1805 = vmatprep.subr.mxu0 %v1555
    %1806 = vmatpush1.msra.mxu0 %v1554
    %1807 = vmatprep.subr.mxu0 %v1561
    %1808 = vmatpush1.msra.mxu0 %v1560
    %1809 = vmatprep.subr.mxu0 %v1567
    %1810 = vmatpush1.msra.mxu0 %v1566
    %1811 = vmatprep.subr.mxu0 %v1636
    %1812 = vmatpush1.msra.mxu0 %v1633
    %1813 = vmatprep.subr.mxu0 0.0
    %1814 = vmatpush1.msra.mxu0 0.0
    %1815 = vmatprep.subr.mxu0 0.0
    %1816 = vmatpush1.msra.mxu0 0.0
    %1817 = vmatprep.subr.mxu0 0.0
    %1818 = vmatpush1.msra.mxu0 0.0
    %1819 = vmatprep.subr.mxu0 0.0
    %1820 = vmatpush1.msra.mxu0 0.0
    %1821 = vmatprep.subr.mxu0 0.0
    %1822 = vmatpush1.msra.mxu0 0.0
    %1823 = vmatprep.subr.mxu0 0.0
    %1824 = vmatpush1.msra.mxu0 0.0
    %1825 = vmatprep.subr.mxu0 0.0
    %1826 = vmatpush1.msra.mxu0 0.0
    %1827 = vmatprep.subr.mxu0 0.0
    %1828 = vmatpush1.msra.mxu0 0.0
    %1829 = vmatprep.subr.mxu0 0.0
    %1830 = vmatpush1.msra.mxu0 0.0
    %1831 = vmatprep.subr.mxu0 0.0
    %1832 = vmatpush1.msra.mxu0 0.0
    %1833 = vmatprep.subr.mxu0 0.0
    %1834 = vmatpush1.msra.mxu0 0.0
    %1835 = vmatprep.subr.mxu0 0.0
    %1836 = vmatpush1.msra.mxu0 0.0
    %1837 = vmatprep.subr.mxu0 0.0
    %1838 = vmatpush1.msra.mxu0 0.0
    %1839 = vmatprep.subr.mxu0 0.0
    %1840 = vmatpush1.msra.mxu0 0.0
    %1841 = vmatprep.subr.mxu0 0.0
    %1842 = vmatpush1.msra.mxu0 0.0
    %1843 = vmatprep.subr.mxu0 0.0
    %1844 = vmatpush1.msra.mxu0 0.0
    %1845 = vmatprep.subr.mxu0 0.0
    %1846 = vmatpush1.msra.mxu0 0.0
    %1847 = vmatprep.subr.mxu0 0.0
    %1848 = vmatpush1.msra.mxu0 0.0
    %1849 = vmatprep.subr.mxu0 0.0
    %1850 = vmatpush1.msra.mxu0 0.0
    %1851 = vmatprep.subr.mxu0 0.0
    %1852 = vmatpush1.msra.mxu0 0.0
    %1853 = vmatprep.subr.mxu0 0.0
    %1854 = vmatpush1.msra.mxu0 0.0
    %1855 = vmatprep.subr.mxu0 0.0
    %1856 = vmatpush1.msra.mxu0 0.0
    %1857 = vmatprep.subr.mxu0 0.0
    %1858 = vmatpush1.msra.mxu0 0.0
    %1859 = vmatprep.subr.mxu0 0.0
    %1860 = vmatpush1.msra.mxu0 0.0
    %1861 = vmatprep.subr.mxu0 0.0
    %1862 = vmatpush1.msra.mxu0 0.0
    %1863 = vmatprep.subr.mxu0 0.0
    %1864 = vmatpush1.msra.mxu0 0.0
    %1865 = vmatprep.subr.mxu0 0.0
    %1866 = vmatpush1.msra.mxu0 0.0
    %1867 = vmatprep.subr.mxu0 0.0
    %1868 = vmatpush1.msra.mxu0 0.0
    %1869 = vmatprep.mubr.f32.mxu0 0.0
    %1870 = vmatmul.mubr.f32.gmra.mrb[0].mxu0 %v1578
    %v1871 = vpop.f32.mrb[0].mxu0
    %v1872 = vadd.f32 0.0, %v1871
    %v1873 = vpop.f32.mrb[0].mxu0
    %v1874 = vadd.f32 0.0, %v1873
    %1875 = vmatprep.mubr.f32.mxu0 0.0
    %1876 = vmatmul.mubr.f32.gmra.mrb[0].mxu0 %v1581
    %v1877 = vpop.f32.mrb[0].mxu0
    %v1878 = vadd.f32 0.0, %v1877
    %v1879 = vpop.f32.mrb[0].mxu0
    %v1880 = vadd.f32 0.0, %v1879
    %1881 = vmatprep.mubr.f32.mxu0 0.0
    %1882 = vmatmul.mubr.f32.gmra.mrb[0].mxu0 %v1584
    %v1883 = vpop.f32.mrb[0].mxu0
    %v1884 = vadd.f32 0.0, %v1883
    %v1885 = vpop.f32.mrb[0].mxu0
    %v1886 = vadd.f32 0.0, %v1885
    %1887 = vmatprep.mubr.f32.mxu0 0.0
    %1888 = vmatmul.mubr.f32.gmra.mrb[0].mxu0 %v1587
    %v1889 = vpop.f32.mrb[0].mxu0
    %v1890 = vadd.f32 0.0, %v1889
    %v1891 = vpop.f32.mrb[0].mxu0
    %v1892 = vadd.f32 0.0, %v1891
    %1893 = vmatprep.mubr.f32.mxu0 0.0
    %1894 = vmatmul.mubr.f32.gmra.mrb[0].mxu0 %v1590
    %v1895 = vpop.f32.mrb[0].mxu0
    %v1896 = vadd.f32 0.0, %v1895
    %v1897 = vpop.f32.mrb[0].mxu0
    %v1898 = vadd.f32 0.0, %v1897
    %1899 = vmatprep.mubr.f32.mxu0 0.0
    %1900 = vmatmul.mubr.f32.gmra.mrb[0].mxu0 %v1593
    %v1901 = vpop.f32.mrb[0].mxu0
    %v1902 = vadd.f32 0.0, %v1901
    %v1903 = vpop.f32.mrb[0].mxu0
    %v1904 = vadd.f32 0.0, %v1903
    %1905 = vmatprep.mubr.f32.mxu0 0.0
    %1906 = vmatmul.mubr.f32.gmra.mrb[0].mxu0 %v1596
    %v1907 = vpop.f32.mrb[0].mxu0
    %v1908 = vadd.f32 0.0, %v1907
    %v1909 = vpop.f32.mrb[0].mxu0
    %v1910 = vadd.f32 0.0, %v1909
    %1911 = vmatprep.mubr.f32.mxu0 0.0
    %1912 = vmatmul.mubr.f32.gmra.mrb[0].mxu0 %v1599
    %v1913 = vpop.f32.mrb[0].mxu0
    %v1914 = vadd.f32 0.0, %v1913
    %v1915 = vpop.f32.mrb[0].mxu0
    %v1916 = vadd.f32 0.0, %v1915
    %1917 = vmatprep.mubr.f32.mxu0 0.0
    %1918 = vmatmul.mubr.f32.gmra.mrb[0].mxu0 %v1602
    %v1919 = vpop.f32.mrb[0].mxu0
    %v1920 = vadd.f32 0.0, %v1919
    %v1921 = vpop.f32.mrb[0].mxu0
    %v1922 = vadd.f32 0.0, %v1921
    %1923 = vmatprep.mubr.f32.mxu0 0.0
    %1924 = vmatmul.mubr.f32.gmra.mrb[0].mxu0 %v1605
    %v1925 = vpop.f32.mrb[0].mxu0
    %v1926 = vadd.f32 0.0, %v1925
    %v1927 = vpop.f32.mrb[0].mxu0
    %v1928 = vadd.f32 0.0, %v1927
    %1929 = vmatprep.mubr.f32.mxu0 0.0
    %1930 = vmatmul.mubr.f32.gmra.mrb[0].mxu0 %v1608
    %v1931 = vpop.f32.mrb[0].mxu0
    %v1932 = vadd.f32 0.0, %v1931
    %v1933 = vpop.f32.mrb[0].mxu0
    %v1934 = vadd.f32 0.0, %v1933
    %1935 = vmatprep.mubr.f32.mxu0 0.0
    %1936 = vmatmul.mubr.f32.gmra.mrb[0].mxu0 %v1611
    %v1937 = vpop.f32.mrb[0].mxu0
    %v1938 = vadd.f32 0.0, %v1937
    %v1939 = vpop.f32.mrb[0].mxu0
    %v1940 = vadd.f32 0.0, %v1939
    %1941 = vmatprep.mubr.f32.mxu0 0.0
    %1942 = vmatmul.mubr.f32.gmra.mrb[0].mxu0 %v1614
    %v1943 = vpop.f32.mrb[0].mxu0
    %v1944 = vadd.f32 0.0, %v1943
    %v1945 = vpop.f32.mrb[0].mxu0
    %v1946 = vadd.f32 0.0, %v1945
    %1947 = vmatprep.mubr.f32.mxu0 0.0
    %1948 = vmatmul.mubr.f32.gmra.mrb[0].mxu0 %v1617
    %v1949 = vpop.f32.mrb[0].mxu0
    %v1950 = vadd.f32 0.0, %v1949
    %v1951 = vpop.f32.mrb[0].mxu0
    %v1952 = vadd.f32 0.0, %v1951
    %1953 = vmatprep.mubr.f32.mxu0 0.0
    %1954 = vmatmul.mubr.f32.gmra.mrb[0].mxu0 %v1620
    %v1955 = vpop.f32.mrb[0].mxu0
    %v1956 = vadd.f32 0.0, %v1955
    %v1957 = vpop.f32.mrb[0].mxu0
    %v1958 = vadd.f32 0.0, %v1957
    %1959 = vmatprep.mubr.f32.mxu0 0.0
    %1960 = vmatmul.mubr.f32.gmra.mrb[0].mxu0 %v1623
    %v1961 = vpop.f32.mrb[0].mxu0
    %v1962 = vadd.f32 0.0, %v1961
    %v1963 = vpop.f32.mrb[0].mxu0
    %v1964 = vadd.f32 0.0, %v1963
    %1965 = vdwg.mxu0
    %1966 = vmatprep.subr.mxu0 %v1557
    %1967 = vmatpush1.msra.mxu0 %v1556
    %1968 = vmatprep.subr.mxu0 %v1563
    %1969 = vmatpush1.msra.mxu0 %v1562
    %1970 = vmatprep.subr.mxu0 %v1569
    %1971 = vmatpush1.msra.mxu0 %v1568
    %1972 = vmatprep.subr.mxu0 %v1642
    %1973 = vmatpush1.msra.mxu0 %v1639
    %1974 = vmatprep.subr.mxu0 0.0
    %1975 = vmatpush1.msra.mxu0 0.0
    %1976 = vmatprep.subr.mxu0 0.0
    %1977 = vmatpush1.msra.mxu0 0.0
    %1978 = vmatprep.subr.mxu0 0.0
    %1979 = vmatpush1.msra.mxu0 0.0
    %1980 = vmatprep.subr.mxu0 0.0
    %1981 = vmatpush1.msra.mxu0 0.0
    %1982 = vmatprep.subr.mxu0 0.0
    %1983 = vmatpush1.msra.mxu0 0.0
    %1984 = vmatprep.subr.mxu0 0.0
    %1985 = vmatpush1.msra.mxu0 0.0
    %1986 = vmatprep.subr.mxu0 0.0
    %1987 = vmatpush1.msra.mxu0 0.0
    %1988 = vmatprep.subr.mxu0 0.0
    %1989 = vmatpush1.msra.mxu0 0.0
    %1990 = vmatprep.subr.mxu0 0.0
    %1991 = vmatpush1.msra.mxu0 0.0
    %1992 = vmatprep.subr.mxu0 0.0
    %1993 = vmatpush1.msra.mxu0 0.0
    %1994 = vmatprep.subr.mxu0 0.0
    %1995 = vmatpush1.msra.mxu0 0.0
    %1996 = vmatprep.subr.mxu0 0.0
    %1997 = vmatpush1.msra.mxu0 0.0
    %1998 = vmatprep.subr.mxu0 0.0
    %1999 = vmatpush1.msra.mxu0 0.0
    %2000 = vmatprep.subr.mxu0 0.0
    %2001 = vmatpush1.msra.mxu0 0.0
    %2002 = vmatprep.subr.mxu0 0.0
    %2003 = vmatpush1.msra.mxu0 0.0
    %2004 = vmatprep.subr.mxu0 0.0
    %2005 = vmatpush1.msra.mxu0 0.0
    %2006 = vmatprep.subr.mxu0 0.0
    %2007 = vmatpush1.msra.mxu0 0.0
    %2008 = vmatprep.subr.mxu0 0.0
    %2009 = vmatpush1.msra.mxu0 0.0
    %2010 = vmatprep.subr.mxu0 0.0
    %2011 = vmatpush1.msra.mxu0 0.0
    %2012 = vmatprep.subr.mxu0 0.0
    %2013 = vmatpush1.msra.mxu0 0.0
    %2014 = vmatprep.subr.mxu0 0.0
    %2015 = vmatpush1.msra.mxu0 0.0
    %2016 = vmatprep.subr.mxu0 0.0
    %2017 = vmatpush1.msra.mxu0 0.0
    %2018 = vmatprep.subr.mxu0 0.0
    %2019 = vmatpush1.msra.mxu0 0.0
    %2020 = vmatprep.subr.mxu0 0.0
    %2021 = vmatpush1.msra.mxu0 0.0
    %2022 = vmatprep.subr.mxu0 0.0
    %2023 = vmatpush1.msra.mxu0 0.0
    %2024 = vmatprep.subr.mxu0 0.0
    %2025 = vmatpush1.msra.mxu0 0.0
    %2026 = vmatprep.subr.mxu0 0.0
    %2027 = vmatpush1.msra.mxu0 0.0
    %2028 = vmatprep.subr.mxu0 0.0
    %2029 = vmatpush1.msra.mxu0 0.0
    %2030 = vmatprep.mubr.f32.mxu0 0.0
    %2031 = vmatmul.mubr.f32.gmra.mrb[0].mxu0 %v1578
    %v2032 = vpop.f32.mrb[0].mxu0
    %v2033 = vadd.f32 0.0, %v2032
    %v2034 = vpop.f32.mrb[0].mxu0
    %v2035 = vadd.f32 0.0, %v2034
    %2036 = vmatprep.mubr.f32.mxu0 0.0
    %2037 = vmatmul.mubr.f32.gmra.mrb[0].mxu0 %v1581
    %v2038 = vpop.f32.mrb[0].mxu0
    %v2039 = vadd.f32 0.0, %v2038
    %v2040 = vpop.f32.mrb[0].mxu0
    %v2041 = vadd.f32 0.0, %v2040
    %2042 = vmatprep.mubr.f32.mxu0 0.0
    %2043 = vmatmul.mubr.f32.gmra.mrb[0].mxu0 %v1584
    %v2044 = vpop.f32.mrb[0].mxu0
    %v2045 = vadd.f32 0.0, %v2044
    %v2046 = vpop.f32.mrb[0].mxu0
    %v2047 = vadd.f32 0.0, %v2046
    %2048 = vmatprep.mubr.f32.mxu0 0.0
    %2049 = vmatmul.mubr.f32.gmra.mrb[0].mxu0 %v1587
    %v2050 = vpop.f32.mrb[0].mxu0
    %v2051 = vadd.f32 0.0, %v2050
    %v2052 = vpop.f32.mrb[0].mxu0
    %v2053 = vadd.f32 0.0, %v2052
    %2054 = vmatprep.mubr.f32.mxu0 0.0
    %2055 = vmatmul.mubr.f32.gmra.mrb[0].mxu0 %v1590
    %v2056 = vpop.f32.mrb[0].mxu0
    %v2057 = vadd.f32 0.0, %v2056
    %v2058 = vpop.f32.mrb[0].mxu0
    %v2059 = vadd.f32 0.0, %v2058
    %2060 = vmatprep.mubr.f32.mxu0 0.0
    %2061 = vmatmul.mubr.f32.gmra.mrb[0].mxu0 %v1593
    %v2062 = vpop.f32.mrb[0].mxu0
    %v2063 = vadd.f32 0.0, %v2062
    %v2064 = vpop.f32.mrb[0].mxu0
    %v2065 = vadd.f32 0.0, %v2064
    %2066 = vmatprep.mubr.f32.mxu0 0.0
    %2067 = vmatmul.mubr.f32.gmra.mrb[0].mxu0 %v1596
    %v2068 = vpop.f32.mrb[0].mxu0
    %v2069 = vadd.f32 0.0, %v2068
    %v2070 = vpop.f32.mrb[0].mxu0
    %v2071 = vadd.f32 0.0, %v2070
    %2072 = vmatprep.mubr.f32.mxu0 0.0
    %2073 = vmatmul.mubr.f32.gmra.mrb[0].mxu0 %v1599
    %v2074 = vpop.f32.mrb[0].mxu0
    %v2075 = vadd.f32 0.0, %v2074
    %v2076 = vpop.f32.mrb[0].mxu0
    %v2077 = vadd.f32 0.0, %v2076
    %2078 = vmatprep.mubr.f32.mxu0 0.0
    %2079 = vmatmul.mubr.f32.gmra.mrb[0].mxu0 %v1602
    %v2080 = vpop.f32.mrb[0].mxu0
    %v2081 = vadd.f32 0.0, %v2080
    %v2082 = vpop.f32.mrb[0].mxu0
    %v2083 = vadd.f32 0.0, %v2082
    %2084 = vmatprep.mubr.f32.mxu0 0.0
    %2085 = vmatmul.mubr.f32.gmra.mrb[0].mxu0 %v1605
    %v2086 = vpop.f32.mrb[0].mxu0
    %v2087 = vadd.f32 0.0, %v2086
    %v2088 = vpop.f32.mrb[0].mxu0
    %v2089 = vadd.f32 0.0, %v2088
    %2090 = vmatprep.mubr.f32.mxu0 0.0
    %2091 = vmatmul.mubr.f32.gmra.mrb[0].mxu0 %v1608
    %v2092 = vpop.f32.mrb[0].mxu0
    %v2093 = vadd.f32 0.0, %v2092
    %v2094 = vpop.f32.mrb[0].mxu0
    %v2095 = vadd.f32 0.0, %v2094
    %2096 = vmatprep.mubr.f32.mxu0 0.0
    %2097 = vmatmul.mubr.f32.gmra.mrb[0].mxu0 %v1611
    %v2098 = vpop.f32.mrb[0].mxu0
    %v2099 = vadd.f32 0.0, %v2098
    %v2100 = vpop.f32.mrb[0].mxu0
    %v2101 = vadd.f32 0.0, %v2100
    %2102 = vmatprep.mubr.f32.mxu0 0.0
    %2103 = vmatmul.mubr.f32.gmra.mrb[0].mxu0 %v1614
    %v2104 = vpop.f32.mrb[0].mxu0
    %v2105 = vadd.f32 0.0, %v2104
    %v2106 = vpop.f32.mrb[0].mxu0
    %v2107 = vadd.f32 0.0, %v2106
    %2108 = vmatprep.mubr.f32.mxu0 0.0
    %2109 = vmatmul.mubr.f32.gmra.mrb[0].mxu0 %v1617
    %v2110 = vpop.f32.mrb[0].mxu0
    %v2111 = vadd.f32 0.0, %v2110
    %v2112 = vpop.f32.mrb[0].mxu0
    %v2113 = vadd.f32 0.0, %v2112
    %2114 = vmatprep.mubr.f32.mxu0 0.0
    %2115 = vmatmul.mubr.f32.gmra.mrb[0].mxu0 %v1620
    %v2116 = vpop.f32.mrb[0].mxu0
    %v2117 = vadd.f32 0.0, %v2116
    %v2118 = vpop.f32.mrb[0].mxu0
    %v2119 = vadd.f32 0.0, %v2118
    %2120 = vmatprep.mubr.f32.mxu0 0.0
    %2121 = vmatmul.mubr.f32.gmra.mrb[0].mxu0 %v1623
    %v2122 = vpop.f32.mrb[0].mxu0
    %v2123 = vadd.f32 0.0, %v2122
    %v2124 = vpop.f32.mrb[0].mxu0
    %v2125 = vadd.f32 0.0, %v2124
    %2126 = vdwg.mxu0
    %v2127 = vmax.f32 %v1711, %v1723
    %v2128 = vmax.f32 %v1713, %v1725
    %v2129 = vmax.f32 %v1872, %v1884
    %v2130 = vmax.f32 %v1874, %v1886
    %v2131 = vmax.f32 %v2033, %v2045
    %v2132 = vmax.f32 %v2035, %v2047
    %v2133 = vmax.f32 %v1717, %v1729
    %v2134 = vmax.f32 %v1719, %v1731
    %v2135 = vmax.f32 %v1878, %v1890
    %v2136 = vmax.f32 %v1880, %v1892
    %v2137 = vmax.f32 %v2039, %v2051
    %v2138 = vmax.f32 %v2041, %v2053
    %v2139 = vmax.f32 %v2127, %v1735
    %v2140 = vmax.f32 %v2128, %v1737
    %v2141 = vmax.f32 %v2129, %v1896
    %v2142 = vmax.f32 %v2130, %v1898
    %v2143 = vmax.f32 %v2131, %v2057
    %v2144 = vmax.f32 %v2132, %v2059
    %v2145 = vmax.f32 %v2133, %v1741
    %v2146 = vmax.f32 %v2134, %v1743
    %v2147 = vmax.f32 %v2135, %v1902
    %v2148 = vmax.f32 %v2136, %v1904
    %v2149 = vmax.f32 %v2137, %v2063
    %v2150 = vmax.f32 %v2138, %v2065
    %v2151 = vmax.f32 %v2139, %v1747
    %v2152 = vmax.f32 %v2140, %v1749
    %v2153 = vmax.f32 %v2141, %v1908
    %v2154 = vmax.f32 %v2142, %v1910
    %v2155 = vmax.f32 %v2143, %v2069
    %v2156 = vmax.f32 %v2144, %v2071
    %v2157 = vmax.f32 %v2145, %v1753
    %v2158 = vmax.f32 %v2146, %v1755
    %v2159 = vmax.f32 %v2147, %v1914
    %v2160 = vmax.f32 %v2148, %v1916
    %v2161 = vmax.f32 %v2149, %v2075
    %v2162 = vmax.f32 %v2150, %v2077
    %v2163 = vmax.f32 %v2151, %v1759
    %v2164 = vmax.f32 %v2152, %v1761
    %v2165 = vmax.f32 %v2153, %v1920
    %v2166 = vmax.f32 %v2154, %v1922
    %v2167 = vmax.f32 %v2155, %v2081
    %v2168 = vmax.f32 %v2156, %v2083
    %v2169 = vmax.f32 %v2157, %v1765
    %v2170 = vmax.f32 %v2158, %v1767
    %v2171 = vmax.f32 %v2159, %v1926
    %v2172 = vmax.f32 %v2160, %v1928
    %v2173 = vmax.f32 %v2161, %v2087
    %v2174 = vmax.f32 %v2162, %v2089
    %v2175 = vmax.f32 %v2163, %v1771
    %v2176 = vmax.f32 %v2164, %v1773
    %v2177 = vmax.f32 %v2165, %v1932
    %v2178 = vmax.f32 %v2166, %v1934
    %v2179 = vmax.f32 %v2167, %v2093
    %v2180 = vmax.f32 %v2168, %v2095
    %v2181 = vmax.f32 %v2169, %v1777
    %v2182 = vmax.f32 %v2170, %v1779
    %v2183 = vmax.f32 %v2171, %v1938
    %v2184 = vmax.f32 %v2172, %v1940
    %v2185 = vmax.f32 %v2173, %v2099
    %v2186 = vmax.f32 %v2174, %v2101
    %v2187 = vmax.f32 %v2175, %v1783
    %v2188 = vmax.f32 %v2176, %v1785
    %v2189 = vmax.f32 %v2177, %v1944
    %v2190 = vmax.f32 %v2178, %v1946
    %v2191 = vmax.f32 %v2179, %v2105
    %v2192 = vmax.f32 %v2180, %v2107
    %v2193 = vmax.f32 %v2181, %v1789
    %v2194 = vmax.f32 %v2182, %v1791
    %v2195 = vmax.f32 %v2183, %v1950
    %v2196 = vmax.f32 %v2184, %v1952
    %v2197 = vmax.f32 %v2185, %v2111
    %v2198 = vmax.f32 %v2186, %v2113
    %v2199 = vmax.f32 %v2187, %v1795
    %v2200 = vmax.f32 %v2188, %v1797
    %v2201 = vmax.f32 %v2189, %v1956
    %v2202 = vmax.f32 %v2190, %v1958
    %v2203 = vmax.f32 %v2191, %v2117
    %v2204 = vmax.f32 %v2192, %v2119
    %v2205 = vmax.f32 %v2193, %v1801
    %v2206 = vmax.f32 %v2194, %v1803
    %v2207 = vmax.f32 %v2195, %v1962
    %v2208 = vmax.f32 %v2196, %v1964
    %v2209 = vmax.f32 %v2197, %v2123
    %v2210 = vmax.f32 %v2198, %v2125
    %v2211 = vpack.c.bf16 %v2205, %v2199
    %v2212 = vpack.c.bf16 %v2206, %v2200
    %v2213 = vpack.c.bf16 %v2207, %v2201
    %v2214 = vpack.c.bf16 %v2208, %v2202
    %v2215 = vpack.c.bf16 %v2209, %v2203
    %v2216 = vpack.c.bf16 %v2210, %v2204
    %s2217 = smul.u32 4, 16
    %s2218 = smul.u32 %s2217, 92
    %s2219 = smul.u32 %s2218, 1
    %s2220 = sshll.u32 %s2219, 4
    %2221 = dma.done [#allocation3], %s2220
    %v2222 = vld [vmem:[#allocation2] sm:$0xf]
    %v2223 = vld [vmem:[#allocation2 + $0x4] sm:$0xf]
    %v2224 = vld [vmem:[#allocation2 + $0x8] sm:$0xf]
    %v2225 = vld [vmem:[#allocation2 + $0xc] sm:$0xf]
    %v2226 = vld [vmem:[#allocation2 + $0x10] sm:$0xf]
    %v2227 = vld [vmem:[#allocation2 + $0x14] sm:$0xf]
    %v2228 = vld [vmem:[#allocation2 + $0x18] sm:$0xf]
    %v2229 = vld [vmem:[#allocation2 + $0x1c] sm:$0xf]
    %v2230 = vld [vmem:[#allocation2 + $0x20] sm:$0xf]
    %v2231 = vld [vmem:[#allocation2 + $0x24] sm:$0xf]
    %v2232 = vld [vmem:[#allocation2 + $0x28] sm:$0xf]
    %v2233 = vld [vmem:[#allocation2 + $0x2c] sm:$0xf]
    %v2234 = vld [vmem:[#allocation2 + $0x30] sm:$0xf]
    %v2235 = vld [vmem:[#allocation2 + $0x34] sm:$0xf]
    %v2236 = vld [vmem:[#allocation2 + $0x38] sm:$0xf]
    %v2237 = vld [vmem:[#allocation2 + $0x3c] sm:$0xf]
    %v2238 = vld [vmem:[#allocation2 + $0x40] sm:$0xf]
    %v2239 = vld [vmem:[#allocation2 + $0x44] sm:$0xf]
    %v2240 = vld [vmem:[#allocation2 + $0x48] sm:$0xf]
    %v2241 = vld [vmem:[#allocation2 + $0x4c] sm:$0xf]
    %v2242 = vld [vmem:[#allocation2 + $0x50] sm:$0xf]
    %v2243 = vld [vmem:[#allocation2 + $0x54] sm:$0xf]
    %v2244 = vld [vmem:[#allocation2 + $0x58] sm:$0xf]
    %v2245 = vld [vmem:[#allocation2 + $0x5c] sm:$0xf]
    %v2246 = vld [vmem:[#allocation2 + $0x60] sm:$0xf]
    %v2247 = vld [vmem:[#allocation2 + $0x64] sm:$0xf]
    %v2248 = vld [vmem:[#allocation2 + $0x68] sm:$0xf]
    %v2249 = vld [vmem:[#allocation2 + $0x6c] sm:$0xf]
    %v2250 = vld [vmem:[#allocation2 + $0x70] sm:$0xf]
    %v2251 = vld [vmem:[#allocation2 + $0x74] sm:$0xf]
    %v2252 = vld [vmem:[#allocation2 + $0x78] sm:$0xf]
    %v2253 = vld [vmem:[#allocation2 + $0x7c] sm:$0xf]
    %v2254 = vld [vmem:[#allocation2 + $0x80] sm:$0xf]
    %v2255 = vld [vmem:[#allocation2 + $0x84] sm:$0xf]
    %v2256 = vld [vmem:[#allocation2 + $0x88] sm:$0xf]
    %v2257 = vld [vmem:[#allocation2 + $0x8c] sm:$0xf]
    %v2258 = vld [vmem:[#allocation2 + $0x90] sm:$0xf]
    %v2259 = vld [vmem:[#allocation2 + $0x94] sm:$0xf]
    %v2260 = vld [vmem:[#allocation2 + $0x98] sm:$0xf]
    %v2261 = vld [vmem:[#allocation2 + $0x9c] sm:$0xf]
    %v2262 = vld [vmem:[#allocation2 + $0xa0] sm:$0xf]
    %v2263 = vld [vmem:[#allocation2 + $0xa4] sm:$0xf]
    %v2264 = vld [vmem:[#allocation2 + $0xa8] sm:$0xf]
    %v2265 = vld [vmem:[#allocation2 + $0xac] sm:$0xf]
    %v2266 = vld [vmem:[#allocation2 + $0xb0] sm:$0xf]
    %v2267 = vld [vmem:[#allocation2 + $0xb4] sm:$0xf]
    %v2268 = vld [vmem:[#allocation2 + $0xb8] sm:$0xf]
    %v2269 = vld [vmem:[#allocation2 + $0xbc] sm:$0xf]
    %v2270 = vld [vmem:[#allocation2 + $0xc0] sm:$0xf]
    %v2271 = vld [vmem:[#allocation2 + $0xc4] sm:$0xf]
    %v2272 = vld [vmem:[#allocation2 + $0xc8] sm:$0xf]
    %v2273 = vld [vmem:[#allocation2 + $0xcc] sm:$0xf]
    %v2274 = vld [vmem:[#allocation2 + $0xd0] sm:$0xf]
    %v2275 = vld [vmem:[#allocation2 + $0xd4] sm:$0xf]
    %v2276 = vld [vmem:[#allocation2 + $0xd8] sm:$0xf]
    %v2277 = vld [vmem:[#allocation2 + $0xdc] sm:$0xf]
    %v2278 = vld [vmem:[#allocation2 + $0xe0] sm:$0xf]
    %v2279 = vld [vmem:[#allocation2 + $0xe4] sm:$0xf]
    %v2280 = vld [vmem:[#allocation2 + $0xe8] sm:$0xf]
    %v2281 = vld [vmem:[#allocation2 + $0xec] sm:$0xf]
    %v2282 = vld [vmem:[#allocation2 + $0xf0] sm:$0xf]
    %v2283 = vld [vmem:[#allocation2 + $0xf4] sm:$0xf]
    %v2284 = vld [vmem:[#allocation2 + $0xf8] sm:$0xf]
    %v2285 = vld [vmem:[#allocation2 + $0xfc] sm:$0xf]
    %v2286 = vld [vmem:[#allocation2 + $0x100] sm:$0xf]
    %v2287 = vld [vmem:[#allocation2 + $0x104] sm:$0xf]
    %v2288 = vld [vmem:[#allocation2 + $0x108] sm:$0xf]
    %v2289 = vld [vmem:[#allocation2 + $0x10c] sm:$0xf]
    %v2290 = vld [vmem:[#allocation2 + $0x110] sm:$0xf]
    %v2291 = vld [vmem:[#allocation2 + $0x114] sm:$0xf]
    %v2292 = vld [vmem:[#allocation2 + $0x118] sm:$0xf]
    %v2293 = vld [vmem:[#allocation2 + $0x11c] sm:$0xf]
    %v2294 = vld [vmem:[#allocation2 + $0x120] sm:$0xf]
    %v2295 = vld [vmem:[#allocation2 + $0x124] sm:$0xf]
    %v2296 = vld [vmem:[#allocation2 + $0x128] sm:$0xf]
    %v2297 = vld [vmem:[#allocation2 + $0x12c] sm:$0xf]
    %v2298 = vld [vmem:[#allocation2 + $0x130] sm:$0xf]
    %v2299 = vld [vmem:[#allocation2 + $0x134] sm:$0xf]
    %v2300 = vld [vmem:[#allocation2 + $0x138] sm:$0xf]
    %v2301 = vld [vmem:[#allocation2 + $0x13c] sm:$0xf]
    %v2302 = vld [vmem:[#allocation2 + $0x140] sm:$0xf]
    %v2303 = vld [vmem:[#allocation2 + $0x144] sm:$0xf]
    %v2304 = vld [vmem:[#allocation2 + $0x148] sm:$0xf]
    %v2305 = vld [vmem:[#allocation2 + $0x14c] sm:$0xf]
    %v2306 = vld [vmem:[#allocation2 + $0x150] sm:$0xf]
    %v2307 = vld [vmem:[#allocation2 + $0x154] sm:$0xf]
    %v2308 = vld [vmem:[#allocation2 + $0x158] sm:$0xf]
    %v2309 = vld [vmem:[#allocation2 + $0x15c] sm:$0xf]
    %v2310 = vld [vmem:[#allocation2 + $0x160] sm:$0xf]
    %v2311 = vld [vmem:[#allocation2 + $0x164] sm:$0xf]
    %v2312 = vld [vmem:[#allocation2 + $0x168] sm:$0xf]
    %v2313 = vld [vmem:[#allocation2 + $0x16c] sm:$0x3]
    %s2314 = scalar_lea.vmem [#allocation2], 368
    %v2315 = vld [vmem:[%s2314] sm:$0xf]
    %v2316 = vld [vmem:[%s2314 + $0x4] sm:$0xf]
    %v2317 = vld [vmem:[%s2314 + $0x8] sm:$0xf]
    %v2318 = vld [vmem:[%s2314 + $0xc] sm:$0xf]
    %v2319 = vld [vmem:[%s2314 + $0x10] sm:$0xf]
    %v2320 = vld [vmem:[%s2314 + $0x14] sm:$0xf]
    %v2321 = vld [vmem:[%s2314 + $0x18] sm:$0xf]
    %v2322 = vld [vmem:[%s2314 + $0x1c] sm:$0xf]
    %v2323 = vld [vmem:[%s2314 + $0x20] sm:$0xf]
    %v2324 = vld [vmem:[%s2314 + $0x24] sm:$0xf]
    %v2325 = vld [vmem:[%s2314 + $0x28] sm:$0xf]
    %v2326 = vld [vmem:[%s2314 + $0x2c] sm:$0xf]
    %v2327 = vld [vmem:[%s2314 + $0x30] sm:$0xf]
    %v2328 = vld [vmem:[%s2314 + $0x34] sm:$0xf]
    %v2329 = vld [vmem:[%s2314 + $0x38] sm:$0xf]
    %v2330 = vld [vmem:[%s2314 + $0x3c] sm:$0xf]
    %v2331 = vld [vmem:[%s2314 + $0x40] sm:$0xf]
    %v2332 = vld [vmem:[%s2314 + $0x44] sm:$0xf]
    %v2333 = vld [vmem:[%s2314 + $0x48] sm:$0xf]
    %v2334 = vld [vmem:[%s2314 + $0x4c] sm:$0xf]
    %v2335 = vld [vmem:[%s2314 + $0x50] sm:$0xf]
    %v2336 = vld [vmem:[%s2314 + $0x54] sm:$0xf]
    %v2337 = vld [vmem:[%s2314 + $0x58] sm:$0xf]
    %v2338 = vld [vmem:[%s2314 + $0x5c] sm:$0xf]
    %v2339 = vld [vmem:[%s2314 + $0x60] sm:$0xf]
    %v2340 = vld [vmem:[%s2314 + $0x64] sm:$0xf]
    %v2341 = vld [vmem:[%s2314 + $0x68] sm:$0xf]
    %v2342 = vld [vmem:[%s2314 + $0x6c] sm:$0xf]
    %v2343 = vld [vmem:[%s2314 + $0x70] sm:$0xf]
    %v2344 = vld [vmem:[%s2314 + $0x74] sm:$0xf]
    %v2345 = vld [vmem:[%s2314 + $0x78] sm:$0xf]
    %v2346 = vld [vmem:[%s2314 + $0x7c] sm:$0xf]
    %v2347 = vld [vmem:[%s2314 + $0x80] sm:$0xf]
    %v2348 = vld [vmem:[%s2314 + $0x84] sm:$0xf]
    %v2349 = vld [vmem:[%s2314 + $0x88] sm:$0xf]
    %v2350 = vld [vmem:[%s2314 + $0x8c] sm:$0xf]
    %v2351 = vld [vmem:[%s2314 + $0x90] sm:$0xf]
    %v2352 = vld [vmem:[%s2314 + $0x94] sm:$0xf]
    %v2353 = vld [vmem:[%s2314 + $0x98] sm:$0xf]
    %v2354 = vld [vmem:[%s2314 + $0x9c] sm:$0xf]
    %v2355 = vld [vmem:[%s2314 + $0xa0] sm:$0xf]
    %v2356 = vld [vmem:[%s2314 + $0xa4] sm:$0xf]
    %v2357 = vld [vmem:[%s2314 + $0xa8] sm:$0xf]
    %v2358 = vld [vmem:[%s2314 + $0xac] sm:$0xf]
    %v2359 = vld [vmem:[%s2314 + $0xb0] sm:$0xf]
    %v2360 = vld [vmem:[%s2314 + $0xb4] sm:$0xf]
    %v2361 = vld [vmem:[%s2314 + $0xb8] sm:$0xf]
    %v2362 = vld [vmem:[%s2314 + $0xbc] sm:$0xf]
    %v2363 = vld [vmem:[%s2314 + $0xc0] sm:$0xf]
    %v2364 = vld [vmem:[%s2314 + $0xc4] sm:$0xf]
    %v2365 = vld [vmem:[%s2314 + $0xc8] sm:$0xf]
    %v2366 = vld [vmem:[%s2314 + $0xcc] sm:$0xf]
    %v2367 = vld [vmem:[%s2314 + $0xd0] sm:$0xf]
    %v2368 = vld [vmem:[%s2314 + $0xd4] sm:$0xf]
    %v2369 = vld [vmem:[%s2314 + $0xd8] sm:$0xf]
    %v2370 = vld [vmem:[%s2314 + $0xdc] sm:$0xf]
    %v2371 = vld [vmem:[%s2314 + $0xe0] sm:$0xf]
    %v2372 = vld [vmem:[%s2314 + $0xe4] sm:$0xf]
    %v2373 = vld [vmem:[%s2314 + $0xe8] sm:$0xf]
    %v2374 = vld [vmem:[%s2314 + $0xec] sm:$0xf]
    %v2375 = vld [vmem:[%s2314 + $0xf0] sm:$0xf]
    %v2376 = vld [vmem:[%s2314 + $0xf4] sm:$0xf]
    %v2377 = vld [vmem:[%s2314 + $0xf8] sm:$0xf]
    %v2378 = vld [vmem:[%s2314 + $0xfc] sm:$0xf]
    %v2379 = vld [vmem:[%s2314 + $0x100] sm:$0xf]
    %v2380 = vld [vmem:[%s2314 + $0x104] sm:$0xf]
    %v2381 = vld [vmem:[%s2314 + $0x108] sm:$0xf]
    %v2382 = vld [vmem:[%s2314 + $0x10c] sm:$0xf]
    %v2383 = vld [vmem:[%s2314 + $0x110] sm:$0xf]
    %v2384 = vld [vmem:[%s2314 + $0x114] sm:$0xf]
    %v2385 = vld [vmem:[%s2314 + $0x118] sm:$0xf]
    %v2386 = vld [vmem:[%s2314 + $0x11c] sm:$0xf]
    %v2387 = vld [vmem:[%s2314 + $0x120] sm:$0xf]
    %v2388 = vld [vmem:[%s2314 + $0x124] sm:$0xf]
    %v2389 = vld [vmem:[%s2314 + $0x128] sm:$0xf]
    %v2390 = vld [vmem:[%s2314 + $0x12c] sm:$0xf]
    %v2391 = vld [vmem:[%s2314 + $0x130] sm:$0xf]
    %v2392 = vld [vmem:[%s2314 + $0x134] sm:$0xf]
    %v2393 = vld [vmem:[%s2314 + $0x138] sm:$0xf]
    %v2394 = vld [vmem:[%s2314 + $0x13c] sm:$0xf]
    %v2395 = vld [vmem:[%s2314 + $0x140] sm:$0xf]
    %v2396 = vld [vmem:[%s2314 + $0x144] sm:$0xf]
    %v2397 = vld [vmem:[%s2314 + $0x148] sm:$0xf]
    %v2398 = vld [vmem:[%s2314 + $0x14c] sm:$0xf]
    %v2399 = vld [vmem:[%s2314 + $0x150] sm:$0xf]
    %v2400 = vld [vmem:[%s2314 + $0x154] sm:$0xf]
    %v2401 = vld [vmem:[%s2314 + $0x158] sm:$0xf]
    %v2402 = vld [vmem:[%s2314 + $0x15c] sm:$0xf]
    %v2403 = vld [vmem:[%s2314 + $0x160] sm:$0xf]
    %v2404 = vld [vmem:[%s2314 + $0x164] sm:$0xf]
    %v2405 = vld [vmem:[%s2314 + $0x168] sm:$0xf]
    %v2406 = vld [vmem:[%s2314 + $0x16c] sm:$0x3]
    %v2408 = vshrl.u32 %v2211, 16
    %v2411 = vshrl.u32 %v2212, 16
    %v2414 = vshrl.u32 %v2213, 16
    %v2417 = vshrl.u32 %v2214, 16
    %v2420 = vshrl.u32 %v2215, 16
    %v2423 = vshrl.u32 %v2216, 16
    %v2522 = vunpack.c.l.b16 %v2315
    %v2523 = vunpack.c.l.b16 %v2316
    %v2524 = vunpack.c.l.b16 %v2317
    %v2525 = vunpack.c.l.b16 %v2318
    %v2526 = vunpack.c.l.b16 %v2319
    %v2527 = vunpack.c.l.b16 %v2320
    %v2528 = vunpack.c.l.b16 %v2321
    %v2529 = vunpack.c.l.b16 %v2322
    %v2530 = vunpack.c.l.b16 %v2323
    %v2531 = vunpack.c.l.b16 %v2324
    %v2532 = vunpack.c.l.b16 %v2325
    %v2533 = vunpack.c.l.b16 %v2326
    %v2534 = vunpack.c.l.b16 %v2327
    %v2535 = vunpack.c.l.b16 %v2328
    %v2536 = vunpack.c.l.b16 %v2329
    %v2537 = vunpack.c.l.b16 %v2330
    %v2538 = vunpack.c.l.b16 %v2331
    %v2539 = vunpack.c.l.b16 %v2332
    %v2540 = vunpack.c.l.b16 %v2333
    %v2541 = vunpack.c.l.b16 %v2334
    %v2542 = vunpack.c.l.b16 %v2335
    %v2543 = vunpack.c.l.b16 %v2336
    %v2544 = vunpack.c.l.b16 %v2337
    %v2545 = vunpack.c.l.b16 %v2338
    %v2546 = vunpack.c.l.b16 %v2339
    %v2547 = vunpack.c.l.b16 %v2340
    %v2548 = vunpack.c.l.b16 %v2341
    %v2549 = vunpack.c.l.b16 %v2342
    %v2550 = vunpack.c.l.b16 %v2343
    %v2551 = vunpack.c.l.b16 %v2344
    %v2552 = vunpack.c.l.b16 %v2345
    %v2553 = vunpack.c.l.b16 %v2346
    %v2554 = vunpack.c.l.b16 %v2347
    %v2555 = vunpack.c.l.b16 %v2348
    %v2556 = vunpack.c.l.b16 %v2349
    %v2557 = vunpack.c.l.b16 %v2350
    %v2558 = vunpack.c.l.b16 %v2351
    %v2559 = vunpack.c.l.b16 %v2352
    %v2560 = vunpack.c.l.b16 %v2353
    %v2561 = vunpack.c.l.b16 %v2354
    %v2562 = vunpack.c.l.b16 %v2355
    %v2563 = vunpack.c.l.b16 %v2356
    %v2564 = vunpack.c.l.b16 %v2357
    %v2565 = vunpack.c.l.b16 %v2358
    %v2566 = vunpack.c.l.b16 %v2359
    %v2567 = vunpack.c.l.b16 %v2360
    %v2568 = vunpack.c.l.b16 %v2361
    %v2569 = vunpack.c.l.b16 %v2362
    %v2570 = vunpack.c.l.b16 %v2363
    %v2571 = vunpack.c.l.b16 %v2364
    %v2572 = vunpack.c.l.b16 %v2365
    %v2573 = vunpack.c.l.b16 %v2366
    %v2574 = vunpack.c.l.b16 %v2367
    %v2575 = vunpack.c.l.b16 %v2368
    %v2576 = vunpack.c.l.b16 %v2369
    %v2577 = vunpack.c.l.b16 %v2370
    %v2578 = vunpack.c.l.b16 %v2371
    %v2579 = vunpack.c.l.b16 %v2372
    %v2580 = vunpack.c.l.b16 %v2373
    %v2581 = vunpack.c.l.b16 %v2374
    %v2582 = vunpack.c.l.b16 %v2375
    %v2583 = vunpack.c.l.b16 %v2376
    %v2584 = vunpack.c.l.b16 %v2377
    %v2585 = vunpack.c.l.b16 %v2378
    %v2586 = vunpack.c.l.b16 %v2379
    %v2587 = vunpack.c.l.b16 %v2380
    %v2588 = vunpack.c.l.b16 %v2381
    %v2589 = vunpack.c.l.b16 %v2382
    %v2590 = vunpack.c.l.b16 %v2383
    %v2591 = vunpack.c.l.b16 %v2384
    %v2592 = vunpack.c.l.b16 %v2385
    %v2593 = vunpack.c.l.b16 %v2386
    %v2594 = vunpack.c.l.b16 %v2387
    %v2595 = vunpack.c.l.b16 %v2388
    %v2596 = vunpack.c.l.b16 %v2389
    %v2597 = vunpack.c.l.b16 %v2390
    %v2598 = vunpack.c.l.b16 %v2391
    %v2599 = vunpack.c.l.b16 %v2392
    %v2600 = vunpack.c.l.b16 %v2393
    %v2601 = vunpack.c.l.b16 %v2394
    %v2602 = vunpack.c.l.b16 %v2395
    %v2603 = vunpack.c.l.b16 %v2396
    %v2604 = vunpack.c.l.b16 %v2397
    %v2605 = vunpack.c.l.b16 %v2398
    %v2606 = vunpack.c.l.b16 %v2399
    %v2607 = vunpack.c.l.b16 %v2400
    %v2608 = vunpack.c.l.b16 %v2401
    %v2609 = vunpack.c.l.b16 %v2402
    %v2610 = vunpack.c.l.b16 %v2403
    %v2611 = vunpack.c.l.b16 %v2404
    %v2612 = vunpack.c.l.b16 %v2405
    %v2613 = vunpack.c.l.b16 %v2406
    %v2614 = vpack.c.b16 %v2523, %v2522
    %v2615 = vpack.c.b16 %v2525, %v2524
    %v2616 = vpack.c.b16 %v2527, %v2526
    %v2617 = vpack.c.b16 %v2529, %v2528
    %v2618 = vpack.c.b16 %v2531, %v2530
    %v2619 = vpack.c.b16 %v2533, %v2532
    %v2620 = vpack.c.b16 %v2535, %v2534
    %v2621 = vpack.c.b16 %v2537, %v2536
    %v2622 = vpack.c.b16 %v2539, %v2538
    %v2623 = vpack.c.b16 %v2541, %v2540
    %v2624 = vpack.c.b16 %v2543, %v2542
    %v2625 = vpack.c.b16 %v2545, %v2544
    %v2626 = vpack.c.b16 %v2547, %v2546
    %v2627 = vpack.c.b16 %v2549, %v2548
    %v2628 = vpack.c.b16 %v2551, %v2550
    %v2629 = vpack.c.b16 %v2553, %v2552
    %v2630 = vpack.c.b16 %v2555, %v2554
    %v2631 = vpack.c.b16 %v2557, %v2556
    %v2632 = vpack.c.b16 %v2559, %v2558
    %v2633 = vpack.c.b16 %v2561, %v2560
    %v2634 = vpack.c.b16 %v2563, %v2562
    %v2635 = vpack.c.b16 %v2565, %v2564
    %v2636 = vpack.c.b16 %v2567, %v2566
    %v2637 = vpack.c.b16 %v2569, %v2568
    %v2638 = vpack.c.b16 %v2571, %v2570
    %v2639 = vpack.c.b16 %v2573, %v2572
    %v2640 = vpack.c.b16 %v2575, %v2574
    %v2641 = vpack.c.b16 %v2577, %v2576
    %v2642 = vpack.c.b16 %v2579, %v2578
    %v2643 = vpack.c.b16 %v2581, %v2580
    %v2644 = vpack.c.b16 %v2583, %v2582
    %v2645 = vpack.c.b16 %v2585, %v2584
    %v2646 = vpack.c.b16 %v2587, %v2586
    %v2647 = vpack.c.b16 %v2589, %v2588
    %v2648 = vpack.c.b16 %v2591, %v2590
    %v2649 = vpack.c.b16 %v2593, %v2592
    %v2650 = vpack.c.b16 %v2595, %v2594
    %v2651 = vpack.c.b16 %v2597, %v2596
    %v2652 = vpack.c.b16 %v2599, %v2598
    %v2653 = vpack.c.b16 %v2601, %v2600
    %v2654 = vpack.c.b16 %v2603, %v2602
    %v2655 = vpack.c.b16 %v2605, %v2604
    %v2656 = vpack.c.b16 %v2607, %v2606
    %v2657 = vpack.c.b16 %v2609, %v2608
    %v2658 = vpack.c.b16 %v2611, %v2610
    %v2659 = vpack.c.b16 %v2613, %v2612
    %vm2705 = vcmask 752640
    %v2707 = vsel %vm2705, %v2423, 0
    %vm2709 = vcmask 1045504
    %v2711 = vsel %vm2709, %v2659, 0
    %2713 = vmatprep.subr.bf16.mxu0 0
    %2714 = vmatpush1.bf16.msra.mxu0 %v2614
    %2715 = vmatprep.subr.bf16.mxu0 0
    %2716 = vmatpush1.bf16.msra.mxu0 %v2615
    %2717 = vmatprep.subr.bf16.mxu0 0
    %2718 = vmatpush1.bf16.msra.mxu0 %v2616
    %2719 = vmatprep.subr.bf16.mxu0 0
    %2720 = vmatpush1.bf16.msra.mxu0 %v2617
    %2721 = vmatprep.subr.bf16.mxu0 0
    %2722 = vmatpush1.bf16.msra.mxu0 %v2618
    %2723 = vmatprep.subr.bf16.mxu0 0
    %2724 = vmatpush1.bf16.msra.mxu0 %v2619
    %2725 = vmatprep.subr.bf16.mxu0 0
    %2726 = vmatpush1.bf16.msra.mxu0 %v2620
    %2727 = vmatprep.subr.bf16.mxu0 0
    %2728 = vmatpush1.bf16.msra.mxu0 %v2621
    %2729 = vmatprep.subr.bf16.mxu0 0
    %2730 = vmatpush1.bf16.msra.mxu0 %v2622
    %2731 = vmatprep.subr.bf16.mxu0 0
    %2732 = vmatpush1.bf16.msra.mxu0 %v2623
    %2733 = vmatprep.subr.bf16.mxu0 0
    %2734 = vmatpush1.bf16.msra.mxu0 %v2624
    %2735 = vmatprep.subr.bf16.mxu0 0
    %2736 = vmatpush1.bf16.msra.mxu0 %v2625
    %2737 = vmatprep.subr.bf16.mxu0 0
    %2738 = vmatpush1.bf16.msra.mxu0 %v2626
    %2739 = vmatprep.subr.bf16.mxu0 0
    %2740 = vmatpush1.bf16.msra.mxu0 %v2627
    %2741 = vmatprep.subr.bf16.mxu0 0
    %2742 = vmatpush1.bf16.msra.mxu0 %v2628
    %2743 = vmatprep.subr.bf16.mxu0 0
    %2744 = vmatpush1.bf16.msra.mxu0 %v2629
    %2745 = vmatprep.mubr.bf16.mxu0 %v2411
    %2746 = vmatmul.mubr.bf16.gmra.mrb[0].mxu0 %v2408
    %v2747 = vpop.f32.mrb[0].mxu0
    %v2748 = vadd.f32 0.0, %v2747
    %v2749 = vpop.f32.mrb[0].mxu0
    %v2750 = vpop.f32.mrb[0].mxu0
    %v2751 = vpop.f32.mrb[0].mxu0
    %2752 = vdwg.mxu0
    %2753 = vmatprep.subr.bf16.mxu0 0
    %2754 = vmatpush1.bf16.msra.mxu0 %v2630
    %2755 = vmatprep.subr.bf16.mxu0 0
    %2756 = vmatpush1.bf16.msra.mxu0 %v2631
    %2757 = vmatprep.subr.bf16.mxu0 0
    %2758 = vmatpush1.bf16.msra.mxu0 %v2632
    %2759 = vmatprep.subr.bf16.mxu0 0
    %2760 = vmatpush1.bf16.msra.mxu0 %v2633
    %2761 = vmatprep.subr.bf16.mxu0 0
    %2762 = vmatpush1.bf16.msra.mxu0 %v2634
    %2763 = vmatprep.subr.bf16.mxu0 0
    %2764 = vmatpush1.bf16.msra.mxu0 %v2635
    %2765 = vmatprep.subr.bf16.mxu0 0
    %2766 = vmatpush1.bf16.msra.mxu0 %v2636
    %2767 = vmatprep.subr.bf16.mxu0 0
    %2768 = vmatpush1.bf16.msra.mxu0 %v2637
    %2769 = vmatprep.subr.bf16.mxu0 0
    %2770 = vmatpush1.bf16.msra.mxu0 %v2638
    %2771 = vmatprep.subr.bf16.mxu0 0
    %2772 = vmatpush1.bf16.msra.mxu0 %v2639
    %2773 = vmatprep.subr.bf16.mxu0 0
    %2774 = vmatpush1.bf16.msra.mxu0 %v2640
    %2775 = vmatprep.subr.bf16.mxu0 0
    %2776 = vmatpush1.bf16.msra.mxu0 %v2641
    %2777 = vmatprep.subr.bf16.mxu0 0
    %2778 = vmatpush1.bf16.msra.mxu0 %v2642
    %2779 = vmatprep.subr.bf16.mxu0 0
    %2780 = vmatpush1.bf16.msra.mxu0 %v2643
    %2781 = vmatprep.subr.bf16.mxu0 0
    %2782 = vmatpush1.bf16.msra.mxu0 %v2644
    %2783 = vmatprep.subr.bf16.mxu0 0
    %2784 = vmatpush1.bf16.msra.mxu0 %v2645
    %2785 = vmatprep.mubr.bf16.mxu0 %v2417
    %2786 = vmatmul.mubr.bf16.gmra.mrb[0].mxu0 %v2414
    %v2787 = vpop.f32.mrb[0].mxu0
    %v2788 = vadd.f32 %v2748, %v2787
    %v2789 = vpop.f32.mrb[0].mxu0
    %v2790 = vpop.f32.mrb[0].mxu0
    %v2791 = vpop.f32.mrb[0].mxu0
    %2792 = vdwg.mxu0
    %2793 = vmatprep.subr.bf16.mxu0 0
    %2794 = vmatpush1.bf16.msra.mxu0 %v2646
    %2795 = vmatprep.subr.bf16.mxu0 0
    %2796 = vmatpush1.bf16.msra.mxu0 %v2647
    %2797 = vmatprep.subr.bf16.mxu0 0
    %2798 = vmatpush1.bf16.msra.mxu0 %v2648
    %2799 = vmatprep.subr.bf16.mxu0 0
    %2800 = vmatpush1.bf16.msra.mxu0 %v2649
    %2801 = vmatprep.subr.bf16.mxu0 0
    %2802 = vmatpush1.bf16.msra.mxu0 %v2650
    %2803 = vmatprep.subr.bf16.mxu0 0
    %2804 = vmatpush1.bf16.msra.mxu0 %v2651
    %2805 = vmatprep.subr.bf16.mxu0 0
    %2806 = vmatpush1.bf16.msra.mxu0 %v2652
    %2807 = vmatprep.subr.bf16.mxu0 0
    %2808 = vmatpush1.bf16.msra.mxu0 %v2653
    %2809 = vmatprep.subr.bf16.mxu0 0
    %2810 = vmatpush1.bf16.msra.mxu0 %v2654
    %2811 = vmatprep.subr.bf16.mxu0 0
    %2812 = vmatpush1.bf16.msra.mxu0 %v2655
    %2813 = vmatprep.subr.bf16.mxu0 0
    %2814 = vmatpush1.bf16.msra.mxu0 %v2656
    %2815 = vmatprep.subr.bf16.mxu0 0
    %2816 = vmatpush1.bf16.msra.mxu0 %v2657
    %2817 = vmatprep.subr.bf16.mxu0 0
    %2818 = vmatpush1.bf16.msra.mxu0 %v2658
    %2819 = vmatprep.subr.bf16.mxu0 0
    %2820 = vmatpush1.bf16.msra.mxu0 %v2711
    %2821 = vmatprep.subr.bf16.mxu0 0
    %2822 = vmatpush1.bf16.msra.mxu0 0
    %2823 = vmatprep.subr.bf16.mxu0 0
    %2824 = vmatpush1.bf16.msra.mxu0 0
    %2825 = vmatprep.mubr.bf16.mxu0 %v2707
    %2826 = vmatmul.mubr.bf16.gmra.mrb[0].mxu0 %v2420
    %v2827 = vpop.f32.mrb[0].mxu0
    %v2828 = vadd.f32 %v2788, %v2827
    %v2829 = vpop.f32.mrb[0].mxu0
    %v2830 = vpop.f32.mrb[0].mxu0
    %v2831 = vpop.f32.mrb[0].mxu0
    %2832 = vdwg.mxu0
    %v2925 = vunpack.c.l.b16 %v2222
    %v2926 = vunpack.c.l.b16 %v2223
    %v2927 = vunpack.c.l.b16 %v2224
    %v2928 = vunpack.c.l.b16 %v2225
    %v2929 = vunpack.c.l.b16 %v2226
    %v2930 = vunpack.c.l.b16 %v2227
    %v2931 = vunpack.c.l.b16 %v2228
    %v2932 = vunpack.c.l.b16 %v2229
    %v2933 = vunpack.c.l.b16 %v2230
    %v2934 = vunpack.c.l.b16 %v2231
    %v2935 = vunpack.c.l.b16 %v2232
    %v2936 = vunpack.c.l.b16 %v2233
    %v2937 = vunpack.c.l.b16 %v2234
    %v2938 = vunpack.c.l.b16 %v2235
    %v2939 = vunpack.c.l.b16 %v2236
    %v2940 = vunpack.c.l.b16 %v2237
    %v2941 = vunpack.c.l.b16 %v2238
    %v2942 = vunpack.c.l.b16 %v2239
    %v2943 = vunpack.c.l.b16 %v2240
    %v2944 = vunpack.c.l.b16 %v2241
    %v2945 = vunpack.c.l.b16 %v2242
    %v2946 = vunpack.c.l.b16 %v2243
    %v2947 = vunpack.c.l.b16 %v2244
    %v2948 = vunpack.c.l.b16 %v2245
    %v2949 = vunpack.c.l.b16 %v2246
    %v2950 = vunpack.c.l.b16 %v2247
    %v2951 = vunpack.c.l.b16 %v2248
    %v2952 = vunpack.c.l.b16 %v2249
    %v2953 = vunpack.c.l.b16 %v2250
    %v2954 = vunpack.c.l.b16 %v2251
    %v2955 = vunpack.c.l.b16 %v2252
    %v2956 = vunpack.c.l.b16 %v2253
    %v2957 = vunpack.c.l.b16 %v2254
    %v2958 = vunpack.c.l.b16 %v2255
    %v2959 = vunpack.c.l.b16 %v2256
    %v2960 = vunpack.c.l.b16 %v2257
    %v2961 = vunpack.c.l.b16 %v2258
    %v2962 = vunpack.c.l.b16 %v2259
    %v2963 = vunpack.c.l.b16 %v2260
    %v2964 = vunpack.c.l.b16 %v2261
    %v2965 = vunpack.c.l.b16 %v2262
    %v2966 = vunpack.c.l.b16 %v2263
    %v2967 = vunpack.c.l.b16 %v2264
    %v2968 = vunpack.c.l.b16 %v2265
    %v2969 = vunpack.c.l.b16 %v2266
    %v2970 = vunpack.c.l.b16 %v2267
    %v2971 = vunpack.c.l.b16 %v2268
    %v2972 = vunpack.c.l.b16 %v2269
    %v2973 = vunpack.c.l.b16 %v2270
    %v2974 = vunpack.c.l.b16 %v2271
    %v2975 = vunpack.c.l.b16 %v2272
    %v2976 = vunpack.c.l.b16 %v2273
    %v2977 = vunpack.c.l.b16 %v2274
    %v2978 = vunpack.c.l.b16 %v2275
    %v2979 = vunpack.c.l.b16 %v2276
    %v2980 = vunpack.c.l.b16 %v2277
    %v2981 = vunpack.c.l.b16 %v2278
    %v2982 = vunpack.c.l.b16 %v2279
    %v2983 = vunpack.c.l.b16 %v2280
    %v2984 = vunpack.c.l.b16 %v2281
    %v2985 = vunpack.c.l.b16 %v2282
    %v2986 = vunpack.c.l.b16 %v2283
    %v2987 = vunpack.c.l.b16 %v2284
    %v2988 = vunpack.c.l.b16 %v2285
    %v2989 = vunpack.c.l.b16 %v2286
    %v2990 = vunpack.c.l.b16 %v2287
    %v2991 = vunpack.c.l.b16 %v2288
    %v2992 = vunpack.c.l.b16 %v2289
    %v2993 = vunpack.c.l.b16 %v2290
    %v2994 = vunpack.c.l.b16 %v2291
    %v2995 = vunpack.c.l.b16 %v2292
    %v2996 = vunpack.c.l.b16 %v2293
    %v2997 = vunpack.c.l.b16 %v2294
    %v2998 = vunpack.c.l.b16 %v2295
    %v2999 = vunpack.c.l.b16 %v2296
    %v3000 = vunpack.c.l.b16 %v2297
    %v3001 = vunpack.c.l.b16 %v2298
    %v3002 = vunpack.c.l.b16 %v2299
    %v3003 = vunpack.c.l.b16 %v2300
    %v3004 = vunpack.c.l.b16 %v2301
    %v3005 = vunpack.c.l.b16 %v2302
    %v3006 = vunpack.c.l.b16 %v2303
    %v3007 = vunpack.c.l.b16 %v2304
    %v3008 = vunpack.c.l.b16 %v2305
    %v3009 = vunpack.c.l.b16 %v2306
    %v3010 = vunpack.c.l.b16 %v2307
    %v3011 = vunpack.c.l.b16 %v2308
    %v3012 = vunpack.c.l.b16 %v2309
    %v3013 = vunpack.c.l.b16 %v2310
    %v3014 = vunpack.c.l.b16 %v2311
    %v3015 = vunpack.c.l.b16 %v2312
    %v3016 = vunpack.c.l.b16 %v2313
    %v3017 = vpack.c.b16 %v2926, %v2925
    %v3018 = vpack.c.b16 %v2928, %v2927
    %v3019 = vpack.c.b16 %v2930, %v2929
    %v3020 = vpack.c.b16 %v2932, %v2931
    %v3021 = vpack.c.b16 %v2934, %v2933
    %v3022 = vpack.c.b16 %v2936, %v2935
    %v3023 = vpack.c.b16 %v2938, %v2937
    %v3024 = vpack.c.b16 %v2940, %v2939
    %v3025 = vpack.c.b16 %v2942, %v2941
    %v3026 = vpack.c.b16 %v2944, %v2943
    %v3027 = vpack.c.b16 %v2946, %v2945
    %v3028 = vpack.c.b16 %v2948, %v2947
    %v3029 = vpack.c.b16 %v2950, %v2949
    %v3030 = vpack.c.b16 %v2952, %v2951
    %v3031 = vpack.c.b16 %v2954, %v2953
    %v3032 = vpack.c.b16 %v2956, %v2955
    %v3033 = vpack.c.b16 %v2958, %v2957
    %v3034 = vpack.c.b16 %v2960, %v2959
    %v3035 = vpack.c.b16 %v2962, %v2961
    %v3036 = vpack.c.b16 %v2964, %v2963
    %v3037 = vpack.c.b16 %v2966, %v2965
    %v3038 = vpack.c.b16 %v2968, %v2967
    %v3039 = vpack.c.b16 %v2970, %v2969
    %v3040 = vpack.c.b16 %v2972, %v2971
    %v3041 = vpack.c.b16 %v2974, %v2973
    %v3042 = vpack.c.b16 %v2976, %v2975
    %v3043 = vpack.c.b16 %v2978, %v2977
    %v3044 = vpack.c.b16 %v2980, %v2979
    %v3045 = vpack.c.b16 %v2982, %v2981
    %v3046 = vpack.c.b16 %v2984, %v2983
    %v3047 = vpack.c.b16 %v2986, %v2985
    %v3048 = vpack.c.b16 %v2988, %v2987
    %v3049 = vpack.c.b16 %v2990, %v2989
    %v3050 = vpack.c.b16 %v2992, %v2991
    %v3051 = vpack.c.b16 %v2994, %v2993
    %v3052 = vpack.c.b16 %v2996, %v2995
    %v3053 = vpack.c.b16 %v2998, %v2997
    %v3054 = vpack.c.b16 %v3000, %v2999
    %v3055 = vpack.c.b16 %v3002, %v3001
    %v3056 = vpack.c.b16 %v3004, %v3003
    %v3057 = vpack.c.b16 %v3006, %v3005
    %v3058 = vpack.c.b16 %v3008, %v3007
    %v3059 = vpack.c.b16 %v3010, %v3009
    %v3060 = vpack.c.b16 %v3012, %v3011
    %v3061 = vpack.c.b16 %v3014, %v3013
    %v3062 = vpack.c.b16 %v3016, %v3015
    %v3108 = vsel %vm2705, %v2216, 0
    %v3111 = vsel %vm2709, %v3062, 0
    %3113 = vmatprep.subr.bf16.mxu0 0
    %3114 = vmatpush1.bf16.msra.mxu0 %v3017
    %3115 = vmatprep.subr.bf16.mxu0 0
    %3116 = vmatpush1.bf16.msra.mxu0 %v3018
    %3117 = vmatprep.subr.bf16.mxu0 0
    %3118 = vmatpush1.bf16.msra.mxu0 %v3019
    %3119 = vmatprep.subr.bf16.mxu0 0
    %3120 = vmatpush1.bf16.msra.mxu0 %v3020
    %3121 = vmatprep.subr.bf16.mxu0 0
    %3122 = vmatpush1.bf16.msra.mxu0 %v3021
    %3123 = vmatprep.subr.bf16.mxu0 0
    %3124 = vmatpush1.bf16.msra.mxu0 %v3022
    %3125 = vmatprep.subr.bf16.mxu0 0
    %3126 = vmatpush1.bf16.msra.mxu0 %v3023
    %3127 = vmatprep.subr.bf16.mxu0 0
    %3128 = vmatpush1.bf16.msra.mxu0 %v3024
    %3129 = vmatprep.subr.bf16.mxu0 0
    %3130 = vmatpush1.bf16.msra.mxu0 %v3025
    %3131 = vmatprep.subr.bf16.mxu0 0
    %3132 = vmatpush1.bf16.msra.mxu0 %v3026
    %3133 = vmatprep.subr.bf16.mxu0 0
    %3134 = vmatpush1.bf16.msra.mxu0 %v3027
    %3135 = vmatprep.subr.bf16.mxu0 0
    %3136 = vmatpush1.bf16.msra.mxu0 %v3028
    %3137 = vmatprep.subr.bf16.mxu0 0
    %3138 = vmatpush1.bf16.msra.mxu0 %v3029
    %3139 = vmatprep.subr.bf16.mxu0 0
    %3140 = vmatpush1.bf16.msra.mxu0 %v3030
    %3141 = vmatprep.subr.bf16.mxu0 0
    %3142 = vmatpush1.bf16.msra.mxu0 %v3031
    %3143 = vmatprep.subr.bf16.mxu0 0
    %3144 = vmatpush1.bf16.msra.mxu0 %v3032
    %3145 = vmatprep.mubr.bf16.mxu0 %v2212
    %3146 = vmatmul.mubr.bf16.gmra.mrb[0].mxu0 %v2211
    %v3147 = vpop.f32.mrb[0].mxu0
    %v3148 = vadd.f32 %v2828, %v3147
    %v3149 = vpop.f32.mrb[0].mxu0
    %v3150 = vpop.f32.mrb[0].mxu0
    %v3151 = vpop.f32.mrb[0].mxu0
    %3152 = vdwg.mxu0
    %3153 = vmatprep.subr.bf16.mxu0 0
    %3154 = vmatpush1.bf16.msra.mxu0 %v3033
    %3155 = vmatprep.subr.bf16.mxu0 0
    %3156 = vmatpush1.bf16.msra.mxu0 %v3034
    %3157 = vmatprep.subr.bf16.mxu0 0
    %3158 = vmatpush1.bf16.msra.mxu0 %v3035
    %3159 = vmatprep.subr.bf16.mxu0 0
    %3160 = vmatpush1.bf16.msra.mxu0 %v3036
    %3161 = vmatprep.subr.bf16.mxu0 0
    %3162 = vmatpush1.bf16.msra.mxu0 %v3037
    %3163 = vmatprep.subr.bf16.mxu0 0
    %3164 = vmatpush1.bf16.msra.mxu0 %v3038
    %3165 = vmatprep.subr.bf16.mxu0 0
    %3166 = vmatpush1.bf16.msra.mxu0 %v3039
    %3167 = vmatprep.subr.bf16.mxu0 0
    %3168 = vmatpush1.bf16.msra.mxu0 %v3040
    %3169 = vmatprep.subr.bf16.mxu0 0
    %3170 = vmatpush1.bf16.msra.mxu0 %v3041
    %3171 = vmatprep.subr.bf16.mxu0 0
    %3172 = vmatpush1.bf16.msra.mxu0 %v3042
    %3173 = vmatprep.subr.bf16.mxu0 0
    %3174 = vmatpush1.bf16.msra.mxu0 %v3043
    %3175 = vmatprep.subr.bf16.mxu0 0
    %3176 = vmatpush1.bf16.msra.mxu0 %v3044
    %3177 = vmatprep.subr.bf16.mxu0 0
    %3178 = vmatpush1.bf16.msra.mxu0 %v3045
    %3179 = vmatprep.subr.bf16.mxu0 0
    %3180 = vmatpush1.bf16.msra.mxu0 %v3046
    %3181 = vmatprep.subr.bf16.mxu0 0
    %3182 = vmatpush1.bf16.msra.mxu0 %v3047
    %3183 = vmatprep.subr.bf16.mxu0 0
    %3184 = vmatpush1.bf16.msra.mxu0 %v3048
    %3185 = vmatprep.mubr.bf16.mxu0 %v2214
    %3186 = vmatmul.mubr.bf16.gmra.mrb[0].mxu0 %v2213
    %v3187 = vpop.f32.mrb[0].mxu0
    %v3188 = vadd.f32 %v3148, %v3187
    %v3189 = vpop.f32.mrb[0].mxu0
    %v3190 = vpop.f32.mrb[0].mxu0
    %v3191 = vpop.f32.mrb[0].mxu0
    %3192 = vdwg.mxu0
    %3193 = vmatprep.subr.bf16.mxu0 0
    %3194 = vmatpush1.bf16.msra.mxu0 %v3049
    %3195 = vmatprep.subr.bf16.mxu0 0
    %3196 = vmatpush1.bf16.msra.mxu0 %v3050
    %3197 = vmatprep.subr.bf16.mxu0 0
    %3198 = vmatpush1.bf16.msra.mxu0 %v3051
    %3199 = vmatprep.subr.bf16.mxu0 0
    %3200 = vmatpush1.bf16.msra.mxu0 %v3052
    %3201 = vmatprep.subr.bf16.mxu0 0
    %3202 = vmatpush1.bf16.msra.mxu0 %v3053
    %3203 = vmatprep.subr.bf16.mxu0 0
    %3204 = vmatpush1.bf16.msra.mxu0 %v3054
    %3205 = vmatprep.subr.bf16.mxu0 0
    %3206 = vmatpush1.bf16.msra.mxu0 %v3055
    %3207 = vmatprep.subr.bf16.mxu0 0
    %3208 = vmatpush1.bf16.msra.mxu0 %v3056
    %3209 = vmatprep.subr.bf16.mxu0 0
    %3210 = vmatpush1.bf16.msra.mxu0 %v3057
    %3211 = vmatprep.subr.bf16.mxu0 0
    %3212 = vmatpush1.bf16.msra.mxu0 %v3058
    %3213 = vmatprep.subr.bf16.mxu0 0
    %3214 = vmatpush1.bf16.msra.mxu0 %v3059
    %3215 = vmatprep.subr.bf16.mxu0 0
    %3216 = vmatpush1.bf16.msra.mxu0 %v3060
    %3217 = vmatprep.subr.bf16.mxu0 0
    %3218 = vmatpush1.bf16.msra.mxu0 %v3061
    %3219 = vmatprep.subr.bf16.mxu0 0
    %3220 = vmatpush1.bf16.msra.mxu0 %v3111
    %3221 = vmatprep.subr.bf16.mxu0 0
    %3222 = vmatpush1.bf16.msra.mxu0 0
    %3223 = vmatprep.subr.bf16.mxu0 0
    %3224 = vmatpush1.bf16.msra.mxu0 0
    %3225 = vmatprep.mubr.bf16.mxu0 %v3108
    %3226 = vmatmul.mubr.bf16.gmra.mrb[0].mxu0 %v2215
    %v3227 = vpop.f32.mrb[0].mxu0
    %v3228 = vadd.f32 %v3188, %v3227
    %v3229 = vpop.f32.mrb[0].mxu0
    %v3230 = vpop.f32.mrb[0].mxu0
    %v3231 = vpop.f32.mrb[0].mxu0
    %3232 = vdwg.mxu0
    %s3233 = scalar_lea.vmem [#allocation2], 736
    %v3234 = vld [vmem:[%s3233] sm:$0xf]
    %v3235 = vld [vmem:[%s3233 + $0x4] sm:$0xf]
    %v3236 = vld [vmem:[%s3233 + $0x8] sm:$0xf]
    %v3237 = vld [vmem:[%s3233 + $0xc] sm:$0xf]
    %v3238 = vld [vmem:[%s3233 + $0x10] sm:$0xf]
    %v3239 = vld [vmem:[%s3233 + $0x14] sm:$0xf]
    %v3240 = vld [vmem:[%s3233 + $0x18] sm:$0xf]
    %v3241 = vld [vmem:[%s3233 + $0x1c] sm:$0xf]
    %v3242 = vld [vmem:[%s3233 + $0x20] sm:$0xf]
    %v3243 = vld [vmem:[%s3233 + $0x24] sm:$0xf]
    %v3244 = vld [vmem:[%s3233 + $0x28] sm:$0xf]
    %v3245 = vld [vmem:[%s3233 + $0x2c] sm:$0xf]
    %v3246 = vld [vmem:[%s3233 + $0x30] sm:$0xf]
    %v3247 = vld [vmem:[%s3233 + $0x34] sm:$0xf]
    %v3248 = vld [vmem:[%s3233 + $0x38] sm:$0xf]
    %v3249 = vld [vmem:[%s3233 + $0x3c] sm:$0xf]
    %v3250 = vld [vmem:[%s3233 + $0x40] sm:$0xf]
    %v3251 = vld [vmem:[%s3233 + $0x44] sm:$0xf]
    %v3252 = vld [vmem:[%s3233 + $0x48] sm:$0xf]
    %v3253 = vld [vmem:[%s3233 + $0x4c] sm:$0xf]
    %v3254 = vld [vmem:[%s3233 + $0x50] sm:$0xf]
    %v3255 = vld [vmem:[%s3233 + $0x54] sm:$0xf]
    %v3256 = vld [vmem:[%s3233 + $0x58] sm:$0xf]
    %v3257 = vld [vmem:[%s3233 + $0x5c] sm:$0xf]
    %v3258 = vld [vmem:[%s3233 + $0x60] sm:$0xf]
    %v3259 = vld [vmem:[%s3233 + $0x64] sm:$0xf]
    %v3260 = vld [vmem:[%s3233 + $0x68] sm:$0xf]
    %v3261 = vld [vmem:[%s3233 + $0x6c] sm:$0xf]
    %v3262 = vld [vmem:[%s3233 + $0x70] sm:$0xf]
    %v3263 = vld [vmem:[%s3233 + $0x74] sm:$0xf]
    %v3264 = vld [vmem:[%s3233 + $0x78] sm:$0xf]
    %v3265 = vld [vmem:[%s3233 + $0x7c] sm:$0xf]
    %v3266 = vld [vmem:[%s3233 + $0x80] sm:$0xf]
    %v3267 = vld [vmem:[%s3233 + $0x84] sm:$0xf]
    %v3268 = vld [vmem:[%s3233 + $0x88] sm:$0xf]
    %v3269 = vld [vmem:[%s3233 + $0x8c] sm:$0xf]
    %v3270 = vld [vmem:[%s3233 + $0x90] sm:$0xf]
    %v3271 = vld [vmem:[%s3233 + $0x94] sm:$0xf]
    %v3272 = vld [vmem:[%s3233 + $0x98] sm:$0xf]
    %v3273 = vld [vmem:[%s3233 + $0x9c] sm:$0xf]
    %v3274 = vld [vmem:[%s3233 + $0xa0] sm:$0xf]
    %v3275 = vld [vmem:[%s3233 + $0xa4] sm:$0xf]
    %v3276 = vld [vmem:[%s3233 + $0xa8] sm:$0xf]
    %v3277 = vld [vmem:[%s3233 + $0xac] sm:$0xf]
    %v3278 = vld [vmem:[%s3233 + $0xb0] sm:$0xf]
    %v3279 = vld [vmem:[%s3233 + $0xb4] sm:$0xf]
    %v3280 = vld [vmem:[%s3233 + $0xb8] sm:$0xf]
    %v3281 = vld [vmem:[%s3233 + $0xbc] sm:$0xf]
    %v3282 = vld [vmem:[%s3233 + $0xc0] sm:$0xf]
    %v3283 = vld [vmem:[%s3233 + $0xc4] sm:$0xf]
    %v3284 = vld [vmem:[%s3233 + $0xc8] sm:$0xf]
    %v3285 = vld [vmem:[%s3233 + $0xcc] sm:$0xf]
    %v3286 = vld [vmem:[%s3233 + $0xd0] sm:$0xf]
    %v3287 = vld [vmem:[%s3233 + $0xd4] sm:$0xf]
    %v3288 = vld [vmem:[%s3233 + $0xd8] sm:$0xf]
    %v3289 = vld [vmem:[%s3233 + $0xdc] sm:$0xf]
    %v3290 = vld [vmem:[%s3233 + $0xe0] sm:$0xf]
    %v3291 = vld [vmem:[%s3233 + $0xe4] sm:$0xf]
    %v3292 = vld [vmem:[%s3233 + $0xe8] sm:$0xf]
    %v3293 = vld [vmem:[%s3233 + $0xec] sm:$0xf]
    %v3294 = vld [vmem:[%s3233 + $0xf0] sm:$0xf]
    %v3295 = vld [vmem:[%s3233 + $0xf4] sm:$0xf]
    %v3296 = vld [vmem:[%s3233 + $0xf8] sm:$0xf]
    %v3297 = vld [vmem:[%s3233 + $0xfc] sm:$0xf]
    %v3298 = vld [vmem:[%s3233 + $0x100] sm:$0xf]
    %v3299 = vld [vmem:[%s3233 + $0x104] sm:$0xf]
    %v3300 = vld [vmem:[%s3233 + $0x108] sm:$0xf]
    %v3301 = vld [vmem:[%s3233 + $0x10c] sm:$0xf]
    %v3302 = vld [vmem:[%s3233 + $0x110] sm:$0xf]
    %v3303 = vld [vmem:[%s3233 + $0x114] sm:$0xf]
    %v3304 = vld [vmem:[%s3233 + $0x118] sm:$0xf]
    %v3305 = vld [vmem:[%s3233 + $0x11c] sm:$0xf]
    %v3306 = vld [vmem:[%s3233 + $0x120] sm:$0xf]
    %v3307 = vld [vmem:[%s3233 + $0x124] sm:$0xf]
    %v3308 = vld [vmem:[%s3233 + $0x128] sm:$0xf]
    %v3309 = vld [vmem:[%s3233 + $0x12c] sm:$0xf]
    %v3310 = vld [vmem:[%s3233 + $0x130] sm:$0xf]
    %v3311 = vld [vmem:[%s3233 + $0x134] sm:$0xf]
    %v3312 = vld [vmem:[%s3233 + $0x138] sm:$0xf]
    %v3313 = vld [vmem:[%s3233 + $0x13c] sm:$0xf]
    %v3314 = vld [vmem:[%s3233 + $0x140] sm:$0xf]
    %v3315 = vld [vmem:[%s3233 + $0x144] sm:$0xf]
    %v3316 = vld [vmem:[%s3233 + $0x148] sm:$0xf]
    %v3317 = vld [vmem:[%s3233 + $0x14c] sm:$0xf]
    %v3318 = vld [vmem:[%s3233 + $0x150] sm:$0xf]
    %v3319 = vld [vmem:[%s3233 + $0x154] sm:$0xf]
    %v3320 = vld [vmem:[%s3233 + $0x158] sm:$0xf]
    %v3321 = vld [vmem:[%s3233 + $0x15c] sm:$0xf]
    %v3322 = vld [vmem:[%s3233 + $0x160] sm:$0xf]
    %v3323 = vld [vmem:[%s3233 + $0x164] sm:$0xf]
    %v3324 = vld [vmem:[%s3233 + $0x168] sm:$0xf]
    %v3325 = vld [vmem:[%s3233 + $0x16c] sm:$0x3]
    %v3332 = vrot.slane %v2211, 1
    %v3333 = vrot.slane %v2212, 1
    %v3334 = vrot.slane %v2213, 1
    %v3335 = vrot.slane %v2214, 1
    %v3336 = vrot.slane %v2215, 1
    %v3337 = vrot.slane %v2216, 1
    %v3435 = vunpack.c.l.b16 %v3234
    %v3436 = vunpack.c.l.b16 %v3235
    %v3437 = vunpack.c.l.b16 %v3236
    %v3438 = vunpack.c.l.b16 %v3237
    %v3439 = vunpack.c.l.b16 %v3238
    %v3440 = vunpack.c.l.b16 %v3239
    %v3441 = vunpack.c.l.b16 %v3240
    %v3442 = vunpack.c.l.b16 %v3241
    %v3443 = vunpack.c.l.b16 %v3242
    %v3444 = vunpack.c.l.b16 %v3243
    %v3445 = vunpack.c.l.b16 %v3244
    %v3446 = vunpack.c.l.b16 %v3245
    %v3447 = vunpack.c.l.b16 %v3246
    %v3448 = vunpack.c.l.b16 %v3247
    %v3449 = vunpack.c.l.b16 %v3248
    %v3450 = vunpack.c.l.b16 %v3249
    %v3451 = vunpack.c.l.b16 %v3250
    %v3452 = vunpack.c.l.b16 %v3251
    %v3453 = vunpack.c.l.b16 %v3252
    %v3454 = vunpack.c.l.b16 %v3253
    %v3455 = vunpack.c.l.b16 %v3254
    %v3456 = vunpack.c.l.b16 %v3255
    %v3457 = vunpack.c.l.b16 %v3256
    %v3458 = vunpack.c.l.b16 %v3257
    %v3459 = vunpack.c.l.b16 %v3258
    %v3460 = vunpack.c.l.b16 %v3259
    %v3461 = vunpack.c.l.b16 %v3260
    %v3462 = vunpack.c.l.b16 %v3261
    %v3463 = vunpack.c.l.b16 %v3262
    %v3464 = vunpack.c.l.b16 %v3263
    %v3465 = vunpack.c.l.b16 %v3264
    %v3466 = vunpack.c.l.b16 %v3265
    %v3467 = vunpack.c.l.b16 %v3266
    %v3468 = vunpack.c.l.b16 %v3267
    %v3469 = vunpack.c.l.b16 %v3268
    %v3470 = vunpack.c.l.b16 %v3269
    %v3471 = vunpack.c.l.b16 %v3270
    %v3472 = vunpack.c.l.b16 %v3271
    %v3473 = vunpack.c.l.b16 %v3272
    %v3474 = vunpack.c.l.b16 %v3273
    %v3475 = vunpack.c.l.b16 %v3274
    %v3476 = vunpack.c.l.b16 %v3275
    %v3477 = vunpack.c.l.b16 %v3276
    %v3478 = vunpack.c.l.b16 %v3277
    %v3479 = vunpack.c.l.b16 %v3278
    %v3480 = vunpack.c.l.b16 %v3279
    %v3481 = vunpack.c.l.b16 %v3280
    %v3482 = vunpack.c.l.b16 %v3281
    %v3483 = vunpack.c.l.b16 %v3282
    %v3484 = vunpack.c.l.b16 %v3283
    %v3485 = vunpack.c.l.b16 %v3284
    %v3486 = vunpack.c.l.b16 %v3285
    %v3487 = vunpack.c.l.b16 %v3286
    %v3488 = vunpack.c.l.b16 %v3287
    %v3489 = vunpack.c.l.b16 %v3288
    %v3490 = vunpack.c.l.b16 %v3289
    %v3491 = vunpack.c.l.b16 %v3290
    %v3492 = vunpack.c.l.b16 %v3291
    %v3493 = vunpack.c.l.b16 %v3292
    %v3494 = vunpack.c.l.b16 %v3293
    %v3495 = vunpack.c.l.b16 %v3294
    %v3496 = vunpack.c.l.b16 %v3295
    %v3497 = vunpack.c.l.b16 %v3296
    %v3498 = vunpack.c.l.b16 %v3297
    %v3499 = vunpack.c.l.b16 %v3298
    %v3500 = vunpack.c.l.b16 %v3299
    %v3501 = vunpack.c.l.b16 %v3300
    %v3502 = vunpack.c.l.b16 %v3301
    %v3503 = vunpack.c.l.b16 %v3302
    %v3504 = vunpack.c.l.b16 %v3303
    %v3505 = vunpack.c.l.b16 %v3304
    %v3506 = vunpack.c.l.b16 %v3305
    %v3507 = vunpack.c.l.b16 %v3306
    %v3508 = vunpack.c.l.b16 %v3307
    %v3509 = vunpack.c.l.b16 %v3308
    %v3510 = vunpack.c.l.b16 %v3309
    %v3511 = vunpack.c.l.b16 %v3310
    %v3512 = vunpack.c.l.b16 %v3311
    %v3513 = vunpack.c.l.b16 %v3312
    %v3514 = vunpack.c.l.b16 %v3313
    %v3515 = vunpack.c.l.b16 %v3314
    %v3516 = vunpack.c.l.b16 %v3315
    %v3517 = vunpack.c.l.b16 %v3316
    %v3518 = vunpack.c.l.b16 %v3317
    %v3519 = vunpack.c.l.b16 %v3318
    %v3520 = vunpack.c.l.b16 %v3319
    %v3521 = vunpack.c.l.b16 %v3320
    %v3522 = vunpack.c.l.b16 %v3321
    %v3523 = vunpack.c.l.b16 %v3322
    %v3524 = vunpack.c.l.b16 %v3323
    %v3525 = vunpack.c.l.b16 %v3324
    %v3526 = vunpack.c.l.b16 %v3325
    %v3527 = vpack.c.b16 %v3436, %v3435
    %v3528 = vpack.c.b16 %v3438, %v3437
    %v3529 = vpack.c.b16 %v3440, %v3439
    %v3530 = vpack.c.b16 %v3442, %v3441
    %v3531 = vpack.c.b16 %v3444, %v3443
    %v3532 = vpack.c.b16 %v3446, %v3445
    %v3533 = vpack.c.b16 %v3448, %v3447
    %v3534 = vpack.c.b16 %v3450, %v3449
    %v3535 = vpack.c.b16 %v3452, %v3451
    %v3536 = vpack.c.b16 %v3454, %v3453
    %v3537 = vpack.c.b16 %v3456, %v3455
    %v3538 = vpack.c.b16 %v3458, %v3457
    %v3539 = vpack.c.b16 %v3460, %v3459
    %v3540 = vpack.c.b16 %v3462, %v3461
    %v3541 = vpack.c.b16 %v3464, %v3463
    %v3542 = vpack.c.b16 %v3466, %v3465
    %v3543 = vpack.c.b16 %v3468, %v3467
    %v3544 = vpack.c.b16 %v3470, %v3469
    %v3545 = vpack.c.b16 %v3472, %v3471
    %v3546 = vpack.c.b16 %v3474, %v3473
    %v3547 = vpack.c.b16 %v3476, %v3475
    %v3548 = vpack.c.b16 %v3478, %v3477
    %v3549 = vpack.c.b16 %v3480, %v3479
    %v3550 = vpack.c.b16 %v3482, %v3481
    %v3551 = vpack.c.b16 %v3484, %v3483
    %v3552 = vpack.c.b16 %v3486, %v3485
    %v3553 = vpack.c.b16 %v3488, %v3487
    %v3554 = vpack.c.b16 %v3490, %v3489
    %v3555 = vpack.c.b16 %v3492, %v3491
    %v3556 = vpack.c.b16 %v3494, %v3493
    %v3557 = vpack.c.b16 %v3496, %v3495
    %v3558 = vpack.c.b16 %v3498, %v3497
    %v3559 = vpack.c.b16 %v3500, %v3499
    %v3560 = vpack.c.b16 %v3502, %v3501
    %v3561 = vpack.c.b16 %v3504, %v3503
    %v3562 = vpack.c.b16 %v3506, %v3505
    %v3563 = vpack.c.b16 %v3508, %v3507
    %v3564 = vpack.c.b16 %v3510, %v3509
    %v3565 = vpack.c.b16 %v3512, %v3511
    %v3566 = vpack.c.b16 %v3514, %v3513
    %v3567 = vpack.c.b16 %v3516, %v3515
    %v3568 = vpack.c.b16 %v3518, %v3517
    %v3569 = vpack.c.b16 %v3520, %v3519
    %v3570 = vpack.c.b16 %v3522, %v3521
    %v3571 = vpack.c.b16 %v3524, %v3523
    %v3572 = vpack.c.b16 %v3526, %v3525
    %v3619 = vsel %vm2705, %v3337, 0
    %v3622 = vsel %vm2709, %v3572, 0
    %3624 = vmatprep.subr.bf16.mxu0 0
    %3625 = vmatpush1.bf16.msra.mxu0 %v3527
    %3626 = vmatprep.subr.bf16.mxu0 0
    %3627 = vmatpush1.bf16.msra.mxu0 %v3528
    %3628 = vmatprep.subr.bf16.mxu0 0
    %3629 = vmatpush1.bf16.msra.mxu0 %v3529
    %3630 = vmatprep.subr.bf16.mxu0 0
    %3631 = vmatpush1.bf16.msra.mxu0 %v3530
    %3632 = vmatprep.subr.bf16.mxu0 0
    %3633 = vmatpush1.bf16.msra.mxu0 %v3531
    %3634 = vmatprep.subr.bf16.mxu0 0
    %3635 = vmatpush1.bf16.msra.mxu0 %v3532
    %3636 = vmatprep.subr.bf16.mxu0 0
    %3637 = vmatpush1.bf16.msra.mxu0 %v3533
    %3638 = vmatprep.subr.bf16.mxu0 0
    %3639 = vmatpush1.bf16.msra.mxu0 %v3534
    %3640 = vmatprep.subr.bf16.mxu0 0
    %3641 = vmatpush1.bf16.msra.mxu0 %v3535
    %3642 = vmatprep.subr.bf16.mxu0 0
    %3643 = vmatpush1.bf16.msra.mxu0 %v3536
    %3644 = vmatprep.subr.bf16.mxu0 0
    %3645 = vmatpush1.bf16.msra.mxu0 %v3537
    %3646 = vmatprep.subr.bf16.mxu0 0
    %3647 = vmatpush1.bf16.msra.mxu0 %v3538
    %3648 = vmatprep.subr.bf16.mxu0 0
    %3649 = vmatpush1.bf16.msra.mxu0 %v3539
    %3650 = vmatprep.subr.bf16.mxu0 0
    %3651 = vmatpush1.bf16.msra.mxu0 %v3540
    %3652 = vmatprep.subr.bf16.mxu0 0
    %3653 = vmatpush1.bf16.msra.mxu0 %v3541
    %3654 = vmatprep.subr.bf16.mxu0 0
    %3655 = vmatpush1.bf16.msra.mxu0 %v3542
    %3656 = vmatprep.mubr.bf16.mxu0 %v3333
    %3657 = vmatmul.mubr.bf16.gmra.mrb[0].mxu0 %v3332
    %v3658 = vpop.f32.mrb[0].mxu0
    %v3659 = vadd.f32 0.0, %v3658
    %v3660 = vpop.f32.mrb[0].mxu0
    %v3661 = vpop.f32.mrb[0].mxu0
    %v3662 = vpop.f32.mrb[0].mxu0
    %3663 = vdwg.mxu0
    %3664 = vmatprep.subr.bf16.mxu0 0
    %3665 = vmatpush1.bf16.msra.mxu0 %v3543
    %3666 = vmatprep.subr.bf16.mxu0 0
    %3667 = vmatpush1.bf16.msra.mxu0 %v3544
    %3668 = vmatprep.subr.bf16.mxu0 0
    %3669 = vmatpush1.bf16.msra.mxu0 %v3545
    %3670 = vmatprep.subr.bf16.mxu0 0
    %3671 = vmatpush1.bf16.msra.mxu0 %v3546
    %3672 = vmatprep.subr.bf16.mxu0 0
    %3673 = vmatpush1.bf16.msra.mxu0 %v3547
    %3674 = vmatprep.subr.bf16.mxu0 0
    %3675 = vmatpush1.bf16.msra.mxu0 %v3548
    %3676 = vmatprep.subr.bf16.mxu0 0
    %3677 = vmatpush1.bf16.msra.mxu0 %v3549
    %3678 = vmatprep.subr.bf16.mxu0 0
    %3679 = vmatpush1.bf16.msra.mxu0 %v3550
    %3680 = vmatprep.subr.bf16.mxu0 0
    %3681 = vmatpush1.bf16.msra.mxu0 %v3551
    %3682 = vmatprep.subr.bf16.mxu0 0
    %3683 = vmatpush1.bf16.msra.mxu0 %v3552
    %3684 = vmatprep.subr.bf16.mxu0 0
    %3685 = vmatpush1.bf16.msra.mxu0 %v3553
    %3686 = vmatprep.subr.bf16.mxu0 0
    %3687 = vmatpush1.bf16.msra.mxu0 %v3554
    %3688 = vmatprep.subr.bf16.mxu0 0
    %3689 = vmatpush1.bf16.msra.mxu0 %v3555
    %3690 = vmatprep.subr.bf16.mxu0 0
    %3691 = vmatpush1.bf16.msra.mxu0 %v3556
    %3692 = vmatprep.subr.bf16.mxu0 0
    %3693 = vmatpush1.bf16.msra.mxu0 %v3557
    %3694 = vmatprep.subr.bf16.mxu0 0
    %3695 = vmatpush1.bf16.msra.mxu0 %v3558
    %3696 = vmatprep.mubr.bf16.mxu0 %v3335
    %3697 = vmatmul.mubr.bf16.gmra.mrb[0].mxu0 %v3334
    %v3698 = vpop.f32.mrb[0].mxu0
    %v3699 = vadd.f32 %v3659, %v3698
    %v3700 = vpop.f32.mrb[0].mxu0
    %v3701 = vpop.f32.mrb[0].mxu0
    %v3702 = vpop.f32.mrb[0].mxu0
    %3703 = vdwg.mxu0
    %3704 = vmatprep.subr.bf16.mxu0 0
    %3705 = vmatpush1.bf16.msra.mxu0 %v3559
    %3706 = vmatprep.subr.bf16.mxu0 0
    %3707 = vmatpush1.bf16.msra.mxu0 %v3560
    %3708 = vmatprep.subr.bf16.mxu0 0
    %3709 = vmatpush1.bf16.msra.mxu0 %v3561
    %3710 = vmatprep.subr.bf16.mxu0 0
    %3711 = vmatpush1.bf16.msra.mxu0 %v3562
    %3712 = vmatprep.subr.bf16.mxu0 0
    %3713 = vmatpush1.bf16.msra.mxu0 %v3563
    %3714 = vmatprep.subr.bf16.mxu0 0
    %3715 = vmatpush1.bf16.msra.mxu0 %v3564
    %3716 = vmatprep.subr.bf16.mxu0 0
    %3717 = vmatpush1.bf16.msra.mxu0 %v3565
    %3718 = vmatprep.subr.bf16.mxu0 0
    %3719 = vmatpush1.bf16.msra.mxu0 %v3566
    %3720 = vmatprep.subr.bf16.mxu0 0
    %3721 = vmatpush1.bf16.msra.mxu0 %v3567
    %3722 = vmatprep.subr.bf16.mxu0 0
    %3723 = vmatpush1.bf16.msra.mxu0 %v3568
    %3724 = vmatprep.subr.bf16.mxu0 0
    %3725 = vmatpush1.bf16.msra.mxu0 %v3569
    %3726 = vmatprep.subr.bf16.mxu0 0
    %3727 = vmatpush1.bf16.msra.mxu0 %v3570
    %3728 = vmatprep.subr.bf16.mxu0 0
    %3729 = vmatpush1.bf16.msra.mxu0 %v3571
    %3730 = vmatprep.subr.bf16.mxu0 0
    %3731 = vmatpush1.bf16.msra.mxu0 %v3622
    %3732 = vmatprep.subr.bf16.mxu0 0
    %3733 = vmatpush1.bf16.msra.mxu0 0
    %3734 = vmatprep.subr.bf16.mxu0 0
    %3735 = vmatpush1.bf16.msra.mxu0 0
    %3736 = vmatprep.mubr.bf16.mxu0 %v3619
    %3737 = vmatmul.mubr.bf16.gmra.mrb[0].mxu0 %v3336
    %v3738 = vpop.f32.mrb[0].mxu0
    %v3739 = vadd.f32 %v3699, %v3738
    %v3740 = vpop.f32.mrb[0].mxu0
    %v3741 = vpop.f32.mrb[0].mxu0
    %v3742 = vpop.f32.mrb[0].mxu0
    %3743 = vdwg.mxu0
    %v3744 = vadd.f32 %v3228, %v3739
    %s3745 = scalar_lea.vmem [#allocation2], 1104
    %v3746 = vld [vmem:[%s3745] sm:$0xf]
    %v3747 = vld [vmem:[%s3745 + $0x4] sm:$0xf]
    %v3748 = vld [vmem:[%s3745 + $0x8] sm:$0xf]
    %v3749 = vld [vmem:[%s3745 + $0xc] sm:$0xf]
    %v3750 = vld [vmem:[%s3745 + $0x10] sm:$0xf]
    %v3751 = vld [vmem:[%s3745 + $0x14] sm:$0xf]
    %v3752 = vld [vmem:[%s3745 + $0x18] sm:$0xf]
    %v3753 = vld [vmem:[%s3745 + $0x1c] sm:$0xf]
    %v3754 = vld [vmem:[%s3745 + $0x20] sm:$0xf]
    %v3755 = vld [vmem:[%s3745 + $0x24] sm:$0xf]
    %v3756 = vld [vmem:[%s3745 + $0x28] sm:$0xf]
    %v3757 = vld [vmem:[%s3745 + $0x2c] sm:$0xf]
    %v3758 = vld [vmem:[%s3745 + $0x30] sm:$0xf]
    %v3759 = vld [vmem:[%s3745 + $0x34] sm:$0xf]
    %v3760 = vld [vmem:[%s3745 + $0x38] sm:$0xf]
    %v3761 = vld [vmem:[%s3745 + $0x3c] sm:$0xf]
    %v3762 = vld [vmem:[%s3745 + $0x40] sm:$0xf]
    %v3763 = vld [vmem:[%s3745 + $0x44] sm:$0xf]
    %v3764 = vld [vmem:[%s3745 + $0x48] sm:$0xf]
    %v3765 = vld [vmem:[%s3745 + $0x4c] sm:$0xf]
    %v3766 = vld [vmem:[%s3745 + $0x50] sm:$0xf]
    %v3767 = vld [vmem:[%s3745 + $0x54] sm:$0xf]
    %v3768 = vld [vmem:[%s3745 + $0x58] sm:$0xf]
    %v3769 = vld [vmem:[%s3745 + $0x5c] sm:$0xf]
    %v3770 = vld [vmem:[%s3745 + $0x60] sm:$0xf]
    %v3771 = vld [vmem:[%s3745 + $0x64] sm:$0xf]
    %v3772 = vld [vmem:[%s3745 + $0x68] sm:$0xf]
    %v3773 = vld [vmem:[%s3745 + $0x6c] sm:$0xf]
    %v3774 = vld [vmem:[%s3745 + $0x70] sm:$0xf]
    %v3775 = vld [vmem:[%s3745 + $0x74] sm:$0xf]
    %v3776 = vld [vmem:[%s3745 + $0x78] sm:$0xf]
    %v3777 = vld [vmem:[%s3745 + $0x7c] sm:$0xf]
    %v3778 = vld [vmem:[%s3745 + $0x80] sm:$0xf]
    %v3779 = vld [vmem:[%s3745 + $0x84] sm:$0xf]
    %v3780 = vld [vmem:[%s3745 + $0x88] sm:$0xf]
    %v3781 = vld [vmem:[%s3745 + $0x8c] sm:$0xf]
    %v3782 = vld [vmem:[%s3745 + $0x90] sm:$0xf]
    %v3783 = vld [vmem:[%s3745 + $0x94] sm:$0xf]
    %v3784 = vld [vmem:[%s3745 + $0x98] sm:$0xf]
    %v3785 = vld [vmem:[%s3745 + $0x9c] sm:$0xf]
    %v3786 = vld [vmem:[%s3745 + $0xa0] sm:$0xf]
    %v3787 = vld [vmem:[%s3745 + $0xa4] sm:$0xf]
    %v3788 = vld [vmem:[%s3745 + $0xa8] sm:$0xf]
    %v3789 = vld [vmem:[%s3745 + $0xac] sm:$0xf]
    %v3790 = vld [vmem:[%s3745 + $0xb0] sm:$0xf]
    %v3791 = vld [vmem:[%s3745 + $0xb4] sm:$0xf]
    %v3792 = vld [vmem:[%s3745 + $0xb8] sm:$0xf]
    %v3793 = vld [vmem:[%s3745 + $0xbc] sm:$0xf]
    %v3794 = vld [vmem:[%s3745 + $0xc0] sm:$0xf]
    %v3795 = vld [vmem:[%s3745 + $0xc4] sm:$0xf]
    %v3796 = vld [vmem:[%s3745 + $0xc8] sm:$0xf]
    %v3797 = vld [vmem:[%s3745 + $0xcc] sm:$0xf]
    %v3798 = vld [vmem:[%s3745 + $0xd0] sm:$0xf]
    %v3799 = vld [vmem:[%s3745 + $0xd4] sm:$0xf]
    %v3800 = vld [vmem:[%s3745 + $0xd8] sm:$0xf]
    %v3801 = vld [vmem:[%s3745 + $0xdc] sm:$0xf]
    %v3802 = vld [vmem:[%s3745 + $0xe0] sm:$0xf]
    %v3803 = vld [vmem:[%s3745 + $0xe4] sm:$0xf]
    %v3804 = vld [vmem:[%s3745 + $0xe8] sm:$0xf]
    %v3805 = vld [vmem:[%s3745 + $0xec] sm:$0xf]
    %v3806 = vld [vmem:[%s3745 + $0xf0] sm:$0xf]
    %v3807 = vld [vmem:[%s3745 + $0xf4] sm:$0xf]
    %v3808 = vld [vmem:[%s3745 + $0xf8] sm:$0xf]
    %v3809 = vld [vmem:[%s3745 + $0xfc] sm:$0xf]
    %v3810 = vld [vmem:[%s3745 + $0x100] sm:$0xf]
    %v3811 = vld [vmem:[%s3745 + $0x104] sm:$0xf]
    %v3812 = vld [vmem:[%s3745 + $0x108] sm:$0xf]
    %v3813 = vld [vmem:[%s3745 + $0x10c] sm:$0xf]
    %v3814 = vld [vmem:[%s3745 + $0x110] sm:$0xf]
    %v3815 = vld [vmem:[%s3745 + $0x114] sm:$0xf]
    %v3816 = vld [vmem:[%s3745 + $0x118] sm:$0xf]
    %v3817 = vld [vmem:[%s3745 + $0x11c] sm:$0xf]
    %v3818 = vld [vmem:[%s3745 + $0x120] sm:$0xf]
    %v3819 = vld [vmem:[%s3745 + $0x124] sm:$0xf]
    %v3820 = vld [vmem:[%s3745 + $0x128] sm:$0xf]
    %v3821 = vld [vmem:[%s3745 + $0x12c] sm:$0xf]
    %v3822 = vld [vmem:[%s3745 + $0x130] sm:$0xf]
    %v3823 = vld [vmem:[%s3745 + $0x134] sm:$0xf]
    %v3824 = vld [vmem:[%s3745 + $0x138] sm:$0xf]
    %v3825 = vld [vmem:[%s3745 + $0x13c] sm:$0xf]
    %v3826 = vld [vmem:[%s3745 + $0x140] sm:$0xf]
    %v3827 = vld [vmem:[%s3745 + $0x144] sm:$0xf]
    %v3828 = vld [vmem:[%s3745 + $0x148] sm:$0xf]
    %v3829 = vld [vmem:[%s3745 + $0x14c] sm:$0xf]
    %v3830 = vld [vmem:[%s3745 + $0x150] sm:$0xf]
    %v3831 = vld [vmem:[%s3745 + $0x154] sm:$0xf]
    %v3832 = vld [vmem:[%s3745 + $0x158] sm:$0xf]
    %v3833 = vld [vmem:[%s3745 + $0x15c] sm:$0xf]
    %v3834 = vld [vmem:[%s3745 + $0x160] sm:$0xf]
    %v3835 = vld [vmem:[%s3745 + $0x164] sm:$0xf]
    %v3836 = vld [vmem:[%s3745 + $0x168] sm:$0xf]
    %v3837 = vld [vmem:[%s3745 + $0x16c] sm:$0x3]
    %v3838 = vrot.slane %v2408, 1
    %v3839 = vrot.slane %v2411, 1
    %v3840 = vrot.slane %v2414, 1
    %v3841 = vrot.slane %v2417, 1
    %v3842 = vrot.slane %v2420, 1
    %v3843 = vrot.slane %v2423, 1
    %v3941 = vunpack.c.l.b16 %v3746
    %v3942 = vunpack.c.l.b16 %v3747
    %v3943 = vunpack.c.l.b16 %v3748
    %v3944 = vunpack.c.l.b16 %v3749
    %v3945 = vunpack.c.l.b16 %v3750
    %v3946 = vunpack.c.l.b16 %v3751
    %v3947 = vunpack.c.l.b16 %v3752
    %v3948 = vunpack.c.l.b16 %v3753
    %v3949 = vunpack.c.l.b16 %v3754
    %v3950 = vunpack.c.l.b16 %v3755
    %v3951 = vunpack.c.l.b16 %v3756
    %v3952 = vunpack.c.l.b16 %v3757
    %v3953 = vunpack.c.l.b16 %v3758
    %v3954 = vunpack.c.l.b16 %v3759
    %v3955 = vunpack.c.l.b16 %v3760
    %v3956 = vunpack.c.l.b16 %v3761
    %v3957 = vunpack.c.l.b16 %v3762
    %v3958 = vunpack.c.l.b16 %v3763
    %v3959 = vunpack.c.l.b16 %v3764
    %v3960 = vunpack.c.l.b16 %v3765
    %v3961 = vunpack.c.l.b16 %v3766
    %v3962 = vunpack.c.l.b16 %v3767
    %v3963 = vunpack.c.l.b16 %v3768
    %v3964 = vunpack.c.l.b16 %v3769
    %v3965 = vunpack.c.l.b16 %v3770
    %v3966 = vunpack.c.l.b16 %v3771
    %v3967 = vunpack.c.l.b16 %v3772
    %v3968 = vunpack.c.l.b16 %v3773
    %v3969 = vunpack.c.l.b16 %v3774
    %v3970 = vunpack.c.l.b16 %v3775
    %v3971 = vunpack.c.l.b16 %v3776
    %v3972 = vunpack.c.l.b16 %v3777
    %v3973 = vunpack.c.l.b16 %v3778
    %v3974 = vunpack.c.l.b16 %v3779
    %v3975 = vunpack.c.l.b16 %v3780
    %v3976 = vunpack.c.l.b16 %v3781
    %v3977 = vunpack.c.l.b16 %v3782
    %v3978 = vunpack.c.l.b16 %v3783
    %v3979 = vunpack.c.l.b16 %v3784
    %v3980 = vunpack.c.l.b16 %v3785
    %v3981 = vunpack.c.l.b16 %v3786
    %v3982 = vunpack.c.l.b16 %v3787
    %v3983 = vunpack.c.l.b16 %v3788
    %v3984 = vunpack.c.l.b16 %v3789
    %v3985 = vunpack.c.l.b16 %v3790
    %v3986 = vunpack.c.l.b16 %v3791
    %v3987 = vunpack.c.l.b16 %v3792
    %v3988 = vunpack.c.l.b16 %v3793
    %v3989 = vunpack.c.l.b16 %v3794
    %v3990 = vunpack.c.l.b16 %v3795
    %v3991 = vunpack.c.l.b16 %v3796
    %v3992 = vunpack.c.l.b16 %v3797
    %v3993 = vunpack.c.l.b16 %v3798
    %v3994 = vunpack.c.l.b16 %v3799
    %v3995 = vunpack.c.l.b16 %v3800
    %v3996 = vunpack.c.l.b16 %v3801
    %v3997 = vunpack.c.l.b16 %v3802
    %v3998 = vunpack.c.l.b16 %v3803
    %v3999 = vunpack.c.l.b16 %v3804
    %v4000 = vunpack.c.l.b16 %v3805
    %v4001 = vunpack.c.l.b16 %v3806
    %v4002 = vunpack.c.l.b16 %v3807
    %v4003 = vunpack.c.l.b16 %v3808
    %v4004 = vunpack.c.l.b16 %v3809
    %v4005 = vunpack.c.l.b16 %v3810
    %v4006 = vunpack.c.l.b16 %v3811
    %v4007 = vunpack.c.l.b16 %v3812
    %v4008 = vunpack.c.l.b16 %v3813
    %v4009 = vunpack.c.l.b16 %v3814
    %v4010 = vunpack.c.l.b16 %v3815
    %v4011 = vunpack.c.l.b16 %v3816
    %v4012 = vunpack.c.l.b16 %v3817
    %v4013 = vunpack.c.l.b16 %v3818
    %v4014 = vunpack.c.l.b16 %v3819
    %v4015 = vunpack.c.l.b16 %v3820
    %v4016 = vunpack.c.l.b16 %v3821
    %v4017 = vunpack.c.l.b16 %v3822
    %v4018 = vunpack.c.l.b16 %v3823
    %v4019 = vunpack.c.l.b16 %v3824
    %v4020 = vunpack.c.l.b16 %v3825
    %v4021 = vunpack.c.l.b16 %v3826
    %v4022 = vunpack.c.l.b16 %v3827
    %v4023 = vunpack.c.l.b16 %v3828
    %v4024 = vunpack.c.l.b16 %v3829
    %v4025 = vunpack.c.l.b16 %v3830
    %v4026 = vunpack.c.l.b16 %v3831
    %v4027 = vunpack.c.l.b16 %v3832
    %v4028 = vunpack.c.l.b16 %v3833
    %v4029 = vunpack.c.l.b16 %v3834
    %v4030 = vunpack.c.l.b16 %v3835
    %v4031 = vunpack.c.l.b16 %v3836
    %v4032 = vunpack.c.l.b16 %v3837
    %v4033 = vpack.c.b16 %v3942, %v3941
    %v4034 = vpack.c.b16 %v3944, %v3943
    %v4035 = vpack.c.b16 %v3946, %v3945
    %v4036 = vpack.c.b16 %v3948, %v3947
    %v4037 = vpack.c.b16 %v3950, %v3949
    %v4038 = vpack.c.b16 %v3952, %v3951
    %v4039 = vpack.c.b16 %v3954, %v3953
    %v4040 = vpack.c.b16 %v3956, %v3955
    %v4041 = vpack.c.b16 %v3958, %v3957
    %v4042 = vpack.c.b16 %v3960, %v3959
    %v4043 = vpack.c.b16 %v3962, %v3961
    %v4044 = vpack.c.b16 %v3964, %v3963
    %v4045 = vpack.c.b16 %v3966, %v3965
    %v4046 = vpack.c.b16 %v3968, %v3967
    %v4047 = vpack.c.b16 %v3970, %v3969
    %v4048 = vpack.c.b16 %v3972, %v3971
    %v4049 = vpack.c.b16 %v3974, %v3973
    %v4050 = vpack.c.b16 %v3976, %v3975
    %v4051 = vpack.c.b16 %v3978, %v3977
    %v4052 = vpack.c.b16 %v3980, %v3979
    %v4053 = vpack.c.b16 %v3982, %v3981
    %v4054 = vpack.c.b16 %v3984, %v3983
    %v4055 = vpack.c.b16 %v3986, %v3985
    %v4056 = vpack.c.b16 %v3988, %v3987
    %v4057 = vpack.c.b16 %v3990, %v3989
    %v4058 = vpack.c.b16 %v3992, %v3991
    %v4059 = vpack.c.b16 %v3994, %v3993
    %v4060 = vpack.c.b16 %v3996, %v3995
    %v4061 = vpack.c.b16 %v3998, %v3997
    %v4062 = vpack.c.b16 %v4000, %v3999
    %v4063 = vpack.c.b16 %v4002, %v4001
    %v4064 = vpack.c.b16 %v4004, %v4003
    %v4065 = vpack.c.b16 %v4006, %v4005
    %v4066 = vpack.c.b16 %v4008, %v4007
    %v4067 = vpack.c.b16 %v4010, %v4009
    %v4068 = vpack.c.b16 %v4012, %v4011
    %v4069 = vpack.c.b16 %v4014, %v4013
    %v4070 = vpack.c.b16 %v4016, %v4015
    %v4071 = vpack.c.b16 %v4018, %v4017
    %v4072 = vpack.c.b16 %v4020, %v4019
    %v4073 = vpack.c.b16 %v4022, %v4021
    %v4074 = vpack.c.b16 %v4024, %v4023
    %v4075 = vpack.c.b16 %v4026, %v4025
    %v4076 = vpack.c.b16 %v4028, %v4027
    %v4077 = vpack.c.b16 %v4030, %v4029
    %v4078 = vpack.c.b16 %v4032, %v4031
    %v4125 = vsel %vm2705, %v3843, 0
    %v4128 = vsel %vm2709, %v4078, 0
    %4130 = vmatprep.subr.bf16.mxu0 0
    %4131 = vmatpush1.bf16.msra.mxu0 %v4033
    %4132 = vmatprep.subr.bf16.mxu0 0
    %4133 = vmatpush1.bf16.msra.mxu0 %v4034
    %4134 = vmatprep.subr.bf16.mxu0 0
    %4135 = vmatpush1.bf16.msra.mxu0 %v4035
    %4136 = vmatprep.subr.bf16.mxu0 0
    %4137 = vmatpush1.bf16.msra.mxu0 %v4036
    %4138 = vmatprep.subr.bf16.mxu0 0
    %4139 = vmatpush1.bf16.msra.mxu0 %v4037
    %4140 = vmatprep.subr.bf16.mxu0 0
    %4141 = vmatpush1.bf16.msra.mxu0 %v4038
    %4142 = vmatprep.subr.bf16.mxu0 0
    %4143 = vmatpush1.bf16.msra.mxu0 %v4039
    %4144 = vmatprep.subr.bf16.mxu0 0
    %4145 = vmatpush1.bf16.msra.mxu0 %v4040
    %4146 = vmatprep.subr.bf16.mxu0 0
    %4147 = vmatpush1.bf16.msra.mxu0 %v4041
    %4148 = vmatprep.subr.bf16.mxu0 0
    %4149 = vmatpush1.bf16.msra.mxu0 %v4042
    %4150 = vmatprep.subr.bf16.mxu0 0
    %4151 = vmatpush1.bf16.msra.mxu0 %v4043
    %4152 = vmatprep.subr.bf16.mxu0 0
    %4153 = vmatpush1.bf16.msra.mxu0 %v4044
    %4154 = vmatprep.subr.bf16.mxu0 0
    %4155 = vmatpush1.bf16.msra.mxu0 %v4045
    %4156 = vmatprep.subr.bf16.mxu0 0
    %4157 = vmatpush1.bf16.msra.mxu0 %v4046
    %4158 = vmatprep.subr.bf16.mxu0 0
    %4159 = vmatpush1.bf16.msra.mxu0 %v4047
    %4160 = vmatprep.subr.bf16.mxu0 0
    %4161 = vmatpush1.bf16.msra.mxu0 %v4048
    %4162 = vmatprep.mubr.bf16.mxu0 %v3839
    %4163 = vmatmul.mubr.bf16.gmra.mrb[0].mxu0 %v3838
    %v4164 = vpop.f32.mrb[0].mxu0
    %v4165 = vadd.f32 0.0, %v4164
    %v4166 = vpop.f32.mrb[0].mxu0
    %v4167 = vpop.f32.mrb[0].mxu0
    %v4168 = vpop.f32.mrb[0].mxu0
    %4169 = vdwg.mxu0
    %4170 = vmatprep.subr.bf16.mxu0 0
    %4171 = vmatpush1.bf16.msra.mxu0 %v4049
    %4172 = vmatprep.subr.bf16.mxu0 0
    %4173 = vmatpush1.bf16.msra.mxu0 %v4050
    %4174 = vmatprep.subr.bf16.mxu0 0
    %4175 = vmatpush1.bf16.msra.mxu0 %v4051
    %4176 = vmatprep.subr.bf16.mxu0 0
    %4177 = vmatpush1.bf16.msra.mxu0 %v4052
    %4178 = vmatprep.subr.bf16.mxu0 0
    %4179 = vmatpush1.bf16.msra.mxu0 %v4053
    %4180 = vmatprep.subr.bf16.mxu0 0
    %4181 = vmatpush1.bf16.msra.mxu0 %v4054
    %4182 = vmatprep.subr.bf16.mxu0 0
    %4183 = vmatpush1.bf16.msra.mxu0 %v4055
    %4184 = vmatprep.subr.bf16.mxu0 0
    %4185 = vmatpush1.bf16.msra.mxu0 %v4056
    %4186 = vmatprep.subr.bf16.mxu0 0
    %4187 = vmatpush1.bf16.msra.mxu0 %v4057
    %4188 = vmatprep.subr.bf16.mxu0 0
    %4189 = vmatpush1.bf16.msra.mxu0 %v4058
    %4190 = vmatprep.subr.bf16.mxu0 0
    %4191 = vmatpush1.bf16.msra.mxu0 %v4059
    %4192 = vmatprep.subr.bf16.mxu0 0
    %4193 = vmatpush1.bf16.msra.mxu0 %v4060
    %4194 = vmatprep.subr.bf16.mxu0 0
    %4195 = vmatpush1.bf16.msra.mxu0 %v4061
    %4196 = vmatprep.subr.bf16.mxu0 0
    %4197 = vmatpush1.bf16.msra.mxu0 %v4062
    %4198 = vmatprep.subr.bf16.mxu0 0
    %4199 = vmatpush1.bf16.msra.mxu0 %v4063
    %4200 = vmatprep.subr.bf16.mxu0 0
    %4201 = vmatpush1.bf16.msra.mxu0 %v4064
    %4202 = vmatprep.mubr.bf16.mxu0 %v3841
    %4203 = vmatmul.mubr.bf16.gmra.mrb[0].mxu0 %v3840
    %v4204 = vpop.f32.mrb[0].mxu0
    %v4205 = vadd.f32 %v4165, %v4204
    %v4206 = vpop.f32.mrb[0].mxu0
    %v4207 = vpop.f32.mrb[0].mxu0
    %v4208 = vpop.f32.mrb[0].mxu0
    %4209 = vdwg.mxu0
    %4210 = vmatprep.subr.bf16.mxu0 0
    %4211 = vmatpush1.bf16.msra.mxu0 %v4065
    %4212 = vmatprep.subr.bf16.mxu0 0
    %4213 = vmatpush1.bf16.msra.mxu0 %v4066
    %4214 = vmatprep.subr.bf16.mxu0 0
    %4215 = vmatpush1.bf16.msra.mxu0 %v4067
    %4216 = vmatprep.subr.bf16.mxu0 0
    %4217 = vmatpush1.bf16.msra.mxu0 %v4068
    %4218 = vmatprep.subr.bf16.mxu0 0
    %4219 = vmatpush1.bf16.msra.mxu0 %v4069
    %4220 = vmatprep.subr.bf16.mxu0 0
    %4221 = vmatpush1.bf16.msra.mxu0 %v4070
    %4222 = vmatprep.subr.bf16.mxu0 0
    %4223 = vmatpush1.bf16.msra.mxu0 %v4071
    %4224 = vmatprep.subr.bf16.mxu0 0
    %4225 = vmatpush1.bf16.msra.mxu0 %v4072
    %4226 = vmatprep.subr.bf16.mxu0 0
    %4227 = vmatpush1.bf16.msra.mxu0 %v4073
    %4228 = vmatprep.subr.bf16.mxu0 0
    %4229 = vmatpush1.bf16.msra.mxu0 %v4074
    %4230 = vmatprep.subr.bf16.mxu0 0
    %4231 = vmatpush1.bf16.msra.mxu0 %v4075
    %4232 = vmatprep.subr.bf16.mxu0 0
    %4233 = vmatpush1.bf16.msra.mxu0 %v4076
    %4234 = vmatprep.subr.bf16.mxu0 0
    %4235 = vmatpush1.bf16.msra.mxu0 %v4077
    %4236 = vmatprep.subr.bf16.mxu0 0
    %4237 = vmatpush1.bf16.msra.mxu0 %v4128
    %4238 = vmatprep.subr.bf16.mxu0 0
    %4239 = vmatpush1.bf16.msra.mxu0 0
    %4240 = vmatprep.subr.bf16.mxu0 0
    %4241 = vmatpush1.bf16.msra.mxu0 0
    %4242 = vmatprep.mubr.bf16.mxu0 %v4125
    %4243 = vmatmul.mubr.bf16.gmra.mrb[0].mxu0 %v3842
    %v4244 = vpop.f32.mrb[0].mxu0
    %v4245 = vadd.f32 %v4205, %v4244
    %v4246 = vpop.f32.mrb[0].mxu0
    %v4247 = vpop.f32.mrb[0].mxu0
    %v4248 = vpop.f32.mrb[0].mxu0
    %4249 = vdwg.mxu0
    %v4250 = vadd.f32 %v3744, %v4245
    %s4251 = scalar_lea.vmem [#allocation2], 1472
    %v4252 = vld [vmem:[%s4251] sm:$0xf]
    %v4253 = vld [vmem:[%s4251 + $0x4] sm:$0xf]
    %v4254 = vld [vmem:[%s4251 + $0x8] sm:$0xf]
    %v4255 = vld [vmem:[%s4251 + $0xc] sm:$0xf]
    %v4256 = vld [vmem:[%s4251 + $0x10] sm:$0xf]
    %v4257 = vld [vmem:[%s4251 + $0x14] sm:$0xf]
    %v4258 = vld [vmem:[%s4251 + $0x18] sm:$0xf]
    %v4259 = vld [vmem:[%s4251 + $0x1c] sm:$0xf]
    %v4260 = vld [vmem:[%s4251 + $0x20] sm:$0xf]
    %v4261 = vld [vmem:[%s4251 + $0x24] sm:$0xf]
    %v4262 = vld [vmem:[%s4251 + $0x28] sm:$0xf]
    %v4263 = vld [vmem:[%s4251 + $0x2c] sm:$0xf]
    %v4264 = vld [vmem:[%s4251 + $0x30] sm:$0xf]
    %v4265 = vld [vmem:[%s4251 + $0x34] sm:$0xf]
    %v4266 = vld [vmem:[%s4251 + $0x38] sm:$0xf]
    %v4267 = vld [vmem:[%s4251 + $0x3c] sm:$0xf]
    %v4268 = vld [vmem:[%s4251 + $0x40] sm:$0xf]
    %v4269 = vld [vmem:[%s4251 + $0x44] sm:$0xf]
    %v4270 = vld [vmem:[%s4251 + $0x48] sm:$0xf]
    %v4271 = vld [vmem:[%s4251 + $0x4c] sm:$0xf]
    %v4272 = vld [vmem:[%s4251 + $0x50] sm:$0xf]
    %v4273 = vld [vmem:[%s4251 + $0x54] sm:$0xf]
    %v4274 = vld [vmem:[%s4251 + $0x58] sm:$0xf]
    %v4275 = vld [vmem:[%s4251 + $0x5c] sm:$0xf]
    %v4276 = vld [vmem:[%s4251 + $0x60] sm:$0xf]
    %v4277 = vld [vmem:[%s4251 + $0x64] sm:$0xf]
    %v4278 = vld [vmem:[%s4251 + $0x68] sm:$0xf]
    %v4279 = vld [vmem:[%s4251 + $0x6c] sm:$0xf]
    %v4280 = vld [vmem:[%s4251 + $0x70] sm:$0xf]
    %v4281 = vld [vmem:[%s4251 + $0x74] sm:$0xf]
    %v4282 = vld [vmem:[%s4251 + $0x78] sm:$0xf]
    %v4283 = vld [vmem:[%s4251 + $0x7c] sm:$0xf]
    %v4284 = vld [vmem:[%s4251 + $0x80] sm:$0xf]
    %v4285 = vld [vmem:[%s4251 + $0x84] sm:$0xf]
    %v4286 = vld [vmem:[%s4251 + $0x88] sm:$0xf]
    %v4287 = vld [vmem:[%s4251 + $0x8c] sm:$0xf]
    %v4288 = vld [vmem:[%s4251 + $0x90] sm:$0xf]
    %v4289 = vld [vmem:[%s4251 + $0x94] sm:$0xf]
    %v4290 = vld [vmem:[%s4251 + $0x98] sm:$0xf]
    %v4291 = vld [vmem:[%s4251 + $0x9c] sm:$0xf]
    %v4292 = vld [vmem:[%s4251 + $0xa0] sm:$0xf]
    %v4293 = vld [vmem:[%s4251 + $0xa4] sm:$0xf]
    %v4294 = vld [vmem:[%s4251 + $0xa8] sm:$0xf]
    %v4295 = vld [vmem:[%s4251 + $0xac] sm:$0xf]
    %v4296 = vld [vmem:[%s4251 + $0xb0] sm:$0xf]
    %v4297 = vld [vmem:[%s4251 + $0xb4] sm:$0xf]
    %v4298 = vld [vmem:[%s4251 + $0xb8] sm:$0xf]
    %v4299 = vld [vmem:[%s4251 + $0xbc] sm:$0xf]
    %v4300 = vld [vmem:[%s4251 + $0xc0] sm:$0xf]
    %v4301 = vld [vmem:[%s4251 + $0xc4] sm:$0xf]
    %v4302 = vld [vmem:[%s4251 + $0xc8] sm:$0xf]
    %v4303 = vld [vmem:[%s4251 + $0xcc] sm:$0xf]
    %v4304 = vld [vmem:[%s4251 + $0xd0] sm:$0xf]
    %v4305 = vld [vmem:[%s4251 + $0xd4] sm:$0xf]
    %v4306 = vld [vmem:[%s4251 + $0xd8] sm:$0xf]
    %v4307 = vld [vmem:[%s4251 + $0xdc] sm:$0xf]
    %v4308 = vld [vmem:[%s4251 + $0xe0] sm:$0xf]
    %v4309 = vld [vmem:[%s4251 + $0xe4] sm:$0xf]
    %v4310 = vld [vmem:[%s4251 + $0xe8] sm:$0xf]
    %v4311 = vld [vmem:[%s4251 + $0xec] sm:$0xf]
    %v4312 = vld [vmem:[%s4251 + $0xf0] sm:$0xf]
    %v4313 = vld [vmem:[%s4251 + $0xf4] sm:$0xf]
    %v4314 = vld [vmem:[%s4251 + $0xf8] sm:$0xf]
    %v4315 = vld [vmem:[%s4251 + $0xfc] sm:$0xf]
    %v4316 = vld [vmem:[%s4251 + $0x100] sm:$0xf]
    %v4317 = vld [vmem:[%s4251 + $0x104] sm:$0xf]
    %v4318 = vld [vmem:[%s4251 + $0x108] sm:$0xf]
    %v4319 = vld [vmem:[%s4251 + $0x10c] sm:$0xf]
    %v4320 = vld [vmem:[%s4251 + $0x110] sm:$0xf]
    %v4321 = vld [vmem:[%s4251 + $0x114] sm:$0xf]
    %v4322 = vld [vmem:[%s4251 + $0x118] sm:$0xf]
    %v4323 = vld [vmem:[%s4251 + $0x11c] sm:$0xf]
    %v4324 = vld [vmem:[%s4251 + $0x120] sm:$0xf]
    %v4325 = vld [vmem:[%s4251 + $0x124] sm:$0xf]
    %v4326 = vld [vmem:[%s4251 + $0x128] sm:$0xf]
    %v4327 = vld [vmem:[%s4251 + $0x12c] sm:$0xf]
    %v4328 = vld [vmem:[%s4251 + $0x130] sm:$0xf]
    %v4329 = vld [vmem:[%s4251 + $0x134] sm:$0xf]
    %v4330 = vld [vmem:[%s4251 + $0x138] sm:$0xf]
    %v4331 = vld [vmem:[%s4251 + $0x13c] sm:$0xf]
    %v4332 = vld [vmem:[%s4251 + $0x140] sm:$0xf]
    %v4333 = vld [vmem:[%s4251 + $0x144] sm:$0xf]
    %v4334 = vld [vmem:[%s4251 + $0x148] sm:$0xf]
    %v4335 = vld [vmem:[%s4251 + $0x14c] sm:$0xf]
    %v4336 = vld [vmem:[%s4251 + $0x150] sm:$0xf]
    %v4337 = vld [vmem:[%s4251 + $0x154] sm:$0xf]
    %v4338 = vld [vmem:[%s4251 + $0x158] sm:$0xf]
    %v4339 = vld [vmem:[%s4251 + $0x15c] sm:$0xf]
    %v4340 = vld [vmem:[%s4251 + $0x160] sm:$0xf]
    %v4341 = vld [vmem:[%s4251 + $0x164] sm:$0xf]
    %v4342 = vld [vmem:[%s4251 + $0x168] sm:$0xf]
    %v4343 = vld [vmem:[%s4251 + $0x16c] sm:$0x3]
    %v4344 = vrot.slane %v2211, 2
    %v4345 = vrot.slane %v2212, 2
    %v4346 = vrot.slane %v2213, 2
    %v4347 = vrot.slane %v2214, 2
    %v4348 = vrot.slane %v2215, 2
    %v4349 = vrot.slane %v2216, 2
    %v4447 = vunpack.c.l.b16 %v4252
    %v4448 = vunpack.c.l.b16 %v4253
    %v4449 = vunpack.c.l.b16 %v4254
    %v4450 = vunpack.c.l.b16 %v4255
    %v4451 = vunpack.c.l.b16 %v4256
    %v4452 = vunpack.c.l.b16 %v4257
    %v4453 = vunpack.c.l.b16 %v4258
    %v4454 = vunpack.c.l.b16 %v4259
    %v4455 = vunpack.c.l.b16 %v4260
    %v4456 = vunpack.c.l.b16 %v4261
    %v4457 = vunpack.c.l.b16 %v4262
    %v4458 = vunpack.c.l.b16 %v4263
    %v4459 = vunpack.c.l.b16 %v4264
    %v4460 = vunpack.c.l.b16 %v4265
    %v4461 = vunpack.c.l.b16 %v4266
    %v4462 = vunpack.c.l.b16 %v4267
    %v4463 = vunpack.c.l.b16 %v4268
    %v4464 = vunpack.c.l.b16 %v4269
    %v4465 = vunpack.c.l.b16 %v4270
    %v4466 = vunpack.c.l.b16 %v4271
    %v4467 = vunpack.c.l.b16 %v4272
    %v4468 = vunpack.c.l.b16 %v4273
    %v4469 = vunpack.c.l.b16 %v4274
    %v4470 = vunpack.c.l.b16 %v4275
    %v4471 = vunpack.c.l.b16 %v4276
    %v4472 = vunpack.c.l.b16 %v4277
    %v4473 = vunpack.c.l.b16 %v4278
    %v4474 = vunpack.c.l.b16 %v4279
    %v4475 = vunpack.c.l.b16 %v4280
    %v4476 = vunpack.c.l.b16 %v4281
    %v4477 = vunpack.c.l.b16 %v4282
    %v4478 = vunpack.c.l.b16 %v4283
    %v4479 = vunpack.c.l.b16 %v4284
    %v4480 = vunpack.c.l.b16 %v4285
    %v4481 = vunpack.c.l.b16 %v4286
    %v4482 = vunpack.c.l.b16 %v4287
    %v4483 = vunpack.c.l.b16 %v4288
    %v4484 = vunpack.c.l.b16 %v4289
    %v4485 = vunpack.c.l.b16 %v4290
    %v4486 = vunpack.c.l.b16 %v4291
    %v4487 = vunpack.c.l.b16 %v4292
    %v4488 = vunpack.c.l.b16 %v4293
    %v4489 = vunpack.c.l.b16 %v4294
    %v4490 = vunpack.c.l.b16 %v4295
    %v4491 = vunpack.c.l.b16 %v4296
    %v4492 = vunpack.c.l.b16 %v4297
    %v4493 = vunpack.c.l.b16 %v4298
    %v4494 = vunpack.c.l.b16 %v4299
    %v4495 = vunpack.c.l.b16 %v4300
    %v4496 = vunpack.c.l.b16 %v4301
    %v4497 = vunpack.c.l.b16 %v4302
    %v4498 = vunpack.c.l.b16 %v4303
    %v4499 = vunpack.c.l.b16 %v4304
    %v4500 = vunpack.c.l.b16 %v4305
    %v4501 = vunpack.c.l.b16 %v4306
    %v4502 = vunpack.c.l.b16 %v4307
    %v4503 = vunpack.c.l.b16 %v4308
    %v4504 = vunpack.c.l.b16 %v4309
    %v4505 = vunpack.c.l.b16 %v4310
    %v4506 = vunpack.c.l.b16 %v4311
    %v4507 = vunpack.c.l.b16 %v4312
    %v4508 = vunpack.c.l.b16 %v4313
    %v4509 = vunpack.c.l.b16 %v4314
    %v4510 = vunpack.c.l.b16 %v4315
    %v4511 = vunpack.c.l.b16 %v4316
    %v4512 = vunpack.c.l.b16 %v4317
    %v4513 = vunpack.c.l.b16 %v4318
    %v4514 = vunpack.c.l.b16 %v4319
    %v4515 = vunpack.c.l.b16 %v4320
    %v4516 = vunpack.c.l.b16 %v4321
    %v4517 = vunpack.c.l.b16 %v4322
    %v4518 = vunpack.c.l.b16 %v4323
    %v4519 = vunpack.c.l.b16 %v4324
    %v4520 = vunpack.c.l.b16 %v4325
    %v4521 = vunpack.c.l.b16 %v4326
    %v4522 = vunpack.c.l.b16 %v4327
    %v4523 = vunpack.c.l.b16 %v4328
    %v4524 = vunpack.c.l.b16 %v4329
    %v4525 = vunpack.c.l.b16 %v4330
    %v4526 = vunpack.c.l.b16 %v4331
    %v4527 = vunpack.c.l.b16 %v4332
    %v4528 = vunpack.c.l.b16 %v4333
    %v4529 = vunpack.c.l.b16 %v4334
    %v4530 = vunpack.c.l.b16 %v4335
    %v4531 = vunpack.c.l.b16 %v4336
    %v4532 = vunpack.c.l.b16 %v4337
    %v4533 = vunpack.c.l.b16 %v4338
    %v4534 = vunpack.c.l.b16 %v4339
    %v4535 = vunpack.c.l.b16 %v4340
    %v4536 = vunpack.c.l.b16 %v4341
    %v4537 = vunpack.c.l.b16 %v4342
    %v4538 = vunpack.c.l.b16 %v4343
    %v4539 = vpack.c.b16 %v4448, %v4447
    %v4540 = vpack.c.b16 %v4450, %v4449
    %v4541 = vpack.c.b16 %v4452, %v4451
    %v4542 = vpack.c.b16 %v4454, %v4453
    %v4543 = vpack.c.b16 %v4456, %v4455
    %v4544 = vpack.c.b16 %v4458, %v4457
    %v4545 = vpack.c.b16 %v4460, %v4459
    %v4546 = vpack.c.b16 %v4462, %v4461
    %v4547 = vpack.c.b16 %v4464, %v4463
    %v4548 = vpack.c.b16 %v4466, %v4465
    %v4549 = vpack.c.b16 %v4468, %v4467
    %v4550 = vpack.c.b16 %v4470, %v4469
    %v4551 = vpack.c.b16 %v4472, %v4471
    %v4552 = vpack.c.b16 %v4474, %v4473
    %v4553 = vpack.c.b16 %v4476, %v4475
    %v4554 = vpack.c.b16 %v4478, %v4477
    %v4555 = vpack.c.b16 %v4480, %v4479
    %v4556 = vpack.c.b16 %v4482, %v4481
    %v4557 = vpack.c.b16 %v4484, %v4483
    %v4558 = vpack.c.b16 %v4486, %v4485
    %v4559 = vpack.c.b16 %v4488, %v4487
    %v4560 = vpack.c.b16 %v4490, %v4489
    %v4561 = vpack.c.b16 %v4492, %v4491
    %v4562 = vpack.c.b16 %v4494, %v4493
    %v4563 = vpack.c.b16 %v4496, %v4495
    %v4564 = vpack.c.b16 %v4498, %v4497
    %v4565 = vpack.c.b16 %v4500, %v4499
    %v4566 = vpack.c.b16 %v4502, %v4501
    %v4567 = vpack.c.b16 %v4504, %v4503
    %v4568 = vpack.c.b16 %v4506, %v4505
    %v4569 = vpack.c.b16 %v4508, %v4507
    %v4570 = vpack.c.b16 %v4510, %v4509
    %v4571 = vpack.c.b16 %v4512, %v4511
    %v4572 = vpack.c.b16 %v4514, %v4513
    %v4573 = vpack.c.b16 %v4516, %v4515
    %v4574 = vpack.c.b16 %v4518, %v4517
    %v4575 = vpack.c.b16 %v4520, %v4519
    %v4576 = vpack.c.b16 %v4522, %v4521
    %v4577 = vpack.c.b16 %v4524, %v4523
    %v4578 = vpack.c.b16 %v4526, %v4525
    %v4579 = vpack.c.b16 %v4528, %v4527
    %v4580 = vpack.c.b16 %v4530, %v4529
    %v4581 = vpack.c.b16 %v4532, %v4531
    %v4582 = vpack.c.b16 %v4534, %v4533
    %v4583 = vpack.c.b16 %v4536, %v4535
    %v4584 = vpack.c.b16 %v4538, %v4537
    %v4631 = vsel %vm2705, %v4349, 0
    %v4634 = vsel %vm2709, %v4584, 0
    %4636 = vmatprep.subr.bf16.mxu0 0
    %4637 = vmatpush1.bf16.msra.mxu0 %v4539
    %4638 = vmatprep.subr.bf16.mxu0 0
    %4639 = vmatpush1.bf16.msra.mxu0 %v4540
    %4640 = vmatprep.subr.bf16.mxu0 0
    %4641 = vmatpush1.bf16.msra.mxu0 %v4541
    %4642 = vmatprep.subr.bf16.mxu0 0
    %4643 = vmatpush1.bf16.msra.mxu0 %v4542
    %4644 = vmatprep.subr.bf16.mxu0 0
    %4645 = vmatpush1.bf16.msra.mxu0 %v4543
    %4646 = vmatprep.subr.bf16.mxu0 0
    %4647 = vmatpush1.bf16.msra.mxu0 %v4544
    %4648 = vmatprep.subr.bf16.mxu0 0
    %4649 = vmatpush1.bf16.msra.mxu0 %v4545
    %4650 = vmatprep.subr.bf16.mxu0 0
    %4651 = vmatpush1.bf16.msra.mxu0 %v4546
    %4652 = vmatprep.subr.bf16.mxu0 0
    %4653 = vmatpush1.bf16.msra.mxu0 %v4547
    %4654 = vmatprep.subr.bf16.mxu0 0
    %4655 = vmatpush1.bf16.msra.mxu0 %v4548
    %4656 = vmatprep.subr.bf16.mxu0 0
    %4657 = vmatpush1.bf16.msra.mxu0 %v4549
    %4658 = vmatprep.subr.bf16.mxu0 0
    %4659 = vmatpush1.bf16.msra.mxu0 %v4550
    %4660 = vmatprep.subr.bf16.mxu0 0
    %4661 = vmatpush1.bf16.msra.mxu0 %v4551
    %4662 = vmatprep.subr.bf16.mxu0 0
    %4663 = vmatpush1.bf16.msra.mxu0 %v4552
    %4664 = vmatprep.subr.bf16.mxu0 0
    %4665 = vmatpush1.bf16.msra.mxu0 %v4553
    %4666 = vmatprep.subr.bf16.mxu0 0
    %4667 = vmatpush1.bf16.msra.mxu0 %v4554
    %4668 = vmatprep.mubr.bf16.mxu0 %v4345
    %4669 = vmatmul.mubr.bf16.gmra.mrb[0].mxu0 %v4344
    %v4670 = vpop.f32.mrb[0].mxu0
    %v4671 = vadd.f32 0.0, %v4670
    %v4672 = vpop.f32.mrb[0].mxu0
    %v4673 = vpop.f32.mrb[0].mxu0
    %v4674 = vpop.f32.mrb[0].mxu0
    %4675 = vdwg.mxu0
    %4676 = vmatprep.subr.bf16.mxu0 0
    %4677 = vmatpush1.bf16.msra.mxu0 %v4555
    %4678 = vmatprep.subr.bf16.mxu0 0
    %4679 = vmatpush1.bf16.msra.mxu0 %v4556
    %4680 = vmatprep.subr.bf16.mxu0 0
    %4681 = vmatpush1.bf16.msra.mxu0 %v4557
    %4682 = vmatprep.subr.bf16.mxu0 0
    %4683 = vmatpush1.bf16.msra.mxu0 %v4558
    %4684 = vmatprep.subr.bf16.mxu0 0
    %4685 = vmatpush1.bf16.msra.mxu0 %v4559
    %4686 = vmatprep.subr.bf16.mxu0 0
    %4687 = vmatpush1.bf16.msra.mxu0 %v4560
    %4688 = vmatprep.subr.bf16.mxu0 0
    %4689 = vmatpush1.bf16.msra.mxu0 %v4561
    %4690 = vmatprep.subr.bf16.mxu0 0
    %4691 = vmatpush1.bf16.msra.mxu0 %v4562
    %4692 = vmatprep.subr.bf16.mxu0 0
    %4693 = vmatpush1.bf16.msra.mxu0 %v4563
    %4694 = vmatprep.subr.bf16.mxu0 0
    %4695 = vmatpush1.bf16.msra.mxu0 %v4564
    %4696 = vmatprep.subr.bf16.mxu0 0
    %4697 = vmatpush1.bf16.msra.mxu0 %v4565
    %4698 = vmatprep.subr.bf16.mxu0 0
    %4699 = vmatpush1.bf16.msra.mxu0 %v4566
    %4700 = vmatprep.subr.bf16.mxu0 0
    %4701 = vmatpush1.bf16.msra.mxu0 %v4567
    %4702 = vmatprep.subr.bf16.mxu0 0
    %4703 = vmatpush1.bf16.msra.mxu0 %v4568
    %4704 = vmatprep.subr.bf16.mxu0 0
    %4705 = vmatpush1.bf16.msra.mxu0 %v4569
    %4706 = vmatprep.subr.bf16.mxu0 0
    %4707 = vmatpush1.bf16.msra.mxu0 %v4570
    %4708 = vmatprep.mubr.bf16.mxu0 %v4347
    %4709 = vmatmul.mubr.bf16.gmra.mrb[0].mxu0 %v4346
    %v4710 = vpop.f32.mrb[0].mxu0
    %v4711 = vadd.f32 %v4671, %v4710
    %v4712 = vpop.f32.mrb[0].mxu0
    %v4713 = vpop.f32.mrb[0].mxu0
    %v4714 = vpop.f32.mrb[0].mxu0
    %4715 = vdwg.mxu0
    %4716 = vmatprep.subr.bf16.mxu0 0
    %4717 = vmatpush1.bf16.msra.mxu0 %v4571
    %4718 = vmatprep.subr.bf16.mxu0 0
    %4719 = vmatpush1.bf16.msra.mxu0 %v4572
    %4720 = vmatprep.subr.bf16.mxu0 0
    %4721 = vmatpush1.bf16.msra.mxu0 %v4573
    %4722 = vmatprep.subr.bf16.mxu0 0
    %4723 = vmatpush1.bf16.msra.mxu0 %v4574
    %4724 = vmatprep.subr.bf16.mxu0 0
    %4725 = vmatpush1.bf16.msra.mxu0 %v4575
    %4726 = vmatprep.subr.bf16.mxu0 0
    %4727 = vmatpush1.bf16.msra.mxu0 %v4576
    %4728 = vmatprep.subr.bf16.mxu0 0
    %4729 = vmatpush1.bf16.msra.mxu0 %v4577
    %4730 = vmatprep.subr.bf16.mxu0 0
    %4731 = vmatpush1.bf16.msra.mxu0 %v4578
    %4732 = vmatprep.subr.bf16.mxu0 0
    %4733 = vmatpush1.bf16.msra.mxu0 %v4579
    %4734 = vmatprep.subr.bf16.mxu0 0
    %4735 = vmatpush1.bf16.msra.mxu0 %v4580
    %4736 = vmatprep.subr.bf16.mxu0 0
    %4737 = vmatpush1.bf16.msra.mxu0 %v4581
    %4738 = vmatprep.subr.bf16.mxu0 0
    %4739 = vmatpush1.bf16.msra.mxu0 %v4582
    %4740 = vmatprep.subr.bf16.mxu0 0
    %4741 = vmatpush1.bf16.msra.mxu0 %v4583
    %4742 = vmatprep.subr.bf16.mxu0 0
    %4743 = vmatpush1.bf16.msra.mxu0 %v4634
    %4744 = vmatprep.subr.bf16.mxu0 0
    %4745 = vmatpush1.bf16.msra.mxu0 0
    %4746 = vmatprep.subr.bf16.mxu0 0
    %4747 = vmatpush1.bf16.msra.mxu0 0
    %4748 = vmatprep.mubr.bf16.mxu0 %v4631
    %4749 = vmatmul.mubr.bf16.gmra.mrb[0].mxu0 %v4348
    %v4750 = vpop.f32.mrb[0].mxu0
    %v4751 = vadd.f32 %v4711, %v4750
    %v4752 = vpop.f32.mrb[0].mxu0
    %v4753 = vpop.f32.mrb[0].mxu0
    %v4754 = vpop.f32.mrb[0].mxu0
    %4755 = vdwg.mxu0
    %v4756 = vadd.f32 %v4250, %v4751
    %s4757 = scalar_lea.vmem [#allocation2], 1840
    %v4758 = vld [vmem:[%s4757] sm:$0xf]
    %v4759 = vld [vmem:[%s4757 + $0x4] sm:$0xf]
    %v4760 = vld [vmem:[%s4757 + $0x8] sm:$0xf]
    %v4761 = vld [vmem:[%s4757 + $0xc] sm:$0xf]
    %v4762 = vld [vmem:[%s4757 + $0x10] sm:$0xf]
    %v4763 = vld [vmem:[%s4757 + $0x14] sm:$0xf]
    %v4764 = vld [vmem:[%s4757 + $0x18] sm:$0xf]
    %v4765 = vld [vmem:[%s4757 + $0x1c] sm:$0xf]
    %v4766 = vld [vmem:[%s4757 + $0x20] sm:$0xf]
    %v4767 = vld [vmem:[%s4757 + $0x24] sm:$0xf]
    %v4768 = vld [vmem:[%s4757 + $0x28] sm:$0xf]
    %v4769 = vld [vmem:[%s4757 + $0x2c] sm:$0xf]
    %v4770 = vld [vmem:[%s4757 + $0x30] sm:$0xf]
    %v4771 = vld [vmem:[%s4757 + $0x34] sm:$0xf]
    %v4772 = vld [vmem:[%s4757 + $0x38] sm:$0xf]
    %v4773 = vld [vmem:[%s4757 + $0x3c] sm:$0xf]
    %v4774 = vld [vmem:[%s4757 + $0x40] sm:$0xf]
    %v4775 = vld [vmem:[%s4757 + $0x44] sm:$0xf]
    %v4776 = vld [vmem:[%s4757 + $0x48] sm:$0xf]
    %v4777 = vld [vmem:[%s4757 + $0x4c] sm:$0xf]
    %v4778 = vld [vmem:[%s4757 + $0x50] sm:$0xf]
    %v4779 = vld [vmem:[%s4757 + $0x54] sm:$0xf]
    %v4780 = vld [vmem:[%s4757 + $0x58] sm:$0xf]
    %v4781 = vld [vmem:[%s4757 + $0x5c] sm:$0xf]
    %v4782 = vld [vmem:[%s4757 + $0x60] sm:$0xf]
    %v4783 = vld [vmem:[%s4757 + $0x64] sm:$0xf]
    %v4784 = vld [vmem:[%s4757 + $0x68] sm:$0xf]
    %v4785 = vld [vmem:[%s4757 + $0x6c] sm:$0xf]
    %v4786 = vld [vmem:[%s4757 + $0x70] sm:$0xf]
    %v4787 = vld [vmem:[%s4757 + $0x74] sm:$0xf]
    %v4788 = vld [vmem:[%s4757 + $0x78] sm:$0xf]
    %v4789 = vld [vmem:[%s4757 + $0x7c] sm:$0xf]
    %v4790 = vld [vmem:[%s4757 + $0x80] sm:$0xf]
    %v4791 = vld [vmem:[%s4757 + $0x84] sm:$0xf]
    %v4792 = vld [vmem:[%s4757 + $0x88] sm:$0xf]
    %v4793 = vld [vmem:[%s4757 + $0x8c] sm:$0xf]
    %v4794 = vld [vmem:[%s4757 + $0x90] sm:$0xf]
    %v4795 = vld [vmem:[%s4757 + $0x94] sm:$0xf]
    %v4796 = vld [vmem:[%s4757 + $0x98] sm:$0xf]
    %v4797 = vld [vmem:[%s4757 + $0x9c] sm:$0xf]
    %v4798 = vld [vmem:[%s4757 + $0xa0] sm:$0xf]
    %v4799 = vld [vmem:[%s4757 + $0xa4] sm:$0xf]
    %v4800 = vld [vmem:[%s4757 + $0xa8] sm:$0xf]
    %v4801 = vld [vmem:[%s4757 + $0xac] sm:$0xf]
    %v4802 = vld [vmem:[%s4757 + $0xb0] sm:$0xf]
    %v4803 = vld [vmem:[%s4757 + $0xb4] sm:$0xf]
    %v4804 = vld [vmem:[%s4757 + $0xb8] sm:$0xf]
    %v4805 = vld [vmem:[%s4757 + $0xbc] sm:$0xf]
    %v4806 = vld [vmem:[%s4757 + $0xc0] sm:$0xf]
    %v4807 = vld [vmem:[%s4757 + $0xc4] sm:$0xf]
    %v4808 = vld [vmem:[%s4757 + $0xc8] sm:$0xf]
    %v4809 = vld [vmem:[%s4757 + $0xcc] sm:$0xf]
    %v4810 = vld [vmem:[%s4757 + $0xd0] sm:$0xf]
    %v4811 = vld [vmem:[%s4757 + $0xd4] sm:$0xf]
    %v4812 = vld [vmem:[%s4757 + $0xd8] sm:$0xf]
    %v4813 = vld [vmem:[%s4757 + $0xdc] sm:$0xf]
    %v4814 = vld [vmem:[%s4757 + $0xe0] sm:$0xf]
    %v4815 = vld [vmem:[%s4757 + $0xe4] sm:$0xf]
    %v4816 = vld [vmem:[%s4757 + $0xe8] sm:$0xf]
    %v4817 = vld [vmem:[%s4757 + $0xec] sm:$0xf]
    %v4818 = vld [vmem:[%s4757 + $0xf0] sm:$0xf]
    %v4819 = vld [vmem:[%s4757 + $0xf4] sm:$0xf]
    %v4820 = vld [vmem:[%s4757 + $0xf8] sm:$0xf]
    %v4821 = vld [vmem:[%s4757 + $0xfc] sm:$0xf]
    %v4822 = vld [vmem:[%s4757 + $0x100] sm:$0xf]
    %v4823 = vld [vmem:[%s4757 + $0x104] sm:$0xf]
    %v4824 = vld [vmem:[%s4757 + $0x108] sm:$0xf]
    %v4825 = vld [vmem:[%s4757 + $0x10c] sm:$0xf]
    %v4826 = vld [vmem:[%s4757 + $0x110] sm:$0xf]
    %v4827 = vld [vmem:[%s4757 + $0x114] sm:$0xf]
    %v4828 = vld [vmem:[%s4757 + $0x118] sm:$0xf]
    %v4829 = vld [vmem:[%s4757 + $0x11c] sm:$0xf]
    %v4830 = vld [vmem:[%s4757 + $0x120] sm:$0xf]
    %v4831 = vld [vmem:[%s4757 + $0x124] sm:$0xf]
    %v4832 = vld [vmem:[%s4757 + $0x128] sm:$0xf]
    %v4833 = vld [vmem:[%s4757 + $0x12c] sm:$0xf]
    %v4834 = vld [vmem:[%s4757 + $0x130] sm:$0xf]
    %v4835 = vld [vmem:[%s4757 + $0x134] sm:$0xf]
    %v4836 = vld [vmem:[%s4757 + $0x138] sm:$0xf]
    %v4837 = vld [vmem:[%s4757 + $0x13c] sm:$0xf]
    %v4838 = vld [vmem:[%s4757 + $0x140] sm:$0xf]
    %v4839 = vld [vmem:[%s4757 + $0x144] sm:$0xf]
    %v4840 = vld [vmem:[%s4757 + $0x148] sm:$0xf]
    %v4841 = vld [vmem:[%s4757 + $0x14c] sm:$0xf]
    %v4842 = vld [vmem:[%s4757 + $0x150] sm:$0xf]
    %v4843 = vld [vmem:[%s4757 + $0x154] sm:$0xf]
    %v4844 = vld [vmem:[%s4757 + $0x158] sm:$0xf]
    %v4845 = vld [vmem:[%s4757 + $0x15c] sm:$0xf]
    %v4846 = vld [vmem:[%s4757 + $0x160] sm:$0xf]
    %v4847 = vld [vmem:[%s4757 + $0x164] sm:$0xf]
    %v4848 = vld [vmem:[%s4757 + $0x168] sm:$0xf]
    %v4849 = vld [vmem:[%s4757 + $0x16c] sm:$0x3]
    %v4850 = vrot.slane %v2408, 2
    %v4851 = vrot.slane %v2411, 2
    %v4852 = vrot.slane %v2414, 2
    %v4853 = vrot.slane %v2417, 2
    %v4854 = vrot.slane %v2420, 2
    %v4855 = vrot.slane %v2423, 2
    %v4953 = vunpack.c.l.b16 %v4758
    %v4954 = vunpack.c.l.b16 %v4759
    %v4955 = vunpack.c.l.b16 %v4760
    %v4956 = vunpack.c.l.b16 %v4761
    %v4957 = vunpack.c.l.b16 %v4762
    %v4958 = vunpack.c.l.b16 %v4763
    %v4959 = vunpack.c.l.b16 %v4764
    %v4960 = vunpack.c.l.b16 %v4765
    %v4961 = vunpack.c.l.b16 %v4766
    %v4962 = vunpack.c.l.b16 %v4767
    %v4963 = vunpack.c.l.b16 %v4768
    %v4964 = vunpack.c.l.b16 %v4769
    %v4965 = vunpack.c.l.b16 %v4770
    %v4966 = vunpack.c.l.b16 %v4771
    %v4967 = vunpack.c.l.b16 %v4772
    %v4968 = vunpack.c.l.b16 %v4773
    %v4969 = vunpack.c.l.b16 %v4774
    %v4970 = vunpack.c.l.b16 %v4775
    %v4971 = vunpack.c.l.b16 %v4776
    %v4972 = vunpack.c.l.b16 %v4777
    %v4973 = vunpack.c.l.b16 %v4778
    %v4974 = vunpack.c.l.b16 %v4779
    %v4975 = vunpack.c.l.b16 %v4780
    %v4976 = vunpack.c.l.b16 %v4781
    %v4977 = vunpack.c.l.b16 %v4782
    %v4978 = vunpack.c.l.b16 %v4783
    %v4979 = vunpack.c.l.b16 %v4784
    %v4980 = vunpack.c.l.b16 %v4785
    %v4981 = vunpack.c.l.b16 %v4786
    %v4982 = vunpack.c.l.b16 %v4787
    %v4983 = vunpack.c.l.b16 %v4788
    %v4984 = vunpack.c.l.b16 %v4789
    %v4985 = vunpack.c.l.b16 %v4790
    %v4986 = vunpack.c.l.b16 %v4791
    %v4987 = vunpack.c.l.b16 %v4792
    %v4988 = vunpack.c.l.b16 %v4793
    %v4989 = vunpack.c.l.b16 %v4794
    %v4990 = vunpack.c.l.b16 %v4795
    %v4991 = vunpack.c.l.b16 %v4796
    %v4992 = vunpack.c.l.b16 %v4797
    %v4993 = vunpack.c.l.b16 %v4798
    %v4994 = vunpack.c.l.b16 %v4799
    %v4995 = vunpack.c.l.b16 %v4800
    %v4996 = vunpack.c.l.b16 %v4801
    %v4997 = vunpack.c.l.b16 %v4802
    %v4998 = vunpack.c.l.b16 %v4803
    %v4999 = vunpack.c.l.b16 %v4804
    %v5000 = vunpack.c.l.b16 %v4805
    %v5001 = vunpack.c.l.b16 %v4806
    %v5002 = vunpack.c.l.b16 %v4807
    %v5003 = vunpack.c.l.b16 %v4808
    %v5004 = vunpack.c.l.b16 %v4809
    %v5005 = vunpack.c.l.b16 %v4810
    %v5006 = vunpack.c.l.b16 %v4811
    %v5007 = vunpack.c.l.b16 %v4812
    %v5008 = vunpack.c.l.b16 %v4813
    %v5009 = vunpack.c.l.b16 %v4814
    %v5010 = vunpack.c.l.b16 %v4815
    %v5011 = vunpack.c.l.b16 %v4816
    %v5012 = vunpack.c.l.b16 %v4817
    %v5013 = vunpack.c.l.b16 %v4818
    %v5014 = vunpack.c.l.b16 %v4819
    %v5015 = vunpack.c.l.b16 %v4820
    %v5016 = vunpack.c.l.b16 %v4821
    %v5017 = vunpack.c.l.b16 %v4822
    %v5018 = vunpack.c.l.b16 %v4823
    %v5019 = vunpack.c.l.b16 %v4824
    %v5020 = vunpack.c.l.b16 %v4825
    %v5021 = vunpack.c.l.b16 %v4826
    %v5022 = vunpack.c.l.b16 %v4827
    %v5023 = vunpack.c.l.b16 %v4828
    %v5024 = vunpack.c.l.b16 %v4829
    %v5025 = vunpack.c.l.b16 %v4830
    %v5026 = vunpack.c.l.b16 %v4831
    %v5027 = vunpack.c.l.b16 %v4832
    %v5028 = vunpack.c.l.b16 %v4833
    %v5029 = vunpack.c.l.b16 %v4834
    %v5030 = vunpack.c.l.b16 %v4835
    %v5031 = vunpack.c.l.b16 %v4836
    %v5032 = vunpack.c.l.b16 %v4837
    %v5033 = vunpack.c.l.b16 %v4838
    %v5034 = vunpack.c.l.b16 %v4839
    %v5035 = vunpack.c.l.b16 %v4840
    %v5036 = vunpack.c.l.b16 %v4841
    %v5037 = vunpack.c.l.b16 %v4842
    %v5038 = vunpack.c.l.b16 %v4843
    %v5039 = vunpack.c.l.b16 %v4844
    %v5040 = vunpack.c.l.b16 %v4845
    %v5041 = vunpack.c.l.b16 %v4846
    %v5042 = vunpack.c.l.b16 %v4847
    %v5043 = vunpack.c.l.b16 %v4848
    %v5044 = vunpack.c.l.b16 %v4849
    %v5045 = vpack.c.b16 %v4954, %v4953
    %v5046 = vpack.c.b16 %v4956, %v4955
    %v5047 = vpack.c.b16 %v4958, %v4957
    %v5048 = vpack.c.b16 %v4960, %v4959
    %v5049 = vpack.c.b16 %v4962, %v4961
    %v5050 = vpack.c.b16 %v4964, %v4963
    %v5051 = vpack.c.b16 %v4966, %v4965
    %v5052 = vpack.c.b16 %v4968, %v4967
    %v5053 = vpack.c.b16 %v4970, %v4969
    %v5054 = vpack.c.b16 %v4972, %v4971
    %v5055 = vpack.c.b16 %v4974, %v4973
    %v5056 = vpack.c.b16 %v4976, %v4975
    %v5057 = vpack.c.b16 %v4978, %v4977
    %v5058 = vpack.c.b16 %v4980, %v4979
    %v5059 = vpack.c.b16 %v4982, %v4981
    %v5060 = vpack.c.b16 %v4984, %v4983
    %v5061 = vpack.c.b16 %v4986, %v4985
    %v5062 = vpack.c.b16 %v4988, %v4987
    %v5063 = vpack.c.b16 %v4990, %v4989
    %v5064 = vpack.c.b16 %v4992, %v4991
    %v5065 = vpack.c.b16 %v4994, %v4993
    %v5066 = vpack.c.b16 %v4996, %v4995
    %v5067 = vpack.c.b16 %v4998, %v4997
    %v5068 = vpack.c.b16 %v5000, %v4999
    %v5069 = vpack.c.b16 %v5002, %v5001
    %v5070 = vpack.c.b16 %v5004, %v5003
    %v5071 = vpack.c.b16 %v5006, %v5005
    %v5072 = vpack.c.b16 %v5008, %v5007
    %v5073 = vpack.c.b16 %v5010, %v5009
    %v5074 = vpack.c.b16 %v5012, %v5011
    %v5075 = vpack.c.b16 %v5014, %v5013
    %v5076 = vpack.c.b16 %v5016, %v5015
    %v5077 = vpack.c.b16 %v5018, %v5017
    %v5078 = vpack.c.b16 %v5020, %v5019
    %v5079 = vpack.c.b16 %v5022, %v5021
    %v5080 = vpack.c.b16 %v5024, %v5023
    %v5081 = vpack.c.b16 %v5026, %v5025
    %v5082 = vpack.c.b16 %v5028, %v5027
    %v5083 = vpack.c.b16 %v5030, %v5029
    %v5084 = vpack.c.b16 %v5032, %v5031
    %v5085 = vpack.c.b16 %v5034, %v5033
    %v5086 = vpack.c.b16 %v5036, %v5035
    %v5087 = vpack.c.b16 %v5038, %v5037
    %v5088 = vpack.c.b16 %v5040, %v5039
    %v5089 = vpack.c.b16 %v5042, %v5041
    %v5090 = vpack.c.b16 %v5044, %v5043
    %v5137 = vsel %vm2705, %v4855, 0
    %v5140 = vsel %vm2709, %v5090, 0
    %5142 = vmatprep.subr.bf16.mxu0 0
    %5143 = vmatpush1.bf16.msra.mxu0 %v5045
    %5144 = vmatprep.subr.bf16.mxu0 0
    %5145 = vmatpush1.bf16.msra.mxu0 %v5046
    %5146 = vmatprep.subr.bf16.mxu0 0
    %5147 = vmatpush1.bf16.msra.mxu0 %v5047
    %5148 = vmatprep.subr.bf16.mxu0 0
    %5149 = vmatpush1.bf16.msra.mxu0 %v5048
    %5150 = vmatprep.subr.bf16.mxu0 0
    %5151 = vmatpush1.bf16.msra.mxu0 %v5049
    %5152 = vmatprep.subr.bf16.mxu0 0
    %5153 = vmatpush1.bf16.msra.mxu0 %v5050
    %5154 = vmatprep.subr.bf16.mxu0 0
    %5155 = vmatpush1.bf16.msra.mxu0 %v5051
    %5156 = vmatprep.subr.bf16.mxu0 0
    %5157 = vmatpush1.bf16.msra.mxu0 %v5052
    %5158 = vmatprep.subr.bf16.mxu0 0
    %5159 = vmatpush1.bf16.msra.mxu0 %v5053
    %5160 = vmatprep.subr.bf16.mxu0 0
    %5161 = vmatpush1.bf16.msra.mxu0 %v5054
    %5162 = vmatprep.subr.bf16.mxu0 0
    %5163 = vmatpush1.bf16.msra.mxu0 %v5055
    %5164 = vmatprep.subr.bf16.mxu0 0
    %5165 = vmatpush1.bf16.msra.mxu0 %v5056
    %5166 = vmatprep.subr.bf16.mxu0 0
    %5167 = vmatpush1.bf16.msra.mxu0 %v5057
    %5168 = vmatprep.subr.bf16.mxu0 0
    %5169 = vmatpush1.bf16.msra.mxu0 %v5058
    %5170 = vmatprep.subr.bf16.mxu0 0
    %5171 = vmatpush1.bf16.msra.mxu0 %v5059
    %5172 = vmatprep.subr.bf16.mxu0 0
    %5173 = vmatpush1.bf16.msra.mxu0 %v5060
    %5174 = vmatprep.mubr.bf16.mxu0 %v4851
    %5175 = vmatmul.mubr.bf16.gmra.mrb[0].mxu0 %v4850
    %v5176 = vpop.f32.mrb[0].mxu0
    %v5177 = vadd.f32 0.0, %v5176
    %v5178 = vpop.f32.mrb[0].mxu0
    %v5179 = vpop.f32.mrb[0].mxu0
    %v5180 = vpop.f32.mrb[0].mxu0
    %5181 = vdwg.mxu0
    %5182 = vmatprep.subr.bf16.mxu0 0
    %5183 = vmatpush1.bf16.msra.mxu0 %v5061
    %5184 = vmatprep.subr.bf16.mxu0 0
    %5185 = vmatpush1.bf16.msra.mxu0 %v5062
    %5186 = vmatprep.subr.bf16.mxu0 0
    %5187 = vmatpush1.bf16.msra.mxu0 %v5063
    %5188 = vmatprep.subr.bf16.mxu0 0
    %5189 = vmatpush1.bf16.msra.mxu0 %v5064
    %5190 = vmatprep.subr.bf16.mxu0 0
    %5191 = vmatpush1.bf16.msra.mxu0 %v5065
    %5192 = vmatprep.subr.bf16.mxu0 0
    %5193 = vmatpush1.bf16.msra.mxu0 %v5066
    %5194 = vmatprep.subr.bf16.mxu0 0
    %5195 = vmatpush1.bf16.msra.mxu0 %v5067
    %5196 = vmatprep.subr.bf16.mxu0 0
    %5197 = vmatpush1.bf16.msra.mxu0 %v5068
    %5198 = vmatprep.subr.bf16.mxu0 0
    %5199 = vmatpush1.bf16.msra.mxu0 %v5069
    %5200 = vmatprep.subr.bf16.mxu0 0
    %5201 = vmatpush1.bf16.msra.mxu0 %v5070
    %5202 = vmatprep.subr.bf16.mxu0 0
    %5203 = vmatpush1.bf16.msra.mxu0 %v5071
    %5204 = vmatprep.subr.bf16.mxu0 0
    %5205 = vmatpush1.bf16.msra.mxu0 %v5072
    %5206 = vmatprep.subr.bf16.mxu0 0
    %5207 = vmatpush1.bf16.msra.mxu0 %v5073
    %5208 = vmatprep.subr.bf16.mxu0 0
    %5209 = vmatpush1.bf16.msra.mxu0 %v5074
    %5210 = vmatprep.subr.bf16.mxu0 0
    %5211 = vmatpush1.bf16.msra.mxu0 %v5075
    %5212 = vmatprep.subr.bf16.mxu0 0
    %5213 = vmatpush1.bf16.msra.mxu0 %v5076
    %5214 = vmatprep.mubr.bf16.mxu0 %v4853
    %5215 = vmatmul.mubr.bf16.gmra.mrb[0].mxu0 %v4852
    %v5216 = vpop.f32.mrb[0].mxu0
    %v5217 = vadd.f32 %v5177, %v5216
    %v5218 = vpop.f32.mrb[0].mxu0
    %v5219 = vpop.f32.mrb[0].mxu0
    %v5220 = vpop.f32.mrb[0].mxu0
    %5221 = vdwg.mxu0
    %5222 = vmatprep.subr.bf16.mxu0 0
    %5223 = vmatpush1.bf16.msra.mxu0 %v5077
    %5224 = vmatprep.subr.bf16.mxu0 0
    %5225 = vmatpush1.bf16.msra.mxu0 %v5078
    %5226 = vmatprep.subr.bf16.mxu0 0
    %5227 = vmatpush1.bf16.msra.mxu0 %v5079
    %5228 = vmatprep.subr.bf16.mxu0 0
    %5229 = vmatpush1.bf16.msra.mxu0 %v5080
    %5230 = vmatprep.subr.bf16.mxu0 0
    %5231 = vmatpush1.bf16.msra.mxu0 %v5081
    %5232 = vmatprep.subr.bf16.mxu0 0
    %5233 = vmatpush1.bf16.msra.mxu0 %v5082
    %5234 = vmatprep.subr.bf16.mxu0 0
    %5235 = vmatpush1.bf16.msra.mxu0 %v5083
    %5236 = vmatprep.subr.bf16.mxu0 0
    %5237 = vmatpush1.bf16.msra.mxu0 %v5084
    %5238 = vmatprep.subr.bf16.mxu0 0
    %5239 = vmatpush1.bf16.msra.mxu0 %v5085
    %5240 = vmatprep.subr.bf16.mxu0 0
    %5241 = vmatpush1.bf16.msra.mxu0 %v5086
    %5242 = vmatprep.subr.bf16.mxu0 0
    %5243 = vmatpush1.bf16.msra.mxu0 %v5087
    %5244 = vmatprep.subr.bf16.mxu0 0
    %5245 = vmatpush1.bf16.msra.mxu0 %v5088
    %5246 = vmatprep.subr.bf16.mxu0 0
    %5247 = vmatpush1.bf16.msra.mxu0 %v5089
    %5248 = vmatprep.subr.bf16.mxu0 0
    %5249 = vmatpush1.bf16.msra.mxu0 %v5140
    %5250 = vmatprep.subr.bf16.mxu0 0
    %5251 = vmatpush1.bf16.msra.mxu0 0
    %5252 = vmatprep.subr.bf16.mxu0 0
    %5253 = vmatpush1.bf16.msra.mxu0 0
    %5254 = vmatprep.mubr.bf16.mxu0 %v5137
    %5255 = vmatmul.mubr.bf16.gmra.mrb[0].mxu0 %v4854
    %v5256 = vpop.f32.mrb[0].mxu0
    %v5257 = vadd.f32 %v5217, %v5256
    %v5258 = vpop.f32.mrb[0].mxu0
    %v5259 = vpop.f32.mrb[0].mxu0
    %v5260 = vpop.f32.mrb[0].mxu0
    %5261 = vdwg.mxu0
    %v5262 = vadd.f32 %v4756, %v5257
    %s5263 = scalar_lea.vmem [#allocation2], 2208
    %v5264 = vld [vmem:[%s5263] sm:$0xf]
    %v5265 = vld [vmem:[%s5263 + $0x4] sm:$0xf]
    %v5266 = vld [vmem:[%s5263 + $0x8] sm:$0xf]
    %v5267 = vld [vmem:[%s5263 + $0xc] sm:$0xf]
    %v5268 = vld [vmem:[%s5263 + $0x10] sm:$0xf]
    %v5269 = vld [vmem:[%s5263 + $0x14] sm:$0xf]
    %v5270 = vld [vmem:[%s5263 + $0x18] sm:$0xf]
    %v5271 = vld [vmem:[%s5263 + $0x1c] sm:$0xf]
    %v5272 = vld [vmem:[%s5263 + $0x20] sm:$0xf]
    %v5273 = vld [vmem:[%s5263 + $0x24] sm:$0xf]
    %v5274 = vld [vmem:[%s5263 + $0x28] sm:$0xf]
    %v5275 = vld [vmem:[%s5263 + $0x2c] sm:$0xf]
    %v5276 = vld [vmem:[%s5263 + $0x30] sm:$0xf]
    %v5277 = vld [vmem:[%s5263 + $0x34] sm:$0xf]
    %v5278 = vld [vmem:[%s5263 + $0x38] sm:$0xf]
    %v5279 = vld [vmem:[%s5263 + $0x3c] sm:$0xf]
    %v5280 = vld [vmem:[%s5263 + $0x40] sm:$0xf]
    %v5281 = vld [vmem:[%s5263 + $0x44] sm:$0xf]
    %v5282 = vld [vmem:[%s5263 + $0x48] sm:$0xf]
    %v5283 = vld [vmem:[%s5263 + $0x4c] sm:$0xf]
    %v5284 = vld [vmem:[%s5263 + $0x50] sm:$0xf]
    %v5285 = vld [vmem:[%s5263 + $0x54] sm:$0xf]
    %v5286 = vld [vmem:[%s5263 + $0x58] sm:$0xf]
    %v5287 = vld [vmem:[%s5263 + $0x5c] sm:$0xf]
    %v5288 = vld [vmem:[%s5263 + $0x60] sm:$0xf]
    %v5289 = vld [vmem:[%s5263 + $0x64] sm:$0xf]
    %v5290 = vld [vmem:[%s5263 + $0x68] sm:$0xf]
    %v5291 = vld [vmem:[%s5263 + $0x6c] sm:$0xf]
    %v5292 = vld [vmem:[%s5263 + $0x70] sm:$0xf]
    %v5293 = vld [vmem:[%s5263 + $0x74] sm:$0xf]
    %v5294 = vld [vmem:[%s5263 + $0x78] sm:$0xf]
    %v5295 = vld [vmem:[%s5263 + $0x7c] sm:$0xf]
    %v5296 = vld [vmem:[%s5263 + $0x80] sm:$0xf]
    %v5297 = vld [vmem:[%s5263 + $0x84] sm:$0xf]
    %v5298 = vld [vmem:[%s5263 + $0x88] sm:$0xf]
    %v5299 = vld [vmem:[%s5263 + $0x8c] sm:$0xf]
    %v5300 = vld [vmem:[%s5263 + $0x90] sm:$0xf]
    %v5301 = vld [vmem:[%s5263 + $0x94] sm:$0xf]
    %v5302 = vld [vmem:[%s5263 + $0x98] sm:$0xf]
    %v5303 = vld [vmem:[%s5263 + $0x9c] sm:$0xf]
    %v5304 = vld [vmem:[%s5263 + $0xa0] sm:$0xf]
    %v5305 = vld [vmem:[%s5263 + $0xa4] sm:$0xf]
    %v5306 = vld [vmem:[%s5263 + $0xa8] sm:$0xf]
    %v5307 = vld [vmem:[%s5263 + $0xac] sm:$0xf]
    %v5308 = vld [vmem:[%s5263 + $0xb0] sm:$0xf]
    %v5309 = vld [vmem:[%s5263 + $0xb4] sm:$0xf]
    %v5310 = vld [vmem:[%s5263 + $0xb8] sm:$0xf]
    %v5311 = vld [vmem:[%s5263 + $0xbc] sm:$0xf]
    %v5312 = vld [vmem:[%s5263 + $0xc0] sm:$0xf]
    %v5313 = vld [vmem:[%s5263 + $0xc4] sm:$0xf]
    %v5314 = vld [vmem:[%s5263 + $0xc8] sm:$0xf]
    %v5315 = vld [vmem:[%s5263 + $0xcc] sm:$0xf]
    %v5316 = vld [vmem:[%s5263 + $0xd0] sm:$0xf]
    %v5317 = vld [vmem:[%s5263 + $0xd4] sm:$0xf]
    %v5318 = vld [vmem:[%s5263 + $0xd8] sm:$0xf]
    %v5319 = vld [vmem:[%s5263 + $0xdc] sm:$0xf]
    %v5320 = vld [vmem:[%s5263 + $0xe0] sm:$0xf]
    %v5321 = vld [vmem:[%s5263 + $0xe4] sm:$0xf]
    %v5322 = vld [vmem:[%s5263 + $0xe8] sm:$0xf]
    %v5323 = vld [vmem:[%s5263 + $0xec] sm:$0xf]
    %v5324 = vld [vmem:[%s5263 + $0xf0] sm:$0xf]
    %v5325 = vld [vmem:[%s5263 + $0xf4] sm:$0xf]
    %v5326 = vld [vmem:[%s5263 + $0xf8] sm:$0xf]
    %v5327 = vld [vmem:[%s5263 + $0xfc] sm:$0xf]
    %v5328 = vld [vmem:[%s5263 + $0x100] sm:$0xf]
    %v5329 = vld [vmem:[%s5263 + $0x104] sm:$0xf]
    %v5330 = vld [vmem:[%s5263 + $0x108] sm:$0xf]
    %v5331 = vld [vmem:[%s5263 + $0x10c] sm:$0xf]
    %v5332 = vld [vmem:[%s5263 + $0x110] sm:$0xf]
    %v5333 = vld [vmem:[%s5263 + $0x114] sm:$0xf]
    %v5334 = vld [vmem:[%s5263 + $0x118] sm:$0xf]
    %v5335 = vld [vmem:[%s5263 + $0x11c] sm:$0xf]
    %v5336 = vld [vmem:[%s5263 + $0x120] sm:$0xf]
    %v5337 = vld [vmem:[%s5263 + $0x124] sm:$0xf]
    %v5338 = vld [vmem:[%s5263 + $0x128] sm:$0xf]
    %v5339 = vld [vmem:[%s5263 + $0x12c] sm:$0xf]
    %v5340 = vld [vmem:[%s5263 + $0x130] sm:$0xf]
    %v5341 = vld [vmem:[%s5263 + $0x134] sm:$0xf]
    %v5342 = vld [vmem:[%s5263 + $0x138] sm:$0xf]
    %v5343 = vld [vmem:[%s5263 + $0x13c] sm:$0xf]
    %v5344 = vld [vmem:[%s5263 + $0x140] sm:$0xf]
    %v5345 = vld [vmem:[%s5263 + $0x144] sm:$0xf]
    %v5346 = vld [vmem:[%s5263 + $0x148] sm:$0xf]
    %v5347 = vld [vmem:[%s5263 + $0x14c] sm:$0xf]
    %v5348 = vld [vmem:[%s5263 + $0x150] sm:$0xf]
    %v5349 = vld [vmem:[%s5263 + $0x154] sm:$0xf]
    %v5350 = vld [vmem:[%s5263 + $0x158] sm:$0xf]
    %v5351 = vld [vmem:[%s5263 + $0x15c] sm:$0xf]
    %v5352 = vld [vmem:[%s5263 + $0x160] sm:$0xf]
    %v5353 = vld [vmem:[%s5263 + $0x164] sm:$0xf]
    %v5354 = vld [vmem:[%s5263 + $0x168] sm:$0xf]
    %v5355 = vld [vmem:[%s5263 + $0x16c] sm:$0x3]
    %v5356 = vrot.slane %v2211, 3
    %v5357 = vrot.slane %v2212, 3
    %v5358 = vrot.slane %v2213, 3
    %v5359 = vrot.slane %v2214, 3
    %v5360 = vrot.slane %v2215, 3
    %v5361 = vrot.slane %v2216, 3
    %v5459 = vunpack.c.l.b16 %v5264
    %v5460 = vunpack.c.l.b16 %v5265
    %v5461 = vunpack.c.l.b16 %v5266
    %v5462 = vunpack.c.l.b16 %v5267
    %v5463 = vunpack.c.l.b16 %v5268
    %v5464 = vunpack.c.l.b16 %v5269
    %v5465 = vunpack.c.l.b16 %v5270
    %v5466 = vunpack.c.l.b16 %v5271
    %v5467 = vunpack.c.l.b16 %v5272
    %v5468 = vunpack.c.l.b16 %v5273
    %v5469 = vunpack.c.l.b16 %v5274
    %v5470 = vunpack.c.l.b16 %v5275
    %v5471 = vunpack.c.l.b16 %v5276
    %v5472 = vunpack.c.l.b16 %v5277
    %v5473 = vunpack.c.l.b16 %v5278
    %v5474 = vunpack.c.l.b16 %v5279
    %v5475 = vunpack.c.l.b16 %v5280
    %v5476 = vunpack.c.l.b16 %v5281
    %v5477 = vunpack.c.l.b16 %v5282
    %v5478 = vunpack.c.l.b16 %v5283
    %v5479 = vunpack.c.l.b16 %v5284
    %v5480 = vunpack.c.l.b16 %v5285
    %v5481 = vunpack.c.l.b16 %v5286
    %v5482 = vunpack.c.l.b16 %v5287
    %v5483 = vunpack.c.l.b16 %v5288
    %v5484 = vunpack.c.l.b16 %v5289
    %v5485 = vunpack.c.l.b16 %v5290
    %v5486 = vunpack.c.l.b16 %v5291
    %v5487 = vunpack.c.l.b16 %v5292
    %v5488 = vunpack.c.l.b16 %v5293
    %v5489 = vunpack.c.l.b16 %v5294
    %v5490 = vunpack.c.l.b16 %v5295
    %v5491 = vunpack.c.l.b16 %v5296
    %v5492 = vunpack.c.l.b16 %v5297
    %v5493 = vunpack.c.l.b16 %v5298
    %v5494 = vunpack.c.l.b16 %v5299
    %v5495 = vunpack.c.l.b16 %v5300
    %v5496 = vunpack.c.l.b16 %v5301
    %v5497 = vunpack.c.l.b16 %v5302
    %v5498 = vunpack.c.l.b16 %v5303
    %v5499 = vunpack.c.l.b16 %v5304
    %v5500 = vunpack.c.l.b16 %v5305
    %v5501 = vunpack.c.l.b16 %v5306
    %v5502 = vunpack.c.l.b16 %v5307
    %v5503 = vunpack.c.l.b16 %v5308
    %v5504 = vunpack.c.l.b16 %v5309
    %v5505 = vunpack.c.l.b16 %v5310
    %v5506 = vunpack.c.l.b16 %v5311
    %v5507 = vunpack.c.l.b16 %v5312
    %v5508 = vunpack.c.l.b16 %v5313
    %v5509 = vunpack.c.l.b16 %v5314
    %v5510 = vunpack.c.l.b16 %v5315
    %v5511 = vunpack.c.l.b16 %v5316
    %v5512 = vunpack.c.l.b16 %v5317
    %v5513 = vunpack.c.l.b16 %v5318
    %v5514 = vunpack.c.l.b16 %v5319
    %v5515 = vunpack.c.l.b16 %v5320
    %v5516 = vunpack.c.l.b16 %v5321
    %v5517 = vunpack.c.l.b16 %v5322
    %v5518 = vunpack.c.l.b16 %v5323
    %v5519 = vunpack.c.l.b16 %v5324
    %v5520 = vunpack.c.l.b16 %v5325
    %v5521 = vunpack.c.l.b16 %v5326
    %v5522 = vunpack.c.l.b16 %v5327
    %v5523 = vunpack.c.l.b16 %v5328
    %v5524 = vunpack.c.l.b16 %v5329
    %v5525 = vunpack.c.l.b16 %v5330
    %v5526 = vunpack.c.l.b16 %v5331
    %v5527 = vunpack.c.l.b16 %v5332
    %v5528 = vunpack.c.l.b16 %v5333
    %v5529 = vunpack.c.l.b16 %v5334
    %v5530 = vunpack.c.l.b16 %v5335
    %v5531 = vunpack.c.l.b16 %v5336
    %v5532 = vunpack.c.l.b16 %v5337
    %v5533 = vunpack.c.l.b16 %v5338
    %v5534 = vunpack.c.l.b16 %v5339
    %v5535 = vunpack.c.l.b16 %v5340
    %v5536 = vunpack.c.l.b16 %v5341
    %v5537 = vunpack.c.l.b16 %v5342
    %v5538 = vunpack.c.l.b16 %v5343
    %v5539 = vunpack.c.l.b16 %v5344
    %v5540 = vunpack.c.l.b16 %v5345
    %v5541 = vunpack.c.l.b16 %v5346
    %v5542 = vunpack.c.l.b16 %v5347
    %v5543 = vunpack.c.l.b16 %v5348
    %v5544 = vunpack.c.l.b16 %v5349
    %v5545 = vunpack.c.l.b16 %v5350
    %v5546 = vunpack.c.l.b16 %v5351
    %v5547 = vunpack.c.l.b16 %v5352
    %v5548 = vunpack.c.l.b16 %v5353
    %v5549 = vunpack.c.l.b16 %v5354
    %v5550 = vunpack.c.l.b16 %v5355
    %v5551 = vpack.c.b16 %v5460, %v5459
    %v5552 = vpack.c.b16 %v5462, %v5461
    %v5553 = vpack.c.b16 %v5464, %v5463
    %v5554 = vpack.c.b16 %v5466, %v5465
    %v5555 = vpack.c.b16 %v5468, %v5467
    %v5556 = vpack.c.b16 %v5470, %v5469
    %v5557 = vpack.c.b16 %v5472, %v5471
    %v5558 = vpack.c.b16 %v5474, %v5473
    %v5559 = vpack.c.b16 %v5476, %v5475
    %v5560 = vpack.c.b16 %v5478, %v5477
    %v5561 = vpack.c.b16 %v5480, %v5479
    %v5562 = vpack.c.b16 %v5482, %v5481
    %v5563 = vpack.c.b16 %v5484, %v5483
    %v5564 = vpack.c.b16 %v5486, %v5485
    %v5565 = vpack.c.b16 %v5488, %v5487
    %v5566 = vpack.c.b16 %v5490, %v5489
    %v5567 = vpack.c.b16 %v5492, %v5491
    %v5568 = vpack.c.b16 %v5494, %v5493
    %v5569 = vpack.c.b16 %v5496, %v5495
    %v5570 = vpack.c.b16 %v5498, %v5497
    %v5571 = vpack.c.b16 %v5500, %v5499
    %v5572 = vpack.c.b16 %v5502, %v5501
    %v5573 = vpack.c.b16 %v5504, %v5503
    %v5574 = vpack.c.b16 %v5506, %v5505
    %v5575 = vpack.c.b16 %v5508, %v5507
    %v5576 = vpack.c.b16 %v5510, %v5509
    %v5577 = vpack.c.b16 %v5512, %v5511
    %v5578 = vpack.c.b16 %v5514, %v5513
    %v5579 = vpack.c.b16 %v5516, %v5515
    %v5580 = vpack.c.b16 %v5518, %v5517
    %v5581 = vpack.c.b16 %v5520, %v5519
    %v5582 = vpack.c.b16 %v5522, %v5521
    %v5583 = vpack.c.b16 %v5524, %v5523
    %v5584 = vpack.c.b16 %v5526, %v5525
    %v5585 = vpack.c.b16 %v5528, %v5527
    %v5586 = vpack.c.b16 %v5530, %v5529
    %v5587 = vpack.c.b16 %v5532, %v5531
    %v5588 = vpack.c.b16 %v5534, %v5533
    %v5589 = vpack.c.b16 %v5536, %v5535
    %v5590 = vpack.c.b16 %v5538, %v5537
    %v5591 = vpack.c.b16 %v5540, %v5539
    %v5592 = vpack.c.b16 %v5542, %v5541
    %v5593 = vpack.c.b16 %v5544, %v5543
    %v5594 = vpack.c.b16 %v5546, %v5545
    %v5595 = vpack.c.b16 %v5548, %v5547
    %v5596 = vpack.c.b16 %v5550, %v5549
    %v5643 = vsel %vm2705, %v5361, 0
    %v5646 = vsel %vm2709, %v5596, 0
    %5648 = vmatprep.subr.bf16.mxu0 0
    %5649 = vmatpush1.bf16.msra.mxu0 %v5551
    %5650 = vmatprep.subr.bf16.mxu0 0
    %5651 = vmatpush1.bf16.msra.mxu0 %v5552
    %5652 = vmatprep.subr.bf16.mxu0 0
    %5653 = vmatpush1.bf16.msra.mxu0 %v5553
    %5654 = vmatprep.subr.bf16.mxu0 0
    %5655 = vmatpush1.bf16.msra.mxu0 %v5554
    %5656 = vmatprep.subr.bf16.mxu0 0
    %5657 = vmatpush1.bf16.msra.mxu0 %v5555
    %5658 = vmatprep.subr.bf16.mxu0 0
    %5659 = vmatpush1.bf16.msra.mxu0 %v5556
    %5660 = vmatprep.subr.bf16.mxu0 0
    %5661 = vmatpush1.bf16.msra.mxu0 %v5557
    %5662 = vmatprep.subr.bf16.mxu0 0
    %5663 = vmatpush1.bf16.msra.mxu0 %v5558
    %5664 = vmatprep.subr.bf16.mxu0 0
    %5665 = vmatpush1.bf16.msra.mxu0 %v5559
    %5666 = vmatprep.subr.bf16.mxu0 0
    %5667 = vmatpush1.bf16.msra.mxu0 %v5560
    %5668 = vmatprep.subr.bf16.mxu0 0
    %5669 = vmatpush1.bf16.msra.mxu0 %v5561
    %5670 = vmatprep.subr.bf16.mxu0 0
    %5671 = vmatpush1.bf16.msra.mxu0 %v5562
    %5672 = vmatprep.subr.bf16.mxu0 0
    %5673 = vmatpush1.bf16.msra.mxu0 %v5563
    %5674 = vmatprep.subr.bf16.mxu0 0
    %5675 = vmatpush1.bf16.msra.mxu0 %v5564
    %5676 = vmatprep.subr.bf16.mxu0 0
    %5677 = vmatpush1.bf16.msra.mxu0 %v5565
    %5678 = vmatprep.subr.bf16.mxu0 0
    %5679 = vmatpush1.bf16.msra.mxu0 %v5566
    %5680 = vmatprep.mubr.bf16.mxu0 %v5357
    %5681 = vmatmul.mubr.bf16.gmra.mrb[0].mxu0 %v5356
    %v5682 = vpop.f32.mrb[0].mxu0
    %v5683 = vadd.f32 0.0, %v5682
    %v5684 = vpop.f32.mrb[0].mxu0
    %v5685 = vpop.f32.mrb[0].mxu0
    %v5686 = vpop.f32.mrb[0].mxu0
    %5687 = vdwg.mxu0
    %5688 = vmatprep.subr.bf16.mxu0 0
    %5689 = vmatpush1.bf16.msra.mxu0 %v5567
    %5690 = vmatprep.subr.bf16.mxu0 0
    %5691 = vmatpush1.bf16.msra.mxu0 %v5568
    %5692 = vmatprep.subr.bf16.mxu0 0
    %5693 = vmatpush1.bf16.msra.mxu0 %v5569
    %5694 = vmatprep.subr.bf16.mxu0 0
    %5695 = vmatpush1.bf16.msra.mxu0 %v5570
    %5696 = vmatprep.subr.bf16.mxu0 0
    %5697 = vmatpush1.bf16.msra.mxu0 %v5571
    %5698 = vmatprep.subr.bf16.mxu0 0
    %5699 = vmatpush1.bf16.msra.mxu0 %v5572
    %5700 = vmatprep.subr.bf16.mxu0 0
    %5701 = vmatpush1.bf16.msra.mxu0 %v5573
    %5702 = vmatprep.subr.bf16.mxu0 0
    %5703 = vmatpush1.bf16.msra.mxu0 %v5574
    %5704 = vmatprep.subr.bf16.mxu0 0
    %5705 = vmatpush1.bf16.msra.mxu0 %v5575
    %5706 = vmatprep.subr.bf16.mxu0 0
    %5707 = vmatpush1.bf16.msra.mxu0 %v5576
    %5708 = vmatprep.subr.bf16.mxu0 0
    %5709 = vmatpush1.bf16.msra.mxu0 %v5577
    %5710 = vmatprep.subr.bf16.mxu0 0
    %5711 = vmatpush1.bf16.msra.mxu0 %v5578
    %5712 = vmatprep.subr.bf16.mxu0 0
    %5713 = vmatpush1.bf16.msra.mxu0 %v5579
    %5714 = vmatprep.subr.bf16.mxu0 0
    %5715 = vmatpush1.bf16.msra.mxu0 %v5580
    %5716 = vmatprep.subr.bf16.mxu0 0
    %5717 = vmatpush1.bf16.msra.mxu0 %v5581
    %5718 = vmatprep.subr.bf16.mxu0 0
    %5719 = vmatpush1.bf16.msra.mxu0 %v5582
    %5720 = vmatprep.mubr.bf16.mxu0 %v5359
    %5721 = vmatmul.mubr.bf16.gmra.mrb[0].mxu0 %v5358
    %v5722 = vpop.f32.mrb[0].mxu0
    %v5723 = vadd.f32 %v5683, %v5722
    %v5724 = vpop.f32.mrb[0].mxu0
    %v5725 = vpop.f32.mrb[0].mxu0
    %v5726 = vpop.f32.mrb[0].mxu0
    %5727 = vdwg.mxu0
    %5728 = vmatprep.subr.bf16.mxu0 0
    %5729 = vmatpush1.bf16.msra.mxu0 %v5583
    %5730 = vmatprep.subr.bf16.mxu0 0
    %5731 = vmatpush1.bf16.msra.mxu0 %v5584
    %5732 = vmatprep.subr.bf16.mxu0 0
    %5733 = vmatpush1.bf16.msra.mxu0 %v5585
    %5734 = vmatprep.subr.bf16.mxu0 0
    %5735 = vmatpush1.bf16.msra.mxu0 %v5586
    %5736 = vmatprep.subr.bf16.mxu0 0
    %5737 = vmatpush1.bf16.msra.mxu0 %v5587
    %5738 = vmatprep.subr.bf16.mxu0 0
    %5739 = vmatpush1.bf16.msra.mxu0 %v5588
    %5740 = vmatprep.subr.bf16.mxu0 0
    %5741 = vmatpush1.bf16.msra.mxu0 %v5589
    %5742 = vmatprep.subr.bf16.mxu0 0
    %5743 = vmatpush1.bf16.msra.mxu0 %v5590
    %5744 = vmatprep.subr.bf16.mxu0 0
    %5745 = vmatpush1.bf16.msra.mxu0 %v5591
    %5746 = vmatprep.subr.bf16.mxu0 0
    %5747 = vmatpush1.bf16.msra.mxu0 %v5592
    %5748 = vmatprep.subr.bf16.mxu0 0
    %5749 = vmatpush1.bf16.msra.mxu0 %v5593
    %5750 = vmatprep.subr.bf16.mxu0 0
    %5751 = vmatpush1.bf16.msra.mxu0 %v5594
    %5752 = vmatprep.subr.bf16.mxu0 0
    %5753 = vmatpush1.bf16.msra.mxu0 %v5595
    %5754 = vmatprep.subr.bf16.mxu0 0
    %5755 = vmatpush1.bf16.msra.mxu0 %v5646
    %5756 = vmatprep.subr.bf16.mxu0 0
    %5757 = vmatpush1.bf16.msra.mxu0 0
    %5758 = vmatprep.subr.bf16.mxu0 0
    %5759 = vmatpush1.bf16.msra.mxu0 0
    %5760 = vmatprep.mubr.bf16.mxu0 %v5643
    %5761 = vmatmul.mubr.bf16.gmra.mrb[0].mxu0 %v5360
    %v5762 = vpop.f32.mrb[0].mxu0
    %v5763 = vadd.f32 %v5723, %v5762
    %v5764 = vpop.f32.mrb[0].mxu0
    %v5765 = vpop.f32.mrb[0].mxu0
    %v5766 = vpop.f32.mrb[0].mxu0
    %5767 = vdwg.mxu0
    %v5768 = vadd.f32 %v5262, %v5763
    %s5769 = scalar_lea.vmem [#allocation2], 2576
    %v5770 = vld [vmem:[%s5769] sm:$0xf]
    %v5771 = vld [vmem:[%s5769 + $0x4] sm:$0xf]
    %v5772 = vld [vmem:[%s5769 + $0x8] sm:$0xf]
    %v5773 = vld [vmem:[%s5769 + $0xc] sm:$0xf]
    %v5774 = vld [vmem:[%s5769 + $0x10] sm:$0xf]
    %v5775 = vld [vmem:[%s5769 + $0x14] sm:$0xf]
    %v5776 = vld [vmem:[%s5769 + $0x18] sm:$0xf]
    %v5777 = vld [vmem:[%s5769 + $0x1c] sm:$0xf]
    %v5778 = vld [vmem:[%s5769 + $0x20] sm:$0xf]
    %v5779 = vld [vmem:[%s5769 + $0x24] sm:$0xf]
    %v5780 = vld [vmem:[%s5769 + $0x28] sm:$0xf]
    %v5781 = vld [vmem:[%s5769 + $0x2c] sm:$0xf]
    %v5782 = vld [vmem:[%s5769 + $0x30] sm:$0xf]
    %v5783 = vld [vmem:[%s5769 + $0x34] sm:$0xf]
    %v5784 = vld [vmem:[%s5769 + $0x38] sm:$0xf]
    %v5785 = vld [vmem:[%s5769 + $0x3c] sm:$0xf]
    %v5786 = vld [vmem:[%s5769 + $0x40] sm:$0xf]
    %v5787 = vld [vmem:[%s5769 + $0x44] sm:$0xf]
    %v5788 = vld [vmem:[%s5769 + $0x48] sm:$0xf]
    %v5789 = vld [vmem:[%s5769 + $0x4c] sm:$0xf]
    %v5790 = vld [vmem:[%s5769 + $0x50] sm:$0xf]
    %v5791 = vld [vmem:[%s5769 + $0x54] sm:$0xf]
    %v5792 = vld [vmem:[%s5769 + $0x58] sm:$0xf]
    %v5793 = vld [vmem:[%s5769 + $0x5c] sm:$0xf]
    %v5794 = vld [vmem:[%s5769 + $0x60] sm:$0xf]
    %v5795 = vld [vmem:[%s5769 + $0x64] sm:$0xf]
    %v5796 = vld [vmem:[%s5769 + $0x68] sm:$0xf]
    %v5797 = vld [vmem:[%s5769 + $0x6c] sm:$0xf]
    %v5798 = vld [vmem:[%s5769 + $0x70] sm:$0xf]
    %v5799 = vld [vmem:[%s5769 + $0x74] sm:$0xf]
    %v5800 = vld [vmem:[%s5769 + $0x78] sm:$0xf]
    %v5801 = vld [vmem:[%s5769 + $0x7c] sm:$0xf]
    %v5802 = vld [vmem:[%s5769 + $0x80] sm:$0xf]
    %v5803 = vld [vmem:[%s5769 + $0x84] sm:$0xf]
    %v5804 = vld [vmem:[%s5769 + $0x88] sm:$0xf]
    %v5805 = vld [vmem:[%s5769 + $0x8c] sm:$0xf]
    %v5806 = vld [vmem:[%s5769 + $0x90] sm:$0xf]
    %v5807 = vld [vmem:[%s5769 + $0x94] sm:$0xf]
    %v5808 = vld [vmem:[%s5769 + $0x98] sm:$0xf]
    %v5809 = vld [vmem:[%s5769 + $0x9c] sm:$0xf]
    %v5810 = vld [vmem:[%s5769 + $0xa0] sm:$0xf]
    %v5811 = vld [vmem:[%s5769 + $0xa4] sm:$0xf]
    %v5812 = vld [vmem:[%s5769 + $0xa8] sm:$0xf]
    %v5813 = vld [vmem:[%s5769 + $0xac] sm:$0xf]
    %v5814 = vld [vmem:[%s5769 + $0xb0] sm:$0xf]
    %v5815 = vld [vmem:[%s5769 + $0xb4] sm:$0xf]
    %v5816 = vld [vmem:[%s5769 + $0xb8] sm:$0xf]
    %v5817 = vld [vmem:[%s5769 + $0xbc] sm:$0xf]
    %v5818 = vld [vmem:[%s5769 + $0xc0] sm:$0xf]
    %v5819 = vld [vmem:[%s5769 + $0xc4] sm:$0xf]
    %v5820 = vld [vmem:[%s5769 + $0xc8] sm:$0xf]
    %v5821 = vld [vmem:[%s5769 + $0xcc] sm:$0xf]
    %v5822 = vld [vmem:[%s5769 + $0xd0] sm:$0xf]
    %v5823 = vld [vmem:[%s5769 + $0xd4] sm:$0xf]
    %v5824 = vld [vmem:[%s5769 + $0xd8] sm:$0xf]
    %v5825 = vld [vmem:[%s5769 + $0xdc] sm:$0xf]
    %v5826 = vld [vmem:[%s5769 + $0xe0] sm:$0xf]
    %v5827 = vld [vmem:[%s5769 + $0xe4] sm:$0xf]
    %v5828 = vld [vmem:[%s5769 + $0xe8] sm:$0xf]
    %v5829 = vld [vmem:[%s5769 + $0xec] sm:$0xf]
    %v5830 = vld [vmem:[%s5769 + $0xf0] sm:$0xf]
    %v5831 = vld [vmem:[%s5769 + $0xf4] sm:$0xf]
    %v5832 = vld [vmem:[%s5769 + $0xf8] sm:$0xf]
    %v5833 = vld [vmem:[%s5769 + $0xfc] sm:$0xf]
    %v5834 = vld [vmem:[%s5769 + $0x100] sm:$0xf]
    %v5835 = vld [vmem:[%s5769 + $0x104] sm:$0xf]
    %v5836 = vld [vmem:[%s5769 + $0x108] sm:$0xf]
    %v5837 = vld [vmem:[%s5769 + $0x10c] sm:$0xf]
    %v5838 = vld [vmem:[%s5769 + $0x110] sm:$0xf]
    %v5839 = vld [vmem:[%s5769 + $0x114] sm:$0xf]
    %v5840 = vld [vmem:[%s5769 + $0x118] sm:$0xf]
    %v5841 = vld [vmem:[%s5769 + $0x11c] sm:$0xf]
    %v5842 = vld [vmem:[%s5769 + $0x120] sm:$0xf]
    %v5843 = vld [vmem:[%s5769 + $0x124] sm:$0xf]
    %v5844 = vld [vmem:[%s5769 + $0x128] sm:$0xf]
    %v5845 = vld [vmem:[%s5769 + $0x12c] sm:$0xf]
    %v5846 = vld [vmem:[%s5769 + $0x130] sm:$0xf]
    %v5847 = vld [vmem:[%s5769 + $0x134] sm:$0xf]
    %v5848 = vld [vmem:[%s5769 + $0x138] sm:$0xf]
    %v5849 = vld [vmem:[%s5769 + $0x13c] sm:$0xf]
    %v5850 = vld [vmem:[%s5769 + $0x140] sm:$0xf]
    %v5851 = vld [vmem:[%s5769 + $0x144] sm:$0xf]
    %v5852 = vld [vmem:[%s5769 + $0x148] sm:$0xf]
    %v5853 = vld [vmem:[%s5769 + $0x14c] sm:$0xf]
    %v5854 = vld [vmem:[%s5769 + $0x150] sm:$0xf]
    %v5855 = vld [vmem:[%s5769 + $0x154] sm:$0xf]
    %v5856 = vld [vmem:[%s5769 + $0x158] sm:$0xf]
    %v5857 = vld [vmem:[%s5769 + $0x15c] sm:$0xf]
    %v5858 = vld [vmem:[%s5769 + $0x160] sm:$0xf]
    %v5859 = vld [vmem:[%s5769 + $0x164] sm:$0xf]
    %v5860 = vld [vmem:[%s5769 + $0x168] sm:$0xf]
    %v5861 = vld [vmem:[%s5769 + $0x16c] sm:$0x3]
    %v5862 = vrot.slane %v2408, 3
    %v5863 = vrot.slane %v2411, 3
    %v5864 = vrot.slane %v2414, 3
    %v5865 = vrot.slane %v2417, 3
    %v5866 = vrot.slane %v2420, 3
    %v5867 = vrot.slane %v2423, 3
    %v5965 = vunpack.c.l.b16 %v5770
    %v5966 = vunpack.c.l.b16 %v5771
    %v5967 = vunpack.c.l.b16 %v5772
    %v5968 = vunpack.c.l.b16 %v5773
    %v5969 = vunpack.c.l.b16 %v5774
    %v5970 = vunpack.c.l.b16 %v5775
    %v5971 = vunpack.c.l.b16 %v5776
    %v5972 = vunpack.c.l.b16 %v5777
    %v5973 = vunpack.c.l.b16 %v5778
    %v5974 = vunpack.c.l.b16 %v5779
    %v5975 = vunpack.c.l.b16 %v5780
    %v5976 = vunpack.c.l.b16 %v5781
    %v5977 = vunpack.c.l.b16 %v5782
    %v5978 = vunpack.c.l.b16 %v5783
    %v5979 = vunpack.c.l.b16 %v5784
    %v5980 = vunpack.c.l.b16 %v5785
    %v5981 = vunpack.c.l.b16 %v5786
    %v5982 = vunpack.c.l.b16 %v5787
    %v5983 = vunpack.c.l.b16 %v5788
    %v5984 = vunpack.c.l.b16 %v5789
    %v5985 = vunpack.c.l.b16 %v5790
    %v5986 = vunpack.c.l.b16 %v5791
    %v5987 = vunpack.c.l.b16 %v5792
    %v5988 = vunpack.c.l.b16 %v5793
    %v5989 = vunpack.c.l.b16 %v5794
    %v5990 = vunpack.c.l.b16 %v5795
    %v5991 = vunpack.c.l.b16 %v5796
    %v5992 = vunpack.c.l.b16 %v5797
    %v5993 = vunpack.c.l.b16 %v5798
    %v5994 = vunpack.c.l.b16 %v5799
    %v5995 = vunpack.c.l.b16 %v5800
    %v5996 = vunpack.c.l.b16 %v5801
    %v5997 = vunpack.c.l.b16 %v5802
    %v5998 = vunpack.c.l.b16 %v5803
    %v5999 = vunpack.c.l.b16 %v5804
    %v6000 = vunpack.c.l.b16 %v5805
    %v6001 = vunpack.c.l.b16 %v5806
    %v6002 = vunpack.c.l.b16 %v5807
    %v6003 = vunpack.c.l.b16 %v5808
    %v6004 = vunpack.c.l.b16 %v5809
    %v6005 = vunpack.c.l.b16 %v5810
    %v6006 = vunpack.c.l.b16 %v5811
    %v6007 = vunpack.c.l.b16 %v5812
    %v6008 = vunpack.c.l.b16 %v5813
    %v6009 = vunpack.c.l.b16 %v5814
    %v6010 = vunpack.c.l.b16 %v5815
    %v6011 = vunpack.c.l.b16 %v5816
    %v6012 = vunpack.c.l.b16 %v5817
    %v6013 = vunpack.c.l.b16 %v5818
    %v6014 = vunpack.c.l.b16 %v5819
    %v6015 = vunpack.c.l.b16 %v5820
    %v6016 = vunpack.c.l.b16 %v5821
    %v6017 = vunpack.c.l.b16 %v5822
    %v6018 = vunpack.c.l.b16 %v5823
    %v6019 = vunpack.c.l.b16 %v5824
    %v6020 = vunpack.c.l.b16 %v5825
    %v6021 = vunpack.c.l.b16 %v5826
    %v6022 = vunpack.c.l.b16 %v5827
    %v6023 = vunpack.c.l.b16 %v5828
    %v6024 = vunpack.c.l.b16 %v5829
    %v6025 = vunpack.c.l.b16 %v5830
    %v6026 = vunpack.c.l.b16 %v5831
    %v6027 = vunpack.c.l.b16 %v5832
    %v6028 = vunpack.c.l.b16 %v5833
    %v6029 = vunpack.c.l.b16 %v5834
    %v6030 = vunpack.c.l.b16 %v5835
    %v6031 = vunpack.c.l.b16 %v5836
    %v6032 = vunpack.c.l.b16 %v5837
    %v6033 = vunpack.c.l.b16 %v5838
    %v6034 = vunpack.c.l.b16 %v5839
    %v6035 = vunpack.c.l.b16 %v5840
    %v6036 = vunpack.c.l.b16 %v5841
    %v6037 = vunpack.c.l.b16 %v5842
    %v6038 = vunpack.c.l.b16 %v5843
    %v6039 = vunpack.c.l.b16 %v5844
    %v6040 = vunpack.c.l.b16 %v5845
    %v6041 = vunpack.c.l.b16 %v5846
    %v6042 = vunpack.c.l.b16 %v5847
    %v6043 = vunpack.c.l.b16 %v5848
    %v6044 = vunpack.c.l.b16 %v5849
    %v6045 = vunpack.c.l.b16 %v5850
    %v6046 = vunpack.c.l.b16 %v5851
    %v6047 = vunpack.c.l.b16 %v5852
    %v6048 = vunpack.c.l.b16 %v5853
    %v6049 = vunpack.c.l.b16 %v5854
    %v6050 = vunpack.c.l.b16 %v5855
    %v6051 = vunpack.c.l.b16 %v5856
    %v6052 = vunpack.c.l.b16 %v5857
    %v6053 = vunpack.c.l.b16 %v5858
    %v6054 = vunpack.c.l.b16 %v5859
    %v6055 = vunpack.c.l.b16 %v5860
    %v6056 = vunpack.c.l.b16 %v5861
    %v6057 = vpack.c.b16 %v5966, %v5965
    %v6058 = vpack.c.b16 %v5968, %v5967
    %v6059 = vpack.c.b16 %v5970, %v5969
    %v6060 = vpack.c.b16 %v5972, %v5971
    %v6061 = vpack.c.b16 %v5974, %v5973
    %v6062 = vpack.c.b16 %v5976, %v5975
    %v6063 = vpack.c.b16 %v5978, %v5977
    %v6064 = vpack.c.b16 %v5980, %v5979
    %v6065 = vpack.c.b16 %v5982, %v5981
    %v6066 = vpack.c.b16 %v5984, %v5983
    %v6067 = vpack.c.b16 %v5986, %v5985
    %v6068 = vpack.c.b16 %v5988, %v5987
    %v6069 = vpack.c.b16 %v5990, %v5989
    %v6070 = vpack.c.b16 %v5992, %v5991
    %v6071 = vpack.c.b16 %v5994, %v5993
    %v6072 = vpack.c.b16 %v5996, %v5995
    %v6073 = vpack.c.b16 %v5998, %v5997
    %v6074 = vpack.c.b16 %v6000, %v5999
    %v6075 = vpack.c.b16 %v6002, %v6001
    %v6076 = vpack.c.b16 %v6004, %v6003
    %v6077 = vpack.c.b16 %v6006, %v6005
    %v6078 = vpack.c.b16 %v6008, %v6007
    %v6079 = vpack.c.b16 %v6010, %v6009
    %v6080 = vpack.c.b16 %v6012, %v6011
    %v6081 = vpack.c.b16 %v6014, %v6013
    %v6082 = vpack.c.b16 %v6016, %v6015
    %v6083 = vpack.c.b16 %v6018, %v6017
    %v6084 = vpack.c.b16 %v6020, %v6019
    %v6085 = vpack.c.b16 %v6022, %v6021
    %v6086 = vpack.c.b16 %v6024, %v6023
    %v6087 = vpack.c.b16 %v6026, %v6025
    %v6088 = vpack.c.b16 %v6028, %v6027
    %v6089 = vpack.c.b16 %v6030, %v6029
    %v6090 = vpack.c.b16 %v6032, %v6031
    %v6091 = vpack.c.b16 %v6034, %v6033
    %v6092 = vpack.c.b16 %v6036, %v6035
    %v6093 = vpack.c.b16 %v6038, %v6037
    %v6094 = vpack.c.b16 %v6040, %v6039
    %v6095 = vpack.c.b16 %v6042, %v6041
    %v6096 = vpack.c.b16 %v6044, %v6043
    %v6097 = vpack.c.b16 %v6046, %v6045
    %v6098 = vpack.c.b16 %v6048, %v6047
    %v6099 = vpack.c.b16 %v6050, %v6049
    %v6100 = vpack.c.b16 %v6052, %v6051
    %v6101 = vpack.c.b16 %v6054, %v6053
    %v6102 = vpack.c.b16 %v6056, %v6055
    %v6149 = vsel %vm2705, %v5867, 0
    %v6152 = vsel %vm2709, %v6102, 0
    %6154 = vmatprep.subr.bf16.mxu0 0
    %6155 = vmatpush1.bf16.msra.mxu0 %v6057
    %6156 = vmatprep.subr.bf16.mxu0 0
    %6157 = vmatpush1.bf16.msra.mxu0 %v6058
    %6158 = vmatprep.subr.bf16.mxu0 0
    %6159 = vmatpush1.bf16.msra.mxu0 %v6059
    %6160 = vmatprep.subr.bf16.mxu0 0
    %6161 = vmatpush1.bf16.msra.mxu0 %v6060
    %6162 = vmatprep.subr.bf16.mxu0 0
    %6163 = vmatpush1.bf16.msra.mxu0 %v6061
    %6164 = vmatprep.subr.bf16.mxu0 0
    %6165 = vmatpush1.bf16.msra.mxu0 %v6062
    %6166 = vmatprep.subr.bf16.mxu0 0
    %6167 = vmatpush1.bf16.msra.mxu0 %v6063
    %6168 = vmatprep.subr.bf16.mxu0 0
    %6169 = vmatpush1.bf16.msra.mxu0 %v6064
    %6170 = vmatprep.subr.bf16.mxu0 0
    %6171 = vmatpush1.bf16.msra.mxu0 %v6065
    %6172 = vmatprep.subr.bf16.mxu0 0
    %6173 = vmatpush1.bf16.msra.mxu0 %v6066
    %6174 = vmatprep.subr.bf16.mxu0 0
    %6175 = vmatpush1.bf16.msra.mxu0 %v6067
    %6176 = vmatprep.subr.bf16.mxu0 0
    %6177 = vmatpush1.bf16.msra.mxu0 %v6068
    %6178 = vmatprep.subr.bf16.mxu0 0
    %6179 = vmatpush1.bf16.msra.mxu0 %v6069
    %6180 = vmatprep.subr.bf16.mxu0 0
    %6181 = vmatpush1.bf16.msra.mxu0 %v6070
    %6182 = vmatprep.subr.bf16.mxu0 0
    %6183 = vmatpush1.bf16.msra.mxu0 %v6071
    %6184 = vmatprep.subr.bf16.mxu0 0
    %6185 = vmatpush1.bf16.msra.mxu0 %v6072
    %6186 = vmatprep.mubr.bf16.mxu0 %v5863
    %6187 = vmatmul.mubr.bf16.gmra.mrb[0].mxu0 %v5862
    %v6188 = vpop.f32.mrb[0].mxu0
    %v6189 = vadd.f32 0.0, %v6188
    %v6190 = vpop.f32.mrb[0].mxu0
    %v6191 = vpop.f32.mrb[0].mxu0
    %v6192 = vpop.f32.mrb[0].mxu0
    %6193 = vdwg.mxu0
    %6194 = vmatprep.subr.bf16.mxu0 0
    %6195 = vmatpush1.bf16.msra.mxu0 %v6073
    %6196 = vmatprep.subr.bf16.mxu0 0
    %6197 = vmatpush1.bf16.msra.mxu0 %v6074
    %6198 = vmatprep.subr.bf16.mxu0 0
    %6199 = vmatpush1.bf16.msra.mxu0 %v6075
    %6200 = vmatprep.subr.bf16.mxu0 0
    %6201 = vmatpush1.bf16.msra.mxu0 %v6076
    %6202 = vmatprep.subr.bf16.mxu0 0
    %6203 = vmatpush1.bf16.msra.mxu0 %v6077
    %6204 = vmatprep.subr.bf16.mxu0 0
    %6205 = vmatpush1.bf16.msra.mxu0 %v6078
    %6206 = vmatprep.subr.bf16.mxu0 0
    %6207 = vmatpush1.bf16.msra.mxu0 %v6079
    %6208 = vmatprep.subr.bf16.mxu0 0
    %6209 = vmatpush1.bf16.msra.mxu0 %v6080
    %6210 = vmatprep.subr.bf16.mxu0 0
    %6211 = vmatpush1.bf16.msra.mxu0 %v6081
    %6212 = vmatprep.subr.bf16.mxu0 0
    %6213 = vmatpush1.bf16.msra.mxu0 %v6082
    %6214 = vmatprep.subr.bf16.mxu0 0
    %6215 = vmatpush1.bf16.msra.mxu0 %v6083
    %6216 = vmatprep.subr.bf16.mxu0 0
    %6217 = vmatpush1.bf16.msra.mxu0 %v6084
    %6218 = vmatprep.subr.bf16.mxu0 0
    %6219 = vmatpush1.bf16.msra.mxu0 %v6085
    %6220 = vmatprep.subr.bf16.mxu0 0
    %6221 = vmatpush1.bf16.msra.mxu0 %v6086
    %6222 = vmatprep.subr.bf16.mxu0 0
    %6223 = vmatpush1.bf16.msra.mxu0 %v6087
    %6224 = vmatprep.subr.bf16.mxu0 0
    %6225 = vmatpush1.bf16.msra.mxu0 %v6088
    %6226 = vmatprep.mubr.bf16.mxu0 %v5865
    %6227 = vmatmul.mubr.bf16.gmra.mrb[0].mxu0 %v5864
    %v6228 = vpop.f32.mrb[0].mxu0
    %v6229 = vadd.f32 %v6189, %v6228
    %v6230 = vpop.f32.mrb[0].mxu0
    %v6231 = vpop.f32.mrb[0].mxu0
    %v6232 = vpop.f32.mrb[0].mxu0
    %6233 = vdwg.mxu0
    %6234 = vmatprep.subr.bf16.mxu0 0
    %6235 = vmatpush1.bf16.msra.mxu0 %v6089
    %6236 = vmatprep.subr.bf16.mxu0 0
    %6237 = vmatpush1.bf16.msra.mxu0 %v6090
    %6238 = vmatprep.subr.bf16.mxu0 0
    %6239 = vmatpush1.bf16.msra.mxu0 %v6091
    %6240 = vmatprep.subr.bf16.mxu0 0
    %6241 = vmatpush1.bf16.msra.mxu0 %v6092
    %6242 = vmatprep.subr.bf16.mxu0 0
    %6243 = vmatpush1.bf16.msra.mxu0 %v6093
    %6244 = vmatprep.subr.bf16.mxu0 0
    %6245 = vmatpush1.bf16.msra.mxu0 %v6094
    %6246 = vmatprep.subr.bf16.mxu0 0
    %6247 = vmatpush1.bf16.msra.mxu0 %v6095
    %6248 = vmatprep.subr.bf16.mxu0 0
    %6249 = vmatpush1.bf16.msra.mxu0 %v6096
    %6250 = vmatprep.subr.bf16.mxu0 0
    %6251 = vmatpush1.bf16.msra.mxu0 %v6097
    %6252 = vmatprep.subr.bf16.mxu0 0
    %6253 = vmatpush1.bf16.msra.mxu0 %v6098
    %6254 = vmatprep.subr.bf16.mxu0 0
    %6255 = vmatpush1.bf16.msra.mxu0 %v6099
    %6256 = vmatprep.subr.bf16.mxu0 0
    %6257 = vmatpush1.bf16.msra.mxu0 %v6100
    %6258 = vmatprep.subr.bf16.mxu0 0
    %6259 = vmatpush1.bf16.msra.mxu0 %v6101
    %6260 = vmatprep.subr.bf16.mxu0 0
    %6261 = vmatpush1.bf16.msra.mxu0 %v6152
    %6262 = vmatprep.subr.bf16.mxu0 0
    %6263 = vmatpush1.bf16.msra.mxu0 0
    %6264 = vmatprep.subr.bf16.mxu0 0
    %6265 = vmatpush1.bf16.msra.mxu0 0
    %6266 = vmatprep.mubr.bf16.mxu0 %v6149
    %6267 = vmatmul.mubr.bf16.gmra.mrb[0].mxu0 %v5866
    %v6268 = vpop.f32.mrb[0].mxu0
    %v6269 = vadd.f32 %v6229, %v6268
    %v6270 = vpop.f32.mrb[0].mxu0
    %v6271 = vpop.f32.mrb[0].mxu0
    %v6272 = vpop.f32.mrb[0].mxu0
    %6273 = vdwg.mxu0
    %v6274 = vadd.f32 %v5768, %v6269
    %s6275 = scalar_lea.vmem [#allocation2], 2944
    %v6276 = vld [vmem:[%s6275] sm:$0xf]
    %v6277 = vld [vmem:[%s6275 + $0x4] sm:$0xf]
    %v6278 = vld [vmem:[%s6275 + $0x8] sm:$0xf]
    %v6279 = vld [vmem:[%s6275 + $0xc] sm:$0xf]
    %v6280 = vld [vmem:[%s6275 + $0x10] sm:$0xf]
    %v6281 = vld [vmem:[%s6275 + $0x14] sm:$0xf]
    %v6282 = vld [vmem:[%s6275 + $0x18] sm:$0xf]
    %v6283 = vld [vmem:[%s6275 + $0x1c] sm:$0xf]
    %v6284 = vld [vmem:[%s6275 + $0x20] sm:$0xf]
    %v6285 = vld [vmem:[%s6275 + $0x24] sm:$0xf]
    %v6286 = vld [vmem:[%s6275 + $0x28] sm:$0xf]
    %v6287 = vld [vmem:[%s6275 + $0x2c] sm:$0xf]
    %v6288 = vld [vmem:[%s6275 + $0x30] sm:$0xf]
    %v6289 = vld [vmem:[%s6275 + $0x34] sm:$0xf]
    %v6290 = vld [vmem:[%s6275 + $0x38] sm:$0xf]
    %v6291 = vld [vmem:[%s6275 + $0x3c] sm:$0xf]
    %v6292 = vld [vmem:[%s6275 + $0x40] sm:$0xf]
    %v6293 = vld [vmem:[%s6275 + $0x44] sm:$0xf]
    %v6294 = vld [vmem:[%s6275 + $0x48] sm:$0xf]
    %v6295 = vld [vmem:[%s6275 + $0x4c] sm:$0xf]
    %v6296 = vld [vmem:[%s6275 + $0x50] sm:$0xf]
    %v6297 = vld [vmem:[%s6275 + $0x54] sm:$0xf]
    %v6298 = vld [vmem:[%s6275 + $0x58] sm:$0xf]
    %v6299 = vld [vmem:[%s6275 + $0x5c] sm:$0xf]
    %v6300 = vld [vmem:[%s6275 + $0x60] sm:$0xf]
    %v6301 = vld [vmem:[%s6275 + $0x64] sm:$0xf]
    %v6302 = vld [vmem:[%s6275 + $0x68] sm:$0xf]
    %v6303 = vld [vmem:[%s6275 + $0x6c] sm:$0xf]
    %v6304 = vld [vmem:[%s6275 + $0x70] sm:$0xf]
    %v6305 = vld [vmem:[%s6275 + $0x74] sm:$0xf]
    %v6306 = vld [vmem:[%s6275 + $0x78] sm:$0xf]
    %v6307 = vld [vmem:[%s6275 + $0x7c] sm:$0xf]
    %v6308 = vld [vmem:[%s6275 + $0x80] sm:$0xf]
    %v6309 = vld [vmem:[%s6275 + $0x84] sm:$0xf]
    %v6310 = vld [vmem:[%s6275 + $0x88] sm:$0xf]
    %v6311 = vld [vmem:[%s6275 + $0x8c] sm:$0xf]
    %v6312 = vld [vmem:[%s6275 + $0x90] sm:$0xf]
    %v6313 = vld [vmem:[%s6275 + $0x94] sm:$0xf]
    %v6314 = vld [vmem:[%s6275 + $0x98] sm:$0xf]
    %v6315 = vld [vmem:[%s6275 + $0x9c] sm:$0xf]
    %v6316 = vld [vmem:[%s6275 + $0xa0] sm:$0xf]
    %v6317 = vld [vmem:[%s6275 + $0xa4] sm:$0xf]
    %v6318 = vld [vmem:[%s6275 + $0xa8] sm:$0xf]
    %v6319 = vld [vmem:[%s6275 + $0xac] sm:$0xf]
    %v6320 = vld [vmem:[%s6275 + $0xb0] sm:$0xf]
    %v6321 = vld [vmem:[%s6275 + $0xb4] sm:$0xf]
    %v6322 = vld [vmem:[%s6275 + $0xb8] sm:$0xf]
    %v6323 = vld [vmem:[%s6275 + $0xbc] sm:$0xf]
    %v6324 = vld [vmem:[%s6275 + $0xc0] sm:$0xf]
    %v6325 = vld [vmem:[%s6275 + $0xc4] sm:$0xf]
    %v6326 = vld [vmem:[%s6275 + $0xc8] sm:$0xf]
    %v6327 = vld [vmem:[%s6275 + $0xcc] sm:$0xf]
    %v6328 = vld [vmem:[%s6275 + $0xd0] sm:$0xf]
    %v6329 = vld [vmem:[%s6275 + $0xd4] sm:$0xf]
    %v6330 = vld [vmem:[%s6275 + $0xd8] sm:$0xf]
    %v6331 = vld [vmem:[%s6275 + $0xdc] sm:$0xf]
    %v6332 = vld [vmem:[%s6275 + $0xe0] sm:$0xf]
    %v6333 = vld [vmem:[%s6275 + $0xe4] sm:$0xf]
    %v6334 = vld [vmem:[%s6275 + $0xe8] sm:$0xf]
    %v6335 = vld [vmem:[%s6275 + $0xec] sm:$0xf]
    %v6336 = vld [vmem:[%s6275 + $0xf0] sm:$0xf]
    %v6337 = vld [vmem:[%s6275 + $0xf4] sm:$0xf]
    %v6338 = vld [vmem:[%s6275 + $0xf8] sm:$0xf]
    %v6339 = vld [vmem:[%s6275 + $0xfc] sm:$0xf]
    %v6340 = vld [vmem:[%s6275 + $0x100] sm:$0xf]
    %v6341 = vld [vmem:[%s6275 + $0x104] sm:$0xf]
    %v6342 = vld [vmem:[%s6275 + $0x108] sm:$0xf]
    %v6343 = vld [vmem:[%s6275 + $0x10c] sm:$0xf]
    %v6344 = vld [vmem:[%s6275 + $0x110] sm:$0xf]
    %v6345 = vld [vmem:[%s6275 + $0x114] sm:$0xf]
    %v6346 = vld [vmem:[%s6275 + $0x118] sm:$0xf]
    %v6347 = vld [vmem:[%s6275 + $0x11c] sm:$0xf]
    %v6348 = vld [vmem:[%s6275 + $0x120] sm:$0xf]
    %v6349 = vld [vmem:[%s6275 + $0x124] sm:$0xf]
    %v6350 = vld [vmem:[%s6275 + $0x128] sm:$0xf]
    %v6351 = vld [vmem:[%s6275 + $0x12c] sm:$0xf]
    %v6352 = vld [vmem:[%s6275 + $0x130] sm:$0xf]
    %v6353 = vld [vmem:[%s6275 + $0x134] sm:$0xf]
    %v6354 = vld [vmem:[%s6275 + $0x138] sm:$0xf]
    %v6355 = vld [vmem:[%s6275 + $0x13c] sm:$0xf]
    %v6356 = vld [vmem:[%s6275 + $0x140] sm:$0xf]
    %v6357 = vld [vmem:[%s6275 + $0x144] sm:$0xf]
    %v6358 = vld [vmem:[%s6275 + $0x148] sm:$0xf]
    %v6359 = vld [vmem:[%s6275 + $0x14c] sm:$0xf]
    %v6360 = vld [vmem:[%s6275 + $0x150] sm:$0xf]
    %v6361 = vld [vmem:[%s6275 + $0x154] sm:$0xf]
    %v6362 = vld [vmem:[%s6275 + $0x158] sm:$0xf]
    %v6363 = vld [vmem:[%s6275 + $0x15c] sm:$0xf]
    %v6364 = vld [vmem:[%s6275 + $0x160] sm:$0xf]
    %v6365 = vld [vmem:[%s6275 + $0x164] sm:$0xf]
    %v6366 = vld [vmem:[%s6275 + $0x168] sm:$0xf]
    %v6367 = vld [vmem:[%s6275 + $0x16c] sm:$0x3]
    %v6368 = vrot.slane %v2211, 4
    %v6369 = vrot.slane %v2212, 4
    %v6370 = vrot.slane %v2213, 4
    %v6371 = vrot.slane %v2214, 4
    %v6372 = vrot.slane %v2215, 4
    %v6373 = vrot.slane %v2216, 4
    %v6471 = vunpack.c.l.b16 %v6276
    %v6472 = vunpack.c.l.b16 %v6277
    %v6473 = vunpack.c.l.b16 %v6278
    %v6474 = vunpack.c.l.b16 %v6279
    %v6475 = vunpack.c.l.b16 %v6280
    %v6476 = vunpack.c.l.b16 %v6281
    %v6477 = vunpack.c.l.b16 %v6282
    %v6478 = vunpack.c.l.b16 %v6283
    %v6479 = vunpack.c.l.b16 %v6284
    %v6480 = vunpack.c.l.b16 %v6285
    %v6481 = vunpack.c.l.b16 %v6286
    %v6482 = vunpack.c.l.b16 %v6287
    %v6483 = vunpack.c.l.b16 %v6288
    %v6484 = vunpack.c.l.b16 %v6289
    %v6485 = vunpack.c.l.b16 %v6290
    %v6486 = vunpack.c.l.b16 %v6291
    %v6487 = vunpack.c.l.b16 %v6292
    %v6488 = vunpack.c.l.b16 %v6293
    %v6489 = vunpack.c.l.b16 %v6294
    %v6490 = vunpack.c.l.b16 %v6295
    %v6491 = vunpack.c.l.b16 %v6296
    %v6492 = vunpack.c.l.b16 %v6297
    %v6493 = vunpack.c.l.b16 %v6298
    %v6494 = vunpack.c.l.b16 %v6299
    %v6495 = vunpack.c.l.b16 %v6300
    %v6496 = vunpack.c.l.b16 %v6301
    %v6497 = vunpack.c.l.b16 %v6302
    %v6498 = vunpack.c.l.b16 %v6303
    %v6499 = vunpack.c.l.b16 %v6304
    %v6500 = vunpack.c.l.b16 %v6305
    %v6501 = vunpack.c.l.b16 %v6306
    %v6502 = vunpack.c.l.b16 %v6307
    %v6503 = vunpack.c.l.b16 %v6308
    %v6504 = vunpack.c.l.b16 %v6309
    %v6505 = vunpack.c.l.b16 %v6310
    %v6506 = vunpack.c.l.b16 %v6311
    %v6507 = vunpack.c.l.b16 %v6312
    %v6508 = vunpack.c.l.b16 %v6313
    %v6509 = vunpack.c.l.b16 %v6314
    %v6510 = vunpack.c.l.b16 %v6315
    %v6511 = vunpack.c.l.b16 %v6316
    %v6512 = vunpack.c.l.b16 %v6317
    %v6513 = vunpack.c.l.b16 %v6318
    %v6514 = vunpack.c.l.b16 %v6319
    %v6515 = vunpack.c.l.b16 %v6320
    %v6516 = vunpack.c.l.b16 %v6321
    %v6517 = vunpack.c.l.b16 %v6322
    %v6518 = vunpack.c.l.b16 %v6323
    %v6519 = vunpack.c.l.b16 %v6324
    %v6520 = vunpack.c.l.b16 %v6325
    %v6521 = vunpack.c.l.b16 %v6326
    %v6522 = vunpack.c.l.b16 %v6327
    %v6523 = vunpack.c.l.b16 %v6328
    %v6524 = vunpack.c.l.b16 %v6329
    %v6525 = vunpack.c.l.b16 %v6330
    %v6526 = vunpack.c.l.b16 %v6331
    %v6527 = vunpack.c.l.b16 %v6332
    %v6528 = vunpack.c.l.b16 %v6333
    %v6529 = vunpack.c.l.b16 %v6334
    %v6530 = vunpack.c.l.b16 %v6335
    %v6531 = vunpack.c.l.b16 %v6336
    %v6532 = vunpack.c.l.b16 %v6337
    %v6533 = vunpack.c.l.b16 %v6338
    %v6534 = vunpack.c.l.b16 %v6339
    %v6535 = vunpack.c.l.b16 %v6340
    %v6536 = vunpack.c.l.b16 %v6341
    %v6537 = vunpack.c.l.b16 %v6342
    %v6538 = vunpack.c.l.b16 %v6343
    %v6539 = vunpack.c.l.b16 %v6344
    %v6540 = vunpack.c.l.b16 %v6345
    %v6541 = vunpack.c.l.b16 %v6346
    %v6542 = vunpack.c.l.b16 %v6347
    %v6543 = vunpack.c.l.b16 %v6348
    %v6544 = vunpack.c.l.b16 %v6349
    %v6545 = vunpack.c.l.b16 %v6350
    %v6546 = vunpack.c.l.b16 %v6351
    %v6547 = vunpack.c.l.b16 %v6352
    %v6548 = vunpack.c.l.b16 %v6353
    %v6549 = vunpack.c.l.b16 %v6354
    %v6550 = vunpack.c.l.b16 %v6355
    %v6551 = vunpack.c.l.b16 %v6356
    %v6552 = vunpack.c.l.b16 %v6357
    %v6553 = vunpack.c.l.b16 %v6358
    %v6554 = vunpack.c.l.b16 %v6359
    %v6555 = vunpack.c.l.b16 %v6360
    %v6556 = vunpack.c.l.b16 %v6361
    %v6557 = vunpack.c.l.b16 %v6362
    %v6558 = vunpack.c.l.b16 %v6363
    %v6559 = vunpack.c.l.b16 %v6364
    %v6560 = vunpack.c.l.b16 %v6365
    %v6561 = vunpack.c.l.b16 %v6366
    %v6562 = vunpack.c.l.b16 %v6367
    %v6563 = vpack.c.b16 %v6472, %v6471
    %v6564 = vpack.c.b16 %v6474, %v6473
    %v6565 = vpack.c.b16 %v6476, %v6475
    %v6566 = vpack.c.b16 %v6478, %v6477
    %v6567 = vpack.c.b16 %v6480, %v6479
    %v6568 = vpack.c.b16 %v6482, %v6481
    %v6569 = vpack.c.b16 %v6484, %v6483
    %v6570 = vpack.c.b16 %v6486, %v6485
    %v6571 = vpack.c.b16 %v6488, %v6487
    %v6572 = vpack.c.b16 %v6490, %v6489
    %v6573 = vpack.c.b16 %v6492, %v6491
    %v6574 = vpack.c.b16 %v6494, %v6493
    %v6575 = vpack.c.b16 %v6496, %v6495
    %v6576 = vpack.c.b16 %v6498, %v6497
    %v6577 = vpack.c.b16 %v6500, %v6499
    %v6578 = vpack.c.b16 %v6502, %v6501
    %v6579 = vpack.c.b16 %v6504, %v6503
    %v6580 = vpack.c.b16 %v6506, %v6505
    %v6581 = vpack.c.b16 %v6508, %v6507
    %v6582 = vpack.c.b16 %v6510, %v6509
    %v6583 = vpack.c.b16 %v6512, %v6511
    %v6584 = vpack.c.b16 %v6514, %v6513
    %v6585 = vpack.c.b16 %v6516, %v6515
    %v6586 = vpack.c.b16 %v6518, %v6517
    %v6587 = vpack.c.b16 %v6520, %v6519
    %v6588 = vpack.c.b16 %v6522, %v6521
    %v6589 = vpack.c.b16 %v6524, %v6523
    %v6590 = vpack.c.b16 %v6526, %v6525
    %v6591 = vpack.c.b16 %v6528, %v6527
    %v6592 = vpack.c.b16 %v6530, %v6529
    %v6593 = vpack.c.b16 %v6532, %v6531
    %v6594 = vpack.c.b16 %v6534, %v6533
    %v6595 = vpack.c.b16 %v6536, %v6535
    %v6596 = vpack.c.b16 %v6538, %v6537
    %v6597 = vpack.c.b16 %v6540, %v6539
    %v6598 = vpack.c.b16 %v6542, %v6541
    %v6599 = vpack.c.b16 %v6544, %v6543
    %v6600 = vpack.c.b16 %v6546, %v6545
    %v6601 = vpack.c.b16 %v6548, %v6547
    %v6602 = vpack.c.b16 %v6550, %v6549
    %v6603 = vpack.c.b16 %v6552, %v6551
    %v6604 = vpack.c.b16 %v6554, %v6553
    %v6605 = vpack.c.b16 %v6556, %v6555
    %v6606 = vpack.c.b16 %v6558, %v6557
    %v6607 = vpack.c.b16 %v6560, %v6559
    %v6608 = vpack.c.b16 %v6562, %v6561
    %v6655 = vsel %vm2705, %v6373, 0
    %v6658 = vsel %vm2709, %v6608, 0
    %6660 = vmatprep.subr.bf16.mxu0 0
    %6661 = vmatpush1.bf16.msra.mxu0 %v6563
    %6662 = vmatprep.subr.bf16.mxu0 0
    %6663 = vmatpush1.bf16.msra.mxu0 %v6564
    %6664 = vmatprep.subr.bf16.mxu0 0
    %6665 = vmatpush1.bf16.msra.mxu0 %v6565
    %6666 = vmatprep.subr.bf16.mxu0 0
    %6667 = vmatpush1.bf16.msra.mxu0 %v6566
    %6668 = vmatprep.subr.bf16.mxu0 0
    %6669 = vmatpush1.bf16.msra.mxu0 %v6567
    %6670 = vmatprep.subr.bf16.mxu0 0
    %6671 = vmatpush1.bf16.msra.mxu0 %v6568
    %6672 = vmatprep.subr.bf16.mxu0 0
    %6673 = vmatpush1.bf16.msra.mxu0 %v6569
    %6674 = vmatprep.subr.bf16.mxu0 0
    %6675 = vmatpush1.bf16.msra.mxu0 %v6570
    %6676 = vmatprep.subr.bf16.mxu0 0
    %6677 = vmatpush1.bf16.msra.mxu0 %v6571
    %6678 = vmatprep.subr.bf16.mxu0 0
    %6679 = vmatpush1.bf16.msra.mxu0 %v6572
    %6680 = vmatprep.subr.bf16.mxu0 0
    %6681 = vmatpush1.bf16.msra.mxu0 %v6573
    %6682 = vmatprep.subr.bf16.mxu0 0
    %6683 = vmatpush1.bf16.msra.mxu0 %v6574
    %6684 = vmatprep.subr.bf16.mxu0 0
    %6685 = vmatpush1.bf16.msra.mxu0 %v6575
    %6686 = vmatprep.subr.bf16.mxu0 0
    %6687 = vmatpush1.bf16.msra.mxu0 %v6576
    %6688 = vmatprep.subr.bf16.mxu0 0
    %6689 = vmatpush1.bf16.msra.mxu0 %v6577
    %6690 = vmatprep.subr.bf16.mxu0 0
    %6691 = vmatpush1.bf16.msra.mxu0 %v6578
    %6692 = vmatprep.mubr.bf16.mxu0 %v6369
    %6693 = vmatmul.mubr.bf16.gmra.mrb[0].mxu0 %v6368
    %v6694 = vpop.f32.mrb[0].mxu0
    %v6695 = vadd.f32 0.0, %v6694
    %v6696 = vpop.f32.mrb[0].mxu0
    %v6697 = vpop.f32.mrb[0].mxu0
    %v6698 = vpop.f32.mrb[0].mxu0
    %6699 = vdwg.mxu0
    %6700 = vmatprep.subr.bf16.mxu0 0
    %6701 = vmatpush1.bf16.msra.mxu0 %v6579
    %6702 = vmatprep.subr.bf16.mxu0 0
    %6703 = vmatpush1.bf16.msra.mxu0 %v6580
    %6704 = vmatprep.subr.bf16.mxu0 0
    %6705 = vmatpush1.bf16.msra.mxu0 %v6581
    %6706 = vmatprep.subr.bf16.mxu0 0
    %6707 = vmatpush1.bf16.msra.mxu0 %v6582
    %6708 = vmatprep.subr.bf16.mxu0 0
    %6709 = vmatpush1.bf16.msra.mxu0 %v6583
    %6710 = vmatprep.subr.bf16.mxu0 0
    %6711 = vmatpush1.bf16.msra.mxu0 %v6584
    %6712 = vmatprep.subr.bf16.mxu0 0
    %6713 = vmatpush1.bf16.msra.mxu0 %v6585
    %6714 = vmatprep.subr.bf16.mxu0 0
    %6715 = vmatpush1.bf16.msra.mxu0 %v6586
    %6716 = vmatprep.subr.bf16.mxu0 0
    %6717 = vmatpush1.bf16.msra.mxu0 %v6587
    %6718 = vmatprep.subr.bf16.mxu0 0
    %6719 = vmatpush1.bf16.msra.mxu0 %v6588
    %6720 = vmatprep.subr.bf16.mxu0 0
    %6721 = vmatpush1.bf16.msra.mxu0 %v6589
    %6722 = vmatprep.subr.bf16.mxu0 0
    %6723 = vmatpush1.bf16.msra.mxu0 %v6590
    %6724 = vmatprep.subr.bf16.mxu0 0
    %6725 = vmatpush1.bf16.msra.mxu0 %v6591
    %6726 = vmatprep.subr.bf16.mxu0 0
    %6727 = vmatpush1.bf16.msra.mxu0 %v6592
    %6728 = vmatprep.subr.bf16.mxu0 0
    %6729 = vmatpush1.bf16.msra.mxu0 %v6593
    %6730 = vmatprep.subr.bf16.mxu0 0
    %6731 = vmatpush1.bf16.msra.mxu0 %v6594
    %6732 = vmatprep.mubr.bf16.mxu0 %v6371
    %6733 = vmatmul.mubr.bf16.gmra.mrb[0].mxu0 %v6370
    %v6734 = vpop.f32.mrb[0].mxu0
    %v6735 = vadd.f32 %v6695, %v6734
    %v6736 = vpop.f32.mrb[0].mxu0
    %v6737 = vpop.f32.mrb[0].mxu0
    %v6738 = vpop.f32.mrb[0].mxu0
    %6739 = vdwg.mxu0
    %6740 = vmatprep.subr.bf16.mxu0 0
    %6741 = vmatpush1.bf16.msra.mxu0 %v6595
    %6742 = vmatprep.subr.bf16.mxu0 0
    %6743 = vmatpush1.bf16.msra.mxu0 %v6596
    %6744 = vmatprep.subr.bf16.mxu0 0
    %6745 = vmatpush1.bf16.msra.mxu0 %v6597
    %6746 = vmatprep.subr.bf16.mxu0 0
    %6747 = vmatpush1.bf16.msra.mxu0 %v6598
    %6748 = vmatprep.subr.bf16.mxu0 0
    %6749 = vmatpush1.bf16.msra.mxu0 %v6599
    %6750 = vmatprep.subr.bf16.mxu0 0
    %6751 = vmatpush1.bf16.msra.mxu0 %v6600
    %6752 = vmatprep.subr.bf16.mxu0 0
    %6753 = vmatpush1.bf16.msra.mxu0 %v6601
    %6754 = vmatprep.subr.bf16.mxu0 0
    %6755 = vmatpush1.bf16.msra.mxu0 %v6602
    %6756 = vmatprep.subr.bf16.mxu0 0
    %6757 = vmatpush1.bf16.msra.mxu0 %v6603
    %6758 = vmatprep.subr.bf16.mxu0 0
    %6759 = vmatpush1.bf16.msra.mxu0 %v6604
    %6760 = vmatprep.subr.bf16.mxu0 0
    %6761 = vmatpush1.bf16.msra.mxu0 %v6605
    %6762 = vmatprep.subr.bf16.mxu0 0
    %6763 = vmatpush1.bf16.msra.mxu0 %v6606
    %6764 = vmatprep.subr.bf16.mxu0 0
    %6765 = vmatpush1.bf16.msra.mxu0 %v6607
    %6766 = vmatprep.subr.bf16.mxu0 0
    %6767 = vmatpush1.bf16.msra.mxu0 %v6658
    %6768 = vmatprep.subr.bf16.mxu0 0
    %6769 = vmatpush1.bf16.msra.mxu0 0
    %6770 = vmatprep.subr.bf16.mxu0 0
    %6771 = vmatpush1.bf16.msra.mxu0 0
    %6772 = vmatprep.mubr.bf16.mxu0 %v6655
    %6773 = vmatmul.mubr.bf16.gmra.mrb[0].mxu0 %v6372
    %v6774 = vpop.f32.mrb[0].mxu0
    %v6775 = vadd.f32 %v6735, %v6774
    %v6776 = vpop.f32.mrb[0].mxu0
    %v6777 = vpop.f32.mrb[0].mxu0
    %v6778 = vpop.f32.mrb[0].mxu0
    %6779 = vdwg.mxu0
    %v6780 = vadd.f32 %v6274, %v6775
    %s6781 = scalar_lea.vmem [#allocation2], 3312
    %v6782 = vld [vmem:[%s6781] sm:$0xf]
    %v6783 = vld [vmem:[%s6781 + $0x4] sm:$0xf]
    %v6784 = vld [vmem:[%s6781 + $0x8] sm:$0xf]
    %v6785 = vld [vmem:[%s6781 + $0xc] sm:$0xf]
    %v6786 = vld [vmem:[%s6781 + $0x10] sm:$0xf]
    %v6787 = vld [vmem:[%s6781 + $0x14] sm:$0xf]
    %v6788 = vld [vmem:[%s6781 + $0x18] sm:$0xf]
    %v6789 = vld [vmem:[%s6781 + $0x1c] sm:$0xf]
    %v6790 = vld [vmem:[%s6781 + $0x20] sm:$0xf]
    %v6791 = vld [vmem:[%s6781 + $0x24] sm:$0xf]
    %v6792 = vld [vmem:[%s6781 + $0x28] sm:$0xf]
    %v6793 = vld [vmem:[%s6781 + $0x2c] sm:$0xf]
    %v6794 = vld [vmem:[%s6781 + $0x30] sm:$0xf]
    %v6795 = vld [vmem:[%s6781 + $0x34] sm:$0xf]
    %v6796 = vld [vmem:[%s6781 + $0x38] sm:$0xf]
    %v6797 = vld [vmem:[%s6781 + $0x3c] sm:$0xf]
    %v6798 = vld [vmem:[%s6781 + $0x40] sm:$0xf]
    %v6799 = vld [vmem:[%s6781 + $0x44] sm:$0xf]
    %v6800 = vld [vmem:[%s6781 + $0x48] sm:$0xf]
    %v6801 = vld [vmem:[%s6781 + $0x4c] sm:$0xf]
    %v6802 = vld [vmem:[%s6781 + $0x50] sm:$0xf]
    %v6803 = vld [vmem:[%s6781 + $0x54] sm:$0xf]
    %v6804 = vld [vmem:[%s6781 + $0x58] sm:$0xf]
    %v6805 = vld [vmem:[%s6781 + $0x5c] sm:$0xf]
    %v6806 = vld [vmem:[%s6781 + $0x60] sm:$0xf]
    %v6807 = vld [vmem:[%s6781 + $0x64] sm:$0xf]
    %v6808 = vld [vmem:[%s6781 + $0x68] sm:$0xf]
    %v6809 = vld [vmem:[%s6781 + $0x6c] sm:$0xf]
    %v6810 = vld [vmem:[%s6781 + $0x70] sm:$0xf]
    %v6811 = vld [vmem:[%s6781 + $0x74] sm:$0xf]
    %v6812 = vld [vmem:[%s6781 + $0x78] sm:$0xf]
    %v6813 = vld [vmem:[%s6781 + $0x7c] sm:$0xf]
    %v6814 = vld [vmem:[%s6781 + $0x80] sm:$0xf]
    %v6815 = vld [vmem:[%s6781 + $0x84] sm:$0xf]
    %v6816 = vld [vmem:[%s6781 + $0x88] sm:$0xf]
    %v6817 = vld [vmem:[%s6781 + $0x8c] sm:$0xf]
    %v6818 = vld [vmem:[%s6781 + $0x90] sm:$0xf]
    %v6819 = vld [vmem:[%s6781 + $0x94] sm:$0xf]
    %v6820 = vld [vmem:[%s6781 + $0x98] sm:$0xf]
    %v6821 = vld [vmem:[%s6781 + $0x9c] sm:$0xf]
    %v6822 = vld [vmem:[%s6781 + $0xa0] sm:$0xf]
    %v6823 = vld [vmem:[%s6781 + $0xa4] sm:$0xf]
    %v6824 = vld [vmem:[%s6781 + $0xa8] sm:$0xf]
    %v6825 = vld [vmem:[%s6781 + $0xac] sm:$0xf]
    %v6826 = vld [vmem:[%s6781 + $0xb0] sm:$0xf]
    %v6827 = vld [vmem:[%s6781 + $0xb4] sm:$0xf]
    %v6828 = vld [vmem:[%s6781 + $0xb8] sm:$0xf]
    %v6829 = vld [vmem:[%s6781 + $0xbc] sm:$0xf]
    %v6830 = vld [vmem:[%s6781 + $0xc0] sm:$0xf]
    %v6831 = vld [vmem:[%s6781 + $0xc4] sm:$0xf]
    %v6832 = vld [vmem:[%s6781 + $0xc8] sm:$0xf]
    %v6833 = vld [vmem:[%s6781 + $0xcc] sm:$0xf]
    %v6834 = vld [vmem:[%s6781 + $0xd0] sm:$0xf]
    %v6835 = vld [vmem:[%s6781 + $0xd4] sm:$0xf]
    %v6836 = vld [vmem:[%s6781 + $0xd8] sm:$0xf]
    %v6837 = vld [vmem:[%s6781 + $0xdc] sm:$0xf]
    %v6838 = vld [vmem:[%s6781 + $0xe0] sm:$0xf]
    %v6839 = vld [vmem:[%s6781 + $0xe4] sm:$0xf]
    %v6840 = vld [vmem:[%s6781 + $0xe8] sm:$0xf]
    %v6841 = vld [vmem:[%s6781 + $0xec] sm:$0xf]
    %v6842 = vld [vmem:[%s6781 + $0xf0] sm:$0xf]
    %v6843 = vld [vmem:[%s6781 + $0xf4] sm:$0xf]
    %v6844 = vld [vmem:[%s6781 + $0xf8] sm:$0xf]
    %v6845 = vld [vmem:[%s6781 + $0xfc] sm:$0xf]
    %v6846 = vld [vmem:[%s6781 + $0x100] sm:$0xf]
    %v6847 = vld [vmem:[%s6781 + $0x104] sm:$0xf]
    %v6848 = vld [vmem:[%s6781 + $0x108] sm:$0xf]
    %v6849 = vld [vmem:[%s6781 + $0x10c] sm:$0xf]
    %v6850 = vld [vmem:[%s6781 + $0x110] sm:$0xf]
    %v6851 = vld [vmem:[%s6781 + $0x114] sm:$0xf]
    %v6852 = vld [vmem:[%s6781 + $0x118] sm:$0xf]
    %v6853 = vld [vmem:[%s6781 + $0x11c] sm:$0xf]
    %v6854 = vld [vmem:[%s6781 + $0x120] sm:$0xf]
    %v6855 = vld [vmem:[%s6781 + $0x124] sm:$0xf]
    %v6856 = vld [vmem:[%s6781 + $0x128] sm:$0xf]
    %v6857 = vld [vmem:[%s6781 + $0x12c] sm:$0xf]
    %v6858 = vld [vmem:[%s6781 + $0x130] sm:$0xf]
    %v6859 = vld [vmem:[%s6781 + $0x134] sm:$0xf]
    %v6860 = vld [vmem:[%s6781 + $0x138] sm:$0xf]
    %v6861 = vld [vmem:[%s6781 + $0x13c] sm:$0xf]
    %v6862 = vld [vmem:[%s6781 + $0x140] sm:$0xf]
    %v6863 = vld [vmem:[%s6781 + $0x144] sm:$0xf]
    %v6864 = vld [vmem:[%s6781 + $0x148] sm:$0xf]
    %v6865 = vld [vmem:[%s6781 + $0x14c] sm:$0xf]
    %v6866 = vld [vmem:[%s6781 + $0x150] sm:$0xf]
    %v6867 = vld [vmem:[%s6781 + $0x154] sm:$0xf]
    %v6868 = vld [vmem:[%s6781 + $0x158] sm:$0xf]
    %v6869 = vld [vmem:[%s6781 + $0x15c] sm:$0xf]
    %v6870 = vld [vmem:[%s6781 + $0x160] sm:$0xf]
    %v6871 = vld [vmem:[%s6781 + $0x164] sm:$0xf]
    %v6872 = vld [vmem:[%s6781 + $0x168] sm:$0xf]
    %v6873 = vld [vmem:[%s6781 + $0x16c] sm:$0x3]
    %v6874 = vrot.slane %v2408, 4
    %v6875 = vrot.slane %v2411, 4
    %v6876 = vrot.slane %v2414, 4
    %v6877 = vrot.slane %v2417, 4
    %v6878 = vrot.slane %v2420, 4
    %v6879 = vrot.slane %v2423, 4
    %v6977 = vunpack.c.l.b16 %v6782
    %v6978 = vunpack.c.l.b16 %v6783
    %v6979 = vunpack.c.l.b16 %v6784
    %v6980 = vunpack.c.l.b16 %v6785
    %v6981 = vunpack.c.l.b16 %v6786
    %v6982 = vunpack.c.l.b16 %v6787
    %v6983 = vunpack.c.l.b16 %v6788
    %v6984 = vunpack.c.l.b16 %v6789
    %v6985 = vunpack.c.l.b16 %v6790
    %v6986 = vunpack.c.l.b16 %v6791
    %v6987 = vunpack.c.l.b16 %v6792
    %v6988 = vunpack.c.l.b16 %v6793
    %v6989 = vunpack.c.l.b16 %v6794
    %v6990 = vunpack.c.l.b16 %v6795
    %v6991 = vunpack.c.l.b16 %v6796
    %v6992 = vunpack.c.l.b16 %v6797
    %v6993 = vunpack.c.l.b16 %v6798
    %v6994 = vunpack.c.l.b16 %v6799
    %v6995 = vunpack.c.l.b16 %v6800
    %v6996 = vunpack.c.l.b16 %v6801
    %v6997 = vunpack.c.l.b16 %v6802
    %v6998 = vunpack.c.l.b16 %v6803
    %v6999 = vunpack.c.l.b16 %v6804
    %v7000 = vunpack.c.l.b16 %v6805
    %v7001 = vunpack.c.l.b16 %v6806
    %v7002 = vunpack.c.l.b16 %v6807
    %v7003 = vunpack.c.l.b16 %v6808
    %v7004 = vunpack.c.l.b16 %v6809
    %v7005 = vunpack.c.l.b16 %v6810
    %v7006 = vunpack.c.l.b16 %v6811
    %v7007 = vunpack.c.l.b16 %v6812
    %v7008 = vunpack.c.l.b16 %v6813
    %v7009 = vunpack.c.l.b16 %v6814
    %v7010 = vunpack.c.l.b16 %v6815
    %v7011 = vunpack.c.l.b16 %v6816
    %v7012 = vunpack.c.l.b16 %v6817
    %v7013 = vunpack.c.l.b16 %v6818
    %v7014 = vunpack.c.l.b16 %v6819
    %v7015 = vunpack.c.l.b16 %v6820
    %v7016 = vunpack.c.l.b16 %v6821
    %v7017 = vunpack.c.l.b16 %v6822
    %v7018 = vunpack.c.l.b16 %v6823
    %v7019 = vunpack.c.l.b16 %v6824
    %v7020 = vunpack.c.l.b16 %v6825
    %v7021 = vunpack.c.l.b16 %v6826
    %v7022 = vunpack.c.l.b16 %v6827
    %v7023 = vunpack.c.l.b16 %v6828
    %v7024 = vunpack.c.l.b16 %v6829
    %v7025 = vunpack.c.l.b16 %v6830
    %v7026 = vunpack.c.l.b16 %v6831
    %v7027 = vunpack.c.l.b16 %v6832
    %v7028 = vunpack.c.l.b16 %v6833
    %v7029 = vunpack.c.l.b16 %v6834
    %v7030 = vunpack.c.l.b16 %v6835
    %v7031 = vunpack.c.l.b16 %v6836
    %v7032 = vunpack.c.l.b16 %v6837
    %v7033 = vunpack.c.l.b16 %v6838
    %v7034 = vunpack.c.l.b16 %v6839
    %v7035 = vunpack.c.l.b16 %v6840
    %v7036 = vunpack.c.l.b16 %v6841
    %v7037 = vunpack.c.l.b16 %v6842
    %v7038 = vunpack.c.l.b16 %v6843
    %v7039 = vunpack.c.l.b16 %v6844
    %v7040 = vunpack.c.l.b16 %v6845
    %v7041 = vunpack.c.l.b16 %v6846
    %v7042 = vunpack.c.l.b16 %v6847
    %v7043 = vunpack.c.l.b16 %v6848
    %v7044 = vunpack.c.l.b16 %v6849
    %v7045 = vunpack.c.l.b16 %v6850
    %v7046 = vunpack.c.l.b16 %v6851
    %v7047 = vunpack.c.l.b16 %v6852
    %v7048 = vunpack.c.l.b16 %v6853
    %v7049 = vunpack.c.l.b16 %v6854
    %v7050 = vunpack.c.l.b16 %v6855
    %v7051 = vunpack.c.l.b16 %v6856
    %v7052 = vunpack.c.l.b16 %v6857
    %v7053 = vunpack.c.l.b16 %v6858
    %v7054 = vunpack.c.l.b16 %v6859
    %v7055 = vunpack.c.l.b16 %v6860
    %v7056 = vunpack.c.l.b16 %v6861
    %v7057 = vunpack.c.l.b16 %v6862
    %v7058 = vunpack.c.l.b16 %v6863
    %v7059 = vunpack.c.l.b16 %v6864
    %v7060 = vunpack.c.l.b16 %v6865
    %v7061 = vunpack.c.l.b16 %v6866
    %v7062 = vunpack.c.l.b16 %v6867
    %v7063 = vunpack.c.l.b16 %v6868
    %v7064 = vunpack.c.l.b16 %v6869
    %v7065 = vunpack.c.l.b16 %v6870
    %v7066 = vunpack.c.l.b16 %v6871
    %v7067 = vunpack.c.l.b16 %v6872
    %v7068 = vunpack.c.l.b16 %v6873
    %v7069 = vpack.c.b16 %v6978, %v6977
    %v7070 = vpack.c.b16 %v6980, %v6979
    %v7071 = vpack.c.b16 %v6982, %v6981
    %v7072 = vpack.c.b16 %v6984, %v6983
    %v7073 = vpack.c.b16 %v6986, %v6985
    %v7074 = vpack.c.b16 %v6988, %v6987
    %v7075 = vpack.c.b16 %v6990, %v6989
    %v7076 = vpack.c.b16 %v6992, %v6991
    %v7077 = vpack.c.b16 %v6994, %v6993
    %v7078 = vpack.c.b16 %v6996, %v6995
    %v7079 = vpack.c.b16 %v6998, %v6997
    %v7080 = vpack.c.b16 %v7000, %v6999
    %v7081 = vpack.c.b16 %v7002, %v7001
    %v7082 = vpack.c.b16 %v7004, %v7003
    %v7083 = vpack.c.b16 %v7006, %v7005
    %v7084 = vpack.c.b16 %v7008, %v7007
    %v7085 = vpack.c.b16 %v7010, %v7009
    %v7086 = vpack.c.b16 %v7012, %v7011
    %v7087 = vpack.c.b16 %v7014, %v7013
    %v7088 = vpack.c.b16 %v7016, %v7015
    %v7089 = vpack.c.b16 %v7018, %v7017
    %v7090 = vpack.c.b16 %v7020, %v7019
    %v7091 = vpack.c.b16 %v7022, %v7021
    %v7092 = vpack.c.b16 %v7024, %v7023
    %v7093 = vpack.c.b16 %v7026, %v7025
    %v7094 = vpack.c.b16 %v7028, %v7027
    %v7095 = vpack.c.b16 %v7030, %v7029
    %v7096 = vpack.c.b16 %v7032, %v7031
    %v7097 = vpack.c.b16 %v7034, %v7033
    %v7098 = vpack.c.b16 %v7036, %v7035
    %v7099 = vpack.c.b16 %v7038, %v7037
    %v7100 = vpack.c.b16 %v7040, %v7039
    %v7101 = vpack.c.b16 %v7042, %v7041
    %v7102 = vpack.c.b16 %v7044, %v7043
    %v7103 = vpack.c.b16 %v7046, %v7045
    %v7104 = vpack.c.b16 %v7048, %v7047
    %v7105 = vpack.c.b16 %v7050, %v7049
    %v7106 = vpack.c.b16 %v7052, %v7051
    %v7107 = vpack.c.b16 %v7054, %v7053
    %v7108 = vpack.c.b16 %v7056, %v7055
    %v7109 = vpack.c.b16 %v7058, %v7057
    %v7110 = vpack.c.b16 %v7060, %v7059
    %v7111 = vpack.c.b16 %v7062, %v7061
    %v7112 = vpack.c.b16 %v7064, %v7063
    %v7113 = vpack.c.b16 %v7066, %v7065
    %v7114 = vpack.c.b16 %v7068, %v7067
    %v7161 = vsel %vm2705, %v6879, 0
    %v7164 = vsel %vm2709, %v7114, 0
    %7166 = vmatprep.subr.bf16.mxu0 0
    %7167 = vmatpush1.bf16.msra.mxu0 %v7069
    %7168 = vmatprep.subr.bf16.mxu0 0
    %7169 = vmatpush1.bf16.msra.mxu0 %v7070
    %7170 = vmatprep.subr.bf16.mxu0 0
    %7171 = vmatpush1.bf16.msra.mxu0 %v7071
    %7172 = vmatprep.subr.bf16.mxu0 0
    %7173 = vmatpush1.bf16.msra.mxu0 %v7072
    %7174 = vmatprep.subr.bf16.mxu0 0
    %7175 = vmatpush1.bf16.msra.mxu0 %v7073
    %7176 = vmatprep.subr.bf16.mxu0 0
    %7177 = vmatpush1.bf16.msra.mxu0 %v7074
    %7178 = vmatprep.subr.bf16.mxu0 0
    %7179 = vmatpush1.bf16.msra.mxu0 %v7075
    %7180 = vmatprep.subr.bf16.mxu0 0
    %7181 = vmatpush1.bf16.msra.mxu0 %v7076
    %7182 = vmatprep.subr.bf16.mxu0 0
    %7183 = vmatpush1.bf16.msra.mxu0 %v7077
    %7184 = vmatprep.subr.bf16.mxu0 0
    %7185 = vmatpush1.bf16.msra.mxu0 %v7078
    %7186 = vmatprep.subr.bf16.mxu0 0
    %7187 = vmatpush1.bf16.msra.mxu0 %v7079
    %7188 = vmatprep.subr.bf16.mxu0 0
    %7189 = vmatpush1.bf16.msra.mxu0 %v7080
    %7190 = vmatprep.subr.bf16.mxu0 0
    %7191 = vmatpush1.bf16.msra.mxu0 %v7081
    %7192 = vmatprep.subr.bf16.mxu0 0
    %7193 = vmatpush1.bf16.msra.mxu0 %v7082
    %7194 = vmatprep.subr.bf16.mxu0 0
    %7195 = vmatpush1.bf16.msra.mxu0 %v7083
    %7196 = vmatprep.subr.bf16.mxu0 0
    %7197 = vmatpush1.bf16.msra.mxu0 %v7084
    %7198 = vmatprep.mubr.bf16.mxu0 %v6875
    %7199 = vmatmul.mubr.bf16.gmra.mrb[0].mxu0 %v6874
    %v7200 = vpop.f32.mrb[0].mxu0
    %v7201 = vadd.f32 0.0, %v7200
    %v7202 = vpop.f32.mrb[0].mxu0
    %v7203 = vpop.f32.mrb[0].mxu0
    %v7204 = vpop.f32.mrb[0].mxu0
    %7205 = vdwg.mxu0
    %7206 = vmatprep.subr.bf16.mxu0 0
    %7207 = vmatpush1.bf16.msra.mxu0 %v7085
    %7208 = vmatprep.subr.bf16.mxu0 0
    %7209 = vmatpush1.bf16.msra.mxu0 %v7086
    %7210 = vmatprep.subr.bf16.mxu0 0
    %7211 = vmatpush1.bf16.msra.mxu0 %v7087
    %7212 = vmatprep.subr.bf16.mxu0 0
    %7213 = vmatpush1.bf16.msra.mxu0 %v7088
    %7214 = vmatprep.subr.bf16.mxu0 0
    %7215 = vmatpush1.bf16.msra.mxu0 %v7089
    %7216 = vmatprep.subr.bf16.mxu0 0
    %7217 = vmatpush1.bf16.msra.mxu0 %v7090
    %7218 = vmatprep.subr.bf16.mxu0 0
    %7219 = vmatpush1.bf16.msra.mxu0 %v7091
    %7220 = vmatprep.subr.bf16.mxu0 0
    %7221 = vmatpush1.bf16.msra.mxu0 %v7092
    %7222 = vmatprep.subr.bf16.mxu0 0
    %7223 = vmatpush1.bf16.msra.mxu0 %v7093
    %7224 = vmatprep.subr.bf16.mxu0 0
    %7225 = vmatpush1.bf16.msra.mxu0 %v7094
    %7226 = vmatprep.subr.bf16.mxu0 0
    %7227 = vmatpush1.bf16.msra.mxu0 %v7095
    %7228 = vmatprep.subr.bf16.mxu0 0
    %7229 = vmatpush1.bf16.msra.mxu0 %v7096
    %7230 = vmatprep.subr.bf16.mxu0 0
    %7231 = vmatpush1.bf16.msra.mxu0 %v7097
    %7232 = vmatprep.subr.bf16.mxu0 0
    %7233 = vmatpush1.bf16.msra.mxu0 %v7098
    %7234 = vmatprep.subr.bf16.mxu0 0
    %7235 = vmatpush1.bf16.msra.mxu0 %v7099
    %7236 = vmatprep.subr.bf16.mxu0 0
    %7237 = vmatpush1.bf16.msra.mxu0 %v7100
    %7238 = vmatprep.mubr.bf16.mxu0 %v6877
    %7239 = vmatmul.mubr.bf16.gmra.mrb[0].mxu0 %v6876
    %v7240 = vpop.f32.mrb[0].mxu0
    %v7241 = vadd.f32 %v7201, %v7240
    %v7242 = vpop.f32.mrb[0].mxu0
    %v7243 = vpop.f32.mrb[0].mxu0
    %v7244 = vpop.f32.mrb[0].mxu0
    %7245 = vdwg.mxu0
    %7246 = vmatprep.subr.bf16.mxu0 0
    %7247 = vmatpush1.bf16.msra.mxu0 %v7101
    %7248 = vmatprep.subr.bf16.mxu0 0
    %7249 = vmatpush1.bf16.msra.mxu0 %v7102
    %7250 = vmatprep.subr.bf16.mxu0 0
    %7251 = vmatpush1.bf16.msra.mxu0 %v7103
    %7252 = vmatprep.subr.bf16.mxu0 0
    %7253 = vmatpush1.bf16.msra.mxu0 %v7104
    %7254 = vmatprep.subr.bf16.mxu0 0
    %7255 = vmatpush1.bf16.msra.mxu0 %v7105
    %7256 = vmatprep.subr.bf16.mxu0 0
    %7257 = vmatpush1.bf16.msra.mxu0 %v7106
    %7258 = vmatprep.subr.bf16.mxu0 0
    %7259 = vmatpush1.bf16.msra.mxu0 %v7107
    %7260 = vmatprep.subr.bf16.mxu0 0
    %7261 = vmatpush1.bf16.msra.mxu0 %v7108
    %7262 = vmatprep.subr.bf16.mxu0 0
    %7263 = vmatpush1.bf16.msra.mxu0 %v7109
    %7264 = vmatprep.subr.bf16.mxu0 0
    %7265 = vmatpush1.bf16.msra.mxu0 %v7110
    %7266 = vmatprep.subr.bf16.mxu0 0
    %7267 = vmatpush1.bf16.msra.mxu0 %v7111
    %7268 = vmatprep.subr.bf16.mxu0 0
    %7269 = vmatpush1.bf16.msra.mxu0 %v7112
    %7270 = vmatprep.subr.bf16.mxu0 0
    %7271 = vmatpush1.bf16.msra.mxu0 %v7113
    %7272 = vmatprep.subr.bf16.mxu0 0
    %7273 = vmatpush1.bf16.msra.mxu0 %v7164
    %7274 = vmatprep.subr.bf16.mxu0 0
    %7275 = vmatpush1.bf16.msra.mxu0 0
    %7276 = vmatprep.subr.bf16.mxu0 0
    %7277 = vmatpush1.bf16.msra.mxu0 0
    %7278 = vmatprep.mubr.bf16.mxu0 %v7161
    %7279 = vmatmul.mubr.bf16.gmra.mrb[0].mxu0 %v6878
    %v7280 = vpop.f32.mrb[0].mxu0
    %v7281 = vadd.f32 %v7241, %v7280
    %v7282 = vpop.f32.mrb[0].mxu0
    %v7283 = vpop.f32.mrb[0].mxu0
    %v7284 = vpop.f32.mrb[0].mxu0
    %7285 = vdwg.mxu0
    %v7286 = vadd.f32 %v6780, %v7281
    %s7287 = scalar_lea.vmem [#allocation2], 3680
    %v7288 = vld [vmem:[%s7287] sm:$0xf]
    %v7289 = vld [vmem:[%s7287 + $0x4] sm:$0xf]
    %v7290 = vld [vmem:[%s7287 + $0x8] sm:$0xf]
    %v7291 = vld [vmem:[%s7287 + $0xc] sm:$0xf]
    %v7292 = vld [vmem:[%s7287 + $0x10] sm:$0xf]
    %v7293 = vld [vmem:[%s7287 + $0x14] sm:$0xf]
    %v7294 = vld [vmem:[%s7287 + $0x18] sm:$0xf]
    %v7295 = vld [vmem:[%s7287 + $0x1c] sm:$0xf]
    %v7296 = vld [vmem:[%s7287 + $0x20] sm:$0xf]
    %v7297 = vld [vmem:[%s7287 + $0x24] sm:$0xf]
    %v7298 = vld [vmem:[%s7287 + $0x28] sm:$0xf]
    %v7299 = vld [vmem:[%s7287 + $0x2c] sm:$0xf]
    %v7300 = vld [vmem:[%s7287 + $0x30] sm:$0xf]
    %v7301 = vld [vmem:[%s7287 + $0x34] sm:$0xf]
    %v7302 = vld [vmem:[%s7287 + $0x38] sm:$0xf]
    %v7303 = vld [vmem:[%s7287 + $0x3c] sm:$0xf]
    %v7304 = vld [vmem:[%s7287 + $0x40] sm:$0xf]
    %v7305 = vld [vmem:[%s7287 + $0x44] sm:$0xf]
    %v7306 = vld [vmem:[%s7287 + $0x48] sm:$0xf]
    %v7307 = vld [vmem:[%s7287 + $0x4c] sm:$0xf]
    %v7308 = vld [vmem:[%s7287 + $0x50] sm:$0xf]
    %v7309 = vld [vmem:[%s7287 + $0x54] sm:$0xf]
    %v7310 = vld [vmem:[%s7287 + $0x58] sm:$0xf]
    %v7311 = vld [vmem:[%s7287 + $0x5c] sm:$0xf]
    %v7312 = vld [vmem:[%s7287 + $0x60] sm:$0xf]
    %v7313 = vld [vmem:[%s7287 + $0x64] sm:$0xf]
    %v7314 = vld [vmem:[%s7287 + $0x68] sm:$0xf]
    %v7315 = vld [vmem:[%s7287 + $0x6c] sm:$0xf]
    %v7316 = vld [vmem:[%s7287 + $0x70] sm:$0xf]
    %v7317 = vld [vmem:[%s7287 + $0x74] sm:$0xf]
    %v7318 = vld [vmem:[%s7287 + $0x78] sm:$0xf]
    %v7319 = vld [vmem:[%s7287 + $0x7c] sm:$0xf]
    %v7320 = vld [vmem:[%s7287 + $0x80] sm:$0xf]
    %v7321 = vld [vmem:[%s7287 + $0x84] sm:$0xf]
    %v7322 = vld [vmem:[%s7287 + $0x88] sm:$0xf]
    %v7323 = vld [vmem:[%s7287 + $0x8c] sm:$0xf]
    %v7324 = vld [vmem:[%s7287 + $0x90] sm:$0xf]
    %v7325 = vld [vmem:[%s7287 + $0x94] sm:$0xf]
    %v7326 = vld [vmem:[%s7287 + $0x98] sm:$0xf]
    %v7327 = vld [vmem:[%s7287 + $0x9c] sm:$0xf]
    %v7328 = vld [vmem:[%s7287 + $0xa0] sm:$0xf]
    %v7329 = vld [vmem:[%s7287 + $0xa4] sm:$0xf]
    %v7330 = vld [vmem:[%s7287 + $0xa8] sm:$0xf]
    %v7331 = vld [vmem:[%s7287 + $0xac] sm:$0xf]
    %v7332 = vld [vmem:[%s7287 + $0xb0] sm:$0xf]
    %v7333 = vld [vmem:[%s7287 + $0xb4] sm:$0xf]
    %v7334 = vld [vmem:[%s7287 + $0xb8] sm:$0xf]
    %v7335 = vld [vmem:[%s7287 + $0xbc] sm:$0xf]
    %v7336 = vld [vmem:[%s7287 + $0xc0] sm:$0xf]
    %v7337 = vld [vmem:[%s7287 + $0xc4] sm:$0xf]
    %v7338 = vld [vmem:[%s7287 + $0xc8] sm:$0xf]
    %v7339 = vld [vmem:[%s7287 + $0xcc] sm:$0xf]
    %v7340 = vld [vmem:[%s7287 + $0xd0] sm:$0xf]
    %v7341 = vld [vmem:[%s7287 + $0xd4] sm:$0xf]
    %v7342 = vld [vmem:[%s7287 + $0xd8] sm:$0xf]
    %v7343 = vld [vmem:[%s7287 + $0xdc] sm:$0xf]
    %v7344 = vld [vmem:[%s7287 + $0xe0] sm:$0xf]
    %v7345 = vld [vmem:[%s7287 + $0xe4] sm:$0xf]
    %v7346 = vld [vmem:[%s7287 + $0xe8] sm:$0xf]
    %v7347 = vld [vmem:[%s7287 + $0xec] sm:$0xf]
    %v7348 = vld [vmem:[%s7287 + $0xf0] sm:$0xf]
    %v7349 = vld [vmem:[%s7287 + $0xf4] sm:$0xf]
    %v7350 = vld [vmem:[%s7287 + $0xf8] sm:$0xf]
    %v7351 = vld [vmem:[%s7287 + $0xfc] sm:$0xf]
    %v7352 = vld [vmem:[%s7287 + $0x100] sm:$0xf]
    %v7353 = vld [vmem:[%s7287 + $0x104] sm:$0xf]
    %v7354 = vld [vmem:[%s7287 + $0x108] sm:$0xf]
    %v7355 = vld [vmem:[%s7287 + $0x10c] sm:$0xf]
    %v7356 = vld [vmem:[%s7287 + $0x110] sm:$0xf]
    %v7357 = vld [vmem:[%s7287 + $0x114] sm:$0xf]
    %v7358 = vld [vmem:[%s7287 + $0x118] sm:$0xf]
    %v7359 = vld [vmem:[%s7287 + $0x11c] sm:$0xf]
    %v7360 = vld [vmem:[%s7287 + $0x120] sm:$0xf]
    %v7361 = vld [vmem:[%s7287 + $0x124] sm:$0xf]
    %v7362 = vld [vmem:[%s7287 + $0x128] sm:$0xf]
    %v7363 = vld [vmem:[%s7287 + $0x12c] sm:$0xf]
    %v7364 = vld [vmem:[%s7287 + $0x130] sm:$0xf]
    %v7365 = vld [vmem:[%s7287 + $0x134] sm:$0xf]
    %v7366 = vld [vmem:[%s7287 + $0x138] sm:$0xf]
    %v7367 = vld [vmem:[%s7287 + $0x13c] sm:$0xf]
    %v7368 = vld [vmem:[%s7287 + $0x140] sm:$0xf]
    %v7369 = vld [vmem:[%s7287 + $0x144] sm:$0xf]
    %v7370 = vld [vmem:[%s7287 + $0x148] sm:$0xf]
    %v7371 = vld [vmem:[%s7287 + $0x14c] sm:$0xf]
    %v7372 = vld [vmem:[%s7287 + $0x150] sm:$0xf]
    %v7373 = vld [vmem:[%s7287 + $0x154] sm:$0xf]
    %v7374 = vld [vmem:[%s7287 + $0x158] sm:$0xf]
    %v7375 = vld [vmem:[%s7287 + $0x15c] sm:$0xf]
    %v7376 = vld [vmem:[%s7287 + $0x160] sm:$0xf]
    %v7377 = vld [vmem:[%s7287 + $0x164] sm:$0xf]
    %v7378 = vld [vmem:[%s7287 + $0x168] sm:$0xf]
    %v7379 = vld [vmem:[%s7287 + $0x16c] sm:$0x3]
    %v7380 = vrot.slane %v2211, 5
    %v7381 = vrot.slane %v2212, 5
    %v7382 = vrot.slane %v2213, 5
    %v7383 = vrot.slane %v2214, 5
    %v7384 = vrot.slane %v2215, 5
    %v7385 = vrot.slane %v2216, 5
    %v7483 = vunpack.c.l.b16 %v7288
    %v7484 = vunpack.c.l.b16 %v7289
    %v7485 = vunpack.c.l.b16 %v7290
    %v7486 = vunpack.c.l.b16 %v7291
    %v7487 = vunpack.c.l.b16 %v7292
    %v7488 = vunpack.c.l.b16 %v7293
    %v7489 = vunpack.c.l.b16 %v7294
    %v7490 = vunpack.c.l.b16 %v7295
    %v7491 = vunpack.c.l.b16 %v7296
    %v7492 = vunpack.c.l.b16 %v7297
    %v7493 = vunpack.c.l.b16 %v7298
    %v7494 = vunpack.c.l.b16 %v7299
    %v7495 = vunpack.c.l.b16 %v7300
    %v7496 = vunpack.c.l.b16 %v7301
    %v7497 = vunpack.c.l.b16 %v7302
    %v7498 = vunpack.c.l.b16 %v7303
    %v7499 = vunpack.c.l.b16 %v7304
    %v7500 = vunpack.c.l.b16 %v7305
    %v7501 = vunpack.c.l.b16 %v7306
    %v7502 = vunpack.c.l.b16 %v7307
    %v7503 = vunpack.c.l.b16 %v7308
    %v7504 = vunpack.c.l.b16 %v7309
    %v7505 = vunpack.c.l.b16 %v7310
    %v7506 = vunpack.c.l.b16 %v7311
    %v7507 = vunpack.c.l.b16 %v7312
    %v7508 = vunpack.c.l.b16 %v7313
    %v7509 = vunpack.c.l.b16 %v7314
    %v7510 = vunpack.c.l.b16 %v7315
    %v7511 = vunpack.c.l.b16 %v7316
    %v7512 = vunpack.c.l.b16 %v7317
    %v7513 = vunpack.c.l.b16 %v7318
    %v7514 = vunpack.c.l.b16 %v7319
    %v7515 = vunpack.c.l.b16 %v7320
    %v7516 = vunpack.c.l.b16 %v7321
    %v7517 = vunpack.c.l.b16 %v7322
    %v7518 = vunpack.c.l.b16 %v7323
    %v7519 = vunpack.c.l.b16 %v7324
    %v7520 = vunpack.c.l.b16 %v7325
    %v7521 = vunpack.c.l.b16 %v7326
    %v7522 = vunpack.c.l.b16 %v7327
    %v7523 = vunpack.c.l.b16 %v7328
    %v7524 = vunpack.c.l.b16 %v7329
    %v7525 = vunpack.c.l.b16 %v7330
    %v7526 = vunpack.c.l.b16 %v7331
    %v7527 = vunpack.c.l.b16 %v7332
    %v7528 = vunpack.c.l.b16 %v7333
    %v7529 = vunpack.c.l.b16 %v7334
    %v7530 = vunpack.c.l.b16 %v7335
    %v7531 = vunpack.c.l.b16 %v7336
    %v7532 = vunpack.c.l.b16 %v7337
    %v7533 = vunpack.c.l.b16 %v7338
    %v7534 = vunpack.c.l.b16 %v7339
    %v7535 = vunpack.c.l.b16 %v7340
    %v7536 = vunpack.c.l.b16 %v7341
    %v7537 = vunpack.c.l.b16 %v7342
    %v7538 = vunpack.c.l.b16 %v7343
    %v7539 = vunpack.c.l.b16 %v7344
    %v7540 = vunpack.c.l.b16 %v7345
    %v7541 = vunpack.c.l.b16 %v7346
    %v7542 = vunpack.c.l.b16 %v7347
    %v7543 = vunpack.c.l.b16 %v7348
    %v7544 = vunpack.c.l.b16 %v7349
    %v7545 = vunpack.c.l.b16 %v7350
    %v7546 = vunpack.c.l.b16 %v7351
    %v7547 = vunpack.c.l.b16 %v7352
    %v7548 = vunpack.c.l.b16 %v7353
    %v7549 = vunpack.c.l.b16 %v7354
    %v7550 = vunpack.c.l.b16 %v7355
    %v7551 = vunpack.c.l.b16 %v7356
    %v7552 = vunpack.c.l.b16 %v7357
    %v7553 = vunpack.c.l.b16 %v7358
    %v7554 = vunpack.c.l.b16 %v7359
    %v7555 = vunpack.c.l.b16 %v7360
    %v7556 = vunpack.c.l.b16 %v7361
    %v7557 = vunpack.c.l.b16 %v7362
    %v7558 = vunpack.c.l.b16 %v7363
    %v7559 = vunpack.c.l.b16 %v7364
    %v7560 = vunpack.c.l.b16 %v7365
    %v7561 = vunpack.c.l.b16 %v7366
    %v7562 = vunpack.c.l.b16 %v7367
    %v7563 = vunpack.c.l.b16 %v7368
    %v7564 = vunpack.c.l.b16 %v7369
    %v7565 = vunpack.c.l.b16 %v7370
    %v7566 = vunpack.c.l.b16 %v7371
    %v7567 = vunpack.c.l.b16 %v7372
    %v7568 = vunpack.c.l.b16 %v7373
    %v7569 = vunpack.c.l.b16 %v7374
    %v7570 = vunpack.c.l.b16 %v7375
    %v7571 = vunpack.c.l.b16 %v7376
    %v7572 = vunpack.c.l.b16 %v7377
    %v7573 = vunpack.c.l.b16 %v7378
    %v7574 = vunpack.c.l.b16 %v7379
    %v7575 = vpack.c.b16 %v7484, %v7483
    %v7576 = vpack.c.b16 %v7486, %v7485
    %v7577 = vpack.c.b16 %v7488, %v7487
    %v7578 = vpack.c.b16 %v7490, %v7489
    %v7579 = vpack.c.b16 %v7492, %v7491
    %v7580 = vpack.c.b16 %v7494, %v7493
    %v7581 = vpack.c.b16 %v7496, %v7495
    %v7582 = vpack.c.b16 %v7498, %v7497
    %v7583 = vpack.c.b16 %v7500, %v7499
    %v7584 = vpack.c.b16 %v7502, %v7501
    %v7585 = vpack.c.b16 %v7504, %v7503
    %v7586 = vpack.c.b16 %v7506, %v7505
    %v7587 = vpack.c.b16 %v7508, %v7507
    %v7588 = vpack.c.b16 %v7510, %v7509
    %v7589 = vpack.c.b16 %v7512, %v7511
    %v7590 = vpack.c.b16 %v7514, %v7513
    %v7591 = vpack.c.b16 %v7516, %v7515
    %v7592 = vpack.c.b16 %v7518, %v7517
    %v7593 = vpack.c.b16 %v7520, %v7519
    %v7594 = vpack.c.b16 %v7522, %v7521
    %v7595 = vpack.c.b16 %v7524, %v7523
    %v7596 = vpack.c.b16 %v7526, %v7525
    %v7597 = vpack.c.b16 %v7528, %v7527
    %v7598 = vpack.c.b16 %v7530, %v7529
    %v7599 = vpack.c.b16 %v7532, %v7531
    %v7600 = vpack.c.b16 %v7534, %v7533
    %v7601 = vpack.c.b16 %v7536, %v7535
    %v7602 = vpack.c.b16 %v7538, %v7537
    %v7603 = vpack.c.b16 %v7540, %v7539
    %v7604 = vpack.c.b16 %v7542, %v7541
    %v7605 = vpack.c.b16 %v7544, %v7543
    %v7606 = vpack.c.b16 %v7546, %v7545
    %v7607 = vpack.c.b16 %v7548, %v7547
    %v7608 = vpack.c.b16 %v7550, %v7549
    %v7609 = vpack.c.b16 %v7552, %v7551
    %v7610 = vpack.c.b16 %v7554, %v7553
    %v7611 = vpack.c.b16 %v7556, %v7555
    %v7612 = vpack.c.b16 %v7558, %v7557
    %v7613 = vpack.c.b16 %v7560, %v7559
    %v7614 = vpack.c.b16 %v7562, %v7561
    %v7615 = vpack.c.b16 %v7564, %v7563
    %v7616 = vpack.c.b16 %v7566, %v7565
    %v7617 = vpack.c.b16 %v7568, %v7567
    %v7618 = vpack.c.b16 %v7570, %v7569
    %v7619 = vpack.c.b16 %v7572, %v7571
    %v7620 = vpack.c.b16 %v7574, %v7573
    %v7667 = vsel %vm2705, %v7385, 0
    %v7670 = vsel %vm2709, %v7620, 0
    %7672 = vmatprep.subr.bf16.mxu0 0
    %7673 = vmatpush1.bf16.msra.mxu0 %v7575
    %7674 = vmatprep.subr.bf16.mxu0 0
    %7675 = vmatpush1.bf16.msra.mxu0 %v7576
    %7676 = vmatprep.subr.bf16.mxu0 0
    %7677 = vmatpush1.bf16.msra.mxu0 %v7577
    %7678 = vmatprep.subr.bf16.mxu0 0
    %7679 = vmatpush1.bf16.msra.mxu0 %v7578
    %7680 = vmatprep.subr.bf16.mxu0 0
    %7681 = vmatpush1.bf16.msra.mxu0 %v7579
    %7682 = vmatprep.subr.bf16.mxu0 0
    %7683 = vmatpush1.bf16.msra.mxu0 %v7580
    %7684 = vmatprep.subr.bf16.mxu0 0
    %7685 = vmatpush1.bf16.msra.mxu0 %v7581
    %7686 = vmatprep.subr.bf16.mxu0 0
    %7687 = vmatpush1.bf16.msra.mxu0 %v7582
    %7688 = vmatprep.subr.bf16.mxu0 0
    %7689 = vmatpush1.bf16.msra.mxu0 %v7583
    %7690 = vmatprep.subr.bf16.mxu0 0
    %7691 = vmatpush1.bf16.msra.mxu0 %v7584
    %7692 = vmatprep.subr.bf16.mxu0 0
    %7693 = vmatpush1.bf16.msra.mxu0 %v7585
    %7694 = vmatprep.subr.bf16.mxu0 0
    %7695 = vmatpush1.bf16.msra.mxu0 %v7586
    %7696 = vmatprep.subr.bf16.mxu0 0
    %7697 = vmatpush1.bf16.msra.mxu0 %v7587
    %7698 = vmatprep.subr.bf16.mxu0 0
    %7699 = vmatpush1.bf16.msra.mxu0 %v7588
    %7700 = vmatprep.subr.bf16.mxu0 0
    %7701 = vmatpush1.bf16.msra.mxu0 %v7589
    %7702 = vmatprep.subr.bf16.mxu0 0
    %7703 = vmatpush1.bf16.msra.mxu0 %v7590
    %7704 = vmatprep.mubr.bf16.mxu0 %v7381
    %7705 = vmatmul.mubr.bf16.gmra.mrb[0].mxu0 %v7380
    %v7706 = vpop.f32.mrb[0].mxu0
    %v7707 = vadd.f32 0.0, %v7706
    %v7708 = vpop.f32.mrb[0].mxu0
    %v7709 = vpop.f32.mrb[0].mxu0
    %v7710 = vpop.f32.mrb[0].mxu0
    %7711 = vdwg.mxu0
    %7712 = vmatprep.subr.bf16.mxu0 0
    %7713 = vmatpush1.bf16.msra.mxu0 %v7591
    %7714 = vmatprep.subr.bf16.mxu0 0
    %7715 = vmatpush1.bf16.msra.mxu0 %v7592
    %7716 = vmatprep.subr.bf16.mxu0 0
    %7717 = vmatpush1.bf16.msra.mxu0 %v7593
    %7718 = vmatprep.subr.bf16.mxu0 0
    %7719 = vmatpush1.bf16.msra.mxu0 %v7594
    %7720 = vmatprep.subr.bf16.mxu0 0
    %7721 = vmatpush1.bf16.msra.mxu0 %v7595
    %7722 = vmatprep.subr.bf16.mxu0 0
    %7723 = vmatpush1.bf16.msra.mxu0 %v7596
    %7724 = vmatprep.subr.bf16.mxu0 0
    %7725 = vmatpush1.bf16.msra.mxu0 %v7597
    %7726 = vmatprep.subr.bf16.mxu0 0
    %7727 = vmatpush1.bf16.msra.mxu0 %v7598
    %7728 = vmatprep.subr.bf16.mxu0 0
    %7729 = vmatpush1.bf16.msra.mxu0 %v7599
    %7730 = vmatprep.subr.bf16.mxu0 0
    %7731 = vmatpush1.bf16.msra.mxu0 %v7600
    %7732 = vmatprep.subr.bf16.mxu0 0
    %7733 = vmatpush1.bf16.msra.mxu0 %v7601
    %7734 = vmatprep.subr.bf16.mxu0 0
    %7735 = vmatpush1.bf16.msra.mxu0 %v7602
    %7736 = vmatprep.subr.bf16.mxu0 0
    %7737 = vmatpush1.bf16.msra.mxu0 %v7603
    %7738 = vmatprep.subr.bf16.mxu0 0
    %7739 = vmatpush1.bf16.msra.mxu0 %v7604
    %7740 = vmatprep.subr.bf16.mxu0 0
    %7741 = vmatpush1.bf16.msra.mxu0 %v7605
    %7742 = vmatprep.subr.bf16.mxu0 0
    %7743 = vmatpush1.bf16.msra.mxu0 %v7606
    %7744 = vmatprep.mubr.bf16.mxu0 %v7383
    %7745 = vmatmul.mubr.bf16.gmra.mrb[0].mxu0 %v7382
    %v7746 = vpop.f32.mrb[0].mxu0
    %v7747 = vadd.f32 %v7707, %v7746
    %v7748 = vpop.f32.mrb[0].mxu0
    %v7749 = vpop.f32.mrb[0].mxu0
    %v7750 = vpop.f32.mrb[0].mxu0
    %7751 = vdwg.mxu0
    %7752 = vmatprep.subr.bf16.mxu0 0
    %7753 = vmatpush1.bf16.msra.mxu0 %v7607
    %7754 = vmatprep.subr.bf16.mxu0 0
    %7755 = vmatpush1.bf16.msra.mxu0 %v7608
    %7756 = vmatprep.subr.bf16.mxu0 0
    %7757 = vmatpush1.bf16.msra.mxu0 %v7609
    %7758 = vmatprep.subr.bf16.mxu0 0
    %7759 = vmatpush1.bf16.msra.mxu0 %v7610
    %7760 = vmatprep.subr.bf16.mxu0 0
    %7761 = vmatpush1.bf16.msra.mxu0 %v7611
    %7762 = vmatprep.subr.bf16.mxu0 0
    %7763 = vmatpush1.bf16.msra.mxu0 %v7612
    %7764 = vmatprep.subr.bf16.mxu0 0
    %7765 = vmatpush1.bf16.msra.mxu0 %v7613
    %7766 = vmatprep.subr.bf16.mxu0 0
    %7767 = vmatpush1.bf16.msra.mxu0 %v7614
    %7768 = vmatprep.subr.bf16.mxu0 0
    %7769 = vmatpush1.bf16.msra.mxu0 %v7615
    %7770 = vmatprep.subr.bf16.mxu0 0
    %7771 = vmatpush1.bf16.msra.mxu0 %v7616
    %7772 = vmatprep.subr.bf16.mxu0 0
    %7773 = vmatpush1.bf16.msra.mxu0 %v7617
    %7774 = vmatprep.subr.bf16.mxu0 0
    %7775 = vmatpush1.bf16.msra.mxu0 %v7618
    %7776 = vmatprep.subr.bf16.mxu0 0
    %7777 = vmatpush1.bf16.msra.mxu0 %v7619
    %7778 = vmatprep.subr.bf16.mxu0 0
    %7779 = vmatpush1.bf16.msra.mxu0 %v7670
    %7780 = vmatprep.subr.bf16.mxu0 0
    %7781 = vmatpush1.bf16.msra.mxu0 0
    %7782 = vmatprep.subr.bf16.mxu0 0
    %7783 = vmatpush1.bf16.msra.mxu0 0
    %7784 = vmatprep.mubr.bf16.mxu0 %v7667
    %7785 = vmatmul.mubr.bf16.gmra.mrb[0].mxu0 %v7384
    %v7786 = vpop.f32.mrb[0].mxu0
    %v7787 = vadd.f32 %v7747, %v7786
    %v7788 = vpop.f32.mrb[0].mxu0
    %v7789 = vpop.f32.mrb[0].mxu0
    %v7790 = vpop.f32.mrb[0].mxu0
    %7791 = vdwg.mxu0
    %v7792 = vadd.f32 %v7286, %v7787
    %s7793 = scalar_lea.vmem [#allocation2], 4048
    %v7794 = vld [vmem:[%s7793] sm:$0xf]
    %v7795 = vld [vmem:[%s7793 + $0x4] sm:$0xf]
    %v7796 = vld [vmem:[%s7793 + $0x8] sm:$0xf]
    %v7797 = vld [vmem:[%s7793 + $0xc] sm:$0xf]
    %v7798 = vld [vmem:[%s7793 + $0x10] sm:$0xf]
    %v7799 = vld [vmem:[%s7793 + $0x14] sm:$0xf]
    %v7800 = vld [vmem:[%s7793 + $0x18] sm:$0xf]
    %v7801 = vld [vmem:[%s7793 + $0x1c] sm:$0xf]
    %v7802 = vld [vmem:[%s7793 + $0x20] sm:$0xf]
    %v7803 = vld [vmem:[%s7793 + $0x24] sm:$0xf]
    %v7804 = vld [vmem:[%s7793 + $0x28] sm:$0xf]
    %v7805 = vld [vmem:[%s7793 + $0x2c] sm:$0xf]
    %v7806 = vld [vmem:[%s7793 + $0x30] sm:$0xf]
    %v7807 = vld [vmem:[%s7793 + $0x34] sm:$0xf]
    %v7808 = vld [vmem:[%s7793 + $0x38] sm:$0xf]
    %v7809 = vld [vmem:[%s7793 + $0x3c] sm:$0xf]
    %v7810 = vld [vmem:[%s7793 + $0x40] sm:$0xf]
    %v7811 = vld [vmem:[%s7793 + $0x44] sm:$0xf]
    %v7812 = vld [vmem:[%s7793 + $0x48] sm:$0xf]
    %v7813 = vld [vmem:[%s7793 + $0x4c] sm:$0xf]
    %v7814 = vld [vmem:[%s7793 + $0x50] sm:$0xf]
    %v7815 = vld [vmem:[%s7793 + $0x54] sm:$0xf]
    %v7816 = vld [vmem:[%s7793 + $0x58] sm:$0xf]
    %v7817 = vld [vmem:[%s7793 + $0x5c] sm:$0xf]
    %v7818 = vld [vmem:[%s7793 + $0x60] sm:$0xf]
    %v7819 = vld [vmem:[%s7793 + $0x64] sm:$0xf]
    %v7820 = vld [vmem:[%s7793 + $0x68] sm:$0xf]
    %v7821 = vld [vmem:[%s7793 + $0x6c] sm:$0xf]
    %v7822 = vld [vmem:[%s7793 + $0x70] sm:$0xf]
    %v7823 = vld [vmem:[%s7793 + $0x74] sm:$0xf]
    %v7824 = vld [vmem:[%s7793 + $0x78] sm:$0xf]
    %v7825 = vld [vmem:[%s7793 + $0x7c] sm:$0xf]
    %v7826 = vld [vmem:[%s7793 + $0x80] sm:$0xf]
    %v7827 = vld [vmem:[%s7793 + $0x84] sm:$0xf]
    %v7828 = vld [vmem:[%s7793 + $0x88] sm:$0xf]
    %v7829 = vld [vmem:[%s7793 + $0x8c] sm:$0xf]
    %v7830 = vld [vmem:[%s7793 + $0x90] sm:$0xf]
    %v7831 = vld [vmem:[%s7793 + $0x94] sm:$0xf]
    %v7832 = vld [vmem:[%s7793 + $0x98] sm:$0xf]
    %v7833 = vld [vmem:[%s7793 + $0x9c] sm:$0xf]
    %v7834 = vld [vmem:[%s7793 + $0xa0] sm:$0xf]
    %v7835 = vld [vmem:[%s7793 + $0xa4] sm:$0xf]
    %v7836 = vld [vmem:[%s7793 + $0xa8] sm:$0xf]
    %v7837 = vld [vmem:[%s7793 + $0xac] sm:$0xf]
    %v7838 = vld [vmem:[%s7793 + $0xb0] sm:$0xf]
    %v7839 = vld [vmem:[%s7793 + $0xb4] sm:$0xf]
    %v7840 = vld [vmem:[%s7793 + $0xb8] sm:$0xf]
    %v7841 = vld [vmem:[%s7793 + $0xbc] sm:$0xf]
    %v7842 = vld [vmem:[%s7793 + $0xc0] sm:$0xf]
    %v7843 = vld [vmem:[%s7793 + $0xc4] sm:$0xf]
    %v7844 = vld [vmem:[%s7793 + $0xc8] sm:$0xf]
    %v7845 = vld [vmem:[%s7793 + $0xcc] sm:$0xf]
    %v7846 = vld [vmem:[%s7793 + $0xd0] sm:$0xf]
    %v7847 = vld [vmem:[%s7793 + $0xd4] sm:$0xf]
    %v7848 = vld [vmem:[%s7793 + $0xd8] sm:$0xf]
    %v7849 = vld [vmem:[%s7793 + $0xdc] sm:$0xf]
    %v7850 = vld [vmem:[%s7793 + $0xe0] sm:$0xf]
    %v7851 = vld [vmem:[%s7793 + $0xe4] sm:$0xf]
    %v7852 = vld [vmem:[%s7793 + $0xe8] sm:$0xf]
    %v7853 = vld [vmem:[%s7793 + $0xec] sm:$0xf]
    %v7854 = vld [vmem:[%s7793 + $0xf0] sm:$0xf]
    %v7855 = vld [vmem:[%s7793 + $0xf4] sm:$0xf]
    %v7856 = vld [vmem:[%s7793 + $0xf8] sm:$0xf]
    %v7857 = vld [vmem:[%s7793 + $0xfc] sm:$0xf]
    %v7858 = vld [vmem:[%s7793 + $0x100] sm:$0xf]
    %v7859 = vld [vmem:[%s7793 + $0x104] sm:$0xf]
    %v7860 = vld [vmem:[%s7793 + $0x108] sm:$0xf]
    %v7861 = vld [vmem:[%s7793 + $0x10c] sm:$0xf]
    %v7862 = vld [vmem:[%s7793 + $0x110] sm:$0xf]
    %v7863 = vld [vmem:[%s7793 + $0x114] sm:$0xf]
    %v7864 = vld [vmem:[%s7793 + $0x118] sm:$0xf]
    %v7865 = vld [vmem:[%s7793 + $0x11c] sm:$0xf]
    %v7866 = vld [vmem:[%s7793 + $0x120] sm:$0xf]
    %v7867 = vld [vmem:[%s7793 + $0x124] sm:$0xf]
    %v7868 = vld [vmem:[%s7793 + $0x128] sm:$0xf]
    %v7869 = vld [vmem:[%s7793 + $0x12c] sm:$0xf]
    %v7870 = vld [vmem:[%s7793 + $0x130] sm:$0xf]
    %v7871 = vld [vmem:[%s7793 + $0x134] sm:$0xf]
    %v7872 = vld [vmem:[%s7793 + $0x138] sm:$0xf]
    %v7873 = vld [vmem:[%s7793 + $0x13c] sm:$0xf]
    %v7874 = vld [vmem:[%s7793 + $0x140] sm:$0xf]
    %v7875 = vld [vmem:[%s7793 + $0x144] sm:$0xf]
    %v7876 = vld [vmem:[%s7793 + $0x148] sm:$0xf]
    %v7877 = vld [vmem:[%s7793 + $0x14c] sm:$0xf]
    %v7878 = vld [vmem:[%s7793 + $0x150] sm:$0xf]
    %v7879 = vld [vmem:[%s7793 + $0x154] sm:$0xf]
    %v7880 = vld [vmem:[%s7793 + $0x158] sm:$0xf]
    %v7881 = vld [vmem:[%s7793 + $0x15c] sm:$0xf]
    %v7882 = vld [vmem:[%s7793 + $0x160] sm:$0xf]
    %v7883 = vld [vmem:[%s7793 + $0x164] sm:$0xf]
    %v7884 = vld [vmem:[%s7793 + $0x168] sm:$0xf]
    %v7885 = vld [vmem:[%s7793 + $0x16c] sm:$0x3]
    %v7886 = vrot.slane %v2408, 5
    %v7887 = vrot.slane %v2411, 5
    %v7888 = vrot.slane %v2414, 5
    %v7889 = vrot.slane %v2417, 5
    %v7890 = vrot.slane %v2420, 5
    %v7891 = vrot.slane %v2423, 5
    %v7989 = vunpack.c.l.b16 %v7794
    %v7990 = vunpack.c.l.b16 %v7795
    %v7991 = vunpack.c.l.b16 %v7796
    %v7992 = vunpack.c.l.b16 %v7797
    %v7993 = vunpack.c.l.b16 %v7798
    %v7994 = vunpack.c.l.b16 %v7799
    %v7995 = vunpack.c.l.b16 %v7800
    %v7996 = vunpack.c.l.b16 %v7801
    %v7997 = vunpack.c.l.b16 %v7802
    %v7998 = vunpack.c.l.b16 %v7803
    %v7999 = vunpack.c.l.b16 %v7804
    %v8000 = vunpack.c.l.b16 %v7805
    %v8001 = vunpack.c.l.b16 %v7806
    %v8002 = vunpack.c.l.b16 %v7807
    %v8003 = vunpack.c.l.b16 %v7808
    %v8004 = vunpack.c.l.b16 %v7809
    %v8005 = vunpack.c.l.b16 %v7810
    %v8006 = vunpack.c.l.b16 %v7811
    %v8007 = vunpack.c.l.b16 %v7812
    %v8008 = vunpack.c.l.b16 %v7813
    %v8009 = vunpack.c.l.b16 %v7814
    %v8010 = vunpack.c.l.b16 %v7815
    %v8011 = vunpack.c.l.b16 %v7816
    %v8012 = vunpack.c.l.b16 %v7817
    %v8013 = vunpack.c.l.b16 %v7818
    %v8014 = vunpack.c.l.b16 %v7819
    %v8015 = vunpack.c.l.b16 %v7820
    %v8016 = vunpack.c.l.b16 %v7821
    %v8017 = vunpack.c.l.b16 %v7822
    %v8018 = vunpack.c.l.b16 %v7823
    %v8019 = vunpack.c.l.b16 %v7824
    %v8020 = vunpack.c.l.b16 %v7825
    %v8021 = vunpack.c.l.b16 %v7826
    %v8022 = vunpack.c.l.b16 %v7827
    %v8023 = vunpack.c.l.b16 %v7828
    %v8024 = vunpack.c.l.b16 %v7829
    %v8025 = vunpack.c.l.b16 %v7830
    %v8026 = vunpack.c.l.b16 %v7831
    %v8027 = vunpack.c.l.b16 %v7832
    %v8028 = vunpack.c.l.b16 %v7833
    %v8029 = vunpack.c.l.b16 %v7834
    %v8030 = vunpack.c.l.b16 %v7835
    %v8031 = vunpack.c.l.b16 %v7836
    %v8032 = vunpack.c.l.b16 %v7837
    %v8033 = vunpack.c.l.b16 %v7838
    %v8034 = vunpack.c.l.b16 %v7839
    %v8035 = vunpack.c.l.b16 %v7840
    %v8036 = vunpack.c.l.b16 %v7841
    %v8037 = vunpack.c.l.b16 %v7842
    %v8038 = vunpack.c.l.b16 %v7843
    %v8039 = vunpack.c.l.b16 %v7844
    %v8040 = vunpack.c.l.b16 %v7845
    %v8041 = vunpack.c.l.b16 %v7846
    %v8042 = vunpack.c.l.b16 %v7847
    %v8043 = vunpack.c.l.b16 %v7848
    %v8044 = vunpack.c.l.b16 %v7849
    %v8045 = vunpack.c.l.b16 %v7850
    %v8046 = vunpack.c.l.b16 %v7851
    %v8047 = vunpack.c.l.b16 %v7852
    %v8048 = vunpack.c.l.b16 %v7853
    %v8049 = vunpack.c.l.b16 %v7854
    %v8050 = vunpack.c.l.b16 %v7855
    %v8051 = vunpack.c.l.b16 %v7856
    %v8052 = vunpack.c.l.b16 %v7857
    %v8053 = vunpack.c.l.b16 %v7858
    %v8054 = vunpack.c.l.b16 %v7859
    %v8055 = vunpack.c.l.b16 %v7860
    %v8056 = vunpack.c.l.b16 %v7861
    %v8057 = vunpack.c.l.b16 %v7862
    %v8058 = vunpack.c.l.b16 %v7863
    %v8059 = vunpack.c.l.b16 %v7864
    %v8060 = vunpack.c.l.b16 %v7865
    %v8061 = vunpack.c.l.b16 %v7866
    %v8062 = vunpack.c.l.b16 %v7867
    %v8063 = vunpack.c.l.b16 %v7868
    %v8064 = vunpack.c.l.b16 %v7869
    %v8065 = vunpack.c.l.b16 %v7870
    %v8066 = vunpack.c.l.b16 %v7871
    %v8067 = vunpack.c.l.b16 %v7872
    %v8068 = vunpack.c.l.b16 %v7873
    %v8069 = vunpack.c.l.b16 %v7874
    %v8070 = vunpack.c.l.b16 %v7875
    %v8071 = vunpack.c.l.b16 %v7876
    %v8072 = vunpack.c.l.b16 %v7877
    %v8073 = vunpack.c.l.b16 %v7878
    %v8074 = vunpack.c.l.b16 %v7879
    %v8075 = vunpack.c.l.b16 %v7880
    %v8076 = vunpack.c.l.b16 %v7881
    %v8077 = vunpack.c.l.b16 %v7882
    %v8078 = vunpack.c.l.b16 %v7883
    %v8079 = vunpack.c.l.b16 %v7884
    %v8080 = vunpack.c.l.b16 %v7885
    %v8081 = vpack.c.b16 %v7990, %v7989
    %v8082 = vpack.c.b16 %v7992, %v7991
    %v8083 = vpack.c.b16 %v7994, %v7993
    %v8084 = vpack.c.b16 %v7996, %v7995
    %v8085 = vpack.c.b16 %v7998, %v7997
    %v8086 = vpack.c.b16 %v8000, %v7999
    %v8087 = vpack.c.b16 %v8002, %v8001
    %v8088 = vpack.c.b16 %v8004, %v8003
    %v8089 = vpack.c.b16 %v8006, %v8005
    %v8090 = vpack.c.b16 %v8008, %v8007
    %v8091 = vpack.c.b16 %v8010, %v8009
    %v8092 = vpack.c.b16 %v8012, %v8011
    %v8093 = vpack.c.b16 %v8014, %v8013
    %v8094 = vpack.c.b16 %v8016, %v8015
    %v8095 = vpack.c.b16 %v8018, %v8017
    %v8096 = vpack.c.b16 %v8020, %v8019
    %v8097 = vpack.c.b16 %v8022, %v8021
    %v8098 = vpack.c.b16 %v8024, %v8023
    %v8099 = vpack.c.b16 %v8026, %v8025
    %v8100 = vpack.c.b16 %v8028, %v8027
    %v8101 = vpack.c.b16 %v8030, %v8029
    %v8102 = vpack.c.b16 %v8032, %v8031
    %v8103 = vpack.c.b16 %v8034, %v8033
    %v8104 = vpack.c.b16 %v8036, %v8035
    %v8105 = vpack.c.b16 %v8038, %v8037
    %v8106 = vpack.c.b16 %v8040, %v8039
    %v8107 = vpack.c.b16 %v8042, %v8041
    %v8108 = vpack.c.b16 %v8044, %v8043
    %v8109 = vpack.c.b16 %v8046, %v8045
    %v8110 = vpack.c.b16 %v8048, %v8047
    %v8111 = vpack.c.b16 %v8050, %v8049
    %v8112 = vpack.c.b16 %v8052, %v8051
    %v8113 = vpack.c.b16 %v8054, %v8053
    %v8114 = vpack.c.b16 %v8056, %v8055
    %v8115 = vpack.c.b16 %v8058, %v8057
    %v8116 = vpack.c.b16 %v8060, %v8059
    %v8117 = vpack.c.b16 %v8062, %v8061
    %v8118 = vpack.c.b16 %v8064, %v8063
    %v8119 = vpack.c.b16 %v8066, %v8065
    %v8120 = vpack.c.b16 %v8068, %v8067
    %v8121 = vpack.c.b16 %v8070, %v8069
    %v8122 = vpack.c.b16 %v8072, %v8071
    %v8123 = vpack.c.b16 %v8074, %v8073
    %v8124 = vpack.c.b16 %v8076, %v8075
    %v8125 = vpack.c.b16 %v8078, %v8077
    %v8126 = vpack.c.b16 %v8080, %v8079
    %v8173 = vsel %vm2705, %v7891, 0
    %v8176 = vsel %vm2709, %v8126, 0
    %8178 = vmatprep.subr.bf16.mxu0 0
    %8179 = vmatpush1.bf16.msra.mxu0 %v8081
    %8180 = vmatprep.subr.bf16.mxu0 0
    %8181 = vmatpush1.bf16.msra.mxu0 %v8082
    %8182 = vmatprep.subr.bf16.mxu0 0
    %8183 = vmatpush1.bf16.msra.mxu0 %v8083
    %8184 = vmatprep.subr.bf16.mxu0 0
    %8185 = vmatpush1.bf16.msra.mxu0 %v8084
    %8186 = vmatprep.subr.bf16.mxu0 0
    %8187 = vmatpush1.bf16.msra.mxu0 %v8085
    %8188 = vmatprep.subr.bf16.mxu0 0
    %8189 = vmatpush1.bf16.msra.mxu0 %v8086
    %8190 = vmatprep.subr.bf16.mxu0 0
    %8191 = vmatpush1.bf16.msra.mxu0 %v8087
    %8192 = vmatprep.subr.bf16.mxu0 0
    %8193 = vmatpush1.bf16.msra.mxu0 %v8088
    %8194 = vmatprep.subr.bf16.mxu0 0
    %8195 = vmatpush1.bf16.msra.mxu0 %v8089
    %8196 = vmatprep.subr.bf16.mxu0 0
    %8197 = vmatpush1.bf16.msra.mxu0 %v8090
    %8198 = vmatprep.subr.bf16.mxu0 0
    %8199 = vmatpush1.bf16.msra.mxu0 %v8091
    %8200 = vmatprep.subr.bf16.mxu0 0
    %8201 = vmatpush1.bf16.msra.mxu0 %v8092
    %8202 = vmatprep.subr.bf16.mxu0 0
    %8203 = vmatpush1.bf16.msra.mxu0 %v8093
    %8204 = vmatprep.subr.bf16.mxu0 0
    %8205 = vmatpush1.bf16.msra.mxu0 %v8094
    %8206 = vmatprep.subr.bf16.mxu0 0
    %8207 = vmatpush1.bf16.msra.mxu0 %v8095
    %8208 = vmatprep.subr.bf16.mxu0 0
    %8209 = vmatpush1.bf16.msra.mxu0 %v8096
    %8210 = vmatprep.mubr.bf16.mxu0 %v7887
    %8211 = vmatmul.mubr.bf16.gmra.mrb[0].mxu0 %v7886
    %v8212 = vpop.f32.mrb[0].mxu0
    %v8213 = vadd.f32 0.0, %v8212
    %v8214 = vpop.f32.mrb[0].mxu0
    %v8215 = vpop.f32.mrb[0].mxu0
    %v8216 = vpop.f32.mrb[0].mxu0
    %8217 = vdwg.mxu0
    %8218 = vmatprep.subr.bf16.mxu0 0
    %8219 = vmatpush1.bf16.msra.mxu0 %v8097
    %8220 = vmatprep.subr.bf16.mxu0 0
    %8221 = vmatpush1.bf16.msra.mxu0 %v8098
    %8222 = vmatprep.subr.bf16.mxu0 0
    %8223 = vmatpush1.bf16.msra.mxu0 %v8099
    %8224 = vmatprep.subr.bf16.mxu0 0
    %8225 = vmatpush1.bf16.msra.mxu0 %v8100
    %8226 = vmatprep.subr.bf16.mxu0 0
    %8227 = vmatpush1.bf16.msra.mxu0 %v8101
    %8228 = vmatprep.subr.bf16.mxu0 0
    %8229 = vmatpush1.bf16.msra.mxu0 %v8102
    %8230 = vmatprep.subr.bf16.mxu0 0
    %8231 = vmatpush1.bf16.msra.mxu0 %v8103
    %8232 = vmatprep.subr.bf16.mxu0 0
    %8233 = vmatpush1.bf16.msra.mxu0 %v8104
    %8234 = vmatprep.subr.bf16.mxu0 0
    %8235 = vmatpush1.bf16.msra.mxu0 %v8105
    %8236 = vmatprep.subr.bf16.mxu0 0
    %8237 = vmatpush1.bf16.msra.mxu0 %v8106
    %8238 = vmatprep.subr.bf16.mxu0 0
    %8239 = vmatpush1.bf16.msra.mxu0 %v8107
    %8240 = vmatprep.subr.bf16.mxu0 0
    %8241 = vmatpush1.bf16.msra.mxu0 %v8108
    %8242 = vmatprep.subr.bf16.mxu0 0
    %8243 = vmatpush1.bf16.msra.mxu0 %v8109
    %8244 = vmatprep.subr.bf16.mxu0 0
    %8245 = vmatpush1.bf16.msra.mxu0 %v8110
    %8246 = vmatprep.subr.bf16.mxu0 0
    %8247 = vmatpush1.bf16.msra.mxu0 %v8111
    %8248 = vmatprep.subr.bf16.mxu0 0
    %8249 = vmatpush1.bf16.msra.mxu0 %v8112
    %8250 = vmatprep.mubr.bf16.mxu0 %v7889
    %8251 = vmatmul.mubr.bf16.gmra.mrb[0].mxu0 %v7888
    %v8252 = vpop.f32.mrb[0].mxu0
    %v8253 = vadd.f32 %v8213, %v8252
    %v8254 = vpop.f32.mrb[0].mxu0
    %v8255 = vpop.f32.mrb[0].mxu0
    %v8256 = vpop.f32.mrb[0].mxu0
    %8257 = vdwg.mxu0
    %8258 = vmatprep.subr.bf16.mxu0 0
    %8259 = vmatpush1.bf16.msra.mxu0 %v8113
    %8260 = vmatprep.subr.bf16.mxu0 0
    %8261 = vmatpush1.bf16.msra.mxu0 %v8114
    %8262 = vmatprep.subr.bf16.mxu0 0
    %8263 = vmatpush1.bf16.msra.mxu0 %v8115
    %8264 = vmatprep.subr.bf16.mxu0 0
    %8265 = vmatpush1.bf16.msra.mxu0 %v8116
    %8266 = vmatprep.subr.bf16.mxu0 0
    %8267 = vmatpush1.bf16.msra.mxu0 %v8117
    %8268 = vmatprep.subr.bf16.mxu0 0
    %8269 = vmatpush1.bf16.msra.mxu0 %v8118
    %8270 = vmatprep.subr.bf16.mxu0 0
    %8271 = vmatpush1.bf16.msra.mxu0 %v8119
    %8272 = vmatprep.subr.bf16.mxu0 0
    %8273 = vmatpush1.bf16.msra.mxu0 %v8120
    %8274 = vmatprep.subr.bf16.mxu0 0
    %8275 = vmatpush1.bf16.msra.mxu0 %v8121
    %8276 = vmatprep.subr.bf16.mxu0 0
    %8277 = vmatpush1.bf16.msra.mxu0 %v8122
    %8278 = vmatprep.subr.bf16.mxu0 0
    %8279 = vmatpush1.bf16.msra.mxu0 %v8123
    %8280 = vmatprep.subr.bf16.mxu0 0
    %8281 = vmatpush1.bf16.msra.mxu0 %v8124
    %8282 = vmatprep.subr.bf16.mxu0 0
    %8283 = vmatpush1.bf16.msra.mxu0 %v8125
    %8284 = vmatprep.subr.bf16.mxu0 0
    %8285 = vmatpush1.bf16.msra.mxu0 %v8176
    %8286 = vmatprep.subr.bf16.mxu0 0
    %8287 = vmatpush1.bf16.msra.mxu0 0
    %8288 = vmatprep.subr.bf16.mxu0 0
    %8289 = vmatpush1.bf16.msra.mxu0 0
    %8290 = vmatprep.mubr.bf16.mxu0 %v8173
    %8291 = vmatmul.mubr.bf16.gmra.mrb[0].mxu0 %v7890
    %v8292 = vpop.f32.mrb[0].mxu0
    %v8293 = vadd.f32 %v8253, %v8292
    %v8294 = vpop.f32.mrb[0].mxu0
    %v8295 = vpop.f32.mrb[0].mxu0
    %v8296 = vpop.f32.mrb[0].mxu0
    %8297 = vdwg.mxu0
    %v8298 = vadd.f32 %v7792, %v8293
    %s8299 = scalar_lea.vmem [#allocation2], 4416
    %v8300 = vld [vmem:[%s8299] sm:$0xf]
    %v8301 = vld [vmem:[%s8299 + $0x4] sm:$0xf]
    %v8302 = vld [vmem:[%s8299 + $0x8] sm:$0xf]
    %v8303 = vld [vmem:[%s8299 + $0xc] sm:$0xf]
    %v8304 = vld [vmem:[%s8299 + $0x10] sm:$0xf]
    %v8305 = vld [vmem:[%s8299 + $0x14] sm:$0xf]
    %v8306 = vld [vmem:[%s8299 + $0x18] sm:$0xf]
    %v8307 = vld [vmem:[%s8299 + $0x1c] sm:$0xf]
    %v8308 = vld [vmem:[%s8299 + $0x20] sm:$0xf]
    %v8309 = vld [vmem:[%s8299 + $0x24] sm:$0xf]
    %v8310 = vld [vmem:[%s8299 + $0x28] sm:$0xf]
    %v8311 = vld [vmem:[%s8299 + $0x2c] sm:$0xf]
    %v8312 = vld [vmem:[%s8299 + $0x30] sm:$0xf]
    %v8313 = vld [vmem:[%s8299 + $0x34] sm:$0xf]
    %v8314 = vld [vmem:[%s8299 + $0x38] sm:$0xf]
    %v8315 = vld [vmem:[%s8299 + $0x3c] sm:$0xf]
    %v8316 = vld [vmem:[%s8299 + $0x40] sm:$0xf]
    %v8317 = vld [vmem:[%s8299 + $0x44] sm:$0xf]
    %v8318 = vld [vmem:[%s8299 + $0x48] sm:$0xf]
    %v8319 = vld [vmem:[%s8299 + $0x4c] sm:$0xf]
    %v8320 = vld [vmem:[%s8299 + $0x50] sm:$0xf]
    %v8321 = vld [vmem:[%s8299 + $0x54] sm:$0xf]
    %v8322 = vld [vmem:[%s8299 + $0x58] sm:$0xf]
    %v8323 = vld [vmem:[%s8299 + $0x5c] sm:$0xf]
    %v8324 = vld [vmem:[%s8299 + $0x60] sm:$0xf]
    %v8325 = vld [vmem:[%s8299 + $0x64] sm:$0xf]
    %v8326 = vld [vmem:[%s8299 + $0x68] sm:$0xf]
    %v8327 = vld [vmem:[%s8299 + $0x6c] sm:$0xf]
    %v8328 = vld [vmem:[%s8299 + $0x70] sm:$0xf]
    %v8329 = vld [vmem:[%s8299 + $0x74] sm:$0xf]
    %v8330 = vld [vmem:[%s8299 + $0x78] sm:$0xf]
    %v8331 = vld [vmem:[%s8299 + $0x7c] sm:$0xf]
    %v8332 = vld [vmem:[%s8299 + $0x80] sm:$0xf]
    %v8333 = vld [vmem:[%s8299 + $0x84] sm:$0xf]
    %v8334 = vld [vmem:[%s8299 + $0x88] sm:$0xf]
    %v8335 = vld [vmem:[%s8299 + $0x8c] sm:$0xf]
    %v8336 = vld [vmem:[%s8299 + $0x90] sm:$0xf]
    %v8337 = vld [vmem:[%s8299 + $0x94] sm:$0xf]
    %v8338 = vld [vmem:[%s8299 + $0x98] sm:$0xf]
    %v8339 = vld [vmem:[%s8299 + $0x9c] sm:$0xf]
    %v8340 = vld [vmem:[%s8299 + $0xa0] sm:$0xf]
    %v8341 = vld [vmem:[%s8299 + $0xa4] sm:$0xf]
    %v8342 = vld [vmem:[%s8299 + $0xa8] sm:$0xf]
    %v8343 = vld [vmem:[%s8299 + $0xac] sm:$0xf]
    %v8344 = vld [vmem:[%s8299 + $0xb0] sm:$0xf]
    %v8345 = vld [vmem:[%s8299 + $0xb4] sm:$0xf]
    %v8346 = vld [vmem:[%s8299 + $0xb8] sm:$0xf]
    %v8347 = vld [vmem:[%s8299 + $0xbc] sm:$0xf]
    %v8348 = vld [vmem:[%s8299 + $0xc0] sm:$0xf]
    %v8349 = vld [vmem:[%s8299 + $0xc4] sm:$0xf]
    %v8350 = vld [vmem:[%s8299 + $0xc8] sm:$0xf]
    %v8351 = vld [vmem:[%s8299 + $0xcc] sm:$0xf]
    %v8352 = vld [vmem:[%s8299 + $0xd0] sm:$0xf]
    %v8353 = vld [vmem:[%s8299 + $0xd4] sm:$0xf]
    %v8354 = vld [vmem:[%s8299 + $0xd8] sm:$0xf]
    %v8355 = vld [vmem:[%s8299 + $0xdc] sm:$0xf]
    %v8356 = vld [vmem:[%s8299 + $0xe0] sm:$0xf]
    %v8357 = vld [vmem:[%s8299 + $0xe4] sm:$0xf]
    %v8358 = vld [vmem:[%s8299 + $0xe8] sm:$0xf]
    %v8359 = vld [vmem:[%s8299 + $0xec] sm:$0xf]
    %v8360 = vld [vmem:[%s8299 + $0xf0] sm:$0xf]
    %v8361 = vld [vmem:[%s8299 + $0xf4] sm:$0xf]
    %v8362 = vld [vmem:[%s8299 + $0xf8] sm:$0xf]
    %v8363 = vld [vmem:[%s8299 + $0xfc] sm:$0xf]
    %v8364 = vld [vmem:[%s8299 + $0x100] sm:$0xf]
    %v8365 = vld [vmem:[%s8299 + $0x104] sm:$0xf]
    %v8366 = vld [vmem:[%s8299 + $0x108] sm:$0xf]
    %v8367 = vld [vmem:[%s8299 + $0x10c] sm:$0xf]
    %v8368 = vld [vmem:[%s8299 + $0x110] sm:$0xf]
    %v8369 = vld [vmem:[%s8299 + $0x114] sm:$0xf]
    %v8370 = vld [vmem:[%s8299 + $0x118] sm:$0xf]
    %v8371 = vld [vmem:[%s8299 + $0x11c] sm:$0xf]
    %v8372 = vld [vmem:[%s8299 + $0x120] sm:$0xf]
    %v8373 = vld [vmem:[%s8299 + $0x124] sm:$0xf]
    %v8374 = vld [vmem:[%s8299 + $0x128] sm:$0xf]
    %v8375 = vld [vmem:[%s8299 + $0x12c] sm:$0xf]
    %v8376 = vld [vmem:[%s8299 + $0x130] sm:$0xf]
    %v8377 = vld [vmem:[%s8299 + $0x134] sm:$0xf]
    %v8378 = vld [vmem:[%s8299 + $0x138] sm:$0xf]
    %v8379 = vld [vmem:[%s8299 + $0x13c] sm:$0xf]
    %v8380 = vld [vmem:[%s8299 + $0x140] sm:$0xf]
    %v8381 = vld [vmem:[%s8299 + $0x144] sm:$0xf]
    %v8382 = vld [vmem:[%s8299 + $0x148] sm:$0xf]
    %v8383 = vld [vmem:[%s8299 + $0x14c] sm:$0xf]
    %v8384 = vld [vmem:[%s8299 + $0x150] sm:$0xf]
    %v8385 = vld [vmem:[%s8299 + $0x154] sm:$0xf]
    %v8386 = vld [vmem:[%s8299 + $0x158] sm:$0xf]
    %v8387 = vld [vmem:[%s8299 + $0x15c] sm:$0xf]
    %v8388 = vld [vmem:[%s8299 + $0x160] sm:$0xf]
    %v8389 = vld [vmem:[%s8299 + $0x164] sm:$0xf]
    %v8390 = vld [vmem:[%s8299 + $0x168] sm:$0xf]
    %v8391 = vld [vmem:[%s8299 + $0x16c] sm:$0x3]
    %v8392 = vrot.slane %v2211, 6
    %v8393 = vrot.slane %v2212, 6
    %v8394 = vrot.slane %v2213, 6
    %v8395 = vrot.slane %v2214, 6
    %v8396 = vrot.slane %v2215, 6
    %v8397 = vrot.slane %v2216, 6
    %v8495 = vunpack.c.l.b16 %v8300
    %v8496 = vunpack.c.l.b16 %v8301
    %v8497 = vunpack.c.l.b16 %v8302
    %v8498 = vunpack.c.l.b16 %v8303
    %v8499 = vunpack.c.l.b16 %v8304
    %v8500 = vunpack.c.l.b16 %v8305
    %v8501 = vunpack.c.l.b16 %v8306
    %v8502 = vunpack.c.l.b16 %v8307
    %v8503 = vunpack.c.l.b16 %v8308
    %v8504 = vunpack.c.l.b16 %v8309
    %v8505 = vunpack.c.l.b16 %v8310
    %v8506 = vunpack.c.l.b16 %v8311
    %v8507 = vunpack.c.l.b16 %v8312
    %v8508 = vunpack.c.l.b16 %v8313
    %v8509 = vunpack.c.l.b16 %v8314
    %v8510 = vunpack.c.l.b16 %v8315
    %v8511 = vunpack.c.l.b16 %v8316
    %v8512 = vunpack.c.l.b16 %v8317
    %v8513 = vunpack.c.l.b16 %v8318
    %v8514 = vunpack.c.l.b16 %v8319
    %v8515 = vunpack.c.l.b16 %v8320
    %v8516 = vunpack.c.l.b16 %v8321
    %v8517 = vunpack.c.l.b16 %v8322
    %v8518 = vunpack.c.l.b16 %v8323
    %v8519 = vunpack.c.l.b16 %v8324
    %v8520 = vunpack.c.l.b16 %v8325
    %v8521 = vunpack.c.l.b16 %v8326
    %v8522 = vunpack.c.l.b16 %v8327
    %v8523 = vunpack.c.l.b16 %v8328
    %v8524 = vunpack.c.l.b16 %v8329
    %v8525 = vunpack.c.l.b16 %v8330
    %v8526 = vunpack.c.l.b16 %v8331
    %v8527 = vunpack.c.l.b16 %v8332
    %v8528 = vunpack.c.l.b16 %v8333
    %v8529 = vunpack.c.l.b16 %v8334
    %v8530 = vunpack.c.l.b16 %v8335
    %v8531 = vunpack.c.l.b16 %v8336
    %v8532 = vunpack.c.l.b16 %v8337
    %v8533 = vunpack.c.l.b16 %v8338
    %v8534 = vunpack.c.l.b16 %v8339
    %v8535 = vunpack.c.l.b16 %v8340
    %v8536 = vunpack.c.l.b16 %v8341
    %v8537 = vunpack.c.l.b16 %v8342
    %v8538 = vunpack.c.l.b16 %v8343
    %v8539 = vunpack.c.l.b16 %v8344
    %v8540 = vunpack.c.l.b16 %v8345
    %v8541 = vunpack.c.l.b16 %v8346
    %v8542 = vunpack.c.l.b16 %v8347
    %v8543 = vunpack.c.l.b16 %v8348
    %v8544 = vunpack.c.l.b16 %v8349
    %v8545 = vunpack.c.l.b16 %v8350
    %v8546 = vunpack.c.l.b16 %v8351
    %v8547 = vunpack.c.l.b16 %v8352
    %v8548 = vunpack.c.l.b16 %v8353
    %v8549 = vunpack.c.l.b16 %v8354
    %v8550 = vunpack.c.l.b16 %v8355
    %v8551 = vunpack.c.l.b16 %v8356
    %v8552 = vunpack.c.l.b16 %v8357
    %v8553 = vunpack.c.l.b16 %v8358
    %v8554 = vunpack.c.l.b16 %v8359
    %v8555 = vunpack.c.l.b16 %v8360
    %v8556 = vunpack.c.l.b16 %v8361
    %v8557 = vunpack.c.l.b16 %v8362
    %v8558 = vunpack.c.l.b16 %v8363
    %v8559 = vunpack.c.l.b16 %v8364
    %v8560 = vunpack.c.l.b16 %v8365
    %v8561 = vunpack.c.l.b16 %v8366
    %v8562 = vunpack.c.l.b16 %v8367
    %v8563 = vunpack.c.l.b16 %v8368
    %v8564 = vunpack.c.l.b16 %v8369
    %v8565 = vunpack.c.l.b16 %v8370
    %v8566 = vunpack.c.l.b16 %v8371
    %v8567 = vunpack.c.l.b16 %v8372
    %v8568 = vunpack.c.l.b16 %v8373
    %v8569 = vunpack.c.l.b16 %v8374
    %v8570 = vunpack.c.l.b16 %v8375
    %v8571 = vunpack.c.l.b16 %v8376
    %v8572 = vunpack.c.l.b16 %v8377
    %v8573 = vunpack.c.l.b16 %v8378
    %v8574 = vunpack.c.l.b16 %v8379
    %v8575 = vunpack.c.l.b16 %v8380
    %v8576 = vunpack.c.l.b16 %v8381
    %v8577 = vunpack.c.l.b16 %v8382
    %v8578 = vunpack.c.l.b16 %v8383
    %v8579 = vunpack.c.l.b16 %v8384
    %v8580 = vunpack.c.l.b16 %v8385
    %v8581 = vunpack.c.l.b16 %v8386
    %v8582 = vunpack.c.l.b16 %v8387
    %v8583 = vunpack.c.l.b16 %v8388
    %v8584 = vunpack.c.l.b16 %v8389
    %v8585 = vunpack.c.l.b16 %v8390
    %v8586 = vunpack.c.l.b16 %v8391
    %v8587 = vpack.c.b16 %v8496, %v8495
    %v8588 = vpack.c.b16 %v8498, %v8497
    %v8589 = vpack.c.b16 %v8500, %v8499
    %v8590 = vpack.c.b16 %v8502, %v8501
    %v8591 = vpack.c.b16 %v8504, %v8503
    %v8592 = vpack.c.b16 %v8506, %v8505
    %v8593 = vpack.c.b16 %v8508, %v8507
    %v8594 = vpack.c.b16 %v8510, %v8509
    %v8595 = vpack.c.b16 %v8512, %v8511
    %v8596 = vpack.c.b16 %v8514, %v8513
    %v8597 = vpack.c.b16 %v8516, %v8515
    %v8598 = vpack.c.b16 %v8518, %v8517
    %v8599 = vpack.c.b16 %v8520, %v8519
    %v8600 = vpack.c.b16 %v8522, %v8521
    %v8601 = vpack.c.b16 %v8524, %v8523
    %v8602 = vpack.c.b16 %v8526, %v8525
    %v8603 = vpack.c.b16 %v8528, %v8527
    %v8604 = vpack.c.b16 %v8530, %v8529
    %v8605 = vpack.c.b16 %v8532, %v8531
    %v8606 = vpack.c.b16 %v8534, %v8533
    %v8607 = vpack.c.b16 %v8536, %v8535
    %v8608 = vpack.c.b16 %v8538, %v8537
    %v8609 = vpack.c.b16 %v8540, %v8539
    %v8610 = vpack.c.b16 %v8542, %v8541
    %v8611 = vpack.c.b16 %v8544, %v8543
    %v8612 = vpack.c.b16 %v8546, %v8545
    %v8613 = vpack.c.b16 %v8548, %v8547
    %v8614 = vpack.c.b16 %v8550, %v8549
    %v8615 = vpack.c.b16 %v8552, %v8551
    %v8616 = vpack.c.b16 %v8554, %v8553
    %v8617 = vpack.c.b16 %v8556, %v8555
    %v8618 = vpack.c.b16 %v8558, %v8557
    %v8619 = vpack.c.b16 %v8560, %v8559
    %v8620 = vpack.c.b16 %v8562, %v8561
    %v8621 = vpack.c.b16 %v8564, %v8563
    %v8622 = vpack.c.b16 %v8566, %v8565
    %v8623 = vpack.c.b16 %v8568, %v8567
    %v8624 = vpack.c.b16 %v8570, %v8569
    %v8625 = vpack.c.b16 %v8572, %v8571
    %v8626 = vpack.c.b16 %v8574, %v8573
    %v8627 = vpack.c.b16 %v8576, %v8575
    %v8628 = vpack.c.b16 %v8578, %v8577
    %v8629 = vpack.c.b16 %v8580, %v8579
    %v8630 = vpack.c.b16 %v8582, %v8581
    %v8631 = vpack.c.b16 %v8584, %v8583
    %v8632 = vpack.c.b16 %v8586, %v8585
    %v8679 = vsel %vm2705, %v8397, 0
    %v8682 = vsel %vm2709, %v8632, 0
    %8684 = vmatprep.subr.bf16.mxu0 0
    %8685 = vmatpush1.bf16.msra.mxu0 %v8587
    %8686 = vmatprep.subr.bf16.mxu0 0
    %8687 = vmatpush1.bf16.msra.mxu0 %v8588
    %8688 = vmatprep.subr.bf16.mxu0 0
    %8689 = vmatpush1.bf16.msra.mxu0 %v8589
    %8690 = vmatprep.subr.bf16.mxu0 0
    %8691 = vmatpush1.bf16.msra.mxu0 %v8590
    %8692 = vmatprep.subr.bf16.mxu0 0
    %8693 = vmatpush1.bf16.msra.mxu0 %v8591
    %8694 = vmatprep.subr.bf16.mxu0 0
    %8695 = vmatpush1.bf16.msra.mxu0 %v8592
    %8696 = vmatprep.subr.bf16.mxu0 0
    %8697 = vmatpush1.bf16.msra.mxu0 %v8593
    %8698 = vmatprep.subr.bf16.mxu0 0
    %8699 = vmatpush1.bf16.msra.mxu0 %v8594
    %8700 = vmatprep.subr.bf16.mxu0 0
    %8701 = vmatpush1.bf16.msra.mxu0 %v8595
    %8702 = vmatprep.subr.bf16.mxu0 0
    %8703 = vmatpush1.bf16.msra.mxu0 %v8596
    %8704 = vmatprep.subr.bf16.mxu0 0
    %8705 = vmatpush1.bf16.msra.mxu0 %v8597
    %8706 = vmatprep.subr.bf16.mxu0 0
    %8707 = vmatpush1.bf16.msra.mxu0 %v8598
    %8708 = vmatprep.subr.bf16.mxu0 0
    %8709 = vmatpush1.bf16.msra.mxu0 %v8599
    %8710 = vmatprep.subr.bf16.mxu0 0
    %8711 = vmatpush1.bf16.msra.mxu0 %v8600
    %8712 = vmatprep.subr.bf16.mxu0 0
    %8713 = vmatpush1.bf16.msra.mxu0 %v8601
    %8714 = vmatprep.subr.bf16.mxu0 0
    %8715 = vmatpush1.bf16.msra.mxu0 %v8602
    %8716 = vmatprep.mubr.bf16.mxu0 %v8393
    %8717 = vmatmul.mubr.bf16.gmra.mrb[0].mxu0 %v8392
    %v8718 = vpop.f32.mrb[0].mxu0
    %v8719 = vadd.f32 0.0, %v8718
    %v8720 = vpop.f32.mrb[0].mxu0
    %v8721 = vpop.f32.mrb[0].mxu0
    %v8722 = vpop.f32.mrb[0].mxu0
    %8723 = vdwg.mxu0
    %8724 = vmatprep.subr.bf16.mxu0 0
    %8725 = vmatpush1.bf16.msra.mxu0 %v8603
    %8726 = vmatprep.subr.bf16.mxu0 0
    %8727 = vmatpush1.bf16.msra.mxu0 %v8604
    %8728 = vmatprep.subr.bf16.mxu0 0
    %8729 = vmatpush1.bf16.msra.mxu0 %v8605
    %8730 = vmatprep.subr.bf16.mxu0 0
    %8731 = vmatpush1.bf16.msra.mxu0 %v8606
    %8732 = vmatprep.subr.bf16.mxu0 0
    %8733 = vmatpush1.bf16.msra.mxu0 %v8607
    %8734 = vmatprep.subr.bf16.mxu0 0
    %8735 = vmatpush1.bf16.msra.mxu0 %v8608
    %8736 = vmatprep.subr.bf16.mxu0 0
    %8737 = vmatpush1.bf16.msra.mxu0 %v8609
    %8738 = vmatprep.subr.bf16.mxu0 0
    %8739 = vmatpush1.bf16.msra.mxu0 %v8610
    %8740 = vmatprep.subr.bf16.mxu0 0
    %8741 = vmatpush1.bf16.msra.mxu0 %v8611
    %8742 = vmatprep.subr.bf16.mxu0 0
    %8743 = vmatpush1.bf16.msra.mxu0 %v8612
    %8744 = vmatprep.subr.bf16.mxu0 0
    %8745 = vmatpush1.bf16.msra.mxu0 %v8613
    %8746 = vmatprep.subr.bf16.mxu0 0
    %8747 = vmatpush1.bf16.msra.mxu0 %v8614
    %8748 = vmatprep.subr.bf16.mxu0 0
    %8749 = vmatpush1.bf16.msra.mxu0 %v8615
    %8750 = vmatprep.subr.bf16.mxu0 0
    %8751 = vmatpush1.bf16.msra.mxu0 %v8616
    %8752 = vmatprep.subr.bf16.mxu0 0
    %8753 = vmatpush1.bf16.msra.mxu0 %v8617
    %8754 = vmatprep.subr.bf16.mxu0 0
    %8755 = vmatpush1.bf16.msra.mxu0 %v8618
    %8756 = vmatprep.mubr.bf16.mxu0 %v8395
    %8757 = vmatmul.mubr.bf16.gmra.mrb[0].mxu0 %v8394
    %v8758 = vpop.f32.mrb[0].mxu0
    %v8759 = vadd.f32 %v8719, %v8758
    %v8760 = vpop.f32.mrb[0].mxu0
    %v8761 = vpop.f32.mrb[0].mxu0
    %v8762 = vpop.f32.mrb[0].mxu0
    %8763 = vdwg.mxu0
    %8764 = vmatprep.subr.bf16.mxu0 0
    %8765 = vmatpush1.bf16.msra.mxu0 %v8619
    %8766 = vmatprep.subr.bf16.mxu0 0
    %8767 = vmatpush1.bf16.msra.mxu0 %v8620
    %8768 = vmatprep.subr.bf16.mxu0 0
    %8769 = vmatpush1.bf16.msra.mxu0 %v8621
    %8770 = vmatprep.subr.bf16.mxu0 0
    %8771 = vmatpush1.bf16.msra.mxu0 %v8622
    %8772 = vmatprep.subr.bf16.mxu0 0
    %8773 = vmatpush1.bf16.msra.mxu0 %v8623
    %8774 = vmatprep.subr.bf16.mxu0 0
    %8775 = vmatpush1.bf16.msra.mxu0 %v8624
    %8776 = vmatprep.subr.bf16.mxu0 0
    %8777 = vmatpush1.bf16.msra.mxu0 %v8625
    %8778 = vmatprep.subr.bf16.mxu0 0
    %8779 = vmatpush1.bf16.msra.mxu0 %v8626
    %8780 = vmatprep.subr.bf16.mxu0 0
    %8781 = vmatpush1.bf16.msra.mxu0 %v8627
    %8782 = vmatprep.subr.bf16.mxu0 0
    %8783 = vmatpush1.bf16.msra.mxu0 %v8628
    %8784 = vmatprep.subr.bf16.mxu0 0
    %8785 = vmatpush1.bf16.msra.mxu0 %v8629
    %8786 = vmatprep.subr.bf16.mxu0 0
    %8787 = vmatpush1.bf16.msra.mxu0 %v8630
    %8788 = vmatprep.subr.bf16.mxu0 0
    %8789 = vmatpush1.bf16.msra.mxu0 %v8631
    %8790 = vmatprep.subr.bf16.mxu0 0
    %8791 = vmatpush1.bf16.msra.mxu0 %v8682
    %8792 = vmatprep.subr.bf16.mxu0 0
    %8793 = vmatpush1.bf16.msra.mxu0 0
    %8794 = vmatprep.subr.bf16.mxu0 0
    %8795 = vmatpush1.bf16.msra.mxu0 0
    %8796 = vmatprep.mubr.bf16.mxu0 %v8679
    %8797 = vmatmul.mubr.bf16.gmra.mrb[0].mxu0 %v8396
    %v8798 = vpop.f32.mrb[0].mxu0
    %v8799 = vadd.f32 %v8759, %v8798
    %v8800 = vpop.f32.mrb[0].mxu0
    %v8801 = vpop.f32.mrb[0].mxu0
    %v8802 = vpop.f32.mrb[0].mxu0
    %8803 = vdwg.mxu0
    %v8804 = vadd.f32 %v8298, %v8799
    %s8805 = scalar_lea.vmem [#allocation2], 4784
    %v8806 = vld [vmem:[%s8805] sm:$0xf]
    %v8807 = vld [vmem:[%s8805 + $0x4] sm:$0xf]
    %v8808 = vld [vmem:[%s8805 + $0x8] sm:$0xf]
    %v8809 = vld [vmem:[%s8805 + $0xc] sm:$0xf]
    %v8810 = vld [vmem:[%s8805 + $0x10] sm:$0xf]
    %v8811 = vld [vmem:[%s8805 + $0x14] sm:$0xf]
    %v8812 = vld [vmem:[%s8805 + $0x18] sm:$0xf]
    %v8813 = vld [vmem:[%s8805 + $0x1c] sm:$0xf]
    %v8814 = vld [vmem:[%s8805 + $0x20] sm:$0xf]
    %v8815 = vld [vmem:[%s8805 + $0x24] sm:$0xf]
    %v8816 = vld [vmem:[%s8805 + $0x28] sm:$0xf]
    %v8817 = vld [vmem:[%s8805 + $0x2c] sm:$0xf]
    %v8818 = vld [vmem:[%s8805 + $0x30] sm:$0xf]
    %v8819 = vld [vmem:[%s8805 + $0x34] sm:$0xf]
    %v8820 = vld [vmem:[%s8805 + $0x38] sm:$0xf]
    %v8821 = vld [vmem:[%s8805 + $0x3c] sm:$0xf]
    %v8822 = vld [vmem:[%s8805 + $0x40] sm:$0xf]
    %v8823 = vld [vmem:[%s8805 + $0x44] sm:$0xf]
    %v8824 = vld [vmem:[%s8805 + $0x48] sm:$0xf]
    %v8825 = vld [vmem:[%s8805 + $0x4c] sm:$0xf]
    %v8826 = vld [vmem:[%s8805 + $0x50] sm:$0xf]
    %v8827 = vld [vmem:[%s8805 + $0x54] sm:$0xf]
    %v8828 = vld [vmem:[%s8805 + $0x58] sm:$0xf]
    %v8829 = vld [vmem:[%s8805 + $0x5c] sm:$0xf]
    %v8830 = vld [vmem:[%s8805 + $0x60] sm:$0xf]
    %v8831 = vld [vmem:[%s8805 + $0x64] sm:$0xf]
    %v8832 = vld [vmem:[%s8805 + $0x68] sm:$0xf]
    %v8833 = vld [vmem:[%s8805 + $0x6c] sm:$0xf]
    %v8834 = vld [vmem:[%s8805 + $0x70] sm:$0xf]
    %v8835 = vld [vmem:[%s8805 + $0x74] sm:$0xf]
    %v8836 = vld [vmem:[%s8805 + $0x78] sm:$0xf]
    %v8837 = vld [vmem:[%s8805 + $0x7c] sm:$0xf]
    %v8838 = vld [vmem:[%s8805 + $0x80] sm:$0xf]
    %v8839 = vld [vmem:[%s8805 + $0x84] sm:$0xf]
    %v8840 = vld [vmem:[%s8805 + $0x88] sm:$0xf]
    %v8841 = vld [vmem:[%s8805 + $0x8c] sm:$0xf]
    %v8842 = vld [vmem:[%s8805 + $0x90] sm:$0xf]
    %v8843 = vld [vmem:[%s8805 + $0x94] sm:$0xf]
    %v8844 = vld [vmem:[%s8805 + $0x98] sm:$0xf]
    %v8845 = vld [vmem:[%s8805 + $0x9c] sm:$0xf]
    %v8846 = vld [vmem:[%s8805 + $0xa0] sm:$0xf]
    %v8847 = vld [vmem:[%s8805 + $0xa4] sm:$0xf]
    %v8848 = vld [vmem:[%s8805 + $0xa8] sm:$0xf]
    %v8849 = vld [vmem:[%s8805 + $0xac] sm:$0xf]
    %v8850 = vld [vmem:[%s8805 + $0xb0] sm:$0xf]
    %v8851 = vld [vmem:[%s8805 + $0xb4] sm:$0xf]
    %v8852 = vld [vmem:[%s8805 + $0xb8] sm:$0xf]
    %v8853 = vld [vmem:[%s8805 + $0xbc] sm:$0xf]
    %v8854 = vld [vmem:[%s8805 + $0xc0] sm:$0xf]
    %v8855 = vld [vmem:[%s8805 + $0xc4] sm:$0xf]
    %v8856 = vld [vmem:[%s8805 + $0xc8] sm:$0xf]
    %v8857 = vld [vmem:[%s8805 + $0xcc] sm:$0xf]
    %v8858 = vld [vmem:[%s8805 + $0xd0] sm:$0xf]
    %v8859 = vld [vmem:[%s8805 + $0xd4] sm:$0xf]
    %v8860 = vld [vmem:[%s8805 + $0xd8] sm:$0xf]
    %v8861 = vld [vmem:[%s8805 + $0xdc] sm:$0xf]
    %v8862 = vld [vmem:[%s8805 + $0xe0] sm:$0xf]
    %v8863 = vld [vmem:[%s8805 + $0xe4] sm:$0xf]
    %v8864 = vld [vmem:[%s8805 + $0xe8] sm:$0xf]
    %v8865 = vld [vmem:[%s8805 + $0xec] sm:$0xf]
    %v8866 = vld [vmem:[%s8805 + $0xf0] sm:$0xf]
    %v8867 = vld [vmem:[%s8805 + $0xf4] sm:$0xf]
    %v8868 = vld [vmem:[%s8805 + $0xf8] sm:$0xf]
    %v8869 = vld [vmem:[%s8805 + $0xfc] sm:$0xf]
    %v8870 = vld [vmem:[%s8805 + $0x100] sm:$0xf]
    %v8871 = vld [vmem:[%s8805 + $0x104] sm:$0xf]
    %v8872 = vld [vmem:[%s8805 + $0x108] sm:$0xf]
    %v8873 = vld [vmem:[%s8805 + $0x10c] sm:$0xf]
    %v8874 = vld [vmem:[%s8805 + $0x110] sm:$0xf]
    %v8875 = vld [vmem:[%s8805 + $0x114] sm:$0xf]
    %v8876 = vld [vmem:[%s8805 + $0x118] sm:$0xf]
    %v8877 = vld [vmem:[%s8805 + $0x11c] sm:$0xf]
    %v8878 = vld [vmem:[%s8805 + $0x120] sm:$0xf]
    %v8879 = vld [vmem:[%s8805 + $0x124] sm:$0xf]
    %v8880 = vld [vmem:[%s8805 + $0x128] sm:$0xf]
    %v8881 = vld [vmem:[%s8805 + $0x12c] sm:$0xf]
    %v8882 = vld [vmem:[%s8805 + $0x130] sm:$0xf]
    %v8883 = vld [vmem:[%s8805 + $0x134] sm:$0xf]
    %v8884 = vld [vmem:[%s8805 + $0x138] sm:$0xf]
    %v8885 = vld [vmem:[%s8805 + $0x13c] sm:$0xf]
    %v8886 = vld [vmem:[%s8805 + $0x140] sm:$0xf]
    %v8887 = vld [vmem:[%s8805 + $0x144] sm:$0xf]
    %v8888 = vld [vmem:[%s8805 + $0x148] sm:$0xf]
    %v8889 = vld [vmem:[%s8805 + $0x14c] sm:$0xf]
    %v8890 = vld [vmem:[%s8805 + $0x150] sm:$0xf]
    %v8891 = vld [vmem:[%s8805 + $0x154] sm:$0xf]
    %v8892 = vld [vmem:[%s8805 + $0x158] sm:$0xf]
    %v8893 = vld [vmem:[%s8805 + $0x15c] sm:$0xf]
    %v8894 = vld [vmem:[%s8805 + $0x160] sm:$0xf]
    %v8895 = vld [vmem:[%s8805 + $0x164] sm:$0xf]
    %v8896 = vld [vmem:[%s8805 + $0x168] sm:$0xf]
    %v8897 = vld [vmem:[%s8805 + $0x16c] sm:$0x3]
    %v8898 = vrot.slane %v2408, 6
    %v8899 = vrot.slane %v2411, 6
    %v8900 = vrot.slane %v2414, 6
    %v8901 = vrot.slane %v2417, 6
    %v8902 = vrot.slane %v2420, 6
    %v8903 = vrot.slane %v2423, 6
    %v9001 = vunpack.c.l.b16 %v8806
    %v9002 = vunpack.c.l.b16 %v8807
    %v9003 = vunpack.c.l.b16 %v8808
    %v9004 = vunpack.c.l.b16 %v8809
    %v9005 = vunpack.c.l.b16 %v8810
    %v9006 = vunpack.c.l.b16 %v8811
    %v9007 = vunpack.c.l.b16 %v8812
    %v9008 = vunpack.c.l.b16 %v8813
    %v9009 = vunpack.c.l.b16 %v8814
    %v9010 = vunpack.c.l.b16 %v8815
    %v9011 = vunpack.c.l.b16 %v8816
    %v9012 = vunpack.c.l.b16 %v8817
    %v9013 = vunpack.c.l.b16 %v8818
    %v9014 = vunpack.c.l.b16 %v8819
    %v9015 = vunpack.c.l.b16 %v8820
    %v9016 = vunpack.c.l.b16 %v8821
    %v9017 = vunpack.c.l.b16 %v8822
    %v9018 = vunpack.c.l.b16 %v8823
    %v9019 = vunpack.c.l.b16 %v8824
    %v9020 = vunpack.c.l.b16 %v8825
    %v9021 = vunpack.c.l.b16 %v8826
    %v9022 = vunpack.c.l.b16 %v8827
    %v9023 = vunpack.c.l.b16 %v8828
    %v9024 = vunpack.c.l.b16 %v8829
    %v9025 = vunpack.c.l.b16 %v8830
    %v9026 = vunpack.c.l.b16 %v8831
    %v9027 = vunpack.c.l.b16 %v8832
    %v9028 = vunpack.c.l.b16 %v8833
    %v9029 = vunpack.c.l.b16 %v8834
    %v9030 = vunpack.c.l.b16 %v8835
    %v9031 = vunpack.c.l.b16 %v8836
    %v9032 = vunpack.c.l.b16 %v8837
    %v9033 = vunpack.c.l.b16 %v8838
    %v9034 = vunpack.c.l.b16 %v8839
    %v9035 = vunpack.c.l.b16 %v8840
    %v9036 = vunpack.c.l.b16 %v8841
    %v9037 = vunpack.c.l.b16 %v8842
    %v9038 = vunpack.c.l.b16 %v8843
    %v9039 = vunpack.c.l.b16 %v8844
    %v9040 = vunpack.c.l.b16 %v8845
    %v9041 = vunpack.c.l.b16 %v8846
    %v9042 = vunpack.c.l.b16 %v8847
    %v9043 = vunpack.c.l.b16 %v8848
    %v9044 = vunpack.c.l.b16 %v8849
    %v9045 = vunpack.c.l.b16 %v8850
    %v9046 = vunpack.c.l.b16 %v8851
    %v9047 = vunpack.c.l.b16 %v8852
    %v9048 = vunpack.c.l.b16 %v8853
    %v9049 = vunpack.c.l.b16 %v8854
    %v9050 = vunpack.c.l.b16 %v8855
    %v9051 = vunpack.c.l.b16 %v8856
    %v9052 = vunpack.c.l.b16 %v8857
    %v9053 = vunpack.c.l.b16 %v8858
    %v9054 = vunpack.c.l.b16 %v8859
    %v9055 = vunpack.c.l.b16 %v8860
    %v9056 = vunpack.c.l.b16 %v8861
    %v9057 = vunpack.c.l.b16 %v8862
    %v9058 = vunpack.c.l.b16 %v8863
    %v9059 = vunpack.c.l.b16 %v8864
    %v9060 = vunpack.c.l.b16 %v8865
    %v9061 = vunpack.c.l.b16 %v8866
    %v9062 = vunpack.c.l.b16 %v8867
    %v9063 = vunpack.c.l.b16 %v8868
    %v9064 = vunpack.c.l.b16 %v8869
    %v9065 = vunpack.c.l.b16 %v8870
    %v9066 = vunpack.c.l.b16 %v8871
    %v9067 = vunpack.c.l.b16 %v8872
    %v9068 = vunpack.c.l.b16 %v8873
    %v9069 = vunpack.c.l.b16 %v8874
    %v9070 = vunpack.c.l.b16 %v8875
    %v9071 = vunpack.c.l.b16 %v8876
    %v9072 = vunpack.c.l.b16 %v8877
    %v9073 = vunpack.c.l.b16 %v8878
    %v9074 = vunpack.c.l.b16 %v8879
    %v9075 = vunpack.c.l.b16 %v8880
    %v9076 = vunpack.c.l.b16 %v8881
    %v9077 = vunpack.c.l.b16 %v8882
    %v9078 = vunpack.c.l.b16 %v8883
    %v9079 = vunpack.c.l.b16 %v8884
    %v9080 = vunpack.c.l.b16 %v8885
    %v9081 = vunpack.c.l.b16 %v8886
    %v9082 = vunpack.c.l.b16 %v8887
    %v9083 = vunpack.c.l.b16 %v8888
    %v9084 = vunpack.c.l.b16 %v8889
    %v9085 = vunpack.c.l.b16 %v8890
    %v9086 = vunpack.c.l.b16 %v8891
    %v9087 = vunpack.c.l.b16 %v8892
    %v9088 = vunpack.c.l.b16 %v8893
    %v9089 = vunpack.c.l.b16 %v8894
    %v9090 = vunpack.c.l.b16 %v8895
    %v9091 = vunpack.c.l.b16 %v8896
    %v9092 = vunpack.c.l.b16 %v8897
    %v9093 = vpack.c.b16 %v9002, %v9001
    %v9094 = vpack.c.b16 %v9004, %v9003
    %v9095 = vpack.c.b16 %v9006, %v9005
    %v9096 = vpack.c.b16 %v9008, %v9007
    %v9097 = vpack.c.b16 %v9010, %v9009
    %v9098 = vpack.c.b16 %v9012, %v9011
    %v9099 = vpack.c.b16 %v9014, %v9013
    %v9100 = vpack.c.b16 %v9016, %v9015
    %v9101 = vpack.c.b16 %v9018, %v9017
    %v9102 = vpack.c.b16 %v9020, %v9019
    %v9103 = vpack.c.b16 %v9022, %v9021
    %v9104 = vpack.c.b16 %v9024, %v9023
    %v9105 = vpack.c.b16 %v9026, %v9025
    %v9106 = vpack.c.b16 %v9028, %v9027
    %v9107 = vpack.c.b16 %v9030, %v9029
    %v9108 = vpack.c.b16 %v9032, %v9031
    %v9109 = vpack.c.b16 %v9034, %v9033
    %v9110 = vpack.c.b16 %v9036, %v9035
    %v9111 = vpack.c.b16 %v9038, %v9037
    %v9112 = vpack.c.b16 %v9040, %v9039
    %v9113 = vpack.c.b16 %v9042, %v9041
    %v9114 = vpack.c.b16 %v9044, %v9043
    %v9115 = vpack.c.b16 %v9046, %v9045
    %v9116 = vpack.c.b16 %v9048, %v9047
    %v9117 = vpack.c.b16 %v9050, %v9049
    %v9118 = vpack.c.b16 %v9052, %v9051
    %v9119 = vpack.c.b16 %v9054, %v9053
    %v9120 = vpack.c.b16 %v9056, %v9055
    %v9121 = vpack.c.b16 %v9058, %v9057
    %v9122 = vpack.c.b16 %v9060, %v9059
    %v9123 = vpack.c.b16 %v9062, %v9061
    %v9124 = vpack.c.b16 %v9064, %v9063
    %v9125 = vpack.c.b16 %v9066, %v9065
    %v9126 = vpack.c.b16 %v9068, %v9067
    %v9127 = vpack.c.b16 %v9070, %v9069
    %v9128 = vpack.c.b16 %v9072, %v9071
    %v9129 = vpack.c.b16 %v9074, %v9073
    %v9130 = vpack.c.b16 %v9076, %v9075
    %v9131 = vpack.c.b16 %v9078, %v9077
    %v9132 = vpack.c.b16 %v9080, %v9079
    %v9133 = vpack.c.b16 %v9082, %v9081
    %v9134 = vpack.c.b16 %v9084, %v9083
    %v9135 = vpack.c.b16 %v9086, %v9085
    %v9136 = vpack.c.b16 %v9088, %v9087
    %v9137 = vpack.c.b16 %v9090, %v9089
    %v9138 = vpack.c.b16 %v9092, %v9091
    %v9185 = vsel %vm2705, %v8903, 0
    %v9188 = vsel %vm2709, %v9138, 0
    %9190 = vmatprep.subr.bf16.mxu0 0
    %9191 = vmatpush1.bf16.msra.mxu0 %v9093
    %9192 = vmatprep.subr.bf16.mxu0 0
    %9193 = vmatpush1.bf16.msra.mxu0 %v9094
    %9194 = vmatprep.subr.bf16.mxu0 0
    %9195 = vmatpush1.bf16.msra.mxu0 %v9095
    %9196 = vmatprep.subr.bf16.mxu0 0
    %9197 = vmatpush1.bf16.msra.mxu0 %v9096
    %9198 = vmatprep.subr.bf16.mxu0 0
    %9199 = vmatpush1.bf16.msra.mxu0 %v9097
    %9200 = vmatprep.subr.bf16.mxu0 0
    %9201 = vmatpush1.bf16.msra.mxu0 %v9098
    %9202 = vmatprep.subr.bf16.mxu0 0
    %9203 = vmatpush1.bf16.msra.mxu0 %v9099
    %9204 = vmatprep.subr.bf16.mxu0 0
    %9205 = vmatpush1.bf16.msra.mxu0 %v9100
    %9206 = vmatprep.subr.bf16.mxu0 0
    %9207 = vmatpush1.bf16.msra.mxu0 %v9101
    %9208 = vmatprep.subr.bf16.mxu0 0
    %9209 = vmatpush1.bf16.msra.mxu0 %v9102
    %9210 = vmatprep.subr.bf16.mxu0 0
    %9211 = vmatpush1.bf16.msra.mxu0 %v9103
    %9212 = vmatprep.subr.bf16.mxu0 0
    %9213 = vmatpush1.bf16.msra.mxu0 %v9104
    %9214 = vmatprep.subr.bf16.mxu0 0
    %9215 = vmatpush1.bf16.msra.mxu0 %v9105
    %9216 = vmatprep.subr.bf16.mxu0 0
    %9217 = vmatpush1.bf16.msra.mxu0 %v9106
    %9218 = vmatprep.subr.bf16.mxu0 0
    %9219 = vmatpush1.bf16.msra.mxu0 %v9107
    %9220 = vmatprep.subr.bf16.mxu0 0
    %9221 = vmatpush1.bf16.msra.mxu0 %v9108
    %9222 = vmatprep.mubr.bf16.mxu0 %v8899
    %9223 = vmatmul.mubr.bf16.gmra.mrb[0].mxu0 %v8898
    %v9224 = vpop.f32.mrb[0].mxu0
    %v9225 = vadd.f32 0.0, %v9224
    %v9226 = vpop.f32.mrb[0].mxu0
    %v9227 = vpop.f32.mrb[0].mxu0
    %v9228 = vpop.f32.mrb[0].mxu0
    %9229 = vdwg.mxu0
    %9230 = vmatprep.subr.bf16.mxu0 0
    %9231 = vmatpush1.bf16.msra.mxu0 %v9109
    %9232 = vmatprep.subr.bf16.mxu0 0
    %9233 = vmatpush1.bf16.msra.mxu0 %v9110
    %9234 = vmatprep.subr.bf16.mxu0 0
    %9235 = vmatpush1.bf16.msra.mxu0 %v9111
    %9236 = vmatprep.subr.bf16.mxu0 0
    %9237 = vmatpush1.bf16.msra.mxu0 %v9112
    %9238 = vmatprep.subr.bf16.mxu0 0
    %9239 = vmatpush1.bf16.msra.mxu0 %v9113
    %9240 = vmatprep.subr.bf16.mxu0 0
    %9241 = vmatpush1.bf16.msra.mxu0 %v9114
    %9242 = vmatprep.subr.bf16.mxu0 0
    %9243 = vmatpush1.bf16.msra.mxu0 %v9115
    %9244 = vmatprep.subr.bf16.mxu0 0
    %9245 = vmatpush1.bf16.msra.mxu0 %v9116
    %9246 = vmatprep.subr.bf16.mxu0 0
    %9247 = vmatpush1.bf16.msra.mxu0 %v9117
    %9248 = vmatprep.subr.bf16.mxu0 0
    %9249 = vmatpush1.bf16.msra.mxu0 %v9118
    %9250 = vmatprep.subr.bf16.mxu0 0
    %9251 = vmatpush1.bf16.msra.mxu0 %v9119
    %9252 = vmatprep.subr.bf16.mxu0 0
    %9253 = vmatpush1.bf16.msra.mxu0 %v9120
    %9254 = vmatprep.subr.bf16.mxu0 0
    %9255 = vmatpush1.bf16.msra.mxu0 %v9121
    %9256 = vmatprep.subr.bf16.mxu0 0
    %9257 = vmatpush1.bf16.msra.mxu0 %v9122
    %9258 = vmatprep.subr.bf16.mxu0 0
    %9259 = vmatpush1.bf16.msra.mxu0 %v9123
    %9260 = vmatprep.subr.bf16.mxu0 0
    %9261 = vmatpush1.bf16.msra.mxu0 %v9124
    %9262 = vmatprep.mubr.bf16.mxu0 %v8901
    %9263 = vmatmul.mubr.bf16.gmra.mrb[0].mxu0 %v8900
    %v9264 = vpop.f32.mrb[0].mxu0
    %v9265 = vadd.f32 %v9225, %v9264
    %v9266 = vpop.f32.mrb[0].mxu0
    %v9267 = vpop.f32.mrb[0].mxu0
    %v9268 = vpop.f32.mrb[0].mxu0
    %9269 = vdwg.mxu0
    %9270 = vmatprep.subr.bf16.mxu0 0
    %9271 = vmatpush1.bf16.msra.mxu0 %v9125
    %9272 = vmatprep.subr.bf16.mxu0 0
    %9273 = vmatpush1.bf16.msra.mxu0 %v9126
    %9274 = vmatprep.subr.bf16.mxu0 0
    %9275 = vmatpush1.bf16.msra.mxu0 %v9127
    %9276 = vmatprep.subr.bf16.mxu0 0
    %9277 = vmatpush1.bf16.msra.mxu0 %v9128
    %9278 = vmatprep.subr.bf16.mxu0 0
    %9279 = vmatpush1.bf16.msra.mxu0 %v9129
    %9280 = vmatprep.subr.bf16.mxu0 0
    %9281 = vmatpush1.bf16.msra.mxu0 %v9130
    %9282 = vmatprep.subr.bf16.mxu0 0
    %9283 = vmatpush1.bf16.msra.mxu0 %v9131
    %9284 = vmatprep.subr.bf16.mxu0 0
    %9285 = vmatpush1.bf16.msra.mxu0 %v9132
    %9286 = vmatprep.subr.bf16.mxu0 0
    %9287 = vmatpush1.bf16.msra.mxu0 %v9133
    %9288 = vmatprep.subr.bf16.mxu0 0
    %9289 = vmatpush1.bf16.msra.mxu0 %v9134
    %9290 = vmatprep.subr.bf16.mxu0 0
    %9291 = vmatpush1.bf16.msra.mxu0 %v9135
    %9292 = vmatprep.subr.bf16.mxu0 0
    %9293 = vmatpush1.bf16.msra.mxu0 %v9136
    %9294 = vmatprep.subr.bf16.mxu0 0
    %9295 = vmatpush1.bf16.msra.mxu0 %v9137
    %9296 = vmatprep.subr.bf16.mxu0 0
    %9297 = vmatpush1.bf16.msra.mxu0 %v9188
    %9298 = vmatprep.subr.bf16.mxu0 0
    %9299 = vmatpush1.bf16.msra.mxu0 0
    %9300 = vmatprep.subr.bf16.mxu0 0
    %9301 = vmatpush1.bf16.msra.mxu0 0
    %9302 = vmatprep.mubr.bf16.mxu0 %v9185
    %9303 = vmatmul.mubr.bf16.gmra.mrb[0].mxu0 %v8902
    %v9304 = vpop.f32.mrb[0].mxu0
    %v9305 = vadd.f32 %v9265, %v9304
    %v9306 = vpop.f32.mrb[0].mxu0
    %v9307 = vpop.f32.mrb[0].mxu0
    %v9308 = vpop.f32.mrb[0].mxu0
    %9309 = vdwg.mxu0
    %v9310 = vadd.f32 %v8804, %v9305
    %s9311 = scalar_lea.vmem [#allocation2], 5152
    %v9312 = vld [vmem:[%s9311] sm:$0xf]
    %v9313 = vld [vmem:[%s9311 + $0x4] sm:$0xf]
    %v9314 = vld [vmem:[%s9311 + $0x8] sm:$0xf]
    %v9315 = vld [vmem:[%s9311 + $0xc] sm:$0xf]
    %v9316 = vld [vmem:[%s9311 + $0x10] sm:$0xf]
    %v9317 = vld [vmem:[%s9311 + $0x14] sm:$0xf]
    %v9318 = vld [vmem:[%s9311 + $0x18] sm:$0xf]
    %v9319 = vld [vmem:[%s9311 + $0x1c] sm:$0xf]
    %v9320 = vld [vmem:[%s9311 + $0x20] sm:$0xf]
    %v9321 = vld [vmem:[%s9311 + $0x24] sm:$0xf]
    %v9322 = vld [vmem:[%s9311 + $0x28] sm:$0xf]
    %v9323 = vld [vmem:[%s9311 + $0x2c] sm:$0xf]
    %v9324 = vld [vmem:[%s9311 + $0x30] sm:$0xf]
    %v9325 = vld [vmem:[%s9311 + $0x34] sm:$0xf]
    %v9326 = vld [vmem:[%s9311 + $0x38] sm:$0xf]
    %v9327 = vld [vmem:[%s9311 + $0x3c] sm:$0xf]
    %v9328 = vld [vmem:[%s9311 + $0x40] sm:$0xf]
    %v9329 = vld [vmem:[%s9311 + $0x44] sm:$0xf]
    %v9330 = vld [vmem:[%s9311 + $0x48] sm:$0xf]
    %v9331 = vld [vmem:[%s9311 + $0x4c] sm:$0xf]
    %v9332 = vld [vmem:[%s9311 + $0x50] sm:$0xf]
    %v9333 = vld [vmem:[%s9311 + $0x54] sm:$0xf]
    %v9334 = vld [vmem:[%s9311 + $0x58] sm:$0xf]
    %v9335 = vld [vmem:[%s9311 + $0x5c] sm:$0xf]
    %v9336 = vld [vmem:[%s9311 + $0x60] sm:$0xf]
    %v9337 = vld [vmem:[%s9311 + $0x64] sm:$0xf]
    %v9338 = vld [vmem:[%s9311 + $0x68] sm:$0xf]
    %v9339 = vld [vmem:[%s9311 + $0x6c] sm:$0xf]
    %v9340 = vld [vmem:[%s9311 + $0x70] sm:$0xf]
    %v9341 = vld [vmem:[%s9311 + $0x74] sm:$0xf]
    %v9342 = vld [vmem:[%s9311 + $0x78] sm:$0xf]
    %v9343 = vld [vmem:[%s9311 + $0x7c] sm:$0xf]
    %v9344 = vld [vmem:[%s9311 + $0x80] sm:$0xf]
    %v9345 = vld [vmem:[%s9311 + $0x84] sm:$0xf]
    %v9346 = vld [vmem:[%s9311 + $0x88] sm:$0xf]
    %v9347 = vld [vmem:[%s9311 + $0x8c] sm:$0xf]
    %v9348 = vld [vmem:[%s9311 + $0x90] sm:$0xf]
    %v9349 = vld [vmem:[%s9311 + $0x94] sm:$0xf]
    %v9350 = vld [vmem:[%s9311 + $0x98] sm:$0xf]
    %v9351 = vld [vmem:[%s9311 + $0x9c] sm:$0xf]
    %v9352 = vld [vmem:[%s9311 + $0xa0] sm:$0xf]
    %v9353 = vld [vmem:[%s9311 + $0xa4] sm:$0xf]
    %v9354 = vld [vmem:[%s9311 + $0xa8] sm:$0xf]
    %v9355 = vld [vmem:[%s9311 + $0xac] sm:$0xf]
    %v9356 = vld [vmem:[%s9311 + $0xb0] sm:$0xf]
    %v9357 = vld [vmem:[%s9311 + $0xb4] sm:$0xf]
    %v9358 = vld [vmem:[%s9311 + $0xb8] sm:$0xf]
    %v9359 = vld [vmem:[%s9311 + $0xbc] sm:$0xf]
    %v9360 = vld [vmem:[%s9311 + $0xc0] sm:$0xf]
    %v9361 = vld [vmem:[%s9311 + $0xc4] sm:$0xf]
    %v9362 = vld [vmem:[%s9311 + $0xc8] sm:$0xf]
    %v9363 = vld [vmem:[%s9311 + $0xcc] sm:$0xf]
    %v9364 = vld [vmem:[%s9311 + $0xd0] sm:$0xf]
    %v9365 = vld [vmem:[%s9311 + $0xd4] sm:$0xf]
    %v9366 = vld [vmem:[%s9311 + $0xd8] sm:$0xf]
    %v9367 = vld [vmem:[%s9311 + $0xdc] sm:$0xf]
    %v9368 = vld [vmem:[%s9311 + $0xe0] sm:$0xf]
    %v9369 = vld [vmem:[%s9311 + $0xe4] sm:$0xf]
    %v9370 = vld [vmem:[%s9311 + $0xe8] sm:$0xf]
    %v9371 = vld [vmem:[%s9311 + $0xec] sm:$0xf]
    %v9372 = vld [vmem:[%s9311 + $0xf0] sm:$0xf]
    %v9373 = vld [vmem:[%s9311 + $0xf4] sm:$0xf]
    %v9374 = vld [vmem:[%s9311 + $0xf8] sm:$0xf]
    %v9375 = vld [vmem:[%s9311 + $0xfc] sm:$0xf]
    %v9376 = vld [vmem:[%s9311 + $0x100] sm:$0xf]
    %v9377 = vld [vmem:[%s9311 + $0x104] sm:$0xf]
    %v9378 = vld [vmem:[%s9311 + $0x108] sm:$0xf]
    %v9379 = vld [vmem:[%s9311 + $0x10c] sm:$0xf]
    %v9380 = vld [vmem:[%s9311 + $0x110] sm:$0xf]
    %v9381 = vld [vmem:[%s9311 + $0x114] sm:$0xf]
    %v9382 = vld [vmem:[%s9311 + $0x118] sm:$0xf]
    %v9383 = vld [vmem:[%s9311 + $0x11c] sm:$0xf]
    %v9384 = vld [vmem:[%s9311 + $0x120] sm:$0xf]
    %v9385 = vld [vmem:[%s9311 + $0x124] sm:$0xf]
    %v9386 = vld [vmem:[%s9311 + $0x128] sm:$0xf]
    %v9387 = vld [vmem:[%s9311 + $0x12c] sm:$0xf]
    %v9388 = vld [vmem:[%s9311 + $0x130] sm:$0xf]
    %v9389 = vld [vmem:[%s9311 + $0x134] sm:$0xf]
    %v9390 = vld [vmem:[%s9311 + $0x138] sm:$0xf]
    %v9391 = vld [vmem:[%s9311 + $0x13c] sm:$0xf]
    %v9392 = vld [vmem:[%s9311 + $0x140] sm:$0xf]
    %v9393 = vld [vmem:[%s9311 + $0x144] sm:$0xf]
    %v9394 = vld [vmem:[%s9311 + $0x148] sm:$0xf]
    %v9395 = vld [vmem:[%s9311 + $0x14c] sm:$0xf]
    %v9396 = vld [vmem:[%s9311 + $0x150] sm:$0xf]
    %v9397 = vld [vmem:[%s9311 + $0x154] sm:$0xf]
    %v9398 = vld [vmem:[%s9311 + $0x158] sm:$0xf]
    %v9399 = vld [vmem:[%s9311 + $0x15c] sm:$0xf]
    %v9400 = vld [vmem:[%s9311 + $0x160] sm:$0xf]
    %v9401 = vld [vmem:[%s9311 + $0x164] sm:$0xf]
    %v9402 = vld [vmem:[%s9311 + $0x168] sm:$0xf]
    %v9403 = vld [vmem:[%s9311 + $0x16c] sm:$0x3]
    %v9404 = vrot.slane %v2211, 7
    %v9405 = vrot.slane %v2212, 7
    %v9406 = vrot.slane %v2213, 7
    %v9407 = vrot.slane %v2214, 7
    %v9408 = vrot.slane %v2215, 7
    %v9409 = vrot.slane %v2216, 7
    %v9507 = vunpack.c.l.b16 %v9312
    %v9508 = vunpack.c.l.b16 %v9313
    %v9509 = vunpack.c.l.b16 %v9314
    %v9510 = vunpack.c.l.b16 %v9315
    %v9511 = vunpack.c.l.b16 %v9316
    %v9512 = vunpack.c.l.b16 %v9317
    %v9513 = vunpack.c.l.b16 %v9318
    %v9514 = vunpack.c.l.b16 %v9319
    %v9515 = vunpack.c.l.b16 %v9320
    %v9516 = vunpack.c.l.b16 %v9321
    %v9517 = vunpack.c.l.b16 %v9322
    %v9518 = vunpack.c.l.b16 %v9323
    %v9519 = vunpack.c.l.b16 %v9324
    %v9520 = vunpack.c.l.b16 %v9325
    %v9521 = vunpack.c.l.b16 %v9326
    %v9522 = vunpack.c.l.b16 %v9327
    %v9523 = vunpack.c.l.b16 %v9328
    %v9524 = vunpack.c.l.b16 %v9329
    %v9525 = vunpack.c.l.b16 %v9330
    %v9526 = vunpack.c.l.b16 %v9331
    %v9527 = vunpack.c.l.b16 %v9332
    %v9528 = vunpack.c.l.b16 %v9333
    %v9529 = vunpack.c.l.b16 %v9334
    %v9530 = vunpack.c.l.b16 %v9335
    %v9531 = vunpack.c.l.b16 %v9336
    %v9532 = vunpack.c.l.b16 %v9337
    %v9533 = vunpack.c.l.b16 %v9338
    %v9534 = vunpack.c.l.b16 %v9339
    %v9535 = vunpack.c.l.b16 %v9340
    %v9536 = vunpack.c.l.b16 %v9341
    %v9537 = vunpack.c.l.b16 %v9342
    %v9538 = vunpack.c.l.b16 %v9343
    %v9539 = vunpack.c.l.b16 %v9344
    %v9540 = vunpack.c.l.b16 %v9345
    %v9541 = vunpack.c.l.b16 %v9346
    %v9542 = vunpack.c.l.b16 %v9347
    %v9543 = vunpack.c.l.b16 %v9348
    %v9544 = vunpack.c.l.b16 %v9349
    %v9545 = vunpack.c.l.b16 %v9350
    %v9546 = vunpack.c.l.b16 %v9351
    %v9547 = vunpack.c.l.b16 %v9352
    %v9548 = vunpack.c.l.b16 %v9353
    %v9549 = vunpack.c.l.b16 %v9354
    %v9550 = vunpack.c.l.b16 %v9355
    %v9551 = vunpack.c.l.b16 %v9356
    %v9552 = vunpack.c.l.b16 %v9357
    %v9553 = vunpack.c.l.b16 %v9358
    %v9554 = vunpack.c.l.b16 %v9359
    %v9555 = vunpack.c.l.b16 %v9360
    %v9556 = vunpack.c.l.b16 %v9361
    %v9557 = vunpack.c.l.b16 %v9362
    %v9558 = vunpack.c.l.b16 %v9363
    %v9559 = vunpack.c.l.b16 %v9364
    %v9560 = vunpack.c.l.b16 %v9365
    %v9561 = vunpack.c.l.b16 %v9366
    %v9562 = vunpack.c.l.b16 %v9367
    %v9563 = vunpack.c.l.b16 %v9368
    %v9564 = vunpack.c.l.b16 %v9369
    %v9565 = vunpack.c.l.b16 %v9370
    %v9566 = vunpack.c.l.b16 %v9371
    %v9567 = vunpack.c.l.b16 %v9372
    %v9568 = vunpack.c.l.b16 %v9373
    %v9569 = vunpack.c.l.b16 %v9374
    %v9570 = vunpack.c.l.b16 %v9375
    %v9571 = vunpack.c.l.b16 %v9376
    %v9572 = vunpack.c.l.b16 %v9377
    %v9573 = vunpack.c.l.b16 %v9378
    %v9574 = vunpack.c.l.b16 %v9379
    %v9575 = vunpack.c.l.b16 %v9380
    %v9576 = vunpack.c.l.b16 %v9381
    %v9577 = vunpack.c.l.b16 %v9382
    %v9578 = vunpack.c.l.b16 %v9383
    %v9579 = vunpack.c.l.b16 %v9384
    %v9580 = vunpack.c.l.b16 %v9385
    %v9581 = vunpack.c.l.b16 %v9386
    %v9582 = vunpack.c.l.b16 %v9387
    %v9583 = vunpack.c.l.b16 %v9388
    %v9584 = vunpack.c.l.b16 %v9389
    %v9585 = vunpack.c.l.b16 %v9390
    %v9586 = vunpack.c.l.b16 %v9391
    %v9587 = vunpack.c.l.b16 %v9392
    %v9588 = vunpack.c.l.b16 %v9393
    %v9589 = vunpack.c.l.b16 %v9394
    %v9590 = vunpack.c.l.b16 %v9395
    %v9591 = vunpack.c.l.b16 %v9396
    %v9592 = vunpack.c.l.b16 %v9397
    %v9593 = vunpack.c.l.b16 %v9398
    %v9594 = vunpack.c.l.b16 %v9399
    %v9595 = vunpack.c.l.b16 %v9400
    %v9596 = vunpack.c.l.b16 %v9401
    %v9597 = vunpack.c.l.b16 %v9402
    %v9598 = vunpack.c.l.b16 %v9403
    %v9599 = vpack.c.b16 %v9508, %v9507
    %v9600 = vpack.c.b16 %v9510, %v9509
    %v9601 = vpack.c.b16 %v9512, %v9511
    %v9602 = vpack.c.b16 %v9514, %v9513
    %v9603 = vpack.c.b16 %v9516, %v9515
    %v9604 = vpack.c.b16 %v9518, %v9517
    %v9605 = vpack.c.b16 %v9520, %v9519
    %v9606 = vpack.c.b16 %v9522, %v9521
    %v9607 = vpack.c.b16 %v9524, %v9523
    %v9608 = vpack.c.b16 %v9526, %v9525
    %v9609 = vpack.c.b16 %v9528, %v9527
    %v9610 = vpack.c.b16 %v9530, %v9529
    %v9611 = vpack.c.b16 %v9532, %v9531
    %v9612 = vpack.c.b16 %v9534, %v9533
    %v9613 = vpack.c.b16 %v9536, %v9535
    %v9614 = vpack.c.b16 %v9538, %v9537
    %v9615 = vpack.c.b16 %v9540, %v9539
    %v9616 = vpack.c.b16 %v9542, %v9541
    %v9617 = vpack.c.b16 %v9544, %v9543
    %v9618 = vpack.c.b16 %v9546, %v9545
    %v9619 = vpack.c.b16 %v9548, %v9547
    %v9620 = vpack.c.b16 %v9550, %v9549
    %v9621 = vpack.c.b16 %v9552, %v9551
    %v9622 = vpack.c.b16 %v9554, %v9553
    %v9623 = vpack.c.b16 %v9556, %v9555
    %v9624 = vpack.c.b16 %v9558, %v9557
    %v9625 = vpack.c.b16 %v9560, %v9559
    %v9626 = vpack.c.b16 %v9562, %v9561
    %v9627 = vpack.c.b16 %v9564, %v9563
    %v9628 = vpack.c.b16 %v9566, %v9565
    %v9629 = vpack.c.b16 %v9568, %v9567
    %v9630 = vpack.c.b16 %v9570, %v9569
    %v9631 = vpack.c.b16 %v9572, %v9571
    %v9632 = vpack.c.b16 %v9574, %v9573
    %v9633 = vpack.c.b16 %v9576, %v9575
    %v9634 = vpack.c.b16 %v9578, %v9577
    %v9635 = vpack.c.b16 %v9580, %v9579
    %v9636 = vpack.c.b16 %v9582, %v9581
    %v9637 = vpack.c.b16 %v9584, %v9583
    %v9638 = vpack.c.b16 %v9586, %v9585
    %v9639 = vpack.c.b16 %v9588, %v9587
    %v9640 = vpack.c.b16 %v9590, %v9589
    %v9641 = vpack.c.b16 %v9592, %v9591
    %v9642 = vpack.c.b16 %v9594, %v9593
    %v9643 = vpack.c.b16 %v9596, %v9595
    %v9644 = vpack.c.b16 %v9598, %v9597
    %v9691 = vsel %vm2705, %v9409, 0
    %v9694 = vsel %vm2709, %v9644, 0
    %9696 = vmatprep.subr.bf16.mxu0 0
    %9697 = vmatpush1.bf16.msra.mxu0 %v9599
    %9698 = vmatprep.subr.bf16.mxu0 0
    %9699 = vmatpush1.bf16.msra.mxu0 %v9600
    %9700 = vmatprep.subr.bf16.mxu0 0
    %9701 = vmatpush1.bf16.msra.mxu0 %v9601
    %9702 = vmatprep.subr.bf16.mxu0 0
    %9703 = vmatpush1.bf16.msra.mxu0 %v9602
    %9704 = vmatprep.subr.bf16.mxu0 0
    %9705 = vmatpush1.bf16.msra.mxu0 %v9603
    %9706 = vmatprep.subr.bf16.mxu0 0
    %9707 = vmatpush1.bf16.msra.mxu0 %v9604
    %9708 = vmatprep.subr.bf16.mxu0 0
    %9709 = vmatpush1.bf16.msra.mxu0 %v9605
    %9710 = vmatprep.subr.bf16.mxu0 0
    %9711 = vmatpush1.bf16.msra.mxu0 %v9606
    %9712 = vmatprep.subr.bf16.mxu0 0
    %9713 = vmatpush1.bf16.msra.mxu0 %v9607
    %9714 = vmatprep.subr.bf16.mxu0 0
    %9715 = vmatpush1.bf16.msra.mxu0 %v9608
    %9716 = vmatprep.subr.bf16.mxu0 0
    %9717 = vmatpush1.bf16.msra.mxu0 %v9609
    %9718 = vmatprep.subr.bf16.mxu0 0
    %9719 = vmatpush1.bf16.msra.mxu0 %v9610
    %9720 = vmatprep.subr.bf16.mxu0 0
    %9721 = vmatpush1.bf16.msra.mxu0 %v9611
    %9722 = vmatprep.subr.bf16.mxu0 0
    %9723 = vmatpush1.bf16.msra.mxu0 %v9612
    %9724 = vmatprep.subr.bf16.mxu0 0
    %9725 = vmatpush1.bf16.msra.mxu0 %v9613
    %9726 = vmatprep.subr.bf16.mxu0 0
    %9727 = vmatpush1.bf16.msra.mxu0 %v9614
    %9728 = vmatprep.mubr.bf16.mxu0 %v9405
    %9729 = vmatmul.mubr.bf16.gmra.mrb[0].mxu0 %v9404
    %v9730 = vpop.f32.mrb[0].mxu0
    %v9731 = vadd.f32 0.0, %v9730
    %v9732 = vpop.f32.mrb[0].mxu0
    %v9733 = vpop.f32.mrb[0].mxu0
    %v9734 = vpop.f32.mrb[0].mxu0
    %9735 = vdwg.mxu0
    %9736 = vmatprep.subr.bf16.mxu0 0
    %9737 = vmatpush1.bf16.msra.mxu0 %v9615
    %9738 = vmatprep.subr.bf16.mxu0 0
    %9739 = vmatpush1.bf16.msra.mxu0 %v9616
    %9740 = vmatprep.subr.bf16.mxu0 0
    %9741 = vmatpush1.bf16.msra.mxu0 %v9617
    %9742 = vmatprep.subr.bf16.mxu0 0
    %9743 = vmatpush1.bf16.msra.mxu0 %v9618
    %9744 = vmatprep.subr.bf16.mxu0 0
    %9745 = vmatpush1.bf16.msra.mxu0 %v9619
    %9746 = vmatprep.subr.bf16.mxu0 0
    %9747 = vmatpush1.bf16.msra.mxu0 %v9620
    %9748 = vmatprep.subr.bf16.mxu0 0
    %9749 = vmatpush1.bf16.msra.mxu0 %v9621
    %9750 = vmatprep.subr.bf16.mxu0 0
    %9751 = vmatpush1.bf16.msra.mxu0 %v9622
    %9752 = vmatprep.subr.bf16.mxu0 0
    %9753 = vmatpush1.bf16.msra.mxu0 %v9623
    %9754 = vmatprep.subr.bf16.mxu0 0
    %9755 = vmatpush1.bf16.msra.mxu0 %v9624
    %9756 = vmatprep.subr.bf16.mxu0 0
    %9757 = vmatpush1.bf16.msra.mxu0 %v9625
    %9758 = vmatprep.subr.bf16.mxu0 0
    %9759 = vmatpush1.bf16.msra.mxu0 %v9626
    %9760 = vmatprep.subr.bf16.mxu0 0
    %9761 = vmatpush1.bf16.msra.mxu0 %v9627
    %9762 = vmatprep.subr.bf16.mxu0 0
    %9763 = vmatpush1.bf16.msra.mxu0 %v9628
    %9764 = vmatprep.subr.bf16.mxu0 0
    %9765 = vmatpush1.bf16.msra.mxu0 %v9629
    %9766 = vmatprep.subr.bf16.mxu0 0
    %9767 = vmatpush1.bf16.msra.mxu0 %v9630
    %9768 = vmatprep.mubr.bf16.mxu0 %v9407
    %9769 = vmatmul.mubr.bf16.gmra.mrb[0].mxu0 %v9406
    %v9770 = vpop.f32.mrb[0].mxu0
    %v9771 = vadd.f32 %v9731, %v9770
    %v9772 = vpop.f32.mrb[0].mxu0
    %v9773 = vpop.f32.mrb[0].mxu0
    %v9774 = vpop.f32.mrb[0].mxu0
    %9775 = vdwg.mxu0
    %9776 = vmatprep.subr.bf16.mxu0 0
    %9777 = vmatpush1.bf16.msra.mxu0 %v9631
    %9778 = vmatprep.subr.bf16.mxu0 0
    %9779 = vmatpush1.bf16.msra.mxu0 %v9632
    %9780 = vmatprep.subr.bf16.mxu0 0
    %9781 = vmatpush1.bf16.msra.mxu0 %v9633
    %9782 = vmatprep.subr.bf16.mxu0 0
    %9783 = vmatpush1.bf16.msra.mxu0 %v9634
    %9784 = vmatprep.subr.bf16.mxu0 0
    %9785 = vmatpush1.bf16.msra.mxu0 %v9635
    %9786 = vmatprep.subr.bf16.mxu0 0
    %9787 = vmatpush1.bf16.msra.mxu0 %v9636
    %9788 = vmatprep.subr.bf16.mxu0 0
    %9789 = vmatpush1.bf16.msra.mxu0 %v9637
    %9790 = vmatprep.subr.bf16.mxu0 0
    %9791 = vmatpush1.bf16.msra.mxu0 %v9638
    %9792 = vmatprep.subr.bf16.mxu0 0
    %9793 = vmatpush1.bf16.msra.mxu0 %v9639
    %9794 = vmatprep.subr.bf16.mxu0 0
    %9795 = vmatpush1.bf16.msra.mxu0 %v9640
    %9796 = vmatprep.subr.bf16.mxu0 0
    %9797 = vmatpush1.bf16.msra.mxu0 %v9641
    %9798 = vmatprep.subr.bf16.mxu0 0
    %9799 = vmatpush1.bf16.msra.mxu0 %v9642
    %9800 = vmatprep.subr.bf16.mxu0 0
    %9801 = vmatpush1.bf16.msra.mxu0 %v9643
    %9802 = vmatprep.subr.bf16.mxu0 0
    %9803 = vmatpush1.bf16.msra.mxu0 %v9694
    %9804 = vmatprep.subr.bf16.mxu0 0
    %9805 = vmatpush1.bf16.msra.mxu0 0
    %9806 = vmatprep.subr.bf16.mxu0 0
    %9807 = vmatpush1.bf16.msra.mxu0 0
    %9808 = vmatprep.mubr.bf16.mxu0 %v9691
    %9809 = vmatmul.mubr.bf16.gmra.mrb[0].mxu0 %v9408
    %v9810 = vpop.f32.mrb[0].mxu0
    %v9811 = vadd.f32 %v9771, %v9810
    %v9812 = vpop.f32.mrb[0].mxu0
    %v9813 = vpop.f32.mrb[0].mxu0
    %v9814 = vpop.f32.mrb[0].mxu0
    %9815 = vdwg.mxu0
    %v9816 = vadd.f32 %v9310, %v9811
    %s9817 = scalar_lea.vmem [#allocation2], 5520
    %v9818 = vld [vmem:[%s9817] sm:$0xf]
    %v9819 = vld [vmem:[%s9817 + $0x4] sm:$0xf]
    %v9820 = vld [vmem:[%s9817 + $0x8] sm:$0xf]
    %v9821 = vld [vmem:[%s9817 + $0xc] sm:$0xf]
    %v9822 = vld [vmem:[%s9817 + $0x10] sm:$0xf]
    %v9823 = vld [vmem:[%s9817 + $0x14] sm:$0xf]
    %v9824 = vld [vmem:[%s9817 + $0x18] sm:$0xf]
    %v9825 = vld [vmem:[%s9817 + $0x1c] sm:$0xf]
    %v9826 = vld [vmem:[%s9817 + $0x20] sm:$0xf]
    %v9827 = vld [vmem:[%s9817 + $0x24] sm:$0xf]
    %v9828 = vld [vmem:[%s9817 + $0x28] sm:$0xf]
    %v9829 = vld [vmem:[%s9817 + $0x2c] sm:$0xf]
    %v9830 = vld [vmem:[%s9817 + $0x30] sm:$0xf]
    %v9831 = vld [vmem:[%s9817 + $0x34] sm:$0xf]
    %v9832 = vld [vmem:[%s9817 + $0x38] sm:$0xf]
    %v9833 = vld [vmem:[%s9817 + $0x3c] sm:$0xf]
    %v9834 = vld [vmem:[%s9817 + $0x40] sm:$0xf]
    %v9835 = vld [vmem:[%s9817 + $0x44] sm:$0xf]
    %v9836 = vld [vmem:[%s9817 + $0x48] sm:$0xf]
    %v9837 = vld [vmem:[%s9817 + $0x4c] sm:$0xf]
    %v9838 = vld [vmem:[%s9817 + $0x50] sm:$0xf]
    %v9839 = vld [vmem:[%s9817 + $0x54] sm:$0xf]
    %v9840 = vld [vmem:[%s9817 + $0x58] sm:$0xf]
    %v9841 = vld [vmem:[%s9817 + $0x5c] sm:$0xf]
    %v9842 = vld [vmem:[%s9817 + $0x60] sm:$0xf]
    %v9843 = vld [vmem:[%s9817 + $0x64] sm:$0xf]
    %v9844 = vld [vmem:[%s9817 + $0x68] sm:$0xf]
    %v9845 = vld [vmem:[%s9817 + $0x6c] sm:$0xf]
    %v9846 = vld [vmem:[%s9817 + $0x70] sm:$0xf]
    %v9847 = vld [vmem:[%s9817 + $0x74] sm:$0xf]
    %v9848 = vld [vmem:[%s9817 + $0x78] sm:$0xf]
    %v9849 = vld [vmem:[%s9817 + $0x7c] sm:$0xf]
    %v9850 = vld [vmem:[%s9817 + $0x80] sm:$0xf]
    %v9851 = vld [vmem:[%s9817 + $0x84] sm:$0xf]
    %v9852 = vld [vmem:[%s9817 + $0x88] sm:$0xf]
    %v9853 = vld [vmem:[%s9817 + $0x8c] sm:$0xf]
    %v9854 = vld [vmem:[%s9817 + $0x90] sm:$0xf]
    %v9855 = vld [vmem:[%s9817 + $0x94] sm:$0xf]
    %v9856 = vld [vmem:[%s9817 + $0x98] sm:$0xf]
    %v9857 = vld [vmem:[%s9817 + $0x9c] sm:$0xf]
    %v9858 = vld [vmem:[%s9817 + $0xa0] sm:$0xf]
    %v9859 = vld [vmem:[%s9817 + $0xa4] sm:$0xf]
    %v9860 = vld [vmem:[%s9817 + $0xa8] sm:$0xf]
    %v9861 = vld [vmem:[%s9817 + $0xac] sm:$0xf]
    %v9862 = vld [vmem:[%s9817 + $0xb0] sm:$0xf]
    %v9863 = vld [vmem:[%s9817 + $0xb4] sm:$0xf]
    %v9864 = vld [vmem:[%s9817 + $0xb8] sm:$0xf]
    %v9865 = vld [vmem:[%s9817 + $0xbc] sm:$0xf]
    %v9866 = vld [vmem:[%s9817 + $0xc0] sm:$0xf]
    %v9867 = vld [vmem:[%s9817 + $0xc4] sm:$0xf]
    %v9868 = vld [vmem:[%s9817 + $0xc8] sm:$0xf]
    %v9869 = vld [vmem:[%s9817 + $0xcc] sm:$0xf]
    %v9870 = vld [vmem:[%s9817 + $0xd0] sm:$0xf]
    %v9871 = vld [vmem:[%s9817 + $0xd4] sm:$0xf]
    %v9872 = vld [vmem:[%s9817 + $0xd8] sm:$0xf]
    %v9873 = vld [vmem:[%s9817 + $0xdc] sm:$0xf]
    %v9874 = vld [vmem:[%s9817 + $0xe0] sm:$0xf]
    %v9875 = vld [vmem:[%s9817 + $0xe4] sm:$0xf]
    %v9876 = vld [vmem:[%s9817 + $0xe8] sm:$0xf]
    %v9877 = vld [vmem:[%s9817 + $0xec] sm:$0xf]
    %v9878 = vld [vmem:[%s9817 + $0xf0] sm:$0xf]
    %v9879 = vld [vmem:[%s9817 + $0xf4] sm:$0xf]
    %v9880 = vld [vmem:[%s9817 + $0xf8] sm:$0xf]
    %v9881 = vld [vmem:[%s9817 + $0xfc] sm:$0xf]
    %v9882 = vld [vmem:[%s9817 + $0x100] sm:$0xf]
    %v9883 = vld [vmem:[%s9817 + $0x104] sm:$0xf]
    %v9884 = vld [vmem:[%s9817 + $0x108] sm:$0xf]
    %v9885 = vld [vmem:[%s9817 + $0x10c] sm:$0xf]
    %v9886 = vld [vmem:[%s9817 + $0x110] sm:$0xf]
    %v9887 = vld [vmem:[%s9817 + $0x114] sm:$0xf]
    %v9888 = vld [vmem:[%s9817 + $0x118] sm:$0xf]
    %v9889 = vld [vmem:[%s9817 + $0x11c] sm:$0xf]
    %v9890 = vld [vmem:[%s9817 + $0x120] sm:$0xf]
    %v9891 = vld [vmem:[%s9817 + $0x124] sm:$0xf]
    %v9892 = vld [vmem:[%s9817 + $0x128] sm:$0xf]
    %v9893 = vld [vmem:[%s9817 + $0x12c] sm:$0xf]
    %v9894 = vld [vmem:[%s9817 + $0x130] sm:$0xf]
    %v9895 = vld [vmem:[%s9817 + $0x134] sm:$0xf]
    %v9896 = vld [vmem:[%s9817 + $0x138] sm:$0xf]
    %v9897 = vld [vmem:[%s9817 + $0x13c] sm:$0xf]
    %v9898 = vld [vmem:[%s9817 + $0x140] sm:$0xf]
    %v9899 = vld [vmem:[%s9817 + $0x144] sm:$0xf]
    %v9900 = vld [vmem:[%s9817 + $0x148] sm:$0xf]
    %v9901 = vld [vmem:[%s9817 + $0x14c] sm:$0xf]
    %v9902 = vld [vmem:[%s9817 + $0x150] sm:$0xf]
    %v9903 = vld [vmem:[%s9817 + $0x154] sm:$0xf]
    %v9904 = vld [vmem:[%s9817 + $0x158] sm:$0xf]
    %v9905 = vld [vmem:[%s9817 + $0x15c] sm:$0xf]
    %v9906 = vld [vmem:[%s9817 + $0x160] sm:$0xf]
    %v9907 = vld [vmem:[%s9817 + $0x164] sm:$0xf]
    %v9908 = vld [vmem:[%s9817 + $0x168] sm:$0xf]
    %v9909 = vld [vmem:[%s9817 + $0x16c] sm:$0x3]
    %v9910 = vrot.slane %v2408, 7
    %v9911 = vrot.slane %v2411, 7
    %v9912 = vrot.slane %v2414, 7
    %v9913 = vrot.slane %v2417, 7
    %v9914 = vrot.slane %v2420, 7
    %v9915 = vrot.slane %v2423, 7
    %v10013 = vunpack.c.l.b16 %v9818
    %v10014 = vunpack.c.l.b16 %v9819
    %v10015 = vunpack.c.l.b16 %v9820
    %v10016 = vunpack.c.l.b16 %v9821
    %v10017 = vunpack.c.l.b16 %v9822
    %v10018 = vunpack.c.l.b16 %v9823
    %v10019 = vunpack.c.l.b16 %v9824
    %v10020 = vunpack.c.l.b16 %v9825
    %v10021 = vunpack.c.l.b16 %v9826
    %v10022 = vunpack.c.l.b16 %v9827
    %v10023 = vunpack.c.l.b16 %v9828
    %v10024 = vunpack.c.l.b16 %v9829
    %v10025 = vunpack.c.l.b16 %v9830
    %v10026 = vunpack.c.l.b16 %v9831
    %v10027 = vunpack.c.l.b16 %v9832
    %v10028 = vunpack.c.l.b16 %v9833
    %v10029 = vunpack.c.l.b16 %v9834
    %v10030 = vunpack.c.l.b16 %v9835
    %v10031 = vunpack.c.l.b16 %v9836
    %v10032 = vunpack.c.l.b16 %v9837
    %v10033 = vunpack.c.l.b16 %v9838
    %v10034 = vunpack.c.l.b16 %v9839
    %v10035 = vunpack.c.l.b16 %v9840
    %v10036 = vunpack.c.l.b16 %v9841
    %v10037 = vunpack.c.l.b16 %v9842
    %v10038 = vunpack.c.l.b16 %v9843
    %v10039 = vunpack.c.l.b16 %v9844
    %v10040 = vunpack.c.l.b16 %v9845
    %v10041 = vunpack.c.l.b16 %v9846
    %v10042 = vunpack.c.l.b16 %v9847
    %v10043 = vunpack.c.l.b16 %v9848
    %v10044 = vunpack.c.l.b16 %v9849
    %v10045 = vunpack.c.l.b16 %v9850
    %v10046 = vunpack.c.l.b16 %v9851
    %v10047 = vunpack.c.l.b16 %v9852
    %v10048 = vunpack.c.l.b16 %v9853
    %v10049 = vunpack.c.l.b16 %v9854
    %v10050 = vunpack.c.l.b16 %v9855
    %v10051 = vunpack.c.l.b16 %v9856
    %v10052 = vunpack.c.l.b16 %v9857
    %v10053 = vunpack.c.l.b16 %v9858
    %v10054 = vunpack.c.l.b16 %v9859
    %v10055 = vunpack.c.l.b16 %v9860
    %v10056 = vunpack.c.l.b16 %v9861
    %v10057 = vunpack.c.l.b16 %v9862
    %v10058 = vunpack.c.l.b16 %v9863
    %v10059 = vunpack.c.l.b16 %v9864
    %v10060 = vunpack.c.l.b16 %v9865
    %v10061 = vunpack.c.l.b16 %v9866
    %v10062 = vunpack.c.l.b16 %v9867
    %v10063 = vunpack.c.l.b16 %v9868
    %v10064 = vunpack.c.l.b16 %v9869
    %v10065 = vunpack.c.l.b16 %v9870
    %v10066 = vunpack.c.l.b16 %v9871
    %v10067 = vunpack.c.l.b16 %v9872
    %v10068 = vunpack.c.l.b16 %v9873
    %v10069 = vunpack.c.l.b16 %v9874
    %v10070 = vunpack.c.l.b16 %v9875
    %v10071 = vunpack.c.l.b16 %v9876
    %v10072 = vunpack.c.l.b16 %v9877
    %v10073 = vunpack.c.l.b16 %v9878
    %v10074 = vunpack.c.l.b16 %v9879
    %v10075 = vunpack.c.l.b16 %v9880
    %v10076 = vunpack.c.l.b16 %v9881
    %v10077 = vunpack.c.l.b16 %v9882
    %v10078 = vunpack.c.l.b16 %v9883
    %v10079 = vunpack.c.l.b16 %v9884
    %v10080 = vunpack.c.l.b16 %v9885
    %v10081 = vunpack.c.l.b16 %v9886
    %v10082 = vunpack.c.l.b16 %v9887
    %v10083 = vunpack.c.l.b16 %v9888
    %v10084 = vunpack.c.l.b16 %v9889
    %v10085 = vunpack.c.l.b16 %v9890
    %v10086 = vunpack.c.l.b16 %v9891
    %v10087 = vunpack.c.l.b16 %v9892
    %v10088 = vunpack.c.l.b16 %v9893
    %v10089 = vunpack.c.l.b16 %v9894
    %v10090 = vunpack.c.l.b16 %v9895
    %v10091 = vunpack.c.l.b16 %v9896
    %v10092 = vunpack.c.l.b16 %v9897
    %v10093 = vunpack.c.l.b16 %v9898
    %v10094 = vunpack.c.l.b16 %v9899
    %v10095 = vunpack.c.l.b16 %v9900
    %v10096 = vunpack.c.l.b16 %v9901
    %v10097 = vunpack.c.l.b16 %v9902
    %v10098 = vunpack.c.l.b16 %v9903
    %v10099 = vunpack.c.l.b16 %v9904
    %v10100 = vunpack.c.l.b16 %v9905
    %v10101 = vunpack.c.l.b16 %v9906
    %v10102 = vunpack.c.l.b16 %v9907
    %v10103 = vunpack.c.l.b16 %v9908
    %v10104 = vunpack.c.l.b16 %v9909
    %v10105 = vpack.c.b16 %v10014, %v10013
    %v10106 = vpack.c.b16 %v10016, %v10015
    %v10107 = vpack.c.b16 %v10018, %v10017
    %v10108 = vpack.c.b16 %v10020, %v10019
    %v10109 = vpack.c.b16 %v10022, %v10021
    %v10110 = vpack.c.b16 %v10024, %v10023
    %v10111 = vpack.c.b16 %v10026, %v10025
    %v10112 = vpack.c.b16 %v10028, %v10027
    %v10113 = vpack.c.b16 %v10030, %v10029
    %v10114 = vpack.c.b16 %v10032, %v10031
    %v10115 = vpack.c.b16 %v10034, %v10033
    %v10116 = vpack.c.b16 %v10036, %v10035
    %v10117 = vpack.c.b16 %v10038, %v10037
    %v10118 = vpack.c.b16 %v10040, %v10039
    %v10119 = vpack.c.b16 %v10042, %v10041
    %v10120 = vpack.c.b16 %v10044, %v10043
    %v10121 = vpack.c.b16 %v10046, %v10045
    %v10122 = vpack.c.b16 %v10048, %v10047
    %v10123 = vpack.c.b16 %v10050, %v10049
    %v10124 = vpack.c.b16 %v10052, %v10051
    %v10125 = vpack.c.b16 %v10054, %v10053
    %v10126 = vpack.c.b16 %v10056, %v10055
    %v10127 = vpack.c.b16 %v10058, %v10057
    %v10128 = vpack.c.b16 %v10060, %v10059
    %v10129 = vpack.c.b16 %v10062, %v10061
    %v10130 = vpack.c.b16 %v10064, %v10063
    %v10131 = vpack.c.b16 %v10066, %v10065
    %v10132 = vpack.c.b16 %v10068, %v10067
    %v10133 = vpack.c.b16 %v10070, %v10069
    %v10134 = vpack.c.b16 %v10072, %v10071
    %v10135 = vpack.c.b16 %v10074, %v10073
    %v10136 = vpack.c.b16 %v10076, %v10075
    %v10137 = vpack.c.b16 %v10078, %v10077
    %v10138 = vpack.c.b16 %v10080, %v10079
    %v10139 = vpack.c.b16 %v10082, %v10081
    %v10140 = vpack.c.b16 %v10084, %v10083
    %v10141 = vpack.c.b16 %v10086, %v10085
    %v10142 = vpack.c.b16 %v10088, %v10087
    %v10143 = vpack.c.b16 %v10090, %v10089
    %v10144 = vpack.c.b16 %v10092, %v10091
    %v10145 = vpack.c.b16 %v10094, %v10093
    %v10146 = vpack.c.b16 %v10096, %v10095
    %v10147 = vpack.c.b16 %v10098, %v10097
    %v10148 = vpack.c.b16 %v10100, %v10099
    %v10149 = vpack.c.b16 %v10102, %v10101
    %v10150 = vpack.c.b16 %v10104, %v10103
    %v10197 = vsel %vm2705, %v9915, 0
    %v10200 = vsel %vm2709, %v10150, 0
    %10202 = vmatprep.subr.bf16.mxu0 0
    %10203 = vmatpush1.bf16.msra.mxu0 %v10105
    %10204 = vmatprep.subr.bf16.mxu0 0
    %10205 = vmatpush1.bf16.msra.mxu0 %v10106
    %10206 = vmatprep.subr.bf16.mxu0 0
    %10207 = vmatpush1.bf16.msra.mxu0 %v10107
    %10208 = vmatprep.subr.bf16.mxu0 0
    %10209 = vmatpush1.bf16.msra.mxu0 %v10108
    %10210 = vmatprep.subr.bf16.mxu0 0
    %10211 = vmatpush1.bf16.msra.mxu0 %v10109
    %10212 = vmatprep.subr.bf16.mxu0 0
    %10213 = vmatpush1.bf16.msra.mxu0 %v10110
    %10214 = vmatprep.subr.bf16.mxu0 0
    %10215 = vmatpush1.bf16.msra.mxu0 %v10111
    %10216 = vmatprep.subr.bf16.mxu0 0
    %10217 = vmatpush1.bf16.msra.mxu0 %v10112
    %10218 = vmatprep.subr.bf16.mxu0 0
    %10219 = vmatpush1.bf16.msra.mxu0 %v10113
    %10220 = vmatprep.subr.bf16.mxu0 0
    %10221 = vmatpush1.bf16.msra.mxu0 %v10114
    %10222 = vmatprep.subr.bf16.mxu0 0
    %10223 = vmatpush1.bf16.msra.mxu0 %v10115
    %10224 = vmatprep.subr.bf16.mxu0 0
    %10225 = vmatpush1.bf16.msra.mxu0 %v10116
    %10226 = vmatprep.subr.bf16.mxu0 0
    %10227 = vmatpush1.bf16.msra.mxu0 %v10117
    %10228 = vmatprep.subr.bf16.mxu0 0
    %10229 = vmatpush1.bf16.msra.mxu0 %v10118
    %10230 = vmatprep.subr.bf16.mxu0 0
    %10231 = vmatpush1.bf16.msra.mxu0 %v10119
    %10232 = vmatprep.subr.bf16.mxu0 0
    %10233 = vmatpush1.bf16.msra.mxu0 %v10120
    %10234 = vmatprep.mubr.bf16.mxu0 %v9911
    %10235 = vmatmul.mubr.bf16.gmra.mrb[0].mxu0 %v9910
    %v10236 = vpop.f32.mrb[0].mxu0
    %v10237 = vadd.f32 0.0, %v10236
    %v10238 = vpop.f32.mrb[0].mxu0
    %v10239 = vpop.f32.mrb[0].mxu0
    %v10240 = vpop.f32.mrb[0].mxu0
    %10241 = vdwg.mxu0
    %10242 = vmatprep.subr.bf16.mxu0 0
    %10243 = vmatpush1.bf16.msra.mxu0 %v10121
    %10244 = vmatprep.subr.bf16.mxu0 0
    %10245 = vmatpush1.bf16.msra.mxu0 %v10122
    %10246 = vmatprep.subr.bf16.mxu0 0
    %10247 = vmatpush1.bf16.msra.mxu0 %v10123
    %10248 = vmatprep.subr.bf16.mxu0 0
    %10249 = vmatpush1.bf16.msra.mxu0 %v10124
    %10250 = vmatprep.subr.bf16.mxu0 0
    %10251 = vmatpush1.bf16.msra.mxu0 %v10125
    %10252 = vmatprep.subr.bf16.mxu0 0
    %10253 = vmatpush1.bf16.msra.mxu0 %v10126
    %10254 = vmatprep.subr.bf16.mxu0 0
    %10255 = vmatpush1.bf16.msra.mxu0 %v10127
    %10256 = vmatprep.subr.bf16.mxu0 0
    %10257 = vmatpush1.bf16.msra.mxu0 %v10128
    %10258 = vmatprep.subr.bf16.mxu0 0
    %10259 = vmatpush1.bf16.msra.mxu0 %v10129
    %10260 = vmatprep.subr.bf16.mxu0 0
    %10261 = vmatpush1.bf16.msra.mxu0 %v10130
    %10262 = vmatprep.subr.bf16.mxu0 0
    %10263 = vmatpush1.bf16.msra.mxu0 %v10131
    %10264 = vmatprep.subr.bf16.mxu0 0
    %10265 = vmatpush1.bf16.msra.mxu0 %v10132
    %10266 = vmatprep.subr.bf16.mxu0 0
    %10267 = vmatpush1.bf16.msra.mxu0 %v10133
    %10268 = vmatprep.subr.bf16.mxu0 0
    %10269 = vmatpush1.bf16.msra.mxu0 %v10134
    %10270 = vmatprep.subr.bf16.mxu0 0
    %10271 = vmatpush1.bf16.msra.mxu0 %v10135
    %10272 = vmatprep.subr.bf16.mxu0 0
    %10273 = vmatpush1.bf16.msra.mxu0 %v10136
    %10274 = vmatprep.mubr.bf16.mxu0 %v9913
    %10275 = vmatmul.mubr.bf16.gmra.mrb[0].mxu0 %v9912
    %v10276 = vpop.f32.mrb[0].mxu0
    %v10277 = vadd.f32 %v10237, %v10276
    %v10278 = vpop.f32.mrb[0].mxu0
    %v10279 = vpop.f32.mrb[0].mxu0
    %v10280 = vpop.f32.mrb[0].mxu0
    %10281 = vdwg.mxu0
    %10282 = vmatprep.subr.bf16.mxu0 0
    %10283 = vmatpush1.bf16.msra.mxu0 %v10137
    %10284 = vmatprep.subr.bf16.mxu0 0
    %10285 = vmatpush1.bf16.msra.mxu0 %v10138
    %10286 = vmatprep.subr.bf16.mxu0 0
    %10287 = vmatpush1.bf16.msra.mxu0 %v10139
    %10288 = vmatprep.subr.bf16.mxu0 0
    %10289 = vmatpush1.bf16.msra.mxu0 %v10140
    %10290 = vmatprep.subr.bf16.mxu0 0
    %10291 = vmatpush1.bf16.msra.mxu0 %v10141
    %10292 = vmatprep.subr.bf16.mxu0 0
    %10293 = vmatpush1.bf16.msra.mxu0 %v10142
    %10294 = vmatprep.subr.bf16.mxu0 0
    %10295 = vmatpush1.bf16.msra.mxu0 %v10143
    %10296 = vmatprep.subr.bf16.mxu0 0
    %10297 = vmatpush1.bf16.msra.mxu0 %v10144
    %10298 = vmatprep.subr.bf16.mxu0 0
    %10299 = vmatpush1.bf16.msra.mxu0 %v10145
    %10300 = vmatprep.subr.bf16.mxu0 0
    %10301 = vmatpush1.bf16.msra.mxu0 %v10146
    %10302 = vmatprep.subr.bf16.mxu0 0
    %10303 = vmatpush1.bf16.msra.mxu0 %v10147
    %10304 = vmatprep.subr.bf16.mxu0 0
    %10305 = vmatpush1.bf16.msra.mxu0 %v10148
    %10306 = vmatprep.subr.bf16.mxu0 0
    %10307 = vmatpush1.bf16.msra.mxu0 %v10149
    %10308 = vmatprep.subr.bf16.mxu0 0
    %10309 = vmatpush1.bf16.msra.mxu0 %v10200
    %10310 = vmatprep.subr.bf16.mxu0 0
    %10311 = vmatpush1.bf16.msra.mxu0 0
    %10312 = vmatprep.subr.bf16.mxu0 0
    %10313 = vmatpush1.bf16.msra.mxu0 0
    %10314 = vmatprep.mubr.bf16.mxu0 %v10197
    %10315 = vmatmul.mubr.bf16.gmra.mrb[0].mxu0 %v9914
    %v10316 = vpop.f32.mrb[0].mxu0
    %v10317 = vadd.f32 %v10277, %v10316
    %v10318 = vpop.f32.mrb[0].mxu0
    %v10319 = vpop.f32.mrb[0].mxu0
    %v10320 = vpop.f32.mrb[0].mxu0
    %10321 = vdwg.mxu0
    %v10322 = vadd.f32 %v9816, %v10317
    %v10323 = vld [vmem:[%s3] sm:$0x1]
    %v10324 = vadd.f32 %v10322, %v10323
    %v10325 = vmax.f32 %v10324, 0.0
    %v10326 = vld [vmem:[%s4] sm:$0x1]
    %v10327 = vmul.f32 %v10325, %v10326
    %vm10328 = vcmask 1040384
    %v10329 = vsel %vm10328, %v10327, 0.0
    %10330 = vadd.xlane.f32.xlu0 %v10329
    %v10331 = vpop.xlane.xlu0 %10330
    %s10332 = sld [smem:[#allocation4]]
    %v10333 = vstv %s10332
    %v10334 = vadd.f32 %v10331, %v10333
    %v10335 = vmax.f32 %v10334, 0.0
    %v10336 = vsub.f32 0.0, %v10335
    %v10337 = vmul.f32 %v10336, 1.442695
    %v10338 = vpow.pop %v10337
    %v10339 = vadd.f32 %v10338, 1.0
    %v10340 = vrcp.pop %v10339
    %v10341 = vmul.f32 1.0, %v10340
    %vm10342 = vcmask 0
    %10343 = vst.msk [vmem:[#allocation5] sm:$0x1] %vm10342, %v10341
    // Predicated region
    $region56: #{stan_forward.3} parent=1 // pred_check
      _
    $region57: #{stan_forward.3} parent=1 // pred_check_branch
      %10345 = sbr.rel (0) target = $region59
    $region58: #{stan_forward.3} parent=1 // pred_region
      %s10347 = ssub.s32 16, 16
      %10348 = vsyncadd [#allocation6], %s10347
      %s10350 = sshll.u32 [#allocation5], 4
      %s10351 = int_to_ptr.vmem [resolvable:$true] %s10350
      %10353 = dma.vmem_to_hbm [thread:$0]  %s10351, 16, %s6, [#allocation6]
    $region59: #{stan_forward.3} parent=1 // pred_fallthru
      _
    // Predicated region
    $region60: #{stan_forward.3} parent=1 // pred_check
      _
    $region61: #{stan_forward.3} parent=1 // pred_check_branch
      %10355 = sbr.rel (0) target = $region63
    $region62: #{stan_forward.3} parent=1 // pred_region
      %10356 = dma.done [#allocation6], 16
    $region63: #{stan_forward.3} parent=1 // pred_fallthru
      _
    %10357 = vsyncpa [#allocation6], 1
  %10358 = vsyncmov [#allocation3]
  %s10359 = vpop.sfrf %10358
  %p10360 = scmp.eq.s32.totalorder %s10359, 0
  %p10361 = pneg %p10360
  %10363 = shalt.err (%p10361)

</llo_original>
